<compile_context>
chip_gen: v5e
topology: v5e:2x2
jax: 0.10.0
libtpu: 0.0.40
codegen_flags: <defaults>
</compile_context>

<pallas_src>
import math
from functools import partial

import jax
import jax.numpy as jnp
from jax.experimental import pallas as pl
from jax.experimental.pallas import tpu as pltpu


# --------------------------- per-chip configuration ---------------------------

def _chip_defaults():
    try:
        info = pltpu.get_tpu_info()
        cap = int(getattr(info, "vmem_capacity_bytes", 128 * 1024 * 1024))
    except Exception:
        cap = 128 * 1024 * 1024
    if cap >= 100 * 1024 * 1024:          # v5e / v6e: 128 MiB VMEM
        return 512, 96 * 1024 * 1024
    return 256, 48 * 1024 * 1024          # v7x: 64 MiB VMEM


ROW_BLOCK, _VMEM_LIMIT = _chip_defaults()


def _cparams(semantics):
    return pltpu.CompilerParams(dimension_semantics=semantics,
                                vmem_limit_bytes=_VMEM_LIMIT)


def _probe_buffered():
    # Check once whether BlockSpec(pipeline_mode=pl.Buffered(1)) is supported.
    try:
        def _copy(x_ref, o_ref):
            o_ref[...] = x_ref[...]
        spec = pl.BlockSpec((8, 128), lambda i: (0, 0), pipeline_mode=pl.Buffered(1))
        out = pl.pallas_call(
            _copy,
            out_shape=jax.ShapeDtypeStruct((8, 128), jnp.float32),
            grid=(1,),
            in_specs=[spec],
            out_specs=pl.BlockSpec((8, 128), lambda i: (0, 0)),
        )(jnp.zeros((8, 128), jnp.float32))
        jax.block_until_ready(out)
        return True
    except Exception:
        return False


_BUFFERED_OK = _probe_buffered()


def _const_spec(shape):
    # Constant-index (grid-resident) block: weights / biases / LN params.
    imap = lambda *_: (0,) * len(shape)
    if _BUFFERED_OK:
        return pl.BlockSpec(shape, imap, pipeline_mode=pl.Buffered(1))
    return pl.BlockSpec(shape, imap)


def _row_block(M):
    if M <= ROW_BLOCK:
        if M >= 256 and M % 16 == 0:
            return M // 2, 2              # keep both TensorCores busy (v7x)
        return M, 1
    for tm in range(ROW_BLOCK, 7, -8):    # prefer a tile that divides M exactly
        if M % tm == 0:
            return tm, M // tm
    return ROW_BLOCK, pl.cdiv(M, ROW_BLOCK)


def _pick_time_tile(T, pref):
    if T <= pref:
        return T
    for tt in range(pref, 7, -8):
        if T % tt == 0:
            return tt
    return T    # TODO(synk): ragged T with no 8-multiple divisor falls back to full-T block


# ------------------------------ in-kernel math ------------------------------

def _gelu(x):
    # tanh-approx GELU: the heavy transcendental goes to the EUP slot instead of
    # loading the VALU; |diff| vs exact-erf GELU ~1e-3, below bf16 activation noise.
    c = math.sqrt(2.0 / math.pi)
    return 0.5 * x * (1.0 + jnp.tanh(c * (x + 0.044715 * x * x * x)))


def _ln(x, g, b, eps):
    mean = jnp.mean(x, axis=-1, keepdims=True)
    var = jnp.mean(jnp.square(x - mean), axis=-1, keepdims=True)
    return (x - mean) * jax.lax.rsqrt(var + eps) * g + b


# --------------------------------- kernels ----------------------------------

def _linear_kernel(x_ref, w_ref, o_ref, *, act):
    # y = act(x @ w)   (conv_bias=False feature convs)
    y = jnp.dot(x_ref[...], w_ref[...], preferred_element_type=jnp.float32)
    if act == 'gelu':
        y = _gelu(y)
    o_ref[...] = y.astype(o_ref.dtype)


def _linear_bias_kernel(x_ref, w_ref, b_ref, o_ref):
    # fused QKV projection: one lane-dense (tm, 3D) matmul + store
    y = jnp.dot(x_ref[...], w_ref[...], preferred_element_type=jnp.float32) + b_ref[...]
    o_ref[...] = y.astype(o_ref.dtype)


def _ln_linear_mask_kernel(x_ref, g_ref, bln_ref, w_ref, b_ref, m_ref, o_ref, *, eps):
    # y = (LN(x) @ w + b) * valid_mask     (feature-LN + post-extract proj +
    #                                        zeroing of padded frames, fused)
    x = _ln(x_ref[...].astype(jnp.float32), g_ref[...], bln_ref[...], eps)
    y = jnp.dot(x.astype(jnp.bfloat16), w_ref[...],
                preferred_element_type=jnp.float32) + b_ref[...]
    o_ref[...] = (y * m_ref[...]).astype(o_ref.dtype)


def _linear_res_ln_kernel(x_ref, w_ref, b_ref, res_ref, g_ref, bln_ref, o_ref, *, eps):
    # y = LN(res + x @ w + b)      (attention out-proj + residual + LN1)
    y = jnp.dot(x_ref[...], w_ref[...], preferred_element_type=jnp.float32) + b_ref[...]
    y = y + res_ref[...].astype(jnp.float32)
    o_ref[...] = _ln(y, g_ref[...], bln_ref[...], eps).astype(o_ref.dtype)


def _ffn_res_ln_kernel(x_ref, w1_ref, b1_ref, w2_ref, b2_ref, g_ref, bln_ref,
                       o_ref, *, eps):
    # y = LN(x + gelu(x @ w1 + b1) @ w2 + b2)
    x = x_ref[...]
    h = _gelu(jnp.dot(x, w1_ref[...], preferred_element_type=jnp.float32) + b1_ref[...])
    y = (jnp.dot(h.astype(jnp.bfloat16), w2_ref[...],
                 preferred_element_type=jnp.float32) + b2_ref[...]
         + x.astype(jnp.float32))
    o_ref[...] = _ln(y, g_ref[...], bln_ref[...], eps).astype(o_ref.dtype)


def _gn_stats_kernel(x_ref, sum_ref, ssq_ref):
    # pass 1 of GroupNorm (groups == C): per-(batch, channel) sum / sumsq over T tiles
    ti = pl.program_id(2)

    @pl.when(ti == 0)
    def _():
        sum_ref[...] = jnp.zeros_like(sum_ref)
        ssq_ref[...] = jnp.zeros_like(ssq_ref)

    x = x_ref[...].astype(jnp.float32)                     # (1, tt, cblk)
    sum_ref[...] += jnp.sum(x, axis=1, keepdims=True)
    ssq_ref[...] += jnp.sum(x * x, axis=1, keepdims=True)


def _gn_apply_kernel(x_ref, sum_ref, ssq_ref, g_ref, b_ref, o_ref, *, eps, inv_t):
    # pass 2: normalize + affine + GELU, tiled over T
    x = x_ref[...].astype(jnp.float32)
    mean = sum_ref[...] * inv_t
    var = ssq_ref[...] * inv_t - mean * mean
    y = (x - mean) * jax.lax.rsqrt(var + eps) * g_ref[...] + b_ref[...]
    o_ref[...] = _gelu(y).astype(o_ref.dtype)


def _pos_conv_res_ln_kernel(xpad_ref, w_ref, b_ref, res_ref, g_ref, bln_ref,
                            o_ref, *, K, eps):
    # positional conv (K shifted in-VMEM dots) + GELU + residual + LN, per batch
    T = res_ref.shape[1]
    acc = jnp.zeros((T, res_ref.shape[2]), jnp.float32)
    for k in range(K):                                     # K is a small static int
        acc = acc + jnp.dot(xpad_ref[0, k:k + T, :], w_ref[k],
                            preferred_element_type=jnp.float32)
    y = _gelu(acc + b_ref[...]) + res_ref[0].astype(jnp.float32)
    o_ref[0] = _ln(y, g_ref[...], bln_ref[...], eps).astype(o_ref.dtype)


def _flash_attn_kernel(q_ref, k_ref, v_ref, bias_ref, o_ref, m_sc, l_sc, acc_sc,
                       *, nheads):
    # flash-style online softmax; 1/sqrt(dh) is pre-folded into Wq.
    ki = pl.program_id(2)

    @pl.when(ki == 0)
    def _():
        m_sc[...] = jnp.full(m_sc.shape, -jnp.inf, m_sc.dtype)
        l_sc[...] = jnp.zeros_like(l_sc)
        acc_sc[...] = jnp.zeros_like(acc_sc)

    bias = bias_ref[0]                                     # (1, tk) key-padding bias
    D = q_ref.shape[-1]
    dh = D // nheads

    for h in range(nheads):
        sl = slice(h * dh, (h + 1) * dh)
        q = q_ref[0, :, sl]                                # bf16 (tq, dh)
        k = k_ref[0, :, sl]
        v = v_ref[0, :, sl]
        s = jax.lax.dot_general(q, k, (((1,), (1,)), ((), ())),
                                preferred_element_type=jnp.float32) + bias
        m_prev = m_sc[h]
        m_new = jnp.maximum(m_prev, jnp.max(s, axis=-1, keepdims=True))
        alpha = jnp.exp(m_prev - m_new)
        p = jnp.exp(s - m_new)
        l_sc[h] = alpha * l_sc[h] + jnp.sum(p, axis=-1, keepdims=True)
        acc_sc[h] = alpha * acc_sc[h] + jnp.dot(p.astype(jnp.bfloat16), v,
                                                preferred_element_type=jnp.float32)
        m_sc[h] = m_new

    @pl.when(ki == pl.num_programs(2) - 1)
    def _():
        # assemble one lane-dense (tq, D) block and store it in a single write
        outs = [acc_sc[h] / l_sc[h] for h in range(nheads)]
        o_ref[0] = jnp.concatenate(outs, axis=-1).astype(o_ref.dtype)


# ------------------------------ kernel wrappers ------------------------------

def linear_act(x, w, act=None):
    M, K = x.shape
    N = w.shape[1]
    tm, gm = _row_block(M)
    return pl.pallas_call(
        partial(_linear_kernel, act=act),
        out_shape=jax.ShapeDtypeStruct((M, N), jnp.bfloat16),
        grid=(gm,),
        in_specs=[pl.BlockSpec((tm, K), lambda i: (i, 0)),
                  _const_spec((K, N))],
        out_specs=pl.BlockSpec((tm, N), lambda i: (i, 0)),
        compiler_params=_cparams(("parallel",)),
    )(x, w)


def linear_bias(x, w, b):
    M, K = x.shape
    N = w.shape[1]
    tm, gm = _row_block(M)
    return pl.pallas_call(
        _linear_bias_kernel,
        out_shape=jax.ShapeDtypeStruct((M, N), jnp.bfloat16),
        grid=(gm,),
        in_specs=[pl.BlockSpec((tm, K), lambda i: (i, 0)),
                  _const_spec((K, N)),
                  _const_spec((1, N))],
        out_specs=pl.BlockSpec((tm, N), lambda i: (i, 0)),
        compiler_params=_cparams(("parallel",)),
    )(x, w, b.reshape(1, N))


def ln_linear_mask(x, g, bln, w, b, valid, eps=1e-5):
    M, K = x.shape
    N = w.shape[1]
    tm, gm = _row_block(M)
    return pl.pallas_call(
        partial(_ln_linear_mask_kernel, eps=eps),
        out_shape=jax.ShapeDtypeStruct((M, N), jnp.bfloat16),
        grid=(gm,),
        in_specs=[pl.BlockSpec((tm, K), lambda i: (i, 0)),
                  _const_spec((1, K)),
                  _const_spec((1, K)),
                  _const_spec((K, N)),
                  _const_spec((1, N)),
                  pl.BlockSpec((tm, 1), lambda i: (i, 0))],
        out_specs=pl.BlockSpec((tm, N), lambda i: (i, 0)),
        compiler_params=_cparams(("parallel",)),
    )(x, g.reshape(1, K), bln.reshape(1, K), w, b.reshape(1, N), valid)


def linear_res_ln(x, w, b, res, g, bln, eps=1e-5):
    M, K = x.shape
    N = w.shape[1]
    tm, gm = _row_block(M)
    return pl.pallas_call(
        partial(_linear_res_ln_kernel, eps=eps),
        out_shape=jax.ShapeDtypeStruct((M, N), jnp.bfloat16),
        grid=(gm,),
        in_specs=[pl.BlockSpec((tm, K), lambda i: (i, 0)),
                  _const_spec((K, N)),
                  _const_spec((1, N)),
                  pl.BlockSpec((tm, N), lambda i: (i, 0)),
                  _const_spec((1, N)),
                  _const_spec((1, N))],
        out_specs=pl.BlockSpec((tm, N), lambda i: (i, 0)),
        compiler_params=_cparams(("parallel",)),
    )(x, w, b.reshape(1, N), res, g.reshape(1, N), bln.reshape(1, N))


def ffn_res_ln(x, w1, b1, w2, b2, g, bln, eps=1e-5):
    M, D = x.shape
    F = w1.shape[1]
    tm, gm = _row_block(M)
    return pl.pallas_call(
        partial(_ffn_res_ln_kernel, eps=eps),
        out_shape=jax.ShapeDtypeStruct((M, D), jnp.bfloat16),
        grid=(gm,),
        in_specs=[pl.BlockSpec((tm, D), lambda i: (i, 0)),
                  _const_spec((D, F)),
                  _const_spec((1, F)),
                  _const_spec((F, D)),
                  _const_spec((1, D)),
                  _const_spec((1, D)),
                  _const_spec((1, D))],
        out_specs=pl.BlockSpec((tm, D), lambda i: (i, 0)),
        compiler_params=_cparams(("parallel",)),
    )(x, w1, b1.reshape(1, F), w2, b2.reshape(1, D), g.reshape(1, D), bln.reshape(1, D))


def group_norm_gelu(x, g, b, eps=1e-5):
    # GroupNorm with groups == C, two-pass and tiled over T (bounded VMEM).
    B, T, C = x.shape
    cblk = 128 if (C > 128 and C % 128 == 0) else C
    gc = C // cblk
    tt = _pick_time_tile(T, 512)
    gt = T // tt
    gC = g.reshape(1, 1, C)
    bC = b.reshape(1, 1, C)

    sums, ssqs = pl.pallas_call(
        _gn_stats_kernel,
        out_shape=(jax.ShapeDtypeStruct((B, 1, C), jnp.float32),
                   jax.ShapeDtypeStruct((B, 1, C), jnp.float32)),
        grid=(B, gc, gt),
        in_specs=[pl.BlockSpec((1, tt, cblk), lambda bi, ci, ti: (bi, ti, ci))],
        out_specs=(pl.BlockSpec((1, 1, cblk), lambda bi, ci, ti: (bi, 0, ci)),
                   pl.BlockSpec((1, 1, cblk), lambda bi, ci, ti: (bi, 0, ci))),
        compiler_params=_cparams(("parallel", "parallel", "arbitrary")),
    )(x)

    return pl.pallas_call(
        partial(_gn_apply_kernel, eps=eps, inv_t=1.0 / T),
        out_shape=jax.ShapeDtypeStruct((B, T, C), jnp.bfloat16),
        grid=(B, gt, gc),
        in_specs=[pl.BlockSpec((1, tt, cblk), lambda bi, ti, ci: (bi, ti, ci)),
                  pl.BlockSpec((1, 1, cblk), lambda bi, ti, ci: (bi, 0, ci)),
                  pl.BlockSpec((1, 1, cblk), lambda bi, ti, ci: (bi, 0, ci)),
                  pl.BlockSpec((1, 1, cblk), lambda bi, ti, ci: (0, 0, ci)),
                  pl.BlockSpec((1, 1, cblk), lambda bi, ti, ci: (0, 0, ci))],
        out_specs=pl.BlockSpec((1, tt, cblk), lambda bi, ti, ci: (bi, ti, ci)),
        compiler_params=_cparams(("parallel", "parallel", "parallel")),
    )(x, sums, ssqs, gC, bC)


def pos_conv_res_ln(x, w_kdd, b, g, bln, eps=1e-5):
    # x: (B, T, D) bf16 with padded frames already zeroed; w_kdd: (K, D, D) bf16
    # TODO(synk): real Hubert uses a weight-normed grouped conv (conv_pos=128,
    #             conv_pos_groups=16); modeled here as a dense K-tap conv, and
    #             the full-T block would need T tiling for very long sequences.
    B, T, D = x.shape
    K = w_kdd.shape[0]
    p = K // 2
    xpad = jnp.pad(x, ((0, 0), (p, p), (0, 0)))
    Tp = T + 2 * p
    return pl.pallas_call(
        partial(_pos_conv_res_ln_kernel, K=K, eps=eps),
        out_shape=jax.ShapeDtypeStruct((B, T, D), jnp.bfloat16),
        grid=(B,),
        in_specs=[pl.BlockSpec((1, Tp, D), lambda bi: (bi, 0, 0)),
                  _const_spec((K, D, D)),
                  _const_spec((1, D)),
                  pl.BlockSpec((1, T, D), lambda bi: (bi, 0, 0)),
                  _const_spec((1, D)),
                  _const_spec((1, D))],
        out_specs=pl.BlockSpec((1, T, D), lambda bi: (bi, 0, 0)),
        compiler_params=_cparams(("parallel",)),
    )(xpad, w_kdd, b.reshape(1, D), x, g.reshape(1, D), bln.reshape(1, D))


def flash_attention(qkv, key_bias, nheads):
    # qkv: (B, T, 3D) bf16 (scale pre-folded into Wq); key_bias: (B, 1, T) fp32.
    B, T, D3 = qkv.shape
    D = D3 // 3
    dh = D // nheads
    tq = _pick_time_tile(T, 256)
    tk = _pick_time_tile(T, 128)
    gq, gk = T // tq, T // tk
    return pl.pallas_call(
        partial(_flash_attn_kernel, nheads=nheads),
        out_shape=jax.ShapeDtypeStruct((B, T, D), jnp.bfloat16),
        grid=(B, gq, gk),
        in_specs=[pl.BlockSpec((1, tq, D), lambda b, qi, ki: (b, qi, 0)),   # q cols
                  pl.BlockSpec((1, tk, D), lambda b, qi, ki: (b, ki, 1)),   # k cols
                  pl.BlockSpec((1, tk, D), lambda b, qi, ki: (b, ki, 2)),   # v cols
                  pl.BlockSpec((1, 1, tk), lambda b, qi, ki: (b, 0, ki))],
        out_specs=pl.BlockSpec((1, tq, D), lambda b, qi, ki: (b, qi, 0)),
        scratch_shapes=[pltpu.VMEM((nheads, tq, 1), jnp.float32),
                        pltpu.VMEM((nheads, tq, 1), jnp.float32),
                        pltpu.VMEM((nheads, tq, dh), jnp.float32)],
        compiler_params=_cparams(("parallel", "parallel", "arbitrary")),
    )(qkv, qkv, qkv, key_bias)


# --------------------------- conv (im2col) helpers ---------------------------

def _im2col_patches(x, K, stride):
    """x: (B, T, Cin) -> (B, T_out, G*stride*Cin); G = ceil(K/stride) shifted copies."""
    B, T, Cin = x.shape
    T_out = (T - K) // stride + 1
    G = (K - 1) // stride + 1
    T_need = (T_out + G - 1) * stride
    if T_need > T:
        x = jnp.pad(x, ((0, 0), (0, T_need - T), (0, 0)))
    xg = x[:, :T_need, :].reshape(B, T_out + G - 1, stride * Cin)
    cols = [xg[:, g:g + T_out, :] for g in range(G)]
    patches = jnp.concatenate(cols, axis=-1) if G > 1 else cols[0]
    return patches, T_out, G


def _conv_weight_matrix(w, stride, G):
    """w: (Cout, Cin, K) -> (G*stride*Cin, Cout) matching _im2col_patches layout."""
    Cout, Cin, K = w.shape
    wt = jnp.transpose(w, (2, 1, 0))                       # (K, Cin, Cout)
    wt = jnp.pad(wt, ((0, G * stride - K), (0, 0), (0, 0)))
    return wt.reshape(G * stride * Cin, Cout)


def conv1d(x, w_mat, K, stride, act=None):
    # TODO(synk): im2col windows are still formed in plain JAX (G <= 2 shifted
    #             copies); an in-kernel halo DMA (pl.ANY + make_async_copy)
    #             would reach 1x HBM traffic for the feature convs.
    B = x.shape[0]
    Cout = w_mat.shape[1]
    patches, T_out, _ = _im2col_patches(x, K, stride)
    y = linear_act(patches.reshape(B * T_out, -1).astype(jnp.bfloat16), w_mat, act=act)
    return y.reshape(B, T_out, Cout)


# ------------------------------- model blocks --------------------------------

def encoder_layer(x, key_bias, p):
    # fairseq wav2vec2 TransformerSentenceEncoderLayer (post-LN)
    B, T, D = x.shape
    xf = x.reshape(B * T, D)
    qkv = linear_bias(xf, p['wqkv'], p['bqkv'])                    # (M, 3D) bf16
    attn = flash_attention(qkv.reshape(B, T, 3 * D), key_bias, p['num_heads'])
    x1 = linear_res_ln(attn.reshape(B * T, D), p['wo'], p['bo'], xf,
                       p['ln1_g'], p['ln1_b'])
    x2 = ffn_res_ln(x1, p['w1'], p['b1'], p['w2'], p['b2'],
                    p['ln2_g'], p['ln2_b'])
    return x2.reshape(B, T, D)


def hubert_forward(params, inp):
    """inp: (B, L, 2); channel 0: valid indicator (0 = pad), channel 1: waveform."""
    long_mask = (inp[:, :, 0] == 0)          # torch: input.narrow(2,0,1).squeeze(2).eq(0)
    source = inp[:, :, 1]                    # (B, L)

    # ---- conv feature extractor (GroupNorm+GELU on first layer, GELU after rest) ----
    x = source.astype(jnp.bfloat16)[:, :, None]            # (B, L, 1) channels-last
    for i, (w_mat, K, stride) in enumerate(params['convs']):
        x = conv1d(x, w_mat, K, stride, act=None if i == 0 else 'gelu')
        if i == 0:
            x = group_norm_gelu(x, params['gn_g'], params['gn_b'])
    B, T, Cc = x.shape

    # ---- downsample padding mask to feature rate (fairseq forward_padding_mask) ----
    L = long_mask.shape[1]
    extra = L % T
    pm = long_mask[:, :L - extra] if extra > 0 else long_mask
    pad_mask = jnp.all(pm.reshape(B, T, -1), axis=-1)       # (B, T) True = padded

    # ---- feature LN + post-extract projection + zeroing of padded frames (fused) ----
    valid = jnp.where(pad_mask, 0.0, 1.0).astype(jnp.float32).reshape(B * T, 1)
    D = params['proj_w'].shape[1]
    x = ln_linear_mask(x.reshape(B * T, Cc), params['feat_ln_g'], params['feat_ln_b'],
                       params['proj_w'], params['proj_b'], valid).reshape(B, T, D)
    # (dropout_input is identity in eval; mask=False -> no SpecAugment)

    # ---- encoder: positional conv + GELU + residual + LN (one kernel) ----
    x = pos_conv_res_ln(x, params['pos_conv_w'], params['pos_conv_b'],
                        params['enc_ln_g'], params['enc_ln_b'])

    # ---- transformer layers ----
    key_bias = jnp.where(pad_mask, jnp.float32(-1e30),
                         jnp.float32(0.0)).reshape(B, 1, T)
    for lp in params['layers']:
        x = encoder_layer(x, key_bias, lp)

    context = jnp.transpose(x.astype(jnp.float32), (1, 0, 2))       # (T, B, D)
    dec_attn_mask = pad_mask.astype(jnp.uint8)                      # .byte()
    return {
        'source': source,
        'context': context,
        'src_mask': dec_attn_mask,
        'src': dec_attn_mask,
        'pos_emb': None,
        'wav2vec_context': context,
        'wav2vec_padding_mask': dec_attn_mask,
        'enc_pred_lang': None,
        'input_noise': None,     # vat_step == 0 -> r is None
    }


# ------------------------------ parameter init -------------------------------
# In a real integration the PyTorch checkpoint would be converted once into this
# kernel-ready form (bf16 weights, fused QKV, pre-built conv weight matrices).

def init_params(key, conv_cfg, D, H, F, n_layers):
    keys = iter(jax.random.split(key, 256))

    def nrm(shape, scale=0.02):
        return scale * jax.random.normal(next(keys), shape, dtype=jnp.float32)

    dh = D // H
    qk_scale = 1.0 / math.sqrt(dh)

    convs = []
    cin = 1
    for (cout, k, s) in conv_cfg:
        w = nrm((cout, cin, k), 0.1)                       # conv_bias=False
        G = (k - 1) // s + 1
        convs.append((_conv_weight_matrix(w, s, G).astype(jnp.bfloat16), k, s))
        cin = cout

    pos_k = 3                                              # conv_pos=3 (odd -> SamePad no-op)
    pos_w = nrm((D, D, pos_k), 0.05)                       # (Cout, Cin, K)
    pos_w_kdd = jnp.transpose(pos_w, (2, 1, 0)).astype(jnp.bfloat16)   # (K, Cin, Cout)

    params = {
        'convs': convs,
        'gn_g': jnp.ones((conv_cfg[0][0],), jnp.float32),
        'gn_b': jnp.zeros((conv_cfg[0][0],), jnp.float32),
        'feat_ln_g': jnp.ones((cin,), jnp.float32),
        'feat_ln_b': jnp.zeros((cin,), jnp.float32),
        'proj_w': nrm((cin, D)).astype(jnp.bfloat16),
        'proj_b': jnp.zeros((D,), jnp.float32),
        'pos_conv_w': pos_w_kdd,
        'pos_conv_b': jnp.zeros((D,), jnp.float32),
        'enc_ln_g': jnp.ones((D,), jnp.float32),
        'enc_ln_b': jnp.zeros((D,), jnp.float32),
        'layers': [],
    }
    for _ in range(n_layers):
        wq, wk, wv = nrm((D, D)), nrm((D, D)), nrm((D, D))
        bq, bk, bv = (jnp.zeros((D,), jnp.float32),) * 3
        # fold 1/sqrt(dh) into Wq/bq; fuse Q/K/V into one (D, 3D) weight
        wqkv = jnp.concatenate([wq * qk_scale, wk, wv], axis=1).astype(jnp.bfloat16)
        bqkv = jnp.concatenate([bq * qk_scale, bk, bv], axis=0)
        params['layers'].append({
            'num_heads': H,
            'wqkv': wqkv, 'bqkv': bqkv,
            'wo': nrm((D, D)).astype(jnp.bfloat16), 'bo': jnp.zeros((D,), jnp.float32),
            'ln1_g': jnp.ones((D,), jnp.float32), 'ln1_b': jnp.zeros((D,), jnp.float32),
            'w1': nrm((D, F)).astype(jnp.bfloat16), 'b1': jnp.zeros((F,), jnp.float32),
            'w2': nrm((F, D)).astype(jnp.bfloat16), 'b2': jnp.zeros((D,), jnp.float32),
            'ln2_g': jnp.ones((D,), jnp.float32), 'ln2_b': jnp.zeros((D,), jnp.float32),
        })
    return params


# ----------------------------------- main ------------------------------------

if __name__ == "__main__":
    key = jax.random.PRNGKey(0)
    k_in, k_par = jax.random.split(key)

    # Small synthetic config (cfg.encoder_embed_dim = model_size = 128).
    B, L = 2, 320
    conv_cfg = [(16, 10, 5), (16, 3, 2), (16, 2, 2)]   # -> T = 15 feature frames
    D, H, F, NL = 128, 4, 256, 2

    params = init_params(k_par, conv_cfg, D, H, F, NL)

    # Input per the module docstring: [batch_size, sequence_length, 2]
    #   channel 0: non-zero for valid samples, 0 for padding; channel 1: waveform
    wave = 0.1 * jax.random.normal(k_in, (B, L), dtype=jnp.float32)
    valid = jnp.ones((B, L), jnp.float32)
    pad_len = 60
    valid = valid.at[1, L - pad_len:].set(0.0)
    wave = wave * valid
    inp = jnp.stack([valid, wave], axis=-1)            # (B, L, 2)

    fwd = jax.jit(lambda t: hubert_forward(params, t))
    out = fwd(inp)
    jax.block_until_ready(out['context'])

    assert out['context'].shape[1] == B and out['context'].shape[2] == D
    assert out['src_mask'].shape == (B, out['context'].shape[0])
    assert out['src_mask'].dtype == jnp.uint8
    assert bool(jnp.all(jnp.isfinite(out['context'][:, 0, :])))
    print("KERNEL_OK")
</pallas_src>

<mosaic_0001>
module attributes {stable_mosaic.version = 11 : i64} {
  func.func @_copy(%arg0: i32, %arg1: memref<8x128xf32, #tpu.memory_space<vmem>>, %arg2: memref<8x128xf32, #tpu.memory_space<vmem>>) attributes {dimension_semantics = [#tpu.dimension_semantics<arbitrary>], iteration_bounds = array<i64: 1>, scalar_prefetch = 0 : i64, scratch_operands = 0 : i64, tpu.core_type = #tpu.core_type<tc>, window_params = [{pipeline_mode = #tpu.pipeline_mode<synchronous>, transform_indices = @transform_0, window_bounds = array<i64: 8, 128>}, {pipeline_mode = #tpu.pipeline_mode<synchronous>, transform_indices = @transform_1, window_bounds = array<i64: 8, 128>}]} {
    %c0 = arith.constant 0 : index
    %c0_0 = arith.constant 0 : index
    %0 = vector.load %arg1[%c0, %c0_0] : memref<8x128xf32, #tpu.memory_space<vmem>>, vector<8x128xf32>
    %c0_1 = arith.constant 0 : index
    %c0_2 = arith.constant 0 : index
    %1 = vector.load %arg2[%c0_1, %c0_2] : memref<8x128xf32, #tpu.memory_space<vmem>>, vector<8x128xf32>
    tpu.vector_store %arg2[%c0_1, %c0_2], %0 {strides = array<i32>} : memref<8x128xf32, #tpu.memory_space<vmem>>, vector<8x128xf32>,
    return
  }
  func.func @transform_0(%arg0: i32) -> (i32, i32) {
    %c0_i32 = arith.constant 0 : i32
    %c0_i32_0 = arith.constant 0 : i32
    %c0_i32_1 = arith.constant 0 : i32
    return %c0_i32, %c0_i32_0 : i32, i32
  }
  func.func @transform_1(%arg0: i32) -> (i32, i32) {
    %c0_i32 = arith.constant 0 : i32
    %c0_i32_0 = arith.constant 0 : i32
    %c0_i32_1 = arith.constant 0 : i32
    return %c0_i32, %c0_i32_0 : i32, i32
  }
}

module attributes {stable_mosaic.version = 11 : i64} {
  func.func @_linear_kernel(%arg0: i32, %arg1: memref<126x10xbf16, #tpu.memory_space<vmem>>, %arg2: memref<10x16xbf16, #tpu.memory_space<vmem>>, %arg3: memref<126x16xbf16, #tpu.memory_space<vmem>>) attributes {dimension_semantics = [#tpu.dimension_semantics<parallel>], iteration_bounds = array<i64: 1>, scalar_prefetch = 0 : i64, scratch_operands = 0 : i64, tpu.core_type = #tpu.core_type<tc>, window_params = [{transform_indices = @transform_0, window_bounds = array<i64: 126, 10>}, {pipeline_mode = #tpu.pipeline_mode<synchronous>, transform_indices = @transform_1, window_bounds = array<i64: 10, 16>}, {transform_indices = @transform_2, window_bounds = array<i64: 126, 16>}]} {
    %c0 = arith.constant 0 : index
    %c0_0 = arith.constant 0 : index
    %0 = vector.load %arg1[%c0, %c0_0] : memref<126x10xbf16, #tpu.memory_space<vmem>>, vector<126x10xbf16>
    %c0_1 = arith.constant 0 : index
    %c0_2 = arith.constant 0 : index
    %1 = vector.load %arg2[%c0_1, %c0_2] : memref<10x16xbf16, #tpu.memory_space<vmem>>, vector<10x16xbf16>
    %cst = arith.constant dense<0.000000e+00> : vector<126x16xf32>
    %2 = tpu.matmul %0, %1, %cst {dimension_numbers = #tpu.dot_dimension_numbers<[1], [0], [0], [1], [0, 0, 1, 1], [], []>} : vector<126x10xbf16>, vector<10x16xbf16>, vector<126x16xf32> -> vector<126x16xf32>
    %3 = arith.truncf %2 : vector<126x16xf32> to vector<126x16xbf16>
    %c0_3 = arith.constant 0 : index
    %c0_4 = arith.constant 0 : index
    %4 = vector.load %arg3[%c0_3, %c0_4] : memref<126x16xbf16, #tpu.memory_space<vmem>>, vector<126x16xbf16>
    tpu.vector_store %arg3[%c0_3, %c0_4], %3 {strides = array<i32>} : memref<126x16xbf16, #tpu.memory_space<vmem>>, vector<126x16xbf16>,
    return
  }
  func.func @transform_0(%arg0: i32) -> (i32, i32) {
    %c0_i32 = arith.constant 0 : i32
    %c0_i32_0 = arith.constant 0 : i32
    return %arg0, %c0_i32 : i32, i32
  }
  func.func @transform_1(%arg0: i32) -> (i32, i32) {
    %c0_i32 = arith.constant 0 : i32
    %c0_i32_0 = arith.constant 0 : i32
    %c0_i32_1 = arith.constant 0 : i32
    return %c0_i32, %c0_i32_0 : i32, i32
  }
  func.func @transform_2(%arg0: i32) -> (i32, i32) {
    %c0_i32 = arith.constant 0 : i32
    %c0_i32_0 = arith.constant 0 : i32
    return %arg0, %c0_i32 : i32, i32
  }
}

module attributes {stable_mosaic.version = 11 : i64} {
  func.func @_gn_stats_kernel(%arg0: i32, %arg1: i32, %arg2: i32, %arg3: memref<1x63x16xbf16, #tpu.memory_space<vmem>>, %arg4: memref<1x1x16xf32, #tpu.memory_space<vmem>>, %arg5: memref<1x1x16xf32, #tpu.memory_space<vmem>>) attributes {dimension_semantics = [#tpu.dimension_semantics<parallel>, #tpu.dimension_semantics<parallel>, #tpu.dimension_semantics<arbitrary>], iteration_bounds = array<i64: 2, 1, 1>, scalar_prefetch = 0 : i64, scratch_operands = 0 : i64, tpu.core_type = #tpu.core_type<tc>, window_params = [{transform_indices = @transform_0, window_bounds = array<i64: 1, 63, 16>}, {transform_indices = @transform_1, window_bounds = array<i64: 1, 1, 16>}, {transform_indices = @transform_2, window_bounds = array<i64: 1, 1, 16>}]} {
    %c0_i32 = arith.constant 0 : i32
    %0 = arith.cmpi eq, %arg2, %c0_i32 : i32
    %1 = arith.extui %0 : i1 to i32
    %c0_i32_0 = arith.constant 0 : i32
    %2 = arith.cmpi ne, %1, %c0_i32_0 : i32
    scf.if %2 {
      %cst_16 = arith.constant 0.000000e+00 : f32
      %16 = vector.broadcast %cst_16 : f32 to vector<1x1x16xf32>
      %c0_17 = arith.constant 0 : index
      %c0_18 = arith.constant 0 : index
      %c0_19 = arith.constant 0 : index
      %17 = vector.load %arg4[%c0_17, %c0_18, %c0_19] : memref<1x1x16xf32, #tpu.memory_space<vmem>>, vector<1x1x16xf32>
      tpu.vector_store %arg4[%c0_17, %c0_18, %c0_19], %16 {strides = array<i32>} : memref<1x1x16xf32, #tpu.memory_space<vmem>>, vector<1x1x16xf32>,
      %cst_20 = arith.constant 0.000000e+00 : f32
      %18 = vector.broadcast %cst_20 : f32 to vector<1x1x16xf32>
      %c0_21 = arith.constant 0 : index
      %c0_22 = arith.constant 0 : index
      %c0_23 = arith.constant 0 : index
      %19 = vector.load %arg5[%c0_21, %c0_22, %c0_23] : memref<1x1x16xf32, #tpu.memory_space<vmem>>, vector<1x1x16xf32>
      tpu.vector_store %arg5[%c0_21, %c0_22, %c0_23], %18 {strides = array<i32>} : memref<1x1x16xf32, #tpu.memory_space<vmem>>, vector<1x1x16xf32>,
    } else {
    }
    %c0 = arith.constant 0 : index
    %c0_1 = arith.constant 0 : index
    %c0_2 = arith.constant 0 : index
    %3 = vector.load %arg3[%c0, %c0_1, %c0_2] : memref<1x63x16xbf16, #tpu.memory_space<vmem>>, vector<1x63x16xbf16>
    %4 = arith.extf %3 : vector<1x63x16xbf16> to vector<1x63x16xf32>
    %c0_3 = arith.constant 0 : index
    %c0_4 = arith.constant 0 : index
    %c0_5 = arith.constant 0 : index
    %5 = vector.load %arg4[%c0_3, %c0_4, %c0_5] : memref<1x1x16xf32, #tpu.memory_space<vmem>>, vector<1x1x16xf32>
    %cst = arith.constant dense<0.000000e+00> : vector<1x16xf32>
    %6 = vector.multi_reduction <add>, %4, %cst [1] : vector<1x63x16xf32> to vector<1x16xf32>
    %7 = vector.shape_cast %6 : vector<1x16xf32> to vector<1x1x16xf32>
    %8 = arith.addf %5, %7 : vector<1x1x16xf32>
    %c0_6 = arith.constant 0 : index
    %c0_7 = arith.constant 0 : index
    %c0_8 = arith.constant 0 : index
    %9 = vector.load %arg4[%c0_6, %c0_7, %c0_8] : memref<1x1x16xf32, #tpu.memory_space<vmem>>, vector<1x1x16xf32>
    tpu.vector_store %arg4[%c0_6, %c0_7, %c0_8], %8 {strides = array<i32>} : memref<1x1x16xf32, #tpu.memory_space<vmem>>, vector<1x1x16xf32>,
    %c0_9 = arith.constant 0 : index
    %c0_10 = arith.constant 0 : index
    %c0_11 = arith.constant 0 : index
    %10 = vector.load %arg5[%c0_9, %c0_10, %c0_11] : memref<1x1x16xf32, #tpu.memory_space<vmem>>, vector<1x1x16xf32>
    %11 = arith.mulf %4, %4 : vector<1x63x16xf32>
    %cst_12 = arith.constant dense<0.000000e+00> : vector<1x16xf32>
    %12 = vector.multi_reduction <add>, %11, %cst_12 [1] : vector<1x63x16xf32> to vector<1x16xf32>
    %13 = vector.shape_cast %12 : vector<1x16xf32> to vector<1x1x16xf32>
    %14 = arith.addf %10, %13 : vector<1x1x16xf32>
    %c0_13 = arith.constant 0 : index
    %c0_14 = arith.constant 0 : index
    %c0_15 = arith.constant 0 : index
    %15 = vector.load %arg5[%c0_13, %c0_14, %c0_15] : memref<1x1x16xf32, #tpu.memory_space<vmem>>, vector<1x1x16xf32>
    tpu.vector_store %arg5[%c0_13, %c0_14, %c0_15], %14 {strides = array<i32>} : memref<1x1x16xf32, #tpu.memory_space<vmem>>, vector<1x1x16xf32>,
    return
  }
  func.func @transform_0(%arg0: i32, %arg1: i32, %arg2: i32) -> (i32, i32, i32) {
    %c0_i32 = arith.constant 0 : i32
    return %arg0, %arg2, %arg1 : i32, i32, i32
  }
  func.func @transform_1(%arg0: i32, %arg1: i32, %arg2: i32) -> (i32, i32, i32) {
    %c0_i32 = arith.constant 0 : i32
    %c0_i32_0 = arith.constant 0 : i32
    return %arg0, %c0_i32, %arg1 : i32, i32, i32
  }
  func.func @transform_2(%arg0: i32, %arg1: i32, %arg2: i32) -> (i32, i32, i32) {
    %c0_i32 = arith.constant 0 : i32
    %c0_i32_0 = arith.constant 0 : i32
    return %arg0, %c0_i32, %arg1 : i32, i32, i32
  }
}

module attributes {stable_mosaic.version = 11 : i64} {
  func.func @_gn_apply_kernel(%arg0: i32, %arg1: i32, %arg2: i32, %arg3: memref<1x63x16xbf16, #tpu.memory_space<vmem>>, %arg4: memref<1x1x16xf32, #tpu.memory_space<vmem>>, %arg5: memref<1x1x16xf32, #tpu.memory_space<vmem>>, %arg6: memref<1x1x16xf32, #tpu.memory_space<vmem>>, %arg7: memref<1x1x16xf32, #tpu.memory_space<vmem>>, %arg8: memref<1x63x16xbf16, #tpu.memory_space<vmem>>) attributes {dimension_semantics = [#tpu.dimension_semantics<parallel>, #tpu.dimension_semantics<parallel>, #tpu.dimension_semantics<parallel>], iteration_bounds = array<i64: 2, 1, 1>, scalar_prefetch = 0 : i64, scratch_operands = 0 : i64, tpu.core_type = #tpu.core_type<tc>, window_params = [{transform_indices = @transform_0, window_bounds = array<i64: 1, 63, 16>}, {transform_indices = @transform_1, window_bounds = array<i64: 1, 1, 16>}, {transform_indices = @transform_2, window_bounds = array<i64: 1, 1, 16>}, {transform_indices = @transform_3, window_bounds = array<i64: 1, 1, 16>}, {transform_indices = @transform_4, window_bounds = array<i64: 1, 1, 16>}, {transform_indices = @transform_5, window_bounds = array<i64: 1, 63, 16>}]} {
    %c0 = arith.constant 0 : index
    %c0_0 = arith.constant 0 : index
    %c0_1 = arith.constant 0 : index
    %0 = vector.load %arg3[%c0, %c0_0, %c0_1] : memref<1x63x16xbf16, #tpu.memory_space<vmem>>, vector<1x63x16xbf16>
    %1 = arith.extf %0 : vector<1x63x16xbf16> to vector<1x63x16xf32>
    %c0_2 = arith.constant 0 : index
    %c0_3 = arith.constant 0 : index
    %c0_4 = arith.constant 0 : index
    %2 = vector.load %arg4[%c0_2, %c0_3, %c0_4] : memref<1x1x16xf32, #tpu.memory_space<vmem>>, vector<1x1x16xf32>
    %cst = arith.constant 0.0158730168 : f32
    %3 = vector.broadcast %cst : f32 to vector<1x1x16xf32>
    %4 = arith.mulf %2, %3 : vector<1x1x16xf32>
    %c0_5 = arith.constant 0 : index
    %c0_6 = arith.constant 0 : index
    %c0_7 = arith.constant 0 : index
    %5 = vector.load %arg5[%c0_5, %c0_6, %c0_7] : memref<1x1x16xf32, #tpu.memory_space<vmem>>, vector<1x1x16xf32>
    %cst_8 = arith.constant 0.0158730168 : f32
    %6 = vector.broadcast %cst_8 : f32 to vector<1x1x16xf32>
    %7 = arith.mulf %5, %6 : vector<1x1x16xf32>
    %8 = arith.mulf %4, %4 : vector<1x1x16xf32>
    %9 = arith.subf %7, %8 : vector<1x1x16xf32>
    %10 = vector.broadcast %4 : vector<1x1x16xf32> to vector<1x63x16xf32>
    %11 = arith.subf %1, %10 : vector<1x63x16xf32>
    %cst_9 = arith.constant 9.99999974E-6 : f32
    %12 = vector.broadcast %cst_9 : f32 to vector<1x1x16xf32>
    %13 = arith.addf %9, %12 : vector<1x1x16xf32>
    %14 = math.rsqrt %13 : vector<1x1x16xf32>
    %15 = vector.broadcast %14 : vector<1x1x16xf32> to vector<1x63x16xf32>
    %16 = arith.mulf %11, %15 : vector<1x63x16xf32>
    %c0_10 = arith.constant 0 : index
    %c0_11 = arith.constant 0 : index
    %c0_12 = arith.constant 0 : index
    %17 = vector.load %arg6[%c0_10, %c0_11, %c0_12] : memref<1x1x16xf32, #tpu.memory_space<vmem>>, vector<1x1x16xf32>
    %18 = vector.broadcast %17 : vector<1x1x16xf32> to vector<1x63x16xf32>
    %19 = arith.mulf %16, %18 : vector<1x63x16xf32>
    %c0_13 = arith.constant 0 : index
    %c0_14 = arith.constant 0 : index
    %c0_15 = arith.constant 0 : index
    %20 = vector.load %arg7[%c0_13, %c0_14, %c0_15] : memref<1x1x16xf32, #tpu.memory_space<vmem>>, vector<1x1x16xf32>
    %21 = vector.broadcast %20 : vector<1x1x16xf32> to vector<1x63x16xf32>
    %22 = arith.addf %19, %21 : vector<1x63x16xf32>
    %cst_16 = arith.constant 5.000000e-01 : f32
    %23 = vector.broadcast %cst_16 : f32 to vector<1x63x16xf32>
    %24 = arith.mulf %23, %22 : vector<1x63x16xf32>
    %cst_17 = arith.constant 4.471500e-02 : f32
    %25 = vector.broadcast %cst_17 : f32 to vector<1x63x16xf32>
    %26 = arith.mulf %25, %22 : vector<1x63x16xf32>
    %27 = arith.mulf %26, %22 : vector<1x63x16xf32>
    %28 = arith.mulf %27, %22 : vector<1x63x16xf32>
    %29 = arith.addf %22, %28 : vector<1x63x16xf32>
    %cst_18 = arith.constant 0.797884583 : f32
    %30 = vector.broadcast %cst_18 : f32 to vector<1x63x16xf32>
    %31 = arith.mulf %30, %29 : vector<1x63x16xf32>
    %32 = math.tanh %31 : vector<1x63x16xf32>
    %cst_19 = arith.constant 1.000000e+00 : f32
    %33 = vector.broadcast %cst_19 : f32 to vector<1x63x16xf32>
    %34 = arith.addf %33, %32 : vector<1x63x16xf32>
    %35 = arith.mulf %24, %34 : vector<1x63x16xf32>
    %36 = arith.truncf %35 : vector<1x63x16xf32> to vector<1x63x16xbf16>
    %c0_20 = arith.constant 0 : index
    %c0_21 = arith.constant 0 : index
    %c0_22 = arith.constant 0 : index
    %37 = vector.load %arg8[%c0_20, %c0_21, %c0_22] : memref<1x63x16xbf16, #tpu.memory_space<vmem>>, vector<1x63x16xbf16>
    tpu.vector_store %arg8[%c0_20, %c0_21, %c0_22], %36 {strides = array<i32>} : memref<1x63x16xbf16, #tpu.memory_space<vmem>>, vector<1x63x16xbf16>,
    return
  }
  func.func @transform_0(%arg0: i32, %arg1: i32, %arg2: i32) -> (i32, i32, i32) {
    %c0_i32 = arith.constant 0 : i32
    return %arg0, %arg1, %arg2 : i32, i32, i32
  }
  func.func @transform_1(%arg0: i32, %arg1: i32, %arg2: i32) -> (i32, i32, i32) {
    %c0_i32 = arith.constant 0 : i32
    %c0_i32_0 = arith.constant 0 : i32
    return %arg0, %c0_i32, %arg2 : i32, i32, i32
  }
  func.func @transform_2(%arg0: i32, %arg1: i32, %arg2: i32) -> (i32, i32, i32) {
    %c0_i32 = arith.constant 0 : i32
    %c0_i32_0 = arith.constant 0 : i32
    return %arg0, %c0_i32, %arg2 : i32, i32, i32
  }
  func.func @transform_3(%arg0: i32, %arg1: i32, %arg2: i32) -> (i32, i32, i32) {
    %c0_i32 = arith.constant 0 : i32
    %c0_i32_0 = arith.constant 0 : i32
    %c0_i32_1 = arith.constant 0 : i32
    return %c0_i32, %c0_i32_0, %arg2 : i32, i32, i32
  }
  func.func @transform_4(%arg0: i32, %arg1: i32, %arg2: i32) -> (i32, i32, i32) {
    %c0_i32 = arith.constant 0 : i32
    %c0_i32_0 = arith.constant 0 : i32
    %c0_i32_1 = arith.constant 0 : i32
    return %c0_i32, %c0_i32_0, %arg2 : i32, i32, i32
  }
  func.func @transform_5(%arg0: i32, %arg1: i32, %arg2: i32) -> (i32, i32, i32) {
    %c0_i32 = arith.constant 0 : i32
    return %arg0, %arg1, %arg2 : i32, i32, i32
  }
}

module attributes {stable_mosaic.version = 11 : i64} {
  func.func @_linear_kernel(%arg0: i32, %arg1: memref<62x64xbf16, #tpu.memory_space<vmem>>, %arg2: memref<64x16xbf16, #tpu.memory_space<vmem>>, %arg3: memref<62x16xbf16, #tpu.memory_space<vmem>>) attributes {dimension_semantics = [#tpu.dimension_semantics<parallel>], iteration_bounds = array<i64: 1>, scalar_prefetch = 0 : i64, scratch_operands = 0 : i64, tpu.core_type = #tpu.core_type<tc>, window_params = [{transform_indices = @transform_0, window_bounds = array<i64: 62, 64>}, {pipeline_mode = #tpu.pipeline_mode<synchronous>, transform_indices = @transform_1, window_bounds = array<i64: 64, 16>}, {transform_indices = @transform_2, window_bounds = array<i64: 62, 16>}]} {
    %c0 = arith.constant 0 : index
    %c0_0 = arith.constant 0 : index
    %0 = vector.load %arg1[%c0, %c0_0] : memref<62x64xbf16, #tpu.memory_space<vmem>>, vector<62x64xbf16>
    %c0_1 = arith.constant 0 : index
    %c0_2 = arith.constant 0 : index
    %1 = vector.load %arg2[%c0_1, %c0_2] : memref<64x16xbf16, #tpu.memory_space<vmem>>, vector<64x16xbf16>
    %cst = arith.constant dense<0.000000e+00> : vector<62x16xf32>
    %2 = tpu.matmul %0, %1, %cst {dimension_numbers = #tpu.dot_dimension_numbers<[1], [0], [0], [1], [0, 0, 1, 1], [], []>} : vector<62x64xbf16>, vector<64x16xbf16>, vector<62x16xf32> -> vector<62x16xf32>
    %cst_3 = arith.constant 5.000000e-01 : f32
    %3 = vector.broadcast %cst_3 : f32 to vector<62x16xf32>
    %4 = arith.mulf %3, %2 : vector<62x16xf32>
    %cst_4 = arith.constant 4.471500e-02 : f32
    %5 = vector.broadcast %cst_4 : f32 to vector<62x16xf32>
    %6 = arith.mulf %5, %2 : vector<62x16xf32>
    %7 = arith.mulf %6, %2 : vector<62x16xf32>
    %8 = arith.mulf %7, %2 : vector<62x16xf32>
    %9 = arith.addf %2, %8 : vector<62x16xf32>
    %cst_5 = arith.constant 0.797884583 : f32
    %10 = vector.broadcast %cst_5 : f32 to vector<62x16xf32>
    %11 = arith.mulf %10, %9 : vector<62x16xf32>
    %12 = math.tanh %11 : vector<62x16xf32>
    %cst_6 = arith.constant 1.000000e+00 : f32
    %13 = vector.broadcast %cst_6 : f32 to vector<62x16xf32>
    %14 = arith.addf %13, %12 : vector<62x16xf32>
    %15 = arith.mulf %4, %14 : vector<62x16xf32>
    %16 = arith.truncf %15 : vector<62x16xf32> to vector<62x16xbf16>
    %c0_7 = arith.constant 0 : index
    %c0_8 = arith.constant 0 : index
    %17 = vector.load %arg3[%c0_7, %c0_8] : memref<62x16xbf16, #tpu.memory_space<vmem>>, vector<62x16xbf16>
    tpu.vector_store %arg3[%c0_7, %c0_8], %16 {strides = array<i32>} : memref<62x16xbf16, #tpu.memory_space<vmem>>, vector<62x16xbf16>,
    return
  }
  func.func @transform_0(%arg0: i32) -> (i32, i32) {
    %c0_i32 = arith.constant 0 : i32
    %c0_i32_0 = arith.constant 0 : i32
    return %arg0, %c0_i32 : i32, i32
  }
  func.func @transform_1(%arg0: i32) -> (i32, i32) {
    %c0_i32 = arith.constant 0 : i32
    %c0_i32_0 = arith.constant 0 : i32
    %c0_i32_1 = arith.constant 0 : i32
    return %c0_i32, %c0_i32_0 : i32, i32
  }
  func.func @transform_2(%arg0: i32) -> (i32, i32) {
    %c0_i32 = arith.constant 0 : i32
    %c0_i32_0 = arith.constant 0 : i32
    return %arg0, %c0_i32 : i32, i32
  }
}

module attributes {stable_mosaic.version = 11 : i64} {
  func.func @_linear_kernel(%arg0: i32, %arg1: memref<30x32xbf16, #tpu.memory_space<vmem>>, %arg2: memref<32x16xbf16, #tpu.memory_space<vmem>>, %arg3: memref<30x16xbf16, #tpu.memory_space<vmem>>) attributes {dimension_semantics = [#tpu.dimension_semantics<parallel>], iteration_bounds = array<i64: 1>, scalar_prefetch = 0 : i64, scratch_operands = 0 : i64, tpu.core_type = #tpu.core_type<tc>, window_params = [{transform_indices = @transform_0, window_bounds = array<i64: 30, 32>}, {pipeline_mode = #tpu.pipeline_mode<synchronous>, transform_indices = @transform_1, window_bounds = array<i64: 32, 16>}, {transform_indices = @transform_2, window_bounds = array<i64: 30, 16>}]} {
    %c0 = arith.constant 0 : index
    %c0_0 = arith.constant 0 : index
    %0 = vector.load %arg1[%c0, %c0_0] : memref<30x32xbf16, #tpu.memory_space<vmem>>, vector<30x32xbf16>
    %c0_1 = arith.constant 0 : index
    %c0_2 = arith.constant 0 : index
    %1 = vector.load %arg2[%c0_1, %c0_2] : memref<32x16xbf16, #tpu.memory_space<vmem>>, vector<32x16xbf16>
    %cst = arith.constant dense<0.000000e+00> : vector<30x16xf32>
    %2 = tpu.matmul %0, %1, %cst {dimension_numbers = #tpu.dot_dimension_numbers<[1], [0], [0], [1], [0, 0, 1, 1], [], []>} : vector<30x32xbf16>, vector<32x16xbf16>, vector<30x16xf32> -> vector<30x16xf32>
    %cst_3 = arith.constant 5.000000e-01 : f32
    %3 = vector.broadcast %cst_3 : f32 to vector<30x16xf32>
    %4 = arith.mulf %3, %2 : vector<30x16xf32>
    %cst_4 = arith.constant 4.471500e-02 : f32
    %5 = vector.broadcast %cst_4 : f32 to vector<30x16xf32>
    %6 = arith.mulf %5, %2 : vector<30x16xf32>
    %7 = arith.mulf %6, %2 : vector<30x16xf32>
    %8 = arith.mulf %7, %2 : vector<30x16xf32>
    %9 = arith.addf %2, %8 : vector<30x16xf32>
    %cst_5 = arith.constant 0.797884583 : f32
    %10 = vector.broadcast %cst_5 : f32 to vector<30x16xf32>
    %11 = arith.mulf %10, %9 : vector<30x16xf32>
    %12 = math.tanh %11 : vector<30x16xf32>
    %cst_6 = arith.constant 1.000000e+00 : f32
    %13 = vector.broadcast %cst_6 : f32 to vector<30x16xf32>
    %14 = arith.addf %13, %12 : vector<30x16xf32>
    %15 = arith.mulf %4, %14 : vector<30x16xf32>
    %16 = arith.truncf %15 : vector<30x16xf32> to vector<30x16xbf16>
    %c0_7 = arith.constant 0 : index
    %c0_8 = arith.constant 0 : index
    %17 = vector.load %arg3[%c0_7, %c0_8] : memref<30x16xbf16, #tpu.memory_space<vmem>>, vector<30x16xbf16>
    tpu.vector_store %arg3[%c0_7, %c0_8], %16 {strides = array<i32>} : memref<30x16xbf16, #tpu.memory_space<vmem>>, vector<30x16xbf16>,
    return
  }
  func.func @transform_0(%arg0: i32) -> (i32, i32) {
    %c0_i32 = arith.constant 0 : i32
    %c0_i32_0 = arith.constant 0 : i32
    return %arg0, %c0_i32 : i32, i32
  }
  func.func @transform_1(%arg0: i32) -> (i32, i32) {
    %c0_i32 = arith.constant 0 : i32
    %c0_i32_0 = arith.constant 0 : i32
    %c0_i32_1 = arith.constant 0 : i32
    return %c0_i32, %c0_i32_0 : i32, i32
  }
  func.func @transform_2(%arg0: i32) -> (i32, i32) {
    %c0_i32 = arith.constant 0 : i32
    %c0_i32_0 = arith.constant 0 : i32
    return %arg0, %c0_i32 : i32, i32
  }
}

module attributes {stable_mosaic.version = 11 : i64} {
  func.func @_ln_linear_mask_kernel(%arg0: i32, %arg1: memref<30x16xbf16, #tpu.memory_space<vmem>>, %arg2: memref<1x16xf32, #tpu.memory_space<vmem>>, %arg3: memref<1x16xf32, #tpu.memory_space<vmem>>, %arg4: memref<16x128xbf16, #tpu.memory_space<vmem>>, %arg5: memref<1x128xf32, #tpu.memory_space<vmem>>, %arg6: memref<30x1xf32, #tpu.memory_space<vmem>>, %arg7: memref<30x128xbf16, #tpu.memory_space<vmem>>) attributes {dimension_semantics = [#tpu.dimension_semantics<parallel>], iteration_bounds = array<i64: 1>, scalar_prefetch = 0 : i64, scratch_operands = 0 : i64, tpu.core_type = #tpu.core_type<tc>, window_params = [{transform_indices = @transform_0, window_bounds = array<i64: 30, 16>}, {pipeline_mode = #tpu.pipeline_mode<synchronous>, transform_indices = @transform_1, window_bounds = array<i64: 1, 16>}, {pipeline_mode = #tpu.pipeline_mode<synchronous>, transform_indices = @transform_2, window_bounds = array<i64: 1, 16>}, {pipeline_mode = #tpu.pipeline_mode<synchronous>, transform_indices = @transform_3, window_bounds = array<i64: 16, 128>}, {pipeline_mode = #tpu.pipeline_mode<synchronous>, transform_indices = @transform_4, window_bounds = array<i64: 1, 128>}, {transform_indices = @transform_5, window_bounds = array<i64: 30, 1>}, {transform_indices = @transform_6, window_bounds = array<i64: 30, 128>}]} {
    %c0 = arith.constant 0 : index
    %c0_0 = arith.constant 0 : index
    %0 = vector.load %arg1[%c0, %c0_0] : memref<30x16xbf16, #tpu.memory_space<vmem>>, vector<30x16xbf16>
    %1 = arith.extf %0 : vector<30x16xbf16> to vector<30x16xf32>
    %c0_1 = arith.constant 0 : index
    %c0_2 = arith.constant 0 : index
    %2 = vector.load %arg2[%c0_1, %c0_2] : memref<1x16xf32, #tpu.memory_space<vmem>>, vector<1x16xf32>
    %c0_3 = arith.constant 0 : index
    %c0_4 = arith.constant 0 : index
    %3 = vector.load %arg3[%c0_3, %c0_4] : memref<1x16xf32, #tpu.memory_space<vmem>>, vector<1x16xf32>
    %cst = arith.constant dense<0.000000e+00> : vector<30xf32>
    %4 = vector.multi_reduction <add>, %1, %cst [1] : vector<30x16xf32> to vector<30xf32>
    %5 = vector.shape_cast %4 : vector<30xf32> to vector<30x1xf32>
    %cst_5 = arith.constant 1.600000e+01 : f32
    %6 = vector.broadcast %cst_5 : f32 to vector<30x1xf32>
    %7 = arith.divf %5, %6 : vector<30x1xf32>
    %8 = vector.broadcast %7 : vector<30x1xf32> to vector<30x16xf32>
    %9 = arith.subf %1, %8 : vector<30x16xf32>
    %10 = arith.mulf %9, %9 : vector<30x16xf32>
    %cst_6 = arith.constant dense<0.000000e+00> : vector<30xf32>
    %11 = vector.multi_reduction <add>, %10, %cst_6 [1] : vector<30x16xf32> to vector<30xf32>
    %12 = vector.shape_cast %11 : vector<30xf32> to vector<30x1xf32>
    %cst_7 = arith.constant 1.600000e+01 : f32
    %13 = vector.broadcast %cst_7 : f32 to vector<30x1xf32>
    %14 = arith.divf %12, %13 : vector<30x1xf32>
    %15 = vector.broadcast %7 : vector<30x1xf32> to vector<30x16xf32>
    %16 = arith.subf %1, %15 : vector<30x16xf32>
    %cst_8 = arith.constant 9.99999974E-6 : f32
    %17 = vector.broadcast %cst_8 : f32 to vector<30x1xf32>
    %18 = arith.addf %14, %17 : vector<30x1xf32>
    %19 = math.rsqrt %18 : vector<30x1xf32>
    %20 = vector.broadcast %19 : vector<30x1xf32> to vector<30x16xf32>
    %21 = arith.mulf %16, %20 : vector<30x16xf32>
    %22 = vector.broadcast %2 : vector<1x16xf32> to vector<30x16xf32>
    %23 = arith.mulf %21, %22 : vector<30x16xf32>
    %24 = vector.broadcast %3 : vector<1x16xf32> to vector<30x16xf32>
    %25 = arith.addf %23, %24 : vector<30x16xf32>
    %26 = arith.truncf %25 : vector<30x16xf32> to vector<30x16xbf16>
    %c0_9 = arith.constant 0 : index
    %c0_10 = arith.constant 0 : index
    %27 = vector.load %arg4[%c0_9, %c0_10] : memref<16x128xbf16, #tpu.memory_space<vmem>>, vector<16x128xbf16>
    %cst_11 = arith.constant dense<0.000000e+00> : vector<30x128xf32>
    %28 = tpu.matmul %26, %27, %cst_11 {dimension_numbers = #tpu.dot_dimension_numbers<[1], [0], [0], [1], [0, 0, 1, 1], [], []>} : vector<30x16xbf16>, vector<16x128xbf16>, vector<30x128xf32> -> vector<30x128xf32>
    %c0_12 = arith.constant 0 : index
    %c0_13 = arith.constant 0 : index
    %29 = vector.load %arg5[%c0_12, %c0_13] : memref<1x128xf32, #tpu.memory_space<vmem>>, vector<1x128xf32>
    %30 = vector.broadcast %29 : vector<1x128xf32> to vector<30x128xf32>
    %31 = arith.addf %28, %30 : vector<30x128xf32>
    %c0_14 = arith.constant 0 : index
    %c0_15 = arith.constant 0 : index
    %32 = vector.load %arg6[%c0_14, %c0_15] : memref<30x1xf32, #tpu.memory_space<vmem>>, vector<30x1xf32>
    %33 = vector.broadcast %32 : vector<30x1xf32> to vector<30x128xf32>
    %34 = arith.mulf %31, %33 : vector<30x128xf32>
    %35 = arith.truncf %34 : vector<30x128xf32> to vector<30x128xbf16>
    %c0_16 = arith.constant 0 : index
    %c0_17 = arith.constant 0 : index
    %36 = vector.load %arg7[%c0_16, %c0_17] : memref<30x128xbf16, #tpu.memory_space<vmem>>, vector<30x128xbf16>
    tpu.vector_store %arg7[%c0_16, %c0_17], %35 {strides = array<i32>} : memref<30x128xbf16, #tpu.memory_space<vmem>>, vector<30x128xbf16>,
    return
  }
  func.func @transform_0(%arg0: i32) -> (i32, i32) {
    %c0_i32 = arith.constant 0 : i32
    %c0_i32_0 = arith.constant 0 : i32
    return %arg0, %c0_i32 : i32, i32
  }
  func.func @transform_1(%arg0: i32) -> (i32, i32) {
    %c0_i32 = arith.constant 0 : i32
    %c0_i32_0 = arith.constant 0 : i32
    %c0_i32_1 = arith.constant 0 : i32
    return %c0_i32, %c0_i32_0 : i32, i32
  }
  func.func @transform_2(%arg0: i32) -> (i32, i32) {
    %c0_i32 = arith.constant 0 : i32
    %c0_i32_0 = arith.constant 0 : i32
    %c0_i32_1 = arith.constant 0 : i32
    return %c0_i32, %c0_i32_0 : i32, i32
  }
  func.func @transform_3(%arg0: i32) -> (i32, i32) {
    %c0_i32 = arith.constant 0 : i32
    %c0_i32_0 = arith.constant 0 : i32
    %c0_i32_1 = arith.constant 0 : i32
    return %c0_i32, %c0_i32_0 : i32, i32
  }
  func.func @transform_4(%arg0: i32) -> (i32, i32) {
    %c0_i32 = arith.constant 0 : i32
    %c0_i32_0 = arith.constant 0 : i32
    %c0_i32_1 = arith.constant 0 : i32
    return %c0_i32, %c0_i32_0 : i32, i32
  }
  func.func @transform_5(%arg0: i32) -> (i32, i32) {
    %c0_i32 = arith.constant 0 : i32
    %c0_i32_0 = arith.constant 0 : i32
    return %arg0, %c0_i32 : i32, i32
  }
  func.func @transform_6(%arg0: i32) -> (i32, i32) {
    %c0_i32 = arith.constant 0 : i32
    %c0_i32_0 = arith.constant 0 : i32
    return %arg0, %c0_i32 : i32, i32
  }
}

module attributes {stable_mosaic.version = 11 : i64} {
  func.func @_pos_conv_res_ln_kernel(%arg0: i32, %arg1: memref<1x17x128xbf16, #tpu.memory_space<vmem>>, %arg2: memref<3x128x128xbf16, #tpu.memory_space<vmem>>, %arg3: memref<1x128xf32, #tpu.memory_space<vmem>>, %arg4: memref<1x15x128xbf16, #tpu.memory_space<vmem>>, %arg5: memref<1x128xf32, #tpu.memory_space<vmem>>, %arg6: memref<1x128xf32, #tpu.memory_space<vmem>>, %arg7: memref<1x15x128xbf16, #tpu.memory_space<vmem>>) attributes {dimension_semantics = [#tpu.dimension_semantics<parallel>], iteration_bounds = array<i64: 2>, scalar_prefetch = 0 : i64, scratch_operands = 0 : i64, tpu.core_type = #tpu.core_type<tc>, window_params = [{transform_indices = @transform_0, window_bounds = array<i64: 1, 17, 128>}, {pipeline_mode = #tpu.pipeline_mode<synchronous>, transform_indices = @transform_1, window_bounds = array<i64: 3, 128, 128>}, {pipeline_mode = #tpu.pipeline_mode<synchronous>, transform_indices = @transform_2, window_bounds = array<i64: 1, 128>}, {transform_indices = @transform_3, window_bounds = array<i64: 1, 15, 128>}, {pipeline_mode = #tpu.pipeline_mode<synchronous>, transform_indices = @transform_4, window_bounds = array<i64: 1, 128>}, {pipeline_mode = #tpu.pipeline_mode<synchronous>, transform_indices = @transform_5, window_bounds = array<i64: 1, 128>}, {transform_indices = @transform_6, window_bounds = array<i64: 1, 15, 128>}]} {
    %cst = arith.constant 0.000000e+00 : f32
    %0 = vector.broadcast %cst : f32 to vector<15x128xf32>
    %c0 = arith.constant 0 : index
    %c0_0 = arith.constant 0 : index
    %c0_1 = arith.constant 0 : index
    %1 = vector.load %arg1[%c0, %c0_0, %c0_1] : memref<1x17x128xbf16, #tpu.memory_space<vmem>>, vector<1x15x128xbf16>
    %2 = vector.shape_cast %1 : vector<1x15x128xbf16> to vector<15x128xbf16>
    %c0_2 = arith.constant 0 : index
    %c0_3 = arith.constant 0 : index
    %c0_4 = arith.constant 0 : index
    %3 = vector.load %arg2[%c0_2, %c0_3, %c0_4] : memref<3x128x128xbf16, #tpu.memory_space<vmem>>, vector<1x128x128xbf16>
    %4 = vector.shape_cast %3 : vector<1x128x128xbf16> to vector<128x128xbf16>
    %cst_5 = arith.constant dense<0.000000e+00> : vector<15x128xf32>
    %5 = tpu.matmul %2, %4, %cst_5 {dimension_numbers = #tpu.dot_dimension_numbers<[1], [0], [0], [1], [0, 0, 1, 1], [], []>} : vector<15x128xbf16>, vector<128x128xbf16>, vector<15x128xf32> -> vector<15x128xf32>
    %6 = arith.addf %0, %5 : vector<15x128xf32>
    %c0_6 = arith.constant 0 : index
    %c1 = arith.constant 1 : index
    %c0_7 = arith.constant 0 : index
    %7 = vector.load %arg1[%c0_6, %c1, %c0_7] : memref<1x17x128xbf16, #tpu.memory_space<vmem>>, vector<1x15x128xbf16>
    %8 = vector.shape_cast %7 : vector<1x15x128xbf16> to vector<15x128xbf16>
    %c1_8 = arith.constant 1 : index
    %c0_9 = arith.constant 0 : index
    %c0_10 = arith.constant 0 : index
    %9 = vector.load %arg2[%c1_8, %c0_9, %c0_10] : memref<3x128x128xbf16, #tpu.memory_space<vmem>>, vector<1x128x128xbf16>
    %10 = vector.shape_cast %9 : vector<1x128x128xbf16> to vector<128x128xbf16>
    %cst_11 = arith.constant dense<0.000000e+00> : vector<15x128xf32>
    %11 = tpu.matmul %8, %10, %cst_11 {dimension_numbers = #tpu.dot_dimension_numbers<[1], [0], [0], [1], [0, 0, 1, 1], [], []>} : vector<15x128xbf16>, vector<128x128xbf16>, vector<15x128xf32> -> vector<15x128xf32>
    %12 = arith.addf %6, %11 : vector<15x128xf32>
    %c0_12 = arith.constant 0 : index
    %c2 = arith.constant 2 : index
    %c0_13 = arith.constant 0 : index
    %13 = vector.load %arg1[%c0_12, %c2, %c0_13] : memref<1x17x128xbf16, #tpu.memory_space<vmem>>, vector<1x15x128xbf16>
    %14 = vector.shape_cast %13 : vector<1x15x128xbf16> to vector<15x128xbf16>
    %c2_14 = arith.constant 2 : index
    %c0_15 = arith.constant 0 : index
    %c0_16 = arith.constant 0 : index
    %15 = vector.load %arg2[%c2_14, %c0_15, %c0_16] : memref<3x128x128xbf16, #tpu.memory_space<vmem>>, vector<1x128x128xbf16>
    %16 = vector.shape_cast %15 : vector<1x128x128xbf16> to vector<128x128xbf16>
    %cst_17 = arith.constant dense<0.000000e+00> : vector<15x128xf32>
    %17 = tpu.matmul %14, %16, %cst_17 {dimension_numbers = #tpu.dot_dimension_numbers<[1], [0], [0], [1], [0, 0, 1, 1], [], []>} : vector<15x128xbf16>, vector<128x128xbf16>, vector<15x128xf32> -> vector<15x128xf32>
    %18 = arith.addf %12, %17 : vector<15x128xf32>
    %c0_18 = arith.constant 0 : index
    %c0_19 = arith.constant 0 : index
    %19 = vector.load %arg3[%c0_18, %c0_19] : memref<1x128xf32, #tpu.memory_space<vmem>>, vector<1x128xf32>
    %20 = vector.broadcast %19 : vector<1x128xf32> to vector<15x128xf32>
    %21 = arith.addf %18, %20 : vector<15x128xf32>
    %cst_20 = arith.constant 5.000000e-01 : f32
    %22 = vector.broadcast %cst_20 : f32 to vector<15x128xf32>
    %23 = arith.mulf %22, %21 : vector<15x128xf32>
    %cst_21 = arith.constant 4.471500e-02 : f32
    %24 = vector.broadcast %cst_21 : f32 to vector<15x128xf32>
    %25 = arith.mulf %24, %21 : vector<15x128xf32>
    %26 = arith.mulf %25, %21 : vector<15x128xf32>
    %27 = arith.mulf %26, %21 : vector<15x128xf32>
    %28 = arith.addf %21, %27 : vector<15x128xf32>
    %cst_22 = arith.constant 0.797884583 : f32
    %29 = vector.broadcast %cst_22 : f32 to vector<15x128xf32>
    %30 = arith.mulf %29, %28 : vector<15x128xf32>
    %31 = math.tanh %30 : vector<15x128xf32>
    %cst_23 = arith.constant 1.000000e+00 : f32
    %32 = vector.broadcast %cst_23 : f32 to vector<15x128xf32>
    %33 = arith.addf %32, %31 : vector<15x128xf32>
    %34 = arith.mulf %23, %33 : vector<15x128xf32>
    %c0_24 = arith.constant 0 : index
    %c0_25 = arith.constant 0 : index
    %c0_26 = arith.constant 0 : index
    %35 = vector.load %arg4[%c0_24, %c0_25, %c0_26] : memref<1x15x128xbf16, #tpu.memory_space<vmem>>, vector<1x15x128xbf16>
    %36 = vector.shape_cast %35 : vector<1x15x128xbf16> to vector<15x128xbf16>
    %37 = arith.extf %36 : vector<15x128xbf16> to vector<15x128xf32>
    %38 = arith.addf %34, %37 : vector<15x128xf32>
    %c0_27 = arith.constant 0 : index
    %c0_28 = arith.constant 0 : index
    %39 = vector.load %arg5[%c0_27, %c0_28] : memref<1x128xf32, #tpu.memory_space<vmem>>, vector<1x128xf32>
    %c0_29 = arith.constant 0 : index
    %c0_30 = arith.constant 0 : index
    %40 = vector.load %arg6[%c0_29, %c0_30] : memref<1x128xf32, #tpu.memory_space<vmem>>, vector<1x128xf32>
    %cst_31 = arith.constant dense<0.000000e+00> : vector<15xf32>
    %41 = vector.multi_reduction <add>, %38, %cst_31 [1] : vector<15x128xf32> to vector<15xf32>
    %42 = vector.shape_cast %41 : vector<15xf32> to vector<15x1xf32>
    %cst_32 = arith.constant 1.280000e+02 : f32
    %43 = vector.broadcast %cst_32 : f32 to vector<15x1xf32>
    %44 = arith.divf %42, %43 : vector<15x1xf32>
    %45 = vector.broadcast %44 : vector<15x1xf32> to vector<15x128xf32>
    %46 = arith.subf %38, %45 : vector<15x128xf32>
    %47 = arith.mulf %46, %46 : vector<15x128xf32>
    %cst_33 = arith.constant dense<0.000000e+00> : vector<15xf32>
    %48 = vector.multi_reduction <add>, %47, %cst_33 [1] : vector<15x128xf32> to vector<15xf32>
    %49 = vector.shape_cast %48 : vector<15xf32> to vector<15x1xf32>
    %cst_34 = arith.constant 1.280000e+02 : f32
    %50 = vector.broadcast %cst_34 : f32 to vector<15x1xf32>
    %51 = arith.divf %49, %50 : vector<15x1xf32>
    %52 = vector.broadcast %44 : vector<15x1xf32> to vector<15x128xf32>
    %53 = arith.subf %38, %52 : vector<15x128xf32>
    %cst_35 = arith.constant 9.99999974E-6 : f32
    %54 = vector.broadcast %cst_35 : f32 to vector<15x1xf32>
    %55 = arith.addf %51, %54 : vector<15x1xf32>
    %56 = math.rsqrt %55 : vector<15x1xf32>
    %57 = vector.broadcast %56 : vector<15x1xf32> to vector<15x128xf32>
    %58 = arith.mulf %53, %57 : vector<15x128xf32>
    %59 = vector.broadcast %39 : vector<1x128xf32> to vector<15x128xf32>
    %60 = arith.mulf %58, %59 : vector<15x128xf32>
    %61 = vector.broadcast %40 : vector<1x128xf32> to vector<15x128xf32>
    %62 = arith.addf %60, %61 : vector<15x128xf32>
    %63 = arith.truncf %62 : vector<15x128xf32> to vector<15x128xbf16>
    %c0_36 = arith.constant 0 : index
    %c0_37 = arith.constant 0 : index
    %c0_38 = arith.constant 0 : index
    %64 = vector.load %arg7[%c0_36, %c0_37, %c0_38] : memref<1x15x128xbf16, #tpu.memory_space<vmem>>, vector<1x15x128xbf16>
    %65 = vector.shape_cast %64 : vector<1x15x128xbf16> to vector<15x128xbf16>
    %66 = vector.shape_cast %63 : vector<15x128xbf16> to vector<1x15x128xbf16>
    tpu.vector_store %arg7[%c0_36, %c0_37, %c0_38], %66 {strides = array<i32>} : memref<1x15x128xbf16, #tpu.memory_space<vmem>>, vector<1x15x128xbf16>,
    return
  }
  func.func @transform_0(%arg0: i32) -> (i32, i32, i32) {
    %c0_i32 = arith.constant 0 : i32
    %c0_i32_0 = arith.constant 0 : i32
    %c0_i32_1 = arith.constant 0 : i32
    return %arg0, %c0_i32, %c0_i32_0 : i32, i32, i32
  }
  func.func @transform_1(%arg0: i32) -> (i32, i32, i32) {
    %c0_i32 = arith.constant 0 : i32
    %c0_i32_0 = arith.constant 0 : i32
    %c0_i32_1 = arith.constant 0 : i32
    %c0_i32_2 = arith.constant 0 : i32
    return %c0_i32, %c0_i32_0, %c0_i32_1 : i32, i32, i32
  }
  func.func @transform_2(%arg0: i32) -> (i32, i32) {
    %c0_i32 = arith.constant 0 : i32
    %c0_i32_0 = arith.constant 0 : i32
    %c0_i32_1 = arith.constant 0 : i32
    return %c0_i32, %c0_i32_0 : i32, i32
  }
  func.func @transform_3(%arg0: i32) -> (i32, i32, i32) {
    %c0_i32 = arith.constant 0 : i32
    %c0_i32_0 = arith.constant 0 : i32
    %c0_i32_1 = arith.constant 0 : i32
    return %arg0, %c0_i32, %c0_i32_0 : i32, i32, i32
  }
  func.func @transform_4(%arg0: i32) -> (i32, i32) {
    %c0_i32 = arith.constant 0 : i32
    %c0_i32_0 = arith.constant 0 : i32
    %c0_i32_1 = arith.constant 0 : i32
    return %c0_i32, %c0_i32_0 : i32, i32
  }
  func.func @transform_5(%arg0: i32) -> (i32, i32) {
    %c0_i32 = arith.constant 0 : i32
    %c0_i32_0 = arith.constant 0 : i32
    %c0_i32_1 = arith.constant 0 : i32
    return %c0_i32, %c0_i32_0 : i32, i32
  }
  func.func @transform_6(%arg0: i32) -> (i32, i32, i32) {
    %c0_i32 = arith.constant 0 : i32
    %c0_i32_0 = arith.constant 0 : i32
    %c0_i32_1 = arith.constant 0 : i32
    return %arg0, %c0_i32, %c0_i32_0 : i32, i32, i32
  }
}

module attributes {stable_mosaic.version = 11 : i64} {
  func.func @_linear_bias_kernel(%arg0: i32, %arg1: memref<30x128xbf16, #tpu.memory_space<vmem>>, %arg2: memref<128x384xbf16, #tpu.memory_space<vmem>>, %arg3: memref<1x384xf32, #tpu.memory_space<vmem>>, %arg4: memref<30x384xbf16, #tpu.memory_space<vmem>>) attributes {dimension_semantics = [#tpu.dimension_semantics<parallel>], iteration_bounds = array<i64: 1>, scalar_prefetch = 0 : i64, scratch_operands = 0 : i64, tpu.core_type = #tpu.core_type<tc>, window_params = [{transform_indices = @transform_0, window_bounds = array<i64: 30, 128>}, {pipeline_mode = #tpu.pipeline_mode<synchronous>, transform_indices = @transform_1, window_bounds = array<i64: 128, 384>}, {pipeline_mode = #tpu.pipeline_mode<synchronous>, transform_indices = @transform_2, window_bounds = array<i64: 1, 384>}, {transform_indices = @transform_3, window_bounds = array<i64: 30, 384>}]} {
    %c0 = arith.constant 0 : index
    %c0_0 = arith.constant 0 : index
    %0 = vector.load %arg1[%c0, %c0_0] : memref<30x128xbf16, #tpu.memory_space<vmem>>, vector<30x128xbf16>
    %c0_1 = arith.constant 0 : index
    %c0_2 = arith.constant 0 : index
    %1 = vector.load %arg2[%c0_1, %c0_2] : memref<128x384xbf16, #tpu.memory_space<vmem>>, vector<128x384xbf16>
    %cst = arith.constant dense<0.000000e+00> : vector<30x384xf32>
    %2 = tpu.matmul %0, %1, %cst {dimension_numbers = #tpu.dot_dimension_numbers<[1], [0], [0], [1], [0, 0, 1, 1], [], []>} : vector<30x128xbf16>, vector<128x384xbf16>, vector<30x384xf32> -> vector<30x384xf32>
    %c0_3 = arith.constant 0 : index
    %c0_4 = arith.constant 0 : index
    %3 = vector.load %arg3[%c0_3, %c0_4] : memref<1x384xf32, #tpu.memory_space<vmem>>, vector<1x384xf32>
    %4 = vector.broadcast %3 : vector<1x384xf32> to vector<30x384xf32>
    %5 = arith.addf %2, %4 : vector<30x384xf32>
    %6 = arith.truncf %5 : vector<30x384xf32> to vector<30x384xbf16>
    %c0_5 = arith.constant 0 : index
    %c0_6 = arith.constant 0 : index
    %7 = vector.load %arg4[%c0_5, %c0_6] : memref<30x384xbf16, #tpu.memory_space<vmem>>, vector<30x384xbf16>
    tpu.vector_store %arg4[%c0_5, %c0_6], %6 {strides = array<i32>} : memref<30x384xbf16, #tpu.memory_space<vmem>>, vector<30x384xbf16>,
    return
  }
  func.func @transform_0(%arg0: i32) -> (i32, i32) {
    %c0_i32 = arith.constant 0 : i32
    %c0_i32_0 = arith.constant 0 : i32
    return %arg0, %c0_i32 : i32, i32
  }
  func.func @transform_1(%arg0: i32) -> (i32, i32) {
    %c0_i32 = arith.constant 0 : i32
    %c0_i32_0 = arith.constant 0 : i32
    %c0_i32_1 = arith.constant 0 : i32
    return %c0_i32, %c0_i32_0 : i32, i32
  }
  func.func @transform_2(%arg0: i32) -> (i32, i32) {
    %c0_i32 = arith.constant 0 : i32
    %c0_i32_0 = arith.constant 0 : i32
    %c0_i32_1 = arith.constant 0 : i32
    return %c0_i32, %c0_i32_0 : i32, i32
  }
  func.func @transform_3(%arg0: i32) -> (i32, i32) {
    %c0_i32 = arith.constant 0 : i32
    %c0_i32_0 = arith.constant 0 : i32
    return %arg0, %c0_i32 : i32, i32
  }
}

module attributes {stable_mosaic.version = 11 : i64} {
  func.func @_flash_attn_kernel(%arg0: i32, %arg1: i32, %arg2: i32, %arg3: memref<1x15x128xbf16, #tpu.memory_space<vmem>>, %arg4: memref<1x15x128xbf16, #tpu.memory_space<vmem>>, %arg5: memref<1x15x128xbf16, #tpu.memory_space<vmem>>, %arg6: memref<1x1x15xf32, #tpu.memory_space<vmem>>, %arg7: memref<1x15x128xbf16, #tpu.memory_space<vmem>>, %arg8: memref<4x15x1xf32, #tpu.memory_space<vmem>>, %arg9: memref<4x15x1xf32, #tpu.memory_space<vmem>>, %arg10: memref<4x15x32xf32, #tpu.memory_space<vmem>>) attributes {dimension_semantics = [#tpu.dimension_semantics<parallel>, #tpu.dimension_semantics<parallel>, #tpu.dimension_semantics<arbitrary>], iteration_bounds = array<i64: 2, 1, 1>, scalar_prefetch = 0 : i64, scratch_operands = 3 : i64, tpu.core_type = #tpu.core_type<tc>, window_params = [{transform_indices = @transform_0, window_bounds = array<i64: 1, 15, 128>}, {transform_indices = @transform_1, window_bounds = array<i64: 1, 15, 128>}, {transform_indices = @transform_2, window_bounds = array<i64: 1, 15, 128>}, {transform_indices = @transform_3, window_bounds = array<i64: 1, 1, 15>}, {transform_indices = @transform_4, window_bounds = array<i64: 1, 15, 128>}]} {
    %c0_i32 = arith.constant 0 : i32
    %0 = arith.cmpi eq, %arg2, %c0_i32 : i32
    %1 = arith.extui %0 : i1 to i32
    %c0_i32_0 = arith.constant 0 : i32
    %2 = arith.cmpi ne, %1, %c0_i32_0 : i32
    scf.if %2 {
      %cst_122 = arith.constant 0xFF800000 : f32
      %172 = vector.broadcast %cst_122 : f32 to vector<4x15x1xf32>
      %c0_123 = arith.constant 0 : index
      %c0_124 = arith.constant 0 : index
      %c0_125 = arith.constant 0 : index
      %173 = vector.load %arg8[%c0_123, %c0_124, %c0_125] : memref<4x15x1xf32, #tpu.memory_space<vmem>>, vector<4x15x1xf32>
      tpu.vector_store %arg8[%c0_123, %c0_124, %c0_125], %172 {strides = array<i32>} : memref<4x15x1xf32, #tpu.memory_space<vmem>>, vector<4x15x1xf32>,
      %cst_126 = arith.constant 0.000000e+00 : f32
      %174 = vector.broadcast %cst_126 : f32 to vector<4x15x1xf32>
      %c0_127 = arith.constant 0 : index
      %c0_128 = arith.constant 0 : index
      %c0_129 = arith.constant 0 : index
      %175 = vector.load %arg9[%c0_127, %c0_128, %c0_129] : memref<4x15x1xf32, #tpu.memory_space<vmem>>, vector<4x15x1xf32>
      tpu.vector_store %arg9[%c0_127, %c0_128, %c0_129], %174 {strides = array<i32>} : memref<4x15x1xf32, #tpu.memory_space<vmem>>, vector<4x15x1xf32>,
      %cst_130 = arith.constant 0.000000e+00 : f32
      %176 = vector.broadcast %cst_130 : f32 to vector<4x15x32xf32>
      %c0_131 = arith.constant 0 : index
      %c0_132 = arith.constant 0 : index
      %c0_133 = arith.constant 0 : index
      %177 = vector.load %arg10[%c0_131, %c0_132, %c0_133] : memref<4x15x32xf32, #tpu.memory_space<vmem>>, vector<4x15x32xf32>
      tpu.vector_store %arg10[%c0_131, %c0_132, %c0_133], %176 {strides = array<i32>} : memref<4x15x32xf32, #tpu.memory_space<vmem>>, vector<4x15x32xf32>,
    } else {
    }
    %c0 = arith.constant 0 : index
    %c0_1 = arith.constant 0 : index
    %c0_2 = arith.constant 0 : index
    %3 = vector.load %arg6[%c0, %c0_1, %c0_2] : memref<1x1x15xf32, #tpu.memory_space<vmem>>, vector<1x1x15xf32>
    %4 = vector.shape_cast %3 : vector<1x1x15xf32> to vector<1x15xf32>
    %c0_3 = arith.constant 0 : index
    %c0_4 = arith.constant 0 : index
    %c0_5 = arith.constant 0 : index
    %5 = vector.load %arg3[%c0_3, %c0_4, %c0_5] : memref<1x15x128xbf16, #tpu.memory_space<vmem>>, vector<1x15x32xbf16>
    %6 = vector.shape_cast %5 : vector<1x15x32xbf16> to vector<15x32xbf16>
    %c0_6 = arith.constant 0 : index
    %c0_7 = arith.constant 0 : index
    %c0_8 = arith.constant 0 : index
    %7 = vector.load %arg4[%c0_6, %c0_7, %c0_8] : memref<1x15x128xbf16, #tpu.memory_space<vmem>>, vector<1x15x32xbf16>
    %8 = vector.shape_cast %7 : vector<1x15x32xbf16> to vector<15x32xbf16>
    %c0_9 = arith.constant 0 : index
    %c0_10 = arith.constant 0 : index
    %c0_11 = arith.constant 0 : index
    %9 = vector.load %arg5[%c0_9, %c0_10, %c0_11] : memref<1x15x128xbf16, #tpu.memory_space<vmem>>, vector<1x15x32xbf16>
    %10 = vector.shape_cast %9 : vector<1x15x32xbf16> to vector<15x32xbf16>
    %cst = arith.constant dense<0.000000e+00> : vector<15x15xf32>
    %11 = tpu.matmul %6, %8, %cst {dimension_numbers = #tpu.dot_dimension_numbers<[1], [1], [0], [0], [0, 0, 1, 0], [], []>} : vector<15x32xbf16>, vector<15x32xbf16>, vector<15x15xf32> -> vector<15x15xf32>
    %12 = vector.broadcast %4 : vector<1x15xf32> to vector<15x15xf32>
    %13 = arith.addf %11, %12 : vector<15x15xf32>
    %c0_12 = arith.constant 0 : index
    %c0_13 = arith.constant 0 : index
    %c0_14 = arith.constant 0 : index
    %14 = vector.load %arg8[%c0_12, %c0_13, %c0_14] : memref<4x15x1xf32, #tpu.memory_space<vmem>>, vector<1x15x1xf32>
    %15 = vector.shape_cast %14 : vector<1x15x1xf32> to vector<15x1xf32>
    %cst_15 = arith.constant dense<0xFF800000> : vector<15xf32>
    %16 = vector.multi_reduction <maximumf>, %13, %cst_15 [1] : vector<15x15xf32> to vector<15xf32>
    %17 = vector.shape_cast %16 : vector<15xf32> to vector<15x1xf32>
    %18 = arith.maximumf %15, %17 : vector<15x1xf32>
    %19 = arith.subf %15, %18 : vector<15x1xf32>
    %20 = math.exp %19 : vector<15x1xf32>
    %21 = vector.broadcast %18 : vector<15x1xf32> to vector<15x15xf32>
    %22 = arith.subf %13, %21 : vector<15x15xf32>
    %23 = math.exp %22 : vector<15x15xf32>
    %c0_16 = arith.constant 0 : index
    %c0_17 = arith.constant 0 : index
    %c0_18 = arith.constant 0 : index
    %24 = vector.load %arg9[%c0_16, %c0_17, %c0_18] : memref<4x15x1xf32, #tpu.memory_space<vmem>>, vector<1x15x1xf32>
    %25 = vector.shape_cast %24 : vector<1x15x1xf32> to vector<15x1xf32>
    %26 = arith.mulf %20, %25 : vector<15x1xf32>
    %cst_19 = arith.constant dense<0.000000e+00> : vector<15xf32>
    %27 = vector.multi_reduction <add>, %23, %cst_19 [1] : vector<15x15xf32> to vector<15xf32>
    %28 = vector.shape_cast %27 : vector<15xf32> to vector<15x1xf32>
    %29 = arith.addf %26, %28 : vector<15x1xf32>
    %c0_20 = arith.constant 0 : index
    %c0_21 = arith.constant 0 : index
    %c0_22 = arith.constant 0 : index
    %30 = vector.load %arg9[%c0_20, %c0_21, %c0_22] : memref<4x15x1xf32, #tpu.memory_space<vmem>>, vector<1x15x1xf32>
    %31 = vector.shape_cast %30 : vector<1x15x1xf32> to vector<15x1xf32>
    %32 = vector.shape_cast %29 : vector<15x1xf32> to vector<1x15x1xf32>
    tpu.vector_store %arg9[%c0_20, %c0_21, %c0_22], %32 {strides = array<i32>} : memref<4x15x1xf32, #tpu.memory_space<vmem>>, vector<1x15x1xf32>,
    %c0_23 = arith.constant 0 : index
    %c0_24 = arith.constant 0 : index
    %c0_25 = arith.constant 0 : index
    %33 = vector.load %arg10[%c0_23, %c0_24, %c0_25] : memref<4x15x32xf32, #tpu.memory_space<vmem>>, vector<1x15x32xf32>
    %34 = vector.shape_cast %33 : vector<1x15x32xf32> to vector<15x32xf32>
    %35 = vector.broadcast %20 : vector<15x1xf32> to vector<15x32xf32>
    %36 = arith.mulf %35, %34 : vector<15x32xf32>
    %37 = arith.truncf %23 : vector<15x15xf32> to vector<15x15xbf16>
    %cst_26 = arith.constant dense<0.000000e+00> : vector<15x32xf32>
    %38 = tpu.matmul %37, %10, %cst_26 {dimension_numbers = #tpu.dot_dimension_numbers<[1], [0], [0], [1], [0, 0, 1, 1], [], []>} : vector<15x15xbf16>, vector<15x32xbf16>, vector<15x32xf32> -> vector<15x32xf32>
    %39 = arith.addf %36, %38 : vector<15x32xf32>
    %c0_27 = arith.constant 0 : index
    %c0_28 = arith.constant 0 : index
    %c0_29 = arith.constant 0 : index
    %40 = vector.load %arg10[%c0_27, %c0_28, %c0_29] : memref<4x15x32xf32, #tpu.memory_space<vmem>>, vector<1x15x32xf32>
    %41 = vector.shape_cast %40 : vector<1x15x32xf32> to vector<15x32xf32>
    %42 = vector.shape_cast %39 : vector<15x32xf32> to vector<1x15x32xf32>
    tpu.vector_store %arg10[%c0_27, %c0_28, %c0_29], %42 {strides = array<i32>} : memref<4x15x32xf32, #tpu.memory_space<vmem>>, vector<1x15x32xf32>,
    %c0_30 = arith.constant 0 : index
    %c0_31 = arith.constant 0 : index
    %c0_32 = arith.constant 0 : index
    %43 = vector.load %arg8[%c0_30, %c0_31, %c0_32] : memref<4x15x1xf32, #tpu.memory_space<vmem>>, vector<1x15x1xf32>
    %44 = vector.shape_cast %43 : vector<1x15x1xf32> to vector<15x1xf32>
    %45 = vector.shape_cast %18 : vector<15x1xf32> to vector<1x15x1xf32>
    tpu.vector_store %arg8[%c0_30, %c0_31, %c0_32], %45 {strides = array<i32>} : memref<4x15x1xf32, #tpu.memory_space<vmem>>, vector<1x15x1xf32>,
    %c0_33 = arith.constant 0 : index
    %c0_34 = arith.constant 0 : index
    %c32 = arith.constant 32 : index
    %46 = vector.load %arg3[%c0_33, %c0_34, %c32] : memref<1x15x128xbf16, #tpu.memory_space<vmem>>, vector<1x15x32xbf16>
    %47 = vector.shape_cast %46 : vector<1x15x32xbf16> to vector<15x32xbf16>
    %c0_35 = arith.constant 0 : index
    %c0_36 = arith.constant 0 : index
    %c32_37 = arith.constant 32 : index
    %48 = vector.load %arg4[%c0_35, %c0_36, %c32_37] : memref<1x15x128xbf16, #tpu.memory_space<vmem>>, vector<1x15x32xbf16>
    %49 = vector.shape_cast %48 : vector<1x15x32xbf16> to vector<15x32xbf16>
    %c0_38 = arith.constant 0 : index
    %c0_39 = arith.constant 0 : index
    %c32_40 = arith.constant 32 : index
    %50 = vector.load %arg5[%c0_38, %c0_39, %c32_40] : memref<1x15x128xbf16, #tpu.memory_space<vmem>>, vector<1x15x32xbf16>
    %51 = vector.shape_cast %50 : vector<1x15x32xbf16> to vector<15x32xbf16>
    %cst_41 = arith.constant dense<0.000000e+00> : vector<15x15xf32>
    %52 = tpu.matmul %47, %49, %cst_41 {dimension_numbers = #tpu.dot_dimension_numbers<[1], [1], [0], [0], [0, 0, 1, 0], [], []>} : vector<15x32xbf16>, vector<15x32xbf16>, vector<15x15xf32> -> vector<15x15xf32>
    %53 = vector.broadcast %4 : vector<1x15xf32> to vector<15x15xf32>
    %54 = arith.addf %52, %53 : vector<15x15xf32>
    %c1 = arith.constant 1 : index
    %c0_42 = arith.constant 0 : index
    %c0_43 = arith.constant 0 : index
    %55 = vector.load %arg8[%c1, %c0_42, %c0_43] : memref<4x15x1xf32, #tpu.memory_space<vmem>>, vector<1x15x1xf32>
    %56 = vector.shape_cast %55 : vector<1x15x1xf32> to vector<15x1xf32>
    %cst_44 = arith.constant dense<0xFF800000> : vector<15xf32>
    %57 = vector.multi_reduction <maximumf>, %54, %cst_44 [1] : vector<15x15xf32> to vector<15xf32>
    %58 = vector.shape_cast %57 : vector<15xf32> to vector<15x1xf32>
    %59 = arith.maximumf %56, %58 : vector<15x1xf32>
    %60 = arith.subf %56, %59 : vector<15x1xf32>
    %61 = math.exp %60 : vector<15x1xf32>
    %62 = vector.broadcast %59 : vector<15x1xf32> to vector<15x15xf32>
    %63 = arith.subf %54, %62 : vector<15x15xf32>
    %64 = math.exp %63 : vector<15x15xf32>
    %c1_45 = arith.constant 1 : index
    %c0_46 = arith.constant 0 : index
    %c0_47 = arith.constant 0 : index
    %65 = vector.load %arg9[%c1_45, %c0_46, %c0_47] : memref<4x15x1xf32, #tpu.memory_space<vmem>>, vector<1x15x1xf32>
    %66 = vector.shape_cast %65 : vector<1x15x1xf32> to vector<15x1xf32>
    %67 = arith.mulf %61, %66 : vector<15x1xf32>
    %cst_48 = arith.constant dense<0.000000e+00> : vector<15xf32>
    %68 = vector.multi_reduction <add>, %64, %cst_48 [1] : vector<15x15xf32> to vector<15xf32>
    %69 = vector.shape_cast %68 : vector<15xf32> to vector<15x1xf32>
    %70 = arith.addf %67, %69 : vector<15x1xf32>
    %c1_49 = arith.constant 1 : index
    %c0_50 = arith.constant 0 : index
    %c0_51 = arith.constant 0 : index
    %71 = vector.load %arg9[%c1_49, %c0_50, %c0_51] : memref<4x15x1xf32, #tpu.memory_space<vmem>>, vector<1x15x1xf32>
    %72 = vector.shape_cast %71 : vector<1x15x1xf32> to vector<15x1xf32>
    %73 = vector.shape_cast %70 : vector<15x1xf32> to vector<1x15x1xf32>
    tpu.vector_store %arg9[%c1_49, %c0_50, %c0_51], %73 {strides = array<i32>} : memref<4x15x1xf32, #tpu.memory_space<vmem>>, vector<1x15x1xf32>,
    %c1_52 = arith.constant 1 : index
    %c0_53 = arith.constant 0 : index
    %c0_54 = arith.constant 0 : index
    %74 = vector.load %arg10[%c1_52, %c0_53, %c0_54] : memref<4x15x32xf32, #tpu.memory_space<vmem>>, vector<1x15x32xf32>
    %75 = vector.shape_cast %74 : vector<1x15x32xf32> to vector<15x32xf32>
    %76 = vector.broadcast %61 : vector<15x1xf32> to vector<15x32xf32>
    %77 = arith.mulf %76, %75 : vector<15x32xf32>
    %78 = arith.truncf %64 : vector<15x15xf32> to vector<15x15xbf16>
    %cst_55 = arith.constant dense<0.000000e+00> : vector<15x32xf32>
    %79 = tpu.matmul %78, %51, %cst_55 {dimension_numbers = #tpu.dot_dimension_numbers<[1], [0], [0], [1], [0, 0, 1, 1], [], []>} : vector<15x15xbf16>, vector<15x32xbf16>, vector<15x32xf32> -> vector<15x32xf32>
    %80 = arith.addf %77, %79 : vector<15x32xf32>
    %c1_56 = arith.constant 1 : index
    %c0_57 = arith.constant 0 : index
    %c0_58 = arith.constant 0 : index
    %81 = vector.load %arg10[%c1_56, %c0_57, %c0_58] : memref<4x15x32xf32, #tpu.memory_space<vmem>>, vector<1x15x32xf32>
    %82 = vector.shape_cast %81 : vector<1x15x32xf32> to vector<15x32xf32>
    %83 = vector.shape_cast %80 : vector<15x32xf32> to vector<1x15x32xf32>
    tpu.vector_store %arg10[%c1_56, %c0_57, %c0_58], %83 {strides = array<i32>} : memref<4x15x32xf32, #tpu.memory_space<vmem>>, vector<1x15x32xf32>,
    %c1_59 = arith.constant 1 : index
    %c0_60 = arith.constant 0 : index
    %c0_61 = arith.constant 0 : index
    %84 = vector.load %arg8[%c1_59, %c0_60, %c0_61] : memref<4x15x1xf32, #tpu.memory_space<vmem>>, vector<1x15x1xf32>
    %85 = vector.shape_cast %84 : vector<1x15x1xf32> to vector<15x1xf32>
    %86 = vector.shape_cast %59 : vector<15x1xf32> to vector<1x15x1xf32>
    tpu.vector_store %arg8[%c1_59, %c0_60, %c0_61], %86 {strides = array<i32>} : memref<4x15x1xf32, #tpu.memory_space<vmem>>, vector<1x15x1xf32>,
    %c0_62 = arith.constant 0 : index
    %c0_63 = arith.constant 0 : index
    %c64 = arith.constant 64 : index
    %87 = vector.load %arg3[%c0_62, %c0_63, %c64] : memref<1x15x128xbf16, #tpu.memory_space<vmem>>, vector<1x15x32xbf16>
    %88 = vector.shape_cast %87 : vector<1x15x32xbf16> to vector<15x32xbf16>
    %c0_64 = arith.constant 0 : index
    %c0_65 = arith.constant 0 : index
    %c64_66 = arith.constant 64 : index
    %89 = vector.load %arg4[%c0_64, %c0_65, %c64_66] : memref<1x15x128xbf16, #tpu.memory_space<vmem>>, vector<1x15x32xbf16>
    %90 = vector.shape_cast %89 : vector<1x15x32xbf16> to vector<15x32xbf16>
    %c0_67 = arith.constant 0 : index
    %c0_68 = arith.constant 0 : index
    %c64_69 = arith.constant 64 : index
    %91 = vector.load %arg5[%c0_67, %c0_68, %c64_69] : memref<1x15x128xbf16, #tpu.memory_space<vmem>>, vector<1x15x32xbf16>
    %92 = vector.shape_cast %91 : vector<1x15x32xbf16> to vector<15x32xbf16>
    %cst_70 = arith.constant dense<0.000000e+00> : vector<15x15xf32>
    %93 = tpu.matmul %88, %90, %cst_70 {dimension_numbers = #tpu.dot_dimension_numbers<[1], [1], [0], [0], [0, 0, 1, 0], [], []>} : vector<15x32xbf16>, vector<15x32xbf16>, vector<15x15xf32> -> vector<15x15xf32>
    %94 = vector.broadcast %4 : vector<1x15xf32> to vector<15x15xf32>
    %95 = arith.addf %93, %94 : vector<15x15xf32>
    %c2 = arith.constant 2 : index
    %c0_71 = arith.constant 0 : index
    %c0_72 = arith.constant 0 : index
    %96 = vector.load %arg8[%c2, %c0_71, %c0_72] : memref<4x15x1xf32, #tpu.memory_space<vmem>>, vector<1x15x1xf32>
    %97 = vector.shape_cast %96 : vector<1x15x1xf32> to vector<15x1xf32>
    %cst_73 = arith.constant dense<0xFF800000> : vector<15xf32>
    %98 = vector.multi_reduction <maximumf>, %95, %cst_73 [1] : vector<15x15xf32> to vector<15xf32>
    %99 = vector.shape_cast %98 : vector<15xf32> to vector<15x1xf32>
    %100 = arith.maximumf %97, %99 : vector<15x1xf32>
    %101 = arith.subf %97, %100 : vector<15x1xf32>
    %102 = math.exp %101 : vector<15x1xf32>
    %103 = vector.broadcast %100 : vector<15x1xf32> to vector<15x15xf32>
    %104 = arith.subf %95, %103 : vector<15x15xf32>
    %105 = math.exp %104 : vector<15x15xf32>
    %c2_74 = arith.constant 2 : index
    %c0_75 = arith.constant 0 : index
    %c0_76 = arith.constant 0 : index
    %106 = vector.load %arg9[%c2_74, %c0_75, %c0_76] : memref<4x15x1xf32, #tpu.memory_space<vmem>>, vector<1x15x1xf32>
    %107 = vector.shape_cast %106 : vector<1x15x1xf32> to vector<15x1xf32>
    %108 = arith.mulf %102, %107 : vector<15x1xf32>
    %cst_77 = arith.constant dense<0.000000e+00> : vector<15xf32>
    %109 = vector.multi_reduction <add>, %105, %cst_77 [1] : vector<15x15xf32> to vector<15xf32>
    %110 = vector.shape_cast %109 : vector<15xf32> to vector<15x1xf32>
    %111 = arith.addf %108, %110 : vector<15x1xf32>
    %c2_78 = arith.constant 2 : index
    %c0_79 = arith.constant 0 : index
    %c0_80 = arith.constant 0 : index
    %112 = vector.load %arg9[%c2_78, %c0_79, %c0_80] : memref<4x15x1xf32, #tpu.memory_space<vmem>>, vector<1x15x1xf32>
    %113 = vector.shape_cast %112 : vector<1x15x1xf32> to vector<15x1xf32>
    %114 = vector.shape_cast %111 : vector<15x1xf32> to vector<1x15x1xf32>
    tpu.vector_store %arg9[%c2_78, %c0_79, %c0_80], %114 {strides = array<i32>} : memref<4x15x1xf32, #tpu.memory_space<vmem>>, vector<1x15x1xf32>,
    %c2_81 = arith.constant 2 : index
    %c0_82 = arith.constant 0 : index
    %c0_83 = arith.constant 0 : index
    %115 = vector.load %arg10[%c2_81, %c0_82, %c0_83] : memref<4x15x32xf32, #tpu.memory_space<vmem>>, vector<1x15x32xf32>
    %116 = vector.shape_cast %115 : vector<1x15x32xf32> to vector<15x32xf32>
    %117 = vector.broadcast %102 : vector<15x1xf32> to vector<15x32xf32>
    %118 = arith.mulf %117, %116 : vector<15x32xf32>
    %119 = arith.truncf %105 : vector<15x15xf32> to vector<15x15xbf16>
    %cst_84 = arith.constant dense<0.000000e+00> : vector<15x32xf32>
    %120 = tpu.matmul %119, %92, %cst_84 {dimension_numbers = #tpu.dot_dimension_numbers<[1], [0], [0], [1], [0, 0, 1, 1], [], []>} : vector<15x15xbf16>, vector<15x32xbf16>, vector<15x32xf32> -> vector<15x32xf32>
    %121 = arith.addf %118, %120 : vector<15x32xf32>
    %c2_85 = arith.constant 2 : index
    %c0_86 = arith.constant 0 : index
    %c0_87 = arith.constant 0 : index
    %122 = vector.load %arg10[%c2_85, %c0_86, %c0_87] : memref<4x15x32xf32, #tpu.memory_space<vmem>>, vector<1x15x32xf32>
    %123 = vector.shape_cast %122 : vector<1x15x32xf32> to vector<15x32xf32>
    %124 = vector.shape_cast %121 : vector<15x32xf32> to vector<1x15x32xf32>
    tpu.vector_store %arg10[%c2_85, %c0_86, %c0_87], %124 {strides = array<i32>} : memref<4x15x32xf32, #tpu.memory_space<vmem>>, vector<1x15x32xf32>,
    %c2_88 = arith.constant 2 : index
    %c0_89 = arith.constant 0 : index
    %c0_90 = arith.constant 0 : index
    %125 = vector.load %arg8[%c2_88, %c0_89, %c0_90] : memref<4x15x1xf32, #tpu.memory_space<vmem>>, vector<1x15x1xf32>
    %126 = vector.shape_cast %125 : vector<1x15x1xf32> to vector<15x1xf32>
    %127 = vector.shape_cast %100 : vector<15x1xf32> to vector<1x15x1xf32>
    tpu.vector_store %arg8[%c2_88, %c0_89, %c0_90], %127 {strides = array<i32>} : memref<4x15x1xf32, #tpu.memory_space<vmem>>, vector<1x15x1xf32>,
    %c0_91 = arith.constant 0 : index
    %c0_92 = arith.constant 0 : index
    %c96 = arith.constant 96 : index
    %128 = vector.load %arg3[%c0_91, %c0_92, %c96] : memref<1x15x128xbf16, #tpu.memory_space<vmem>>, vector<1x15x32xbf16>
    %129 = vector.shape_cast %128 : vector<1x15x32xbf16> to vector<15x32xbf16>
    %c0_93 = arith.constant 0 : index
    %c0_94 = arith.constant 0 : index
    %c96_95 = arith.constant 96 : index
    %130 = vector.load %arg4[%c0_93, %c0_94, %c96_95] : memref<1x15x128xbf16, #tpu.memory_space<vmem>>, vector<1x15x32xbf16>
    %131 = vector.shape_cast %130 : vector<1x15x32xbf16> to vector<15x32xbf16>
    %c0_96 = arith.constant 0 : index
    %c0_97 = arith.constant 0 : index
    %c96_98 = arith.constant 96 : index
    %132 = vector.load %arg5[%c0_96, %c0_97, %c96_98] : memref<1x15x128xbf16, #tpu.memory_space<vmem>>, vector<1x15x32xbf16>
    %133 = vector.shape_cast %132 : vector<1x15x32xbf16> to vector<15x32xbf16>
    %cst_99 = arith.constant dense<0.000000e+00> : vector<15x15xf32>
    %134 = tpu.matmul %129, %131, %cst_99 {dimension_numbers = #tpu.dot_dimension_numbers<[1], [1], [0], [0], [0, 0, 1, 0], [], []>} : vector<15x32xbf16>, vector<15x32xbf16>, vector<15x15xf32> -> vector<15x15xf32>
    %135 = vector.broadcast %4 : vector<1x15xf32> to vector<15x15xf32>
    %136 = arith.addf %134, %135 : vector<15x15xf32>
    %c3 = arith.constant 3 : index
    %c0_100 = arith.constant 0 : index
    %c0_101 = arith.constant 0 : index
    %137 = vector.load %arg8[%c3, %c0_100, %c0_101] : memref<4x15x1xf32, #tpu.memory_space<vmem>>, vector<1x15x1xf32>
    %138 = vector.shape_cast %137 : vector<1x15x1xf32> to vector<15x1xf32>
    %cst_102 = arith.constant dense<0xFF800000> : vector<15xf32>
    %139 = vector.multi_reduction <maximumf>, %136, %cst_102 [1] : vector<15x15xf32> to vector<15xf32>
    %140 = vector.shape_cast %139 : vector<15xf32> to vector<15x1xf32>
    %141 = arith.maximumf %138, %140 : vector<15x1xf32>
    %142 = arith.subf %138, %141 : vector<15x1xf32>
    %143 = math.exp %142 : vector<15x1xf32>
    %144 = vector.broadcast %141 : vector<15x1xf32> to vector<15x15xf32>
    %145 = arith.subf %136, %144 : vector<15x15xf32>
    %146 = math.exp %145 : vector<15x15xf32>
    %c3_103 = arith.constant 3 : index
    %c0_104 = arith.constant 0 : index
    %c0_105 = arith.constant 0 : index
    %147 = vector.load %arg9[%c3_103, %c0_104, %c0_105] : memref<4x15x1xf32, #tpu.memory_space<vmem>>, vector<1x15x1xf32>
    %148 = vector.shape_cast %147 : vector<1x15x1xf32> to vector<15x1xf32>
    %149 = arith.mulf %143, %148 : vector<15x1xf32>
    %cst_106 = arith.constant dense<0.000000e+00> : vector<15xf32>
    %150 = vector.multi_reduction <add>, %146, %cst_106 [1] : vector<15x15xf32> to vector<15xf32>
    %151 = vector.shape_cast %150 : vector<15xf32> to vector<15x1xf32>
    %152 = arith.addf %149, %151 : vector<15x1xf32>
    %c3_107 = arith.constant 3 : index
    %c0_108 = arith.constant 0 : index
    %c0_109 = arith.constant 0 : index
    %153 = vector.load %arg9[%c3_107, %c0_108, %c0_109] : memref<4x15x1xf32, #tpu.memory_space<vmem>>, vector<1x15x1xf32>
    %154 = vector.shape_cast %153 : vector<1x15x1xf32> to vector<15x1xf32>
    %155 = vector.shape_cast %152 : vector<15x1xf32> to vector<1x15x1xf32>
    tpu.vector_store %arg9[%c3_107, %c0_108, %c0_109], %155 {strides = array<i32>} : memref<4x15x1xf32, #tpu.memory_space<vmem>>, vector<1x15x1xf32>,
    %c3_110 = arith.constant 3 : index
    %c0_111 = arith.constant 0 : index
    %c0_112 = arith.constant 0 : index
    %156 = vector.load %arg10[%c3_110, %c0_111, %c0_112] : memref<4x15x32xf32, #tpu.memory_space<vmem>>, vector<1x15x32xf32>
    %157 = vector.shape_cast %156 : vector<1x15x32xf32> to vector<15x32xf32>
    %158 = vector.broadcast %143 : vector<15x1xf32> to vector<15x32xf32>
    %159 = arith.mulf %158, %157 : vector<15x32xf32>
    %160 = arith.truncf %146 : vector<15x15xf32> to vector<15x15xbf16>
    %cst_113 = arith.constant dense<0.000000e+00> : vector<15x32xf32>
    %161 = tpu.matmul %160, %133, %cst_113 {dimension_numbers = #tpu.dot_dimension_numbers<[1], [0], [0], [1], [0, 0, 1, 1], [], []>} : vector<15x15xbf16>, vector<15x32xbf16>, vector<15x32xf32> -> vector<15x32xf32>
    %162 = arith.addf %159, %161 : vector<15x32xf32>
    %c3_114 = arith.constant 3 : index
    %c0_115 = arith.constant 0 : index
    %c0_116 = arith.constant 0 : index
    %163 = vector.load %arg10[%c3_114, %c0_115, %c0_116] : memref<4x15x32xf32, #tpu.memory_space<vmem>>, vector<1x15x32xf32>
    %164 = vector.shape_cast %163 : vector<1x15x32xf32> to vector<15x32xf32>
    %165 = vector.shape_cast %162 : vector<15x32xf32> to vector<1x15x32xf32>
    tpu.vector_store %arg10[%c3_114, %c0_115, %c0_116], %165 {strides = array<i32>} : memref<4x15x32xf32, #tpu.memory_space<vmem>>, vector<1x15x32xf32>,
    %c3_117 = arith.constant 3 : index
    %c0_118 = arith.constant 0 : index
    %c0_119 = arith.constant 0 : index
    %166 = vector.load %arg8[%c3_117, %c0_118, %c0_119] : memref<4x15x1xf32, #tpu.memory_space<vmem>>, vector<1x15x1xf32>
    %167 = vector.shape_cast %166 : vector<1x15x1xf32> to vector<15x1xf32>
    %168 = vector.shape_cast %141 : vector<15x1xf32> to vector<1x15x1xf32>
    tpu.vector_store %arg8[%c3_117, %c0_118, %c0_119], %168 {strides = array<i32>} : memref<4x15x1xf32, #tpu.memory_space<vmem>>, vector<1x15x1xf32>,
    %c0_i32_120 = arith.constant 0 : i32
    %169 = arith.cmpi eq, %arg2, %c0_i32_120 : i32
    %170 = arith.extui %169 : i1 to i32
    %c0_i32_121 = arith.constant 0 : i32
    %171 = arith.cmpi ne, %170, %c0_i32_121 : i32
    scf.if %171 {
      %c0_122 = arith.constant 0 : index
      %c0_123 = arith.constant 0 : index
      %c0_124 = arith.constant 0 : index
      %172 = vector.load %arg10[%c0_122, %c0_123, %c0_124] : memref<4x15x32xf32, #tpu.memory_space<vmem>>, vector<1x15x32xf32>
      %173 = vector.shape_cast %172 : vector<1x15x32xf32> to vector<15x32xf32>
      %c0_125 = arith.constant 0 : index
      %c0_126 = arith.constant 0 : index
      %c0_127 = arith.constant 0 : index
      %174 = vector.load %arg9[%c0_125, %c0_126, %c0_127] : memref<4x15x1xf32, #tpu.memory_space<vmem>>, vector<1x15x1xf32>
      %175 = vector.shape_cast %174 : vector<1x15x1xf32> to vector<15x1xf32>
      %176 = vector.broadcast %175 : vector<15x1xf32> to vector<15x32xf32>
      %177 = arith.divf %173, %176 : vector<15x32xf32>
      %c1_128 = arith.constant 1 : index
      %c0_129 = arith.constant 0 : index
      %c0_130 = arith.constant 0 : index
      %178 = vector.load %arg10[%c1_128, %c0_129, %c0_130] : memref<4x15x32xf32, #tpu.memory_space<vmem>>, vector<1x15x32xf32>
      %179 = vector.shape_cast %178 : vector<1x15x32xf32> to vector<15x32xf32>
      %c1_131 = arith.constant 1 : index
      %c0_132 = arith.constant 0 : index
      %c0_133 = arith.constant 0 : index
      %180 = vector.load %arg9[%c1_131, %c0_132, %c0_133] : memref<4x15x1xf32, #tpu.memory_space<vmem>>, vector<1x15x1xf32>
      %181 = vector.shape_cast %180 : vector<1x15x1xf32> to vector<15x1xf32>
      %182 = vector.broadcast %181 : vector<15x1xf32> to vector<15x32xf32>
      %183 = arith.divf %179, %182 : vector<15x32xf32>
      %c2_134 = arith.constant 2 : index
      %c0_135 = arith.constant 0 : index
      %c0_136 = arith.constant 0 : index
      %184 = vector.load %arg10[%c2_134, %c0_135, %c0_136] : memref<4x15x32xf32, #tpu.memory_space<vmem>>, vector<1x15x32xf32>
      %185 = vector.shape_cast %184 : vector<1x15x32xf32> to vector<15x32xf32>
      %c2_137 = arith.constant 2 : index
      %c0_138 = arith.constant 0 : index
      %c0_139 = arith.constant 0 : index
      %186 = vector.load %arg9[%c2_137, %c0_138, %c0_139] : memref<4x15x1xf32, #tpu.memory_space<vmem>>, vector<1x15x1xf32>
      %187 = vector.shape_cast %186 : vector<1x15x1xf32> to vector<15x1xf32>
      %188 = vector.broadcast %187 : vector<15x1xf32> to vector<15x32xf32>
      %189 = arith.divf %185, %188 : vector<15x32xf32>
      %c3_140 = arith.constant 3 : index
      %c0_141 = arith.constant 0 : index
      %c0_142 = arith.constant 0 : index
      %190 = vector.load %arg10[%c3_140, %c0_141, %c0_142] : memref<4x15x32xf32, #tpu.memory_space<vmem>>, vector<1x15x32xf32>
      %191 = vector.shape_cast %190 : vector<1x15x32xf32> to vector<15x32xf32>
      %c3_143 = arith.constant 3 : index
      %c0_144 = arith.constant 0 : index
      %c0_145 = arith.constant 0 : index
      %192 = vector.load %arg9[%c3_143, %c0_144, %c0_145] : memref<4x15x1xf32, #tpu.memory_space<vmem>>, vector<1x15x1xf32>
      %193 = vector.shape_cast %192 : vector<1x15x1xf32> to vector<15x1xf32>
      %194 = vector.broadcast %193 : vector<15x1xf32> to vector<15x32xf32>
      %195 = arith.divf %191, %194 : vector<15x32xf32>
      %196 = tpu.concatenate %177, %183, %189, %195 in 1 : vector<15x32xf32>, vector<15x32xf32>, vector<15x32xf32>, vector<15x32xf32> -> vector<15x128xf32>
      %197 = arith.truncf %196 : vector<15x128xf32> to vector<15x128xbf16>
      %c0_146 = arith.constant 0 : index
      %c0_147 = arith.constant 0 : index
      %c0_148 = arith.constant 0 : index
      %198 = vector.load %arg7[%c0_146, %c0_147, %c0_148] : memref<1x15x128xbf16, #tpu.memory_space<vmem>>, vector<1x15x128xbf16>
      %199 = vector.shape_cast %198 : vector<1x15x128xbf16> to vector<15x128xbf16>
      %200 = vector.shape_cast %197 : vector<15x128xbf16> to vector<1x15x128xbf16>
      tpu.vector_store %arg7[%c0_146, %c0_147, %c0_148], %200 {strides = array<i32>} : memref<1x15x128xbf16, #tpu.memory_space<vmem>>, vector<1x15x128xbf16>,
    } else {
    }
    return
  }
  func.func @transform_0(%arg0: i32, %arg1: i32, %arg2: i32) -> (i32, i32, i32) {
    %c0_i32 = arith.constant 0 : i32
    %c0_i32_0 = arith.constant 0 : i32
    return %arg0, %arg1, %c0_i32 : i32, i32, i32
  }
  func.func @transform_1(%arg0: i32, %arg1: i32, %arg2: i32) -> (i32, i32, i32) {
    %c1_i32 = arith.constant 1 : i32
    %c0_i32 = arith.constant 0 : i32
    return %arg0, %arg2, %c1_i32 : i32, i32, i32
  }
  func.func @transform_2(%arg0: i32, %arg1: i32, %arg2: i32) -> (i32, i32, i32) {
    %c2_i32 = arith.constant 2 : i32
    %c0_i32 = arith.constant 0 : i32
    return %arg0, %arg2, %c2_i32 : i32, i32, i32
  }
  func.func @transform_3(%arg0: i32, %arg1: i32, %arg2: i32) -> (i32, i32, i32) {
    %c0_i32 = arith.constant 0 : i32
    %c0_i32_0 = arith.constant 0 : i32
    return %arg0, %c0_i32, %arg2 : i32, i32, i32
  }
  func.func @transform_4(%arg0: i32, %arg1: i32, %arg2: i32) -> (i32, i32, i32) {
    %c0_i32 = arith.constant 0 : i32
    %c0_i32_0 = arith.constant 0 : i32
    return %arg0, %arg1, %c0_i32 : i32, i32, i32
  }
}

module attributes {stable_mosaic.version = 11 : i64} {
  func.func @_linear_res_ln_kernel(%arg0: i32, %arg1: memref<30x128xbf16, #tpu.memory_space<vmem>>, %arg2: memref<128x128xbf16, #tpu.memory_space<vmem>>, %arg3: memref<1x128xf32, #tpu.memory_space<vmem>>, %arg4: memref<30x128xbf16, #tpu.memory_space<vmem>>, %arg5: memref<1x128xf32, #tpu.memory_space<vmem>>, %arg6: memref<1x128xf32, #tpu.memory_space<vmem>>, %arg7: memref<30x128xbf16, #tpu.memory_space<vmem>>) attributes {dimension_semantics = [#tpu.dimension_semantics<parallel>], iteration_bounds = array<i64: 1>, scalar_prefetch = 0 : i64, scratch_operands = 0 : i64, tpu.core_type = #tpu.core_type<tc>, window_params = [{transform_indices = @transform_0, window_bounds = array<i64: 30, 128>}, {pipeline_mode = #tpu.pipeline_mode<synchronous>, transform_indices = @transform_1, window_bounds = array<i64: 128, 128>}, {pipeline_mode = #tpu.pipeline_mode<synchronous>, transform_indices = @transform_2, window_bounds = array<i64: 1, 128>}, {transform_indices = @transform_3, window_bounds = array<i64: 30, 128>}, {pipeline_mode = #tpu.pipeline_mode<synchronous>, transform_indices = @transform_4, window_bounds = array<i64: 1, 128>}, {pipeline_mode = #tpu.pipeline_mode<synchronous>, transform_indices = @transform_5, window_bounds = array<i64: 1, 128>}, {transform_indices = @transform_6, window_bounds = array<i64: 30, 128>}]} {
    %c0 = arith.constant 0 : index
    %c0_0 = arith.constant 0 : index
    %0 = vector.load %arg1[%c0, %c0_0] : memref<30x128xbf16, #tpu.memory_space<vmem>>, vector<30x128xbf16>
    %c0_1 = arith.constant 0 : index
    %c0_2 = arith.constant 0 : index
    %1 = vector.load %arg2[%c0_1, %c0_2] : memref<128x128xbf16, #tpu.memory_space<vmem>>, vector<128x128xbf16>
    %cst = arith.constant dense<0.000000e+00> : vector<30x128xf32>
    %2 = tpu.matmul %0, %1, %cst {dimension_numbers = #tpu.dot_dimension_numbers<[1], [0], [0], [1], [0, 0, 1, 1], [], []>} : vector<30x128xbf16>, vector<128x128xbf16>, vector<30x128xf32> -> vector<30x128xf32>
    %c0_3 = arith.constant 0 : index
    %c0_4 = arith.constant 0 : index
    %3 = vector.load %arg3[%c0_3, %c0_4] : memref<1x128xf32, #tpu.memory_space<vmem>>, vector<1x128xf32>
    %4 = vector.broadcast %3 : vector<1x128xf32> to vector<30x128xf32>
    %5 = arith.addf %2, %4 : vector<30x128xf32>
    %c0_5 = arith.constant 0 : index
    %c0_6 = arith.constant 0 : index
    %6 = vector.load %arg4[%c0_5, %c0_6] : memref<30x128xbf16, #tpu.memory_space<vmem>>, vector<30x128xbf16>
    %7 = arith.extf %6 : vector<30x128xbf16> to vector<30x128xf32>
    %8 = arith.addf %5, %7 : vector<30x128xf32>
    %c0_7 = arith.constant 0 : index
    %c0_8 = arith.constant 0 : index
    %9 = vector.load %arg5[%c0_7, %c0_8] : memref<1x128xf32, #tpu.memory_space<vmem>>, vector<1x128xf32>
    %c0_9 = arith.constant 0 : index
    %c0_10 = arith.constant 0 : index
    %10 = vector.load %arg6[%c0_9, %c0_10] : memref<1x128xf32, #tpu.memory_space<vmem>>, vector<1x128xf32>
    %cst_11 = arith.constant dense<0.000000e+00> : vector<30xf32>
    %11 = vector.multi_reduction <add>, %8, %cst_11 [1] : vector<30x128xf32> to vector<30xf32>
    %12 = vector.shape_cast %11 : vector<30xf32> to vector<30x1xf32>
    %cst_12 = arith.constant 1.280000e+02 : f32
    %13 = vector.broadcast %cst_12 : f32 to vector<30x1xf32>
    %14 = arith.divf %12, %13 : vector<30x1xf32>
    %15 = vector.broadcast %14 : vector<30x1xf32> to vector<30x128xf32>
    %16 = arith.subf %8, %15 : vector<30x128xf32>
    %17 = arith.mulf %16, %16 : vector<30x128xf32>
    %cst_13 = arith.constant dense<0.000000e+00> : vector<30xf32>
    %18 = vector.multi_reduction <add>, %17, %cst_13 [1] : vector<30x128xf32> to vector<30xf32>
    %19 = vector.shape_cast %18 : vector<30xf32> to vector<30x1xf32>
    %cst_14 = arith.constant 1.280000e+02 : f32
    %20 = vector.broadcast %cst_14 : f32 to vector<30x1xf32>
    %21 = arith.divf %19, %20 : vector<30x1xf32>
    %22 = vector.broadcast %14 : vector<30x1xf32> to vector<30x128xf32>
    %23 = arith.subf %8, %22 : vector<30x128xf32>
    %cst_15 = arith.constant 9.99999974E-6 : f32
    %24 = vector.broadcast %cst_15 : f32 to vector<30x1xf32>
    %25 = arith.addf %21, %24 : vector<30x1xf32>
    %26 = math.rsqrt %25 : vector<30x1xf32>
    %27 = vector.broadcast %26 : vector<30x1xf32> to vector<30x128xf32>
    %28 = arith.mulf %23, %27 : vector<30x128xf32>
    %29 = vector.broadcast %9 : vector<1x128xf32> to vector<30x128xf32>
    %30 = arith.mulf %28, %29 : vector<30x128xf32>
    %31 = vector.broadcast %10 : vector<1x128xf32> to vector<30x128xf32>
    %32 = arith.addf %30, %31 : vector<30x128xf32>
    %33 = arith.truncf %32 : vector<30x128xf32> to vector<30x128xbf16>
    %c0_16 = arith.constant 0 : index
    %c0_17 = arith.constant 0 : index
    %34 = vector.load %arg7[%c0_16, %c0_17] : memref<30x128xbf16, #tpu.memory_space<vmem>>, vector<30x128xbf16>
    tpu.vector_store %arg7[%c0_16, %c0_17], %33 {strides = array<i32>} : memref<30x128xbf16, #tpu.memory_space<vmem>>, vector<30x128xbf16>,
    return
  }
  func.func @transform_0(%arg0: i32) -> (i32, i32) {
    %c0_i32 = arith.constant 0 : i32
    %c0_i32_0 = arith.constant 0 : i32
    return %arg0, %c0_i32 : i32, i32
  }
  func.func @transform_1(%arg0: i32) -> (i32, i32) {
    %c0_i32 = arith.constant 0 : i32
    %c0_i32_0 = arith.constant 0 : i32
    %c0_i32_1 = arith.constant 0 : i32
    return %c0_i32, %c0_i32_0 : i32, i32
  }
  func.func @transform_2(%arg0: i32) -> (i32, i32) {
    %c0_i32 = arith.constant 0 : i32
    %c0_i32_0 = arith.constant 0 : i32
    %c0_i32_1 = arith.constant 0 : i32
    return %c0_i32, %c0_i32_0 : i32, i32
  }
  func.func @transform_3(%arg0: i32) -> (i32, i32) {
    %c0_i32 = arith.constant 0 : i32
    %c0_i32_0 = arith.constant 0 : i32
    return %arg0, %c0_i32 : i32, i32
  }
  func.func @transform_4(%arg0: i32) -> (i32, i32) {
    %c0_i32 = arith.constant 0 : i32
    %c0_i32_0 = arith.constant 0 : i32
    %c0_i32_1 = arith.constant 0 : i32
    return %c0_i32, %c0_i32_0 : i32, i32
  }
  func.func @transform_5(%arg0: i32) -> (i32, i32) {
    %c0_i32 = arith.constant 0 : i32
    %c0_i32_0 = arith.constant 0 : i32
    %c0_i32_1 = arith.constant 0 : i32
    return %c0_i32, %c0_i32_0 : i32, i32
  }
  func.func @transform_6(%arg0: i32) -> (i32, i32) {
    %c0_i32 = arith.constant 0 : i32
    %c0_i32_0 = arith.constant 0 : i32
    return %arg0, %c0_i32 : i32, i32
  }
}

module attributes {stable_mosaic.version = 11 : i64} {
  func.func @_ffn_res_ln_kernel(%arg0: i32, %arg1: memref<30x128xbf16, #tpu.memory_space<vmem>>, %arg2: memref<128x256xbf16, #tpu.memory_space<vmem>>, %arg3: memref<1x256xf32, #tpu.memory_space<vmem>>, %arg4: memref<256x128xbf16, #tpu.memory_space<vmem>>, %arg5: memref<1x128xf32, #tpu.memory_space<vmem>>, %arg6: memref<1x128xf32, #tpu.memory_space<vmem>>, %arg7: memref<1x128xf32, #tpu.memory_space<vmem>>, %arg8: memref<30x128xbf16, #tpu.memory_space<vmem>>) attributes {dimension_semantics = [#tpu.dimension_semantics<parallel>], iteration_bounds = array<i64: 1>, scalar_prefetch = 0 : i64, scratch_operands = 0 : i64, tpu.core_type = #tpu.core_type<tc>, window_params = [{transform_indices = @transform_0, window_bounds = array<i64: 30, 128>}, {pipeline_mode = #tpu.pipeline_mode<synchronous>, transform_indices = @transform_1, window_bounds = array<i64: 128, 256>}, {pipeline_mode = #tpu.pipeline_mode<synchronous>, transform_indices = @transform_2, window_bounds = array<i64: 1, 256>}, {pipeline_mode = #tpu.pipeline_mode<synchronous>, transform_indices = @transform_3, window_bounds = array<i64: 256, 128>}, {pipeline_mode = #tpu.pipeline_mode<synchronous>, transform_indices = @transform_4, window_bounds = array<i64: 1, 128>}, {pipeline_mode = #tpu.pipeline_mode<synchronous>, transform_indices = @transform_5, window_bounds = array<i64: 1, 128>}, {pipeline_mode = #tpu.pipeline_mode<synchronous>, transform_indices = @transform_6, window_bounds = array<i64: 1, 128>}, {transform_indices = @transform_7, window_bounds = array<i64: 30, 128>}]} {
    %c0 = arith.constant 0 : index
    %c0_0 = arith.constant 0 : index
    %0 = vector.load %arg1[%c0, %c0_0] : memref<30x128xbf16, #tpu.memory_space<vmem>>, vector<30x128xbf16>
    %c0_1 = arith.constant 0 : index
    %c0_2 = arith.constant 0 : index
    %1 = vector.load %arg2[%c0_1, %c0_2] : memref<128x256xbf16, #tpu.memory_space<vmem>>, vector<128x256xbf16>
    %cst = arith.constant dense<0.000000e+00> : vector<30x256xf32>
    %2 = tpu.matmul %0, %1, %cst {dimension_numbers = #tpu.dot_dimension_numbers<[1], [0], [0], [1], [0, 0, 1, 1], [], []>} : vector<30x128xbf16>, vector<128x256xbf16>, vector<30x256xf32> -> vector<30x256xf32>
    %c0_3 = arith.constant 0 : index
    %c0_4 = arith.constant 0 : index
    %3 = vector.load %arg3[%c0_3, %c0_4] : memref<1x256xf32, #tpu.memory_space<vmem>>, vector<1x256xf32>
    %4 = vector.broadcast %3 : vector<1x256xf32> to vector<30x256xf32>
    %5 = arith.addf %2, %4 : vector<30x256xf32>
    %cst_5 = arith.constant 5.000000e-01 : f32
    %6 = vector.broadcast %cst_5 : f32 to vector<30x256xf32>
    %7 = arith.mulf %6, %5 : vector<30x256xf32>
    %cst_6 = arith.constant 4.471500e-02 : f32
    %8 = vector.broadcast %cst_6 : f32 to vector<30x256xf32>
    %9 = arith.mulf %8, %5 : vector<30x256xf32>
    %10 = arith.mulf %9, %5 : vector<30x256xf32>
    %11 = arith.mulf %10, %5 : vector<30x256xf32>
    %12 = arith.addf %5, %11 : vector<30x256xf32>
    %cst_7 = arith.constant 0.797884583 : f32
    %13 = vector.broadcast %cst_7 : f32 to vector<30x256xf32>
    %14 = arith.mulf %13, %12 : vector<30x256xf32>
    %15 = math.tanh %14 : vector<30x256xf32>
    %cst_8 = arith.constant 1.000000e+00 : f32
    %16 = vector.broadcast %cst_8 : f32 to vector<30x256xf32>
    %17 = arith.addf %16, %15 : vector<30x256xf32>
    %18 = arith.mulf %7, %17 : vector<30x256xf32>
    %19 = arith.truncf %18 : vector<30x256xf32> to vector<30x256xbf16>
    %c0_9 = arith.constant 0 : index
    %c0_10 = arith.constant 0 : index
    %20 = vector.load %arg4[%c0_9, %c0_10] : memref<256x128xbf16, #tpu.memory_space<vmem>>, vector<256x128xbf16>
    %cst_11 = arith.constant dense<0.000000e+00> : vector<30x128xf32>
    %21 = tpu.matmul %19, %20, %cst_11 {dimension_numbers = #tpu.dot_dimension_numbers<[1], [0], [0], [1], [0, 0, 1, 1], [], []>} : vector<30x256xbf16>, vector<256x128xbf16>, vector<30x128xf32> -> vector<30x128xf32>
    %c0_12 = arith.constant 0 : index
    %c0_13 = arith.constant 0 : index
    %22 = vector.load %arg5[%c0_12, %c0_13] : memref<1x128xf32, #tpu.memory_space<vmem>>, vector<1x128xf32>
    %23 = vector.broadcast %22 : vector<1x128xf32> to vector<30x128xf32>
    %24 = arith.addf %21, %23 : vector<30x128xf32>
    %25 = arith.extf %0 : vector<30x128xbf16> to vector<30x128xf32>
    %26 = arith.addf %24, %25 : vector<30x128xf32>
    %c0_14 = arith.constant 0 : index
    %c0_15 = arith.constant 0 : index
    %27 = vector.load %arg6[%c0_14, %c0_15] : memref<1x128xf32, #tpu.memory_space<vmem>>, vector<1x128xf32>
    %c0_16 = arith.constant 0 : index
    %c0_17 = arith.constant 0 : index
    %28 = vector.load %arg7[%c0_16, %c0_17] : memref<1x128xf32, #tpu.memory_space<vmem>>, vector<1x128xf32>
    %cst_18 = arith.constant dense<0.000000e+00> : vector<30xf32>
    %29 = vector.multi_reduction <add>, %26, %cst_18 [1] : vector<30x128xf32> to vector<30xf32>
    %30 = vector.shape_cast %29 : vector<30xf32> to vector<30x1xf32>
    %cst_19 = arith.constant 1.280000e+02 : f32
    %31 = vector.broadcast %cst_19 : f32 to vector<30x1xf32>
    %32 = arith.divf %30, %31 : vector<30x1xf32>
    %33 = vector.broadcast %32 : vector<30x1xf32> to vector<30x128xf32>
    %34 = arith.subf %26, %33 : vector<30x128xf32>
    %35 = arith.mulf %34, %34 : vector<30x128xf32>
    %cst_20 = arith.constant dense<0.000000e+00> : vector<30xf32>
    %36 = vector.multi_reduction <add>, %35, %cst_20 [1] : vector<30x128xf32> to vector<30xf32>
    %37 = vector.shape_cast %36 : vector<30xf32> to vector<30x1xf32>
    %cst_21 = arith.constant 1.280000e+02 : f32
    %38 = vector.broadcast %cst_21 : f32 to vector<30x1xf32>
    %39 = arith.divf %37, %38 : vector<30x1xf32>
    %40 = vector.broadcast %32 : vector<30x1xf32> to vector<30x128xf32>
    %41 = arith.subf %26, %40 : vector<30x128xf32>
    %cst_22 = arith.constant 9.99999974E-6 : f32
    %42 = vector.broadcast %cst_22 : f32 to vector<30x1xf32>
    %43 = arith.addf %39, %42 : vector<30x1xf32>
    %44 = math.rsqrt %43 : vector<30x1xf32>
    %45 = vector.broadcast %44 : vector<30x1xf32> to vector<30x128xf32>
    %46 = arith.mulf %41, %45 : vector<30x128xf32>
    %47 = vector.broadcast %27 : vector<1x128xf32> to vector<30x128xf32>
    %48 = arith.mulf %46, %47 : vector<30x128xf32>
    %49 = vector.broadcast %28 : vector<1x128xf32> to vector<30x128xf32>
    %50 = arith.addf %48, %49 : vector<30x128xf32>
    %51 = arith.truncf %50 : vector<30x128xf32> to vector<30x128xbf16>
    %c0_23 = arith.constant 0 : index
    %c0_24 = arith.constant 0 : index
    %52 = vector.load %arg8[%c0_23, %c0_24] : memref<30x128xbf16, #tpu.memory_space<vmem>>, vector<30x128xbf16>
    tpu.vector_store %arg8[%c0_23, %c0_24], %51 {strides = array<i32>} : memref<30x128xbf16, #tpu.memory_space<vmem>>, vector<30x128xbf16>,
    return
  }
  func.func @transform_0(%arg0: i32) -> (i32, i32) {
    %c0_i32 = arith.constant 0 : i32
    %c0_i32_0 = arith.constant 0 : i32
    return %arg0, %c0_i32 : i32, i32
  }
  func.func @transform_1(%arg0: i32) -> (i32, i32) {
    %c0_i32 = arith.constant 0 : i32
    %c0_i32_0 = arith.constant 0 : i32
    %c0_i32_1 = arith.constant 0 : i32
    return %c0_i32, %c0_i32_0 : i32, i32
  }
  func.func @transform_2(%arg0: i32) -> (i32, i32) {
    %c0_i32 = arith.constant 0 : i32
    %c0_i32_0 = arith.constant 0 : i32
    %c0_i32_1 = arith.constant 0 : i32
    return %c0_i32, %c0_i32_0 : i32, i32
  }
  func.func @transform_3(%arg0: i32) -> (i32, i32) {
    %c0_i32 = arith.constant 0 : i32
    %c0_i32_0 = arith.constant 0 : i32
    %c0_i32_1 = arith.constant 0 : i32
    return %c0_i32, %c0_i32_0 : i32, i32
  }
  func.func @transform_4(%arg0: i32) -> (i32, i32) {
    %c0_i32 = arith.constant 0 : i32
    %c0_i32_0 = arith.constant 0 : i32
    %c0_i32_1 = arith.constant 0 : i32
    return %c0_i32, %c0_i32_0 : i32, i32
  }
  func.func @transform_5(%arg0: i32) -> (i32, i32) {
    %c0_i32 = arith.constant 0 : i32
    %c0_i32_0 = arith.constant 0 : i32
    %c0_i32_1 = arith.constant 0 : i32
    return %c0_i32, %c0_i32_0 : i32, i32
  }
  func.func @transform_6(%arg0: i32) -> (i32, i32) {
    %c0_i32 = arith.constant 0 : i32
    %c0_i32_0 = arith.constant 0 : i32
    %c0_i32_1 = arith.constant 0 : i32
    return %c0_i32, %c0_i32_0 : i32, i32
  }
  func.func @transform_7(%arg0: i32) -> (i32, i32) {
    %c0_i32 = arith.constant 0 : i32
    %c0_i32_0 = arith.constant 0 : i32
    return %arg0, %c0_i32 : i32, i32
  }
}

</mosaic_0001>

<llo_original>
// kernel: tpu_custom_call.1
$region0: #{tpu_custom_call.1}
  #allocation0 [shape = 'u32[]', space=smem, size = 0x4, offset = 0x4, fixed_abs, tag = 'smem constant byte address 0x4 - core index']
  #allocation1 [shape = 'u32[72,128]{1,0:T(1,128)}', space=vmem, size = 0x9000, scoped, tag = 'internal scratch']
  %s0 = inlined_call_operand.hbm [shape: f32[8,128], index: 0, kind: input, shape index: {}]
  %s1 = inlined_call_operand.hbm [shape: f32[8,128], index: 1, kind: output, shape index: {}]
  %s2 = sld [smem:[#allocation0]]
  $region18: #{tpu_custom_call.1} parent=0
    _
  %s4 = ssub.s32 1, %s2
  %s5 = scalar_select 0, %s4, %s2
  $region1: #{tpu_custom_call.1} parent=0
    #allocation2 [shape = 'u8[4096]{0}', space=vmem, size = 0x1000, scoped, tag = 'input window, operand 0, single buffered']
    #allocation3 [shape = 's32[1]{0}', space=sflag, size = 0x4, scoped, tag = 'scoped memory for tpu_custom_call.1']
    #allocation4 [shape = 's32[1]{0}', space=sflag, size = 0x4, scoped, tag = 'scoped memory for tpu_custom_call.1']
    #allocation5 [shape = 'u8[4096]{0}', space=vmem, size = 0x1000, scoped, tag = 'output window, operand 0, single buffered']
    %6 = vsyncpa [#allocation3], 0
    %7 = vsyncpa [#allocation4], 0
    // Predicated region
    $region2: #{tpu_custom_call.1} parent=1 // pred_check
      _
    $region3: #{tpu_custom_call.1} parent=1 // pred_check_branch
      %9 = sbr.rel (0) target = $region5
    $region4: #{tpu_custom_call.1} parent=1 // pred_region
      %11 = vsyncadd [#allocation3], 0
      %s13 = sshll.u32 %s0, 4
      %s14 = int_to_ptr.hbm [resolvable:$true] %s13
      %s15 = sshll.u32 [#allocation2], 4
      %s16 = int_to_ptr.vmem [resolvable:$true] %s15
      %18 = dma.hbm_to_vmem [thread:$0]  %s14, 128, %s16, [#allocation3]
    $region5: #{tpu_custom_call.1} parent=1 // pred_fallthru
      _
    // Predicated region
    $region6: #{tpu_custom_call.1} parent=1 // pred_check
      _
    $region7: #{tpu_custom_call.1} parent=1 // pred_check_branch
      %20 = sbr.rel (0) target = $region9
    $region8: #{tpu_custom_call.1} parent=1 // pred_region
      %22 = dma.done [#allocation3], 128
    $region9: #{tpu_custom_call.1} parent=1 // pred_fallthru
      _
    %v23 = vld [vmem:[#allocation2] sm:$0xff]
    %24 = vst [vmem:[#allocation5] sm:$0xff] %v23
    // Predicated region
    $region10: #{tpu_custom_call.1} parent=1 // pred_check
      _
    $region11: #{tpu_custom_call.1} parent=1 // pred_check_branch
      %26 = sbr.rel (0) target = $region13
    $region12: #{tpu_custom_call.1} parent=1 // pred_region
      %28 = vsyncadd [#allocation4], 0
      %s30 = sshll.u32 [#allocation5], 4
      %s31 = int_to_ptr.vmem [resolvable:$true] %s30
      %s32 = sshll.u32 %s1, 4
      %s33 = int_to_ptr.hbm [resolvable:$true] %s32
      %35 = dma.vmem_to_hbm [thread:$0]  %s31, 128, %s33, [#allocation4]
    $region13: #{tpu_custom_call.1} parent=1 // pred_fallthru
      _
    // Predicated region
    $region14: #{tpu_custom_call.1} parent=1 // pred_check
      _
    $region15: #{tpu_custom_call.1} parent=1 // pred_check_branch
      %37 = sbr.rel (0) target = $region17
    $region16: #{tpu_custom_call.1} parent=1 // pred_region
      %39 = dma.done [#allocation4], 128
    $region17: #{tpu_custom_call.1} parent=1 // pred_fallthru
      _
    %40 = vsyncpa [#allocation3], 1
    %41 = vsyncpa [#allocation4], 1

// kernel: _lambda_.15
$region0: #{_lambda_.15}
  #allocation0 [shape = 'u32[]', space=smem, size = 0x4, offset = 0x4, fixed_abs, tag = 'smem constant byte address 0x4 - core index']
  #allocation1 [shape = 'u32[72,128]{1,0:T(1,128)}', space=vmem, size = 0x9000, scoped, tag = 'internal scratch']
  %s0 = inlined_call_operand.vmem [shape: bf16[126,10], index: 0, kind: input, shape index: {}]
  %s1 = inlined_call_operand.vmem [shape: bf16[10,16], index: 1, kind: input, shape index: {}]
  %s2 = inlined_call_operand.vmem [shape: bf16[126,16], index: 2, kind: output, shape index: {}]
  %s3 = sld [smem:[#allocation0]]
  $region18: #{_lambda_.15} parent=0
    _
  %s5 = ssub.s32 1, %s3
  %s6 = scalar_select 0, %s5, %s3
  // Predicated region
  $region2: #{_lambda_.15} parent=0 // pred_check
    _
  $region3: #{_lambda_.15} parent=0 // pred_check_branch
    %8 = sbr.rel (0) target = $region5
  $region4: #{_lambda_.15} parent=0 // pred_region
    _
  $region5: #{_lambda_.15} parent=0 // pred_fallthru
    _
  // Predicated region
  $region6: #{_lambda_.15} parent=0 // pred_check
    _
  $region7: #{_lambda_.15} parent=0 // pred_check_branch
    %10 = sbr.rel (0) target = $region9
  $region8: #{_lambda_.15} parent=0 // pred_region
    _
  $region9: #{_lambda_.15} parent=0 // pred_fallthru
    _
  %v12 = vld [vmem:[%s0] sm:$0xf]
  %v13 = vld [vmem:[%s0 + $0x4] sm:$0xf]
  %v14 = vld [vmem:[%s0 + $0x8] sm:$0xf]
  %v15 = vld [vmem:[%s0 + $0xc] sm:$0xf]
  %v16 = vld [vmem:[%s0 + $0x10] sm:$0xf]
  %v17 = vld [vmem:[%s0 + $0x14] sm:$0xf]
  %v18 = vld [vmem:[%s0 + $0x18] sm:$0xf]
  %v19 = vld [vmem:[%s0 + $0x1c] sm:$0xf]
  %v20 = vld [vmem:[%s0 + $0x20] sm:$0xf]
  %v21 = vld [vmem:[%s0 + $0x24] sm:$0xf]
  %v22 = vld [vmem:[%s0 + $0x28] sm:$0xf]
  %v23 = vld [vmem:[%s0 + $0x2c] sm:$0xf]
  %v24 = vld [vmem:[%s0 + $0x30] sm:$0xf]
  %v25 = vld [vmem:[%s0 + $0x34] sm:$0xf]
  %v26 = vld [vmem:[%s0 + $0x38] sm:$0xf]
  %v27 = vld [vmem:[%s0 + $0x3c] sm:$0x7]
  %v28 = vld [vmem:[%s1] sm:$0xf]
  %v29 = vld [vmem:[%s1 + $0x4] sm:$0x1]
  %v46 = vunpack.c.l.b16 %v12
  %v47 = vunpack.c.l.b16 %v13
  %v48 = vunpack.c.l.b16 %v14
  %v49 = vunpack.c.l.b16 %v15
  %v50 = vunpack.c.l.b16 %v16
  %v51 = vunpack.c.l.b16 %v17
  %v52 = vunpack.c.l.b16 %v18
  %v53 = vunpack.c.l.b16 %v19
  %v54 = vunpack.c.l.b16 %v20
  %v55 = vunpack.c.l.b16 %v21
  %v56 = vunpack.c.l.b16 %v22
  %v57 = vunpack.c.l.b16 %v23
  %v58 = vunpack.c.l.b16 %v24
  %v59 = vunpack.c.l.b16 %v25
  %v60 = vunpack.c.l.b16 %v26
  %v61 = vunpack.c.l.b16 %v27
  %v62 = vpack.c.b16 %v47, %v46
  %v63 = vpack.c.b16 %v49, %v48
  %v64 = vpack.c.b16 %v51, %v50
  %v65 = vpack.c.b16 %v53, %v52
  %v66 = vpack.c.b16 %v55, %v54
  %v67 = vpack.c.b16 %v57, %v56
  %v68 = vpack.c.b16 %v59, %v58
  %v69 = vpack.c.b16 %v61, %v60
  %v72 = vunpack.c.l.b16 %v28
  %v73 = vunpack.c.l.b16 %v29
  %v74 = vpack.c.b16 %v73, %v72
  %vm75 = vcmask 80896
  %v77 = vsel %vm75, %v62, 0
  %v80 = vsel %vm75, %v63, 0
  %v83 = vsel %vm75, %v64, 0
  %v86 = vsel %vm75, %v65, 0
  %v89 = vsel %vm75, %v66, 0
  %v92 = vsel %vm75, %v67, 0
  %v95 = vsel %vm75, %v68, 0
  %v98 = vsel %vm75, %v69, 0
  %vm100 = vcmask 1044480
  %v102 = vsel %vm100, %v74, 0
  %104 = vmatpush.bf16.msra.mxu0 0
  %105 = vmatpush.bf16.msra.mxu0 0
  %106 = vmatpush.bf16.msra.mxu0 0
  %107 = vmatpush.bf16.msra.mxu0 0
  %108 = vmatpush.bf16.msra.mxu0 0
  %109 = vmatpush.bf16.msra.mxu0 0
  %110 = vmatpush.bf16.msra.mxu0 0
  %111 = vmatpush.bf16.msra.mxu0 %v102
  %112 = vmatmul.bf16.gmra.mxu0 %v77
  %v113 = vpop.f32.mrf.mxu0
  %v114 = vadd.f32 0.0, %v113
  %v115 = vpop.f32.mrf.mxu0
  %v116 = vadd.f32 0.0, %v115
  %117 = vmatmul.bf16.gmra.mxu0 %v80
  %v118 = vpop.f32.mrf.mxu0
  %v119 = vadd.f32 0.0, %v118
  %v120 = vpop.f32.mrf.mxu0
  %v121 = vadd.f32 0.0, %v120
  %122 = vmatmul.bf16.gmra.mxu0 %v83
  %v123 = vpop.f32.mrf.mxu0
  %v124 = vadd.f32 0.0, %v123
  %v125 = vpop.f32.mrf.mxu0
  %v126 = vadd.f32 0.0, %v125
  %127 = vmatmul.bf16.gmra.mxu0 %v86
  %v128 = vpop.f32.mrf.mxu0
  %v129 = vadd.f32 0.0, %v128
  %v130 = vpop.f32.mrf.mxu0
  %v131 = vadd.f32 0.0, %v130
  %132 = vmatmul.bf16.gmra.mxu0 %v89
  %v133 = vpop.f32.mrf.mxu0
  %v134 = vadd.f32 0.0, %v133
  %v135 = vpop.f32.mrf.mxu0
  %v136 = vadd.f32 0.0, %v135
  %137 = vmatmul.bf16.gmra.mxu0 %v92
  %v138 = vpop.f32.mrf.mxu0
  %v139 = vadd.f32 0.0, %v138
  %v140 = vpop.f32.mrf.mxu0
  %v141 = vadd.f32 0.0, %v140
  %142 = vmatmul.bf16.gmra.mxu0 %v95
  %v143 = vpop.f32.mrf.mxu0
  %v144 = vadd.f32 0.0, %v143
  %v145 = vpop.f32.mrf.mxu0
  %v146 = vadd.f32 0.0, %v145
  %147 = vmatmul.bf16.gmra.mxu0 %v98
  %v148 = vpop.f32.mrf.mxu0
  %v149 = vadd.f32 0.0, %v148
  %v150 = vpop.f32.mrf.mxu0
  %v151 = vadd.f32 0.0, %v150
  %152 = vdwg.mxu0
  %v153 = vpack.c.bf16 %v114, %v114
  %v154 = vpack.c.bf16 %v116, %v116
  %v155 = vpack.c.bf16 %v119, %v119
  %v156 = vpack.c.bf16 %v121, %v121
  %v157 = vpack.c.bf16 %v124, %v124
  %v158 = vpack.c.bf16 %v126, %v126
  %v159 = vpack.c.bf16 %v129, %v129
  %v160 = vpack.c.bf16 %v131, %v131
  %v161 = vpack.c.bf16 %v134, %v134
  %v162 = vpack.c.bf16 %v136, %v136
  %v163 = vpack.c.bf16 %v139, %v139
  %v164 = vpack.c.bf16 %v141, %v141
  %v165 = vpack.c.bf16 %v144, %v144
  %v166 = vpack.c.bf16 %v146, %v146
  %v167 = vpack.c.bf16 %v149, %v149
  %v168 = vpack.c.bf16 %v151, %v151
  %vm169 = vcmask 125952
  %170 = vst.msk [vmem:[%s2] sm:$0xf] %vm169, %v153
  %171 = vst.msk [vmem:[%s2 + $0x4] sm:$0xf] %vm169, %v154
  %172 = vst.msk [vmem:[%s2 + $0x8] sm:$0xf] %vm169, %v155
  %173 = vst.msk [vmem:[%s2 + $0xc] sm:$0xf] %vm169, %v156
  %174 = vst.msk [vmem:[%s2 + $0x10] sm:$0xf] %vm169, %v157
  %175 = vst.msk [vmem:[%s2 + $0x14] sm:$0xf] %vm169, %v158
  %176 = vst.msk [vmem:[%s2 + $0x18] sm:$0xf] %vm169, %v159
  %177 = vst.msk [vmem:[%s2 + $0x1c] sm:$0xf] %vm169, %v160
  %178 = vst.msk [vmem:[%s2 + $0x20] sm:$0xf] %vm169, %v161
  %179 = vst.msk [vmem:[%s2 + $0x24] sm:$0xf] %vm169, %v162
  %180 = vst.msk [vmem:[%s2 + $0x28] sm:$0xf] %vm169, %v163
  %181 = vst.msk [vmem:[%s2 + $0x2c] sm:$0xf] %vm169, %v164
  %182 = vst.msk [vmem:[%s2 + $0x30] sm:$0xf] %vm169, %v165
  %183 = vst.msk [vmem:[%s2 + $0x34] sm:$0xf] %vm169, %v166
  %184 = vst.msk [vmem:[%s2 + $0x38] sm:$0xf] %vm169, %v167
  %vm185 = vcmask 124928
  %186 = vst.msk [vmem:[%s2 + $0x3c] sm:$0x7] %vm185, %v168
  // Predicated region
  $region10: #{_lambda_.15} parent=0 // pred_check
    _
  $region11: #{_lambda_.15} parent=0 // pred_check_branch
    %188 = sbr.rel (0) target = $region13
  $region12: #{_lambda_.15} parent=0 // pred_region
    _
  $region13: #{_lambda_.15} parent=0 // pred_fallthru
    _
  // Predicated region
  $region14: #{_lambda_.15} parent=0 // pred_check
    _
  $region15: #{_lambda_.15} parent=0 // pred_check_branch
    %190 = sbr.rel (0) target = $region17
  $region16: #{_lambda_.15} parent=0 // pred_region
    _
  $region17: #{_lambda_.15} parent=0 // pred_fallthru
    _

// kernel: _lambda_.16
$region0: #{_lambda_.16}
  #allocation0 [shape = 'u32[]', space=smem, size = 0x4, offset = 0x4, fixed_abs, tag = 'smem constant byte address 0x4 - core index']
  #allocation1 [shape = 'u32[72,128]{1,0:T(1,128)}', space=vmem, size = 0x9000, scoped, tag = 'internal scratch']
  %s0 = inlined_call_operand.vmem [shape: bf16[2,63,16], index: 0, kind: input, shape index: {}]
  %s1 = inlined_call_operand.vmem [shape: f32[2,1,16], index: 1, kind: output, shape index: {0}]
  %s2 = inlined_call_operand.vmem [shape: f32[2,1,16], index: 2, kind: output, shape index: {1}]
  %3 = xla_tuple %s1, %s2
  %s4 = sld [smem:[#allocation0]]
  $region49: #{_lambda_.16} parent=0
    _
  %s6 = ssub.s32 1, %s4
  %s7 = scalar_select 0, %s6, %s4
  loop: start=0, step=1, limit=4
  $region2: #{_lambda_.16} parent=0 // loop_pre_header
    _
  $region3: #{_lambda_.16} parent=0 // loop_header
    %s9 = sphi 0, %s13
    %p10 = scmp.ge.s32.totalorder %s9, 4
    %s16 = sphi 0, %s35
    %s17 = sphi 0, %s31
    %s18 = sphi 0, %s27
    %s19 = sphi 0, %s16
    %s20 = sphi 0, %s17
    %s21 = sphi 0, %s18
    %s22 = sphi 0, %s19
    %s23 = sphi 0, %s20
    %s24 = sphi 0, %s21
    %s42 = sphi 0, %s44
    %s45 = sphi 0, %s42
    %s46 = sphi 0, %s45
    %s62 = sphi 0, %s46
    %s70 = sphi 0, %s72
    %s73 = sphi 0, %s70
    %s74 = sphi 0, %s73
    %s90 = sphi 0, %s74
    %s98 = sphi 0, %s100
    %s101 = sphi 0, %s98
    %s102 = sphi 0, %s101
    %s118 = sphi 0, %s102
  $region4: #{_lambda_.16} parent=0 // loop_header_branch
    %12 = sbr.rel (%p10) target = $region8
  $region5: #{_lambda_.16} parent=0 // loop_body
    %s14 = ssub.s32 %s9, 1
    %s15 = ssub.s32 %s9, 2
    %s25 = sadd.s32 1, %s18
    %p26 = scmp.ge.s32.totalorder %s25, 1
    %s27 = scalar_select %p26, 0, %s25
    %s28 = sadd.s32 1, %s17
    %s29 = scalar_select %p26, %s28, %s17
    %p30 = scmp.ge.s32.totalorder %s29, 1
    %s31 = scalar_select %p30, 0, %s29
    %s32 = sadd.s32 1, %s16
    %s33 = scalar_select %p30, %s32, %s16
    %p34 = scmp.ge.s32.totalorder %s33, 2
    %s35 = scalar_select %p34, 0, %s33
    %s36 = ssub.s32 %s16, %s35
    %s37 = ssub.s32 %s18, %s27
    %s38 = sor.u32 %s36, %s37
    %s39 = ssub.s32 %s17, %s31
    %s40 = sor.u32 %s38, %s39
    %p41 = scmp.eq.s32.totalorder %s40, 0
    %s43 = sadd.s32 %s42, 1
    %s44 = scalar_select %p41, %s42, %s43
    %p47 = pneg %p41
    %p48 = scmp.eq.s32.totalorder %s9, 1
    %p49 = por %p47, %p48
    %p50 = scmp.ne.s32.totalorder %s42, %s45
    %p51 = scmp.eq.s32.totalorder %s9, 0
    %p52 = por %p50, %p51
    %p53 = scmp.ne.s32.totalorder %s42, %s45
    %p54 = scmp.eq.s32.totalorder %s14, 1
    %p55 = por %p53, %p54
    %p56 = scmp.ne.s32.totalorder %s45, %s46
    %p57 = scmp.eq.s32.totalorder %s14, 0
    %p58 = por %p56, %p57
    %p59 = scmp.ne.s32.totalorder %s45, %s46
    %p60 = scmp.eq.s32.totalorder %s15, 1
    %p61 = por %p59, %p60
    %p63 = scmp.ne.s32.totalorder %s46, %s62
    %p64 = scmp.eq.s32.totalorder %s15, 0
    %p65 = por %p63, %p64
    %s66 = ssub.s32 %s16, %s35
    %s67 = ssub.s32 %s17, %s31
    %s68 = sor.u32 %s66, %s67
    %p69 = scmp.eq.s32.totalorder %s68, 0
    %s71 = sadd.s32 %s70, 1
    %s72 = scalar_select %p69, %s70, %s71
    %p75 = pneg %p69
    %p76 = scmp.eq.s32.totalorder %s9, 1
    %p77 = por %p75, %p76
    %p78 = scmp.ne.s32.totalorder %s70, %s73
    %p79 = scmp.eq.s32.totalorder %s9, 0
    %p80 = por %p78, %p79
    %p81 = scmp.ne.s32.totalorder %s70, %s73
    %p82 = scmp.eq.s32.totalorder %s14, 1
    %p83 = por %p81, %p82
    %p84 = scmp.ne.s32.totalorder %s73, %s74
    %p85 = scmp.eq.s32.totalorder %s14, 0
    %p86 = por %p84, %p85
    %p87 = scmp.ne.s32.totalorder %s73, %s74
    %p88 = scmp.eq.s32.totalorder %s15, 1
    %p89 = por %p87, %p88
    %p91 = scmp.ne.s32.totalorder %s74, %s90
    %p92 = scmp.eq.s32.totalorder %s15, 0
    %p93 = por %p91, %p92
    %s94 = ssub.s32 %s16, %s35
    %s95 = ssub.s32 %s17, %s31
    %s96 = sor.u32 %s94, %s95
    %p97 = scmp.eq.s32.totalorder %s96, 0
    %s99 = sadd.s32 %s98, 1
    %s100 = scalar_select %p97, %s98, %s99
    %p103 = pneg %p97
    %p104 = scmp.eq.s32.totalorder %s9, 1
    %p105 = por %p103, %p104
    %p106 = scmp.ne.s32.totalorder %s98, %s101
    %p107 = scmp.eq.s32.totalorder %s9, 0
    %p108 = por %p106, %p107
    %p109 = scmp.ne.s32.totalorder %s98, %s101
    %p110 = scmp.eq.s32.totalorder %s14, 1
    %p111 = por %p109, %p110
    %p112 = scmp.ne.s32.totalorder %s101, %s102
    %p113 = scmp.eq.s32.totalorder %s14, 0
    %p114 = por %p112, %p113
    %p115 = scmp.ne.s32.totalorder %s101, %s102
    %p116 = scmp.eq.s32.totalorder %s15, 1
    %p117 = por %p115, %p116
    %p119 = scmp.ne.s32.totalorder %s102, %s118
    %p120 = scmp.eq.s32.totalorder %s15, 0
    %p121 = por %p119, %p120
    %p122 = scmp.le.s32.totalorder 1, %s9
    %p123 = scmp.lt.s32.totalorder %s9, 3
    %p124 = pnand %p122, %p123
    %p125 = pneg %p124
    // Predicated region
    $region9: #{_lambda_.16} parent=5 // pred_check
      _
    $region10: #{_lambda_.16} parent=5 // pred_check_branch
      %127 = sbr.rel (%p124) target = $region12
    $region11: #{_lambda_.16} parent=5 // pred_region
      %s128 = ssub.s32 %s9, 1
    $region12: #{_lambda_.16} parent=5 // pred_fallthru
      _
    %p129 = scmp.lt.s32.totalorder %s9, 2
    // Predicated region
    $region13: #{_lambda_.16} parent=5 // pred_check
      %p130 = pneg %p129
    $region14: #{_lambda_.16} parent=5 // pred_check_branch
      %132 = sbr.rel (%p130) target = $region16
    $region15: #{_lambda_.16} parent=5 // pred_region
      // Predicated region
      $region17: #{_lambda_.16} parent=15 // pred_check
        %p133 = pneg %p52
      $region18: #{_lambda_.16} parent=15 // pred_check_branch
        %135 = sbr.rel (%p133) target = $region20
      $region19: #{_lambda_.16} parent=15 // pred_region
        %s136 = smul.u32 8, %s18
        %p137 = scmp.lt.s32.totalorder %s16, 1
        %s138 = scalar_select %p137, %s16, 1
        %p139 = scmp.lt.s32.totalorder %s136, 7
        %s140 = scalar_select %p139, %s136, 7
        %p141 = scmp.lt.s32.totalorder %s17, 0
        %s142 = scalar_select %p141, %s17, 0
        %s143 = sadd.s32 %s142, %s140
        %s144 = smul.addr %s138, 8
        %s145 = sadd.s32 %s143, %s144
        %s146 = smul.addr %s145, 4
        %s147 = scalar_lea.vmem %s0, %s146
        %s148 = smul.u32 8, %s18
      $region20: #{_lambda_.16} parent=15 // pred_fallthru
        _
    $region16: #{_lambda_.16} parent=5 // pred_fallthru
      _
    %p149 = scmp.le.s32.totalorder 1, %s9
    %p150 = scmp.lt.s32.totalorder %s9, 3
    %p151 = pnand %p149, %p150
    %p152 = pneg %p151
    // Predicated region
    $region21: #{_lambda_.16} parent=5 // pred_check
      _
    $region22: #{_lambda_.16} parent=5 // pred_check_branch
      %154 = sbr.rel (%p151) target = $region24
    $region23: #{_lambda_.16} parent=5 // pred_region
      %s155 = ssub.s32 %s9, 1
      %s156 = smul.u32 8, %s21
      %p157 = scmp.lt.s32.totalorder %s19, 1
      %s158 = scalar_select %p157, %s19, 1
      %p159 = scmp.lt.s32.totalorder %s156, 7
      %s160 = scalar_select %p159, %s156, 7
      %p161 = scmp.lt.s32.totalorder %s20, 0
      %s162 = scalar_select %p161, %s20, 0
      %s163 = sadd.s32 %s162, %s160
      %s164 = smul.addr %s158, 8
      %s165 = sadd.s32 %s163, %s164
      %s166 = smul.addr %s165, 4
      %s167 = scalar_lea.vmem %s0, %s166
      %p168 = pneg %p58
      %p169 = pneg %p55
      %p170 = pneg %p86
      %p171 = pneg %p83
      %p172 = scmp.lt.s32.totalorder %s19, 1
      %s173 = scalar_select %p172, %s19, 1
      %p174 = scmp.lt.s32.totalorder %s20, 0
      %s175 = scalar_select %p174, %s20, 0
      %s176 = sadd.s32 %s175, %s173
      %s177 = scalar_lea.vmem %s1, %s176
      %p178 = pneg %p114
      %p179 = pneg %p111
      %p180 = scmp.lt.s32.totalorder %s19, 1
      %s181 = scalar_select %p180, %s19, 1
      %p182 = scmp.lt.s32.totalorder %s20, 0
      %s183 = scalar_select %p182, %s20, 0
      %s184 = sadd.s32 %s183, %s181
      %s185 = scalar_lea.vmem %s2, %s184
      %s186 = smul.u32 8, %s21
      %p187 = scmp.lt.s32.totalorder %s19, 1
      %s188 = scalar_select %p187, %s19, 1
      %p189 = scmp.lt.s32.totalorder %s186, 7
      %s190 = scalar_select %p189, %s186, 7
      %p191 = scmp.lt.s32.totalorder %s20, 0
      %s192 = scalar_select %p191, %s20, 0
      %s193 = sadd.s32 %s192, %s190
      %s194 = smul.addr %s188, 8
      %s195 = sadd.s32 %s193, %s194
      %s196 = smul.addr %s195, 4
      %s197 = scalar_lea.vmem %s0, %s196
      %s198 = smul.u32 8, %s21
      %p199 = scmp.lt.s32.totalorder %s19, 1
      %s200 = scalar_select %p199, %s19, 1
      %p201 = scmp.lt.s32.totalorder %s20, 0
      %s202 = scalar_select %p201, %s20, 0
      %s203 = sadd.s32 %s202, %s200
      %s204 = scalar_lea.vmem %s1, %s203
      %p205 = scmp.lt.s32.totalorder %s19, 1
      %s206 = scalar_select %p205, %s19, 1
      %p207 = scmp.lt.s32.totalorder %s20, 0
      %s208 = scalar_select %p207, %s20, 0
      %s209 = sadd.s32 %s208, %s206
      %s210 = scalar_lea.vmem %s2, %s209
      %p211 = scmp.eq.s32.totalorder %s21, 0
      // Predicated region
      $region25: #{_lambda_.16} parent=23 // pred_check
        %p212 = pneg %p211
      $region26: #{_lambda_.16} parent=23 // pred_check_branch
        %214 = sbr.rel (%p212) target = $region28
      $region27: #{_lambda_.16} parent=23 // pred_region
        %vm215 = vcmask 122880
        %216 = vst.msk [vmem:[%s204] sm:$0x1] %vm215, 0.0
        %217 = vst.msk [vmem:[%s210] sm:$0x1] %vm215, 0.0
      $region28: #{_lambda_.16} parent=23 // pred_fallthru
        _
      %v218 = vld [vmem:[%s197] sm:$0xf]
      %v219 = vld [vmem:[%s197 + $0x4] sm:$0xf]
      %v220 = vld [vmem:[%s197 + $0x8] sm:$0xf]
      %v221 = vld [vmem:[%s197 + $0xc] sm:$0xf]
      %v222 = vld [vmem:[%s197 + $0x10] sm:$0xf]
      %v223 = vld [vmem:[%s197 + $0x14] sm:$0xf]
      %v224 = vld [vmem:[%s197 + $0x18] sm:$0xf]
      %v225 = vld [vmem:[%s197 + $0x1c] sm:$0xf]
      %v226 = vunpack.c.l.bf16 %v218
      %v227 = vunpack.c.l.bf16 %v219
      %v228 = vunpack.c.l.bf16 %v220
      %v229 = vunpack.c.l.bf16 %v221
      %v230 = vunpack.c.l.bf16 %v222
      %v231 = vunpack.c.l.bf16 %v223
      %v232 = vunpack.c.l.bf16 %v224
      %v233 = vunpack.c.l.bf16 %v225
      %v234 = vld [vmem:[%s204] sm:$0x1]
      %vm235 = vcmask 130048
      %v236 = vsel %vm235, %v226, 0.0
      %v237 = vsel %vm235, %v227, 0.0
      %v238 = vadd.f32 %v236, %v237
      %v239 = vsel %vm235, %v228, 0.0
      %v240 = vadd.f32 %v238, %v239
      %v241 = vsel %vm235, %v229, 0.0
      %v242 = vadd.f32 %v240, %v241
      %v243 = vsel %vm235, %v230, 0.0
      %v244 = vadd.f32 %v242, %v243
      %v245 = vsel %vm235, %v231, 0.0
      %v246 = vadd.f32 %v244, %v245
      %v247 = vsel %vm235, %v232, 0.0
      %v248 = vadd.f32 %v246, %v247
      %vm249 = vcmask 129024
      %v250 = vsel %vm249, %v233, 0.0
      %v251 = vadd.f32 %v248, %v250
      %v252 = vrot.slane %v251, 4
      %v253 = vadd.f32 %v251, %v252
      %v254 = vrot.slane %v253, 2
      %v255 = vadd.f32 %v253, %v254
      %v256 = vrot.slane %v255, 1
      %v257 = vadd.f32 %v255, %v256
      %v258 = vadd.f32 %v234, %v257
      %vm259 = vcmask 122880
      %260 = vst.msk [vmem:[%s204] sm:$0x1] %vm259, %v258
      %v261 = vld [vmem:[%s210] sm:$0x1]
      %v262 = vmul.f32 %v226, %v226
      %v263 = vmul.f32 %v227, %v227
      %v264 = vmul.f32 %v228, %v228
      %v265 = vmul.f32 %v229, %v229
      %v266 = vmul.f32 %v230, %v230
      %v267 = vmul.f32 %v231, %v231
      %v268 = vmul.f32 %v232, %v232
      %v269 = vmul.f32 %v233, %v233
      %v270 = vsel %vm235, %v262, 0.0
      %v271 = vsel %vm235, %v263, 0.0
      %v272 = vadd.f32 %v270, %v271
      %v273 = vsel %vm235, %v264, 0.0
      %v274 = vadd.f32 %v272, %v273
      %v275 = vsel %vm235, %v265, 0.0
      %v276 = vadd.f32 %v274, %v275
      %v277 = vsel %vm235, %v266, 0.0
      %v278 = vadd.f32 %v276, %v277
      %v279 = vsel %vm235, %v267, 0.0
      %v280 = vadd.f32 %v278, %v279
      %v281 = vsel %vm235, %v268, 0.0
      %v282 = vadd.f32 %v280, %v281
      %v283 = vsel %vm249, %v269, 0.0
      %v284 = vadd.f32 %v282, %v283
      %v285 = vrot.slane %v284, 4
      %v286 = vadd.f32 %v284, %v285
      %v287 = vrot.slane %v286, 2
      %v288 = vadd.f32 %v286, %v287
      %v289 = vrot.slane %v288, 1
      %v290 = vadd.f32 %v288, %v289
      %v291 = vadd.f32 %v261, %v290
      %292 = vst.msk [vmem:[%s210] sm:$0x1] %vm259, %v291
      %p293 = scmp.lt.s32.totalorder %s19, 1
      %s294 = scalar_select %p293, %s19, 1
      %p295 = scmp.lt.s32.totalorder %s20, 0
      %s296 = scalar_select %p295, %s20, 0
      %s297 = sadd.s32 %s296, %s294
      %s298 = scalar_lea.vmem %s1, %s297
      %p299 = scmp.lt.s32.totalorder %s19, 1
      %s300 = scalar_select %p299, %s19, 1
      %p301 = scmp.lt.s32.totalorder %s20, 0
      %s302 = scalar_select %p301, %s20, 0
      %s303 = sadd.s32 %s302, %s300
      %s304 = scalar_lea.vmem %s2, %s303
      // Predicated region
      $region29: #{_lambda_.16} parent=23 // pred_check
        %p305 = pneg %p83
      $region30: #{_lambda_.16} parent=23 // pred_check_branch
        %307 = sbr.rel (%p305) target = $region32
      $region31: #{_lambda_.16} parent=23 // pred_region
        _
      $region32: #{_lambda_.16} parent=23 // pred_fallthru
        _
      // Predicated region
      $region33: #{_lambda_.16} parent=23 // pred_check
        %p308 = pneg %p111
      $region34: #{_lambda_.16} parent=23 // pred_check_branch
        %310 = sbr.rel (%p308) target = $region36
      $region35: #{_lambda_.16} parent=23 // pred_region
        _
      $region36: #{_lambda_.16} parent=23 // pred_fallthru
        _
    $region24: #{_lambda_.16} parent=5 // pred_fallthru
      _
    %p311 = scmp.le.s32.totalorder 2, %s9
    // Predicated region
    $region37: #{_lambda_.16} parent=5 // pred_check
      %p312 = pneg %p311
    $region38: #{_lambda_.16} parent=5 // pred_check_branch
      %314 = sbr.rel (%p312) target = $region40
    $region39: #{_lambda_.16} parent=5 // pred_region
      %s315 = ssub.s32 %s9, 2
      // Predicated region
      $region41: #{_lambda_.16} parent=39 // pred_check
        %p316 = pneg %p89
      $region42: #{_lambda_.16} parent=39 // pred_check_branch
        %318 = sbr.rel (%p316) target = $region44
      $region43: #{_lambda_.16} parent=39 // pred_region
        %p319 = scmp.lt.s32.totalorder %s22, 1
        %s320 = scalar_select %p319, %s22, 1
        %p321 = scmp.lt.s32.totalorder %s23, 0
        %s322 = scalar_select %p321, %s23, 0
        %s323 = sadd.s32 %s322, %s320
        %s324 = scalar_lea.vmem %s1, %s323
      $region44: #{_lambda_.16} parent=39 // pred_fallthru
        _
      // Predicated region
      $region45: #{_lambda_.16} parent=39 // pred_check
        %p325 = pneg %p117
      $region46: #{_lambda_.16} parent=39 // pred_check_branch
        %327 = sbr.rel (%p325) target = $region48
      $region47: #{_lambda_.16} parent=39 // pred_region
        %p328 = scmp.lt.s32.totalorder %s22, 1
        %s329 = scalar_select %p328, %s22, 1
        %p330 = scmp.lt.s32.totalorder %s23, 0
        %s331 = scalar_select %p330, %s23, 0
        %s332 = sadd.s32 %s331, %s329
        %s333 = scalar_lea.vmem %s2, %s332
      $region48: #{_lambda_.16} parent=39 // pred_fallthru
        _
    $region40: #{_lambda_.16} parent=5 // pred_fallthru
      _
  $region6: #{_lambda_.16} parent=0 // loop_footer
    %s13 = sadd.s32 1, %s9
  $region7: #{_lambda_.16} parent=0 // loop_footer_branch
    %8 = sbr.rel target = $region3
  $region8: #{_lambda_.16} parent=0 // loop_exit
    _

// kernel: _lambda_.17
$region0: #{_lambda_.17}
  #allocation0 [shape = 'u32[]', space=smem, size = 0x4, offset = 0x4, fixed_abs, tag = 'smem constant byte address 0x4 - core index']
  #allocation1 [shape = 'u32[72,128]{1,0:T(1,128)}', space=vmem, size = 0x9000, scoped, tag = 'internal scratch']
  %s0 = inlined_call_operand.vmem [shape: bf16[2,63,16], index: 0, kind: input, shape index: {}]
  %s1 = inlined_call_operand.vmem [shape: f32[2,1,16], index: 1, kind: input, shape index: {}]
  %s2 = inlined_call_operand.vmem [shape: f32[2,1,16], index: 2, kind: input, shape index: {}]
  %s3 = inlined_call_operand.vmem [shape: f32[1,1,16], index: 3, kind: input, shape index: {}]
  %s4 = inlined_call_operand.vmem [shape: f32[1,1,16], index: 4, kind: input, shape index: {}]
  %s5 = inlined_call_operand.vmem [shape: bf16[2,63,16], index: 5, kind: output, shape index: {}]
  %s6 = sld [smem:[#allocation0]]
  $region53: #{_lambda_.17} parent=0
    _
  %s8 = ssub.s32 1, %s6
  %s9 = scalar_select 0, %s8, %s6
  loop: start=0, step=1, limit=4
  $region2: #{_lambda_.17} parent=0 // loop_pre_header
    _
  $region3: #{_lambda_.17} parent=0 // loop_header
    %s11 = sphi 0, %s15
    %p12 = scmp.ge.s32.totalorder %s11, 4
    %s18 = sphi 0, %s37
    %s19 = sphi 0, %s33
    %s20 = sphi 0, %s29
    %s21 = sphi 0, %s18
    %s22 = sphi 0, %s19
    %s23 = sphi 0, %s20
    %s24 = sphi 0, %s21
    %s25 = sphi 0, %s22
    %s26 = sphi 0, %s23
    %s44 = sphi 0, %s46
    %s47 = sphi 0, %s44
    %s48 = sphi 0, %s47
    %s64 = sphi 0, %s48
    %s72 = sphi 0, %s74
    %s75 = sphi 0, %s72
    %s76 = sphi 0, %s75
    %s92 = sphi 0, %s76
    %s100 = sphi 0, %s102
    %s103 = sphi 0, %s100
    %s104 = sphi 0, %s103
    %s120 = sphi 0, %s104
    %s126 = sphi 0, %s128
    %s129 = sphi 0, %s126
    %s130 = sphi 0, %s129
    %s146 = sphi 0, %s130
    %s152 = sphi 0, %s154
    %s155 = sphi 0, %s152
    %s156 = sphi 0, %s155
    %s172 = sphi 0, %s156
    %s182 = sphi 0, %s184
    %s185 = sphi 0, %s182
    %s186 = sphi 0, %s185
    %s202 = sphi 0, %s186
  $region4: #{_lambda_.17} parent=0 // loop_header_branch
    %14 = sbr.rel (%p12) target = $region8
  $region5: #{_lambda_.17} parent=0 // loop_body
    %s16 = ssub.s32 %s11, 1
    %s17 = ssub.s32 %s11, 2
    %s27 = sadd.s32 1, %s20
    %p28 = scmp.ge.s32.totalorder %s27, 1
    %s29 = scalar_select %p28, 0, %s27
    %s30 = sadd.s32 1, %s19
    %s31 = scalar_select %p28, %s30, %s19
    %p32 = scmp.ge.s32.totalorder %s31, 1
    %s33 = scalar_select %p32, 0, %s31
    %s34 = sadd.s32 1, %s18
    %s35 = scalar_select %p32, %s34, %s18
    %p36 = scmp.ge.s32.totalorder %s35, 2
    %s37 = scalar_select %p36, 0, %s35
    %s38 = ssub.s32 %s18, %s37
    %s39 = ssub.s32 %s19, %s33
    %s40 = sor.u32 %s38, %s39
    %s41 = ssub.s32 %s20, %s29
    %s42 = sor.u32 %s40, %s41
    %p43 = scmp.eq.s32.totalorder %s42, 0
    %s45 = sadd.s32 %s44, 1
    %s46 = scalar_select %p43, %s44, %s45
    %p49 = pneg %p43
    %p50 = scmp.eq.s32.totalorder %s11, 1
    %p51 = por %p49, %p50
    %p52 = scmp.ne.s32.totalorder %s44, %s47
    %p53 = scmp.eq.s32.totalorder %s11, 0
    %p54 = por %p52, %p53
    %p55 = scmp.ne.s32.totalorder %s44, %s47
    %p56 = scmp.eq.s32.totalorder %s16, 1
    %p57 = por %p55, %p56
    %p58 = scmp.ne.s32.totalorder %s47, %s48
    %p59 = scmp.eq.s32.totalorder %s16, 0
    %p60 = por %p58, %p59
    %p61 = scmp.ne.s32.totalorder %s47, %s48
    %p62 = scmp.eq.s32.totalorder %s17, 1
    %p63 = por %p61, %p62
    %p65 = scmp.ne.s32.totalorder %s48, %s64
    %p66 = scmp.eq.s32.totalorder %s17, 0
    %p67 = por %p65, %p66
    %s68 = ssub.s32 %s18, %s37
    %s69 = ssub.s32 %s20, %s29
    %s70 = sor.u32 %s68, %s69
    %p71 = scmp.eq.s32.totalorder %s70, 0
    %s73 = sadd.s32 %s72, 1
    %s74 = scalar_select %p71, %s72, %s73
    %p77 = pneg %p71
    %p78 = scmp.eq.s32.totalorder %s11, 1
    %p79 = por %p77, %p78
    %p80 = scmp.ne.s32.totalorder %s72, %s75
    %p81 = scmp.eq.s32.totalorder %s11, 0
    %p82 = por %p80, %p81
    %p83 = scmp.ne.s32.totalorder %s72, %s75
    %p84 = scmp.eq.s32.totalorder %s16, 1
    %p85 = por %p83, %p84
    %p86 = scmp.ne.s32.totalorder %s75, %s76
    %p87 = scmp.eq.s32.totalorder %s16, 0
    %p88 = por %p86, %p87
    %p89 = scmp.ne.s32.totalorder %s75, %s76
    %p90 = scmp.eq.s32.totalorder %s17, 1
    %p91 = por %p89, %p90
    %p93 = scmp.ne.s32.totalorder %s76, %s92
    %p94 = scmp.eq.s32.totalorder %s17, 0
    %p95 = por %p93, %p94
    %s96 = ssub.s32 %s18, %s37
    %s97 = ssub.s32 %s20, %s29
    %s98 = sor.u32 %s96, %s97
    %p99 = scmp.eq.s32.totalorder %s98, 0
    %s101 = sadd.s32 %s100, 1
    %s102 = scalar_select %p99, %s100, %s101
    %p105 = pneg %p99
    %p106 = scmp.eq.s32.totalorder %s11, 1
    %p107 = por %p105, %p106
    %p108 = scmp.ne.s32.totalorder %s100, %s103
    %p109 = scmp.eq.s32.totalorder %s11, 0
    %p110 = por %p108, %p109
    %p111 = scmp.ne.s32.totalorder %s100, %s103
    %p112 = scmp.eq.s32.totalorder %s16, 1
    %p113 = por %p111, %p112
    %p114 = scmp.ne.s32.totalorder %s103, %s104
    %p115 = scmp.eq.s32.totalorder %s16, 0
    %p116 = por %p114, %p115
    %p117 = scmp.ne.s32.totalorder %s103, %s104
    %p118 = scmp.eq.s32.totalorder %s17, 1
    %p119 = por %p117, %p118
    %p121 = scmp.ne.s32.totalorder %s104, %s120
    %p122 = scmp.eq.s32.totalorder %s17, 0
    %p123 = por %p121, %p122
    %s124 = ssub.s32 %s20, %s29
    %p125 = scmp.eq.s32.totalorder %s124, 0
    %s127 = sadd.s32 %s126, 1
    %s128 = scalar_select %p125, %s126, %s127
    %p131 = pneg %p125
    %p132 = scmp.eq.s32.totalorder %s11, 1
    %p133 = por %p131, %p132
    %p134 = scmp.ne.s32.totalorder %s126, %s129
    %p135 = scmp.eq.s32.totalorder %s11, 0
    %p136 = por %p134, %p135
    %p137 = scmp.ne.s32.totalorder %s126, %s129
    %p138 = scmp.eq.s32.totalorder %s16, 1
    %p139 = por %p137, %p138
    %p140 = scmp.ne.s32.totalorder %s129, %s130
    %p141 = scmp.eq.s32.totalorder %s16, 0
    %p142 = por %p140, %p141
    %p143 = scmp.ne.s32.totalorder %s129, %s130
    %p144 = scmp.eq.s32.totalorder %s17, 1
    %p145 = por %p143, %p144
    %p147 = scmp.ne.s32.totalorder %s130, %s146
    %p148 = scmp.eq.s32.totalorder %s17, 0
    %p149 = por %p147, %p148
    %s150 = ssub.s32 %s20, %s29
    %p151 = scmp.eq.s32.totalorder %s150, 0
    %s153 = sadd.s32 %s152, 1
    %s154 = scalar_select %p151, %s152, %s153
    %p157 = pneg %p151
    %p158 = scmp.eq.s32.totalorder %s11, 1
    %p159 = por %p157, %p158
    %p160 = scmp.ne.s32.totalorder %s152, %s155
    %p161 = scmp.eq.s32.totalorder %s11, 0
    %p162 = por %p160, %p161
    %p163 = scmp.ne.s32.totalorder %s152, %s155
    %p164 = scmp.eq.s32.totalorder %s16, 1
    %p165 = por %p163, %p164
    %p166 = scmp.ne.s32.totalorder %s155, %s156
    %p167 = scmp.eq.s32.totalorder %s16, 0
    %p168 = por %p166, %p167
    %p169 = scmp.ne.s32.totalorder %s155, %s156
    %p170 = scmp.eq.s32.totalorder %s17, 1
    %p171 = por %p169, %p170
    %p173 = scmp.ne.s32.totalorder %s156, %s172
    %p174 = scmp.eq.s32.totalorder %s17, 0
    %p175 = por %p173, %p174
    %s176 = ssub.s32 %s18, %s37
    %s177 = ssub.s32 %s19, %s33
    %s178 = sor.u32 %s176, %s177
    %s179 = ssub.s32 %s20, %s29
    %s180 = sor.u32 %s178, %s179
    %p181 = scmp.eq.s32.totalorder %s180, 0
    %s183 = sadd.s32 %s182, 1
    %s184 = scalar_select %p181, %s182, %s183
    %p187 = pneg %p181
    %p188 = scmp.eq.s32.totalorder %s11, 1
    %p189 = por %p187, %p188
    %p190 = scmp.ne.s32.totalorder %s182, %s185
    %p191 = scmp.eq.s32.totalorder %s11, 0
    %p192 = por %p190, %p191
    %p193 = scmp.ne.s32.totalorder %s182, %s185
    %p194 = scmp.eq.s32.totalorder %s16, 1
    %p195 = por %p193, %p194
    %p196 = scmp.ne.s32.totalorder %s185, %s186
    %p197 = scmp.eq.s32.totalorder %s16, 0
    %p198 = por %p196, %p197
    %p199 = scmp.ne.s32.totalorder %s185, %s186
    %p200 = scmp.eq.s32.totalorder %s17, 1
    %p201 = por %p199, %p200
    %p203 = scmp.ne.s32.totalorder %s186, %s202
    %p204 = scmp.eq.s32.totalorder %s17, 0
    %p205 = por %p203, %p204
    %p206 = scmp.le.s32.totalorder 1, %s11
    %p207 = scmp.lt.s32.totalorder %s11, 3
    %p208 = pnand %p206, %p207
    %p209 = pneg %p208
    // Predicated region
    $region9: #{_lambda_.17} parent=5 // pred_check
      _
    $region10: #{_lambda_.17} parent=5 // pred_check_branch
      %211 = sbr.rel (%p208) target = $region12
    $region11: #{_lambda_.17} parent=5 // pred_region
      %s212 = ssub.s32 %s11, 1
      // Predicated region
      $region13: #{_lambda_.17} parent=11 // pred_check
        %p213 = pneg %p142
      $region14: #{_lambda_.17} parent=11 // pred_check_branch
        %215 = sbr.rel (%p213) target = $region16
      $region15: #{_lambda_.17} parent=11 // pred_region
        %p216 = scmp.lt.s32.totalorder %s23, 0
        %s217 = scalar_select %p216, %s23, 0
        %s218 = scalar_lea.vmem %s3, %s217
      $region16: #{_lambda_.17} parent=11 // pred_fallthru
        _
      // Predicated region
      $region17: #{_lambda_.17} parent=11 // pred_check
        %p219 = pneg %p168
      $region18: #{_lambda_.17} parent=11 // pred_check_branch
        %221 = sbr.rel (%p219) target = $region20
      $region19: #{_lambda_.17} parent=11 // pred_region
        %p222 = scmp.lt.s32.totalorder %s23, 0
        %s223 = scalar_select %p222, %s23, 0
        %s224 = scalar_lea.vmem %s4, %s223
      $region20: #{_lambda_.17} parent=11 // pred_fallthru
        _
    $region12: #{_lambda_.17} parent=5 // pred_fallthru
      _
    %p225 = scmp.lt.s32.totalorder %s11, 2
    // Predicated region
    $region21: #{_lambda_.17} parent=5 // pred_check
      %p226 = pneg %p225
    $region22: #{_lambda_.17} parent=5 // pred_check_branch
      %228 = sbr.rel (%p226) target = $region24
    $region23: #{_lambda_.17} parent=5 // pred_region
      // Predicated region
      $region25: #{_lambda_.17} parent=23 // pred_check
        %p229 = pneg %p54
      $region26: #{_lambda_.17} parent=23 // pred_check_branch
        %231 = sbr.rel (%p229) target = $region28
      $region27: #{_lambda_.17} parent=23 // pred_region
        %s232 = smul.u32 8, %s19
        %p233 = scmp.lt.s32.totalorder %s18, 1
        %s234 = scalar_select %p233, %s18, 1
        %p235 = scmp.lt.s32.totalorder %s232, 7
        %s236 = scalar_select %p235, %s232, 7
        %p237 = scmp.lt.s32.totalorder %s20, 0
        %s238 = scalar_select %p237, %s20, 0
        %s239 = sadd.s32 %s238, %s236
        %s240 = smul.addr %s234, 8
        %s241 = sadd.s32 %s239, %s240
        %s242 = smul.addr %s241, 4
        %s243 = scalar_lea.vmem %s0, %s242
        %s244 = smul.u32 8, %s19
      $region28: #{_lambda_.17} parent=23 // pred_fallthru
        _
      // Predicated region
      $region29: #{_lambda_.17} parent=23 // pred_check
        %p245 = pneg %p82
      $region30: #{_lambda_.17} parent=23 // pred_check_branch
        %247 = sbr.rel (%p245) target = $region32
      $region31: #{_lambda_.17} parent=23 // pred_region
        %p248 = scmp.lt.s32.totalorder %s18, 1
        %s249 = scalar_select %p248, %s18, 1
        %p250 = scmp.lt.s32.totalorder %s20, 0
        %s251 = scalar_select %p250, %s20, 0
        %s252 = sadd.s32 %s251, %s249
        %s253 = scalar_lea.vmem %s1, %s252
      $region32: #{_lambda_.17} parent=23 // pred_fallthru
        _
      // Predicated region
      $region33: #{_lambda_.17} parent=23 // pred_check
        %p254 = pneg %p110
      $region34: #{_lambda_.17} parent=23 // pred_check_branch
        %256 = sbr.rel (%p254) target = $region36
      $region35: #{_lambda_.17} parent=23 // pred_region
        %p257 = scmp.lt.s32.totalorder %s18, 1
        %s258 = scalar_select %p257, %s18, 1
        %p259 = scmp.lt.s32.totalorder %s20, 0
        %s260 = scalar_select %p259, %s20, 0
        %s261 = sadd.s32 %s260, %s258
        %s262 = scalar_lea.vmem %s2, %s261
      $region36: #{_lambda_.17} parent=23 // pred_fallthru
        _
    $region24: #{_lambda_.17} parent=5 // pred_fallthru
      _
    %p263 = scmp.le.s32.totalorder 1, %s11
    %p264 = scmp.lt.s32.totalorder %s11, 3
    %p265 = pnand %p263, %p264
    %p266 = pneg %p265
    // Predicated region
    $region37: #{_lambda_.17} parent=5 // pred_check
      _
    $region38: #{_lambda_.17} parent=5 // pred_check_branch
      %268 = sbr.rel (%p265) target = $region40
    $region39: #{_lambda_.17} parent=5 // pred_region
      %s269 = ssub.s32 %s11, 1
      %s270 = smul.u32 8, %s22
      %p271 = scmp.lt.s32.totalorder %s21, 1
      %s272 = scalar_select %p271, %s21, 1
      %p273 = scmp.lt.s32.totalorder %s270, 7
      %s274 = scalar_select %p273, %s270, 7
      %p275 = scmp.lt.s32.totalorder %s23, 0
      %s276 = scalar_select %p275, %s23, 0
      %s277 = sadd.s32 %s276, %s274
      %s278 = smul.addr %s272, 8
      %s279 = sadd.s32 %s277, %s278
      %s280 = smul.addr %s279, 4
      %s281 = scalar_lea.vmem %s0, %s280
      %p282 = pneg %p60
      %p283 = pneg %p57
      %p284 = scmp.lt.s32.totalorder %s21, 1
      %s285 = scalar_select %p284, %s21, 1
      %p286 = scmp.lt.s32.totalorder %s23, 0
      %s287 = scalar_select %p286, %s23, 0
      %s288 = sadd.s32 %s287, %s285
      %s289 = scalar_lea.vmem %s1, %s288
      %p290 = pneg %p88
      %p291 = pneg %p85
      %p292 = scmp.lt.s32.totalorder %s21, 1
      %s293 = scalar_select %p292, %s21, 1
      %p294 = scmp.lt.s32.totalorder %s23, 0
      %s295 = scalar_select %p294, %s23, 0
      %s296 = sadd.s32 %s295, %s293
      %s297 = scalar_lea.vmem %s2, %s296
      %p298 = pneg %p116
      %p299 = pneg %p113
      %p300 = scmp.lt.s32.totalorder %s23, 0
      %s301 = scalar_select %p300, %s23, 0
      %s302 = scalar_lea.vmem %s3, %s301
      %p303 = pneg %p142
      %p304 = pneg %p139
      %p305 = scmp.lt.s32.totalorder %s23, 0
      %s306 = scalar_select %p305, %s23, 0
      %s307 = scalar_lea.vmem %s4, %s306
      %p308 = pneg %p168
      %p309 = pneg %p165
      %p310 = pneg %p198
      %p311 = pneg %p195
      %s312 = smul.u32 8, %s22
      %p313 = scmp.lt.s32.totalorder %s21, 1
      %s314 = scalar_select %p313, %s21, 1
      %p315 = scmp.lt.s32.totalorder %s312, 7
      %s316 = scalar_select %p315, %s312, 7
      %p317 = scmp.lt.s32.totalorder %s23, 0
      %s318 = scalar_select %p317, %s23, 0
      %s319 = sadd.s32 %s318, %s316
      %s320 = smul.addr %s314, 8
      %s321 = sadd.s32 %s319, %s320
      %s322 = smul.addr %s321, 4
      %s323 = scalar_lea.vmem %s5, %s322
      %s324 = smul.u32 8, %s22
      %p325 = scmp.lt.s32.totalorder %s21, 1
      %s326 = scalar_select %p325, %s21, 1
      %p327 = scmp.lt.s32.totalorder %s324, 7
      %s328 = scalar_select %p327, %s324, 7
      %p329 = scmp.lt.s32.totalorder %s23, 0
      %s330 = scalar_select %p329, %s23, 0
      %s331 = sadd.s32 %s330, %s328
      %s332 = smul.addr %s326, 8
      %s333 = sadd.s32 %s331, %s332
      %s334 = smul.addr %s333, 4
      %s335 = scalar_lea.vmem %s0, %s334
      %s336 = smul.u32 8, %s22
      %p337 = scmp.lt.s32.totalorder %s21, 1
      %s338 = scalar_select %p337, %s21, 1
      %p339 = scmp.lt.s32.totalorder %s23, 0
      %s340 = scalar_select %p339, %s23, 0
      %s341 = sadd.s32 %s340, %s338
      %s342 = scalar_lea.vmem %s1, %s341
      %p343 = scmp.lt.s32.totalorder %s21, 1
      %s344 = scalar_select %p343, %s21, 1
      %p345 = scmp.lt.s32.totalorder %s23, 0
      %s346 = scalar_select %p345, %s23, 0
      %s347 = sadd.s32 %s346, %s344
      %s348 = scalar_lea.vmem %s2, %s347
      %p349 = scmp.lt.s32.totalorder %s23, 0
      %s350 = scalar_select %p349, %s23, 0
      %s351 = scalar_lea.vmem %s3, %s350
      %p352 = scmp.lt.s32.totalorder %s23, 0
      %s353 = scalar_select %p352, %s23, 0
      %s354 = scalar_lea.vmem %s4, %s353
      %s355 = smul.u32 8, %s22
      %p356 = scmp.lt.s32.totalorder %s21, 1
      %s357 = scalar_select %p356, %s21, 1
      %p358 = scmp.lt.s32.totalorder %s355, 7
      %s359 = scalar_select %p358, %s355, 7
      %p360 = scmp.lt.s32.totalorder %s23, 0
      %s361 = scalar_select %p360, %s23, 0
      %s362 = sadd.s32 %s361, %s359
      %s363 = smul.addr %s357, 8
      %s364 = sadd.s32 %s362, %s363
      %s365 = smul.addr %s364, 4
      %s366 = scalar_lea.vmem %s5, %s365
      %s367 = smul.u32 8, %s22
      %v368 = vld [vmem:[%s335] sm:$0xf]
      %v369 = vld [vmem:[%s335 + $0x4] sm:$0xf]
      %v370 = vld [vmem:[%s335 + $0x8] sm:$0xf]
      %v371 = vld [vmem:[%s335 + $0xc] sm:$0xf]
      %v372 = vld [vmem:[%s335 + $0x10] sm:$0xf]
      %v373 = vld [vmem:[%s335 + $0x14] sm:$0xf]
      %v374 = vld [vmem:[%s335 + $0x18] sm:$0xf]
      %v375 = vld [vmem:[%s335 + $0x1c] sm:$0xf]
      %v376 = vunpack.c.l.bf16 %v368
      %v377 = vunpack.c.l.bf16 %v369
      %v378 = vunpack.c.l.bf16 %v370
      %v379 = vunpack.c.l.bf16 %v371
      %v380 = vunpack.c.l.bf16 %v372
      %v381 = vunpack.c.l.bf16 %v373
      %v382 = vunpack.c.l.bf16 %v374
      %v383 = vunpack.c.l.bf16 %v375
      %v384 = vld [vmem:[%s342] sm:$0x1]
      %v385 = vmul.f32 %v384, 0.015873017
      %v386 = vld [vmem:[%s348] sm:$0x1]
      %v387 = vmul.f32 %v386, 0.015873017
      %v388 = vmul.f32 %v385, %v385
      %v389 = vsub.f32 %v387, %v388
      %v391 = vperm.slane %v385, 0
      %v393 = vsub.f32 %v376, %v391
      %v394 = vsub.f32 %v377, %v391
      %v395 = vsub.f32 %v378, %v391
      %v396 = vsub.f32 %v379, %v391
      %v397 = vsub.f32 %v380, %v391
      %v398 = vsub.f32 %v381, %v391
      %v399 = vsub.f32 %v382, %v391
      %v400 = vsub.f32 %v383, %v391
      %v401 = vadd.f32 %v389, 1e-05
      %v402 = vrsqrt.pop %v401
      %v403 = vmul.f32 %v402, %v401
      %v404 = vmul.f32 %v403, %v402
      %v405 = vmul.f32 0.5, %v404
      %v406 = vsub.f32 1.5, %v405
      %v407 = vmul.f32 %v402, %v406
      %vm408 = vweird.f32 %v401
      %vm409 = vweird.f32 %v402
      %vm410 = vmor %vm408, %vm409
      %v411 = vsel %vm410, %v402, %v407
      %v413 = vperm.slane %v411, 0
      %v415 = vmul.f32 %v393, %v413
      %v416 = vmul.f32 %v394, %v413
      %v417 = vmul.f32 %v395, %v413
      %v418 = vmul.f32 %v396, %v413
      %v419 = vmul.f32 %v397, %v413
      %v420 = vmul.f32 %v398, %v413
      %v421 = vmul.f32 %v399, %v413
      %v422 = vmul.f32 %v400, %v413
      %v423 = vld [vmem:[%s351] sm:$0x1]
      %v425 = vperm.slane %v423, 0
      %v427 = vmul.f32 %v415, %v425
      %v428 = vmul.f32 %v416, %v425
      %v429 = vmul.f32 %v417, %v425
      %v430 = vmul.f32 %v418, %v425
      %v431 = vmul.f32 %v419, %v425
      %v432 = vmul.f32 %v420, %v425
      %v433 = vmul.f32 %v421, %v425
      %v434 = vmul.f32 %v422, %v425
      %v435 = vld [vmem:[%s354] sm:$0x1]
      %v437 = vperm.slane %v435, 0
      %v439 = vadd.f32 %v427, %v437
      %v440 = vadd.f32 %v428, %v437
      %v441 = vadd.f32 %v429, %v437
      %v442 = vadd.f32 %v430, %v437
      %v443 = vadd.f32 %v431, %v437
      %v444 = vadd.f32 %v432, %v437
      %v445 = vadd.f32 %v433, %v437
      %v446 = vadd.f32 %v434, %v437
      %v447 = vmul.f32 %v439, 0.5
      %v448 = vmul.f32 %v440, 0.5
      %v449 = vmul.f32 %v441, 0.5
      %v450 = vmul.f32 %v442, 0.5
      %v451 = vmul.f32 %v443, 0.5
      %v452 = vmul.f32 %v444, 0.5
      %v453 = vmul.f32 %v445, 0.5
      %v454 = vmul.f32 %v446, 0.5
      %v455 = vmul.f32 %v439, 0.044715
      %v456 = vmul.f32 %v440, 0.044715
      %v457 = vmul.f32 %v441, 0.044715
      %v458 = vmul.f32 %v442, 0.044715
      %v459 = vmul.f32 %v443, 0.044715
      %v460 = vmul.f32 %v444, 0.044715
      %v461 = vmul.f32 %v445, 0.044715
      %v462 = vmul.f32 %v446, 0.044715
      %v463 = vmul.f32 %v455, %v439
      %v464 = vmul.f32 %v456, %v440
      %v465 = vmul.f32 %v457, %v441
      %v466 = vmul.f32 %v458, %v442
      %v467 = vmul.f32 %v459, %v443
      %v468 = vmul.f32 %v460, %v444
      %v469 = vmul.f32 %v461, %v445
      %v470 = vmul.f32 %v462, %v446
      %v471 = vmul.f32 %v463, %v439
      %v472 = vmul.f32 %v464, %v440
      %v473 = vmul.f32 %v465, %v441
      %v474 = vmul.f32 %v466, %v442
      %v475 = vmul.f32 %v467, %v443
      %v476 = vmul.f32 %v468, %v444
      %v477 = vmul.f32 %v469, %v445
      %v478 = vmul.f32 %v470, %v446
      %v479 = vadd.f32 %v439, %v471
      %v480 = vadd.f32 %v440, %v472
      %v481 = vadd.f32 %v441, %v473
      %v482 = vadd.f32 %v442, %v474
      %v483 = vadd.f32 %v443, %v475
      %v484 = vadd.f32 %v444, %v476
      %v485 = vadd.f32 %v445, %v477
      %v486 = vadd.f32 %v446, %v478
      %v487 = vmul.f32 %v479, 0.7978846
      %v488 = vmul.f32 %v480, 0.7978846
      %v489 = vmul.f32 %v481, 0.7978846
      %v490 = vmul.f32 %v482, 0.7978846
      %v491 = vmul.f32 %v483, 0.7978846
      %v492 = vmul.f32 %v484, 0.7978846
      %v493 = vmul.f32 %v485, 0.7978846
      %v494 = vmul.f32 %v486, 0.7978846
      %v495 = vtanh.pop %v487
      %v496 = vtanh.pop %v488
      %v497 = vtanh.pop %v489
      %v498 = vtanh.pop %v490
      %v499 = vtanh.pop %v491
      %v500 = vtanh.pop %v492
      %v501 = vtanh.pop %v493
      %v502 = vtanh.pop %v494
      %v503 = vadd.f32 %v495, 1.0
      %v504 = vadd.f32 %v496, 1.0
      %v505 = vadd.f32 %v497, 1.0
      %v506 = vadd.f32 %v498, 1.0
      %v507 = vadd.f32 %v499, 1.0
      %v508 = vadd.f32 %v500, 1.0
      %v509 = vadd.f32 %v501, 1.0
      %v510 = vadd.f32 %v502, 1.0
      %v511 = vmul.f32 %v447, %v503
      %v512 = vmul.f32 %v448, %v504
      %v513 = vmul.f32 %v449, %v505
      %v514 = vmul.f32 %v450, %v506
      %v515 = vmul.f32 %v451, %v507
      %v516 = vmul.f32 %v452, %v508
      %v517 = vmul.f32 %v453, %v509
      %v518 = vmul.f32 %v454, %v510
      %v519 = vpack.c.bf16 %v511, %v511
      %v520 = vpack.c.bf16 %v512, %v512
      %v521 = vpack.c.bf16 %v513, %v513
      %v522 = vpack.c.bf16 %v514, %v514
      %v523 = vpack.c.bf16 %v515, %v515
      %v524 = vpack.c.bf16 %v516, %v516
      %v525 = vpack.c.bf16 %v517, %v517
      %v526 = vpack.c.bf16 %v518, %v518
      %vm527 = vcmask 125952
      %528 = vst.msk [vmem:[%s366] sm:$0xf] %vm527, %v519
      %529 = vst.msk [vmem:[%s366 + $0x4] sm:$0xf] %vm527, %v520
      %530 = vst.msk [vmem:[%s366 + $0x8] sm:$0xf] %vm527, %v521
      %531 = vst.msk [vmem:[%s366 + $0xc] sm:$0xf] %vm527, %v522
      %532 = vst.msk [vmem:[%s366 + $0x10] sm:$0xf] %vm527, %v523
      %533 = vst.msk [vmem:[%s366 + $0x14] sm:$0xf] %vm527, %v524
      %534 = vst.msk [vmem:[%s366 + $0x18] sm:$0xf] %vm527, %v525
      %vm535 = vcmask 125952
      %vm536 = vsmask.f32 3328
      %vm537 = vmand %vm535, %vm536
      %v538 = vld [vmem:[%s366 + $0x1c] sm:$0xf]
      %v539 = vsel %vm537, %v526, %v538
      %540 = vst [vmem:[%s366 + $0x1c] sm:$0xf] %v539
      %s541 = smul.u32 8, %s22
      %p542 = scmp.lt.s32.totalorder %s21, 1
      %s543 = scalar_select %p542, %s21, 1
      %p544 = scmp.lt.s32.totalorder %s541, 7
      %s545 = scalar_select %p544, %s541, 7
      %p546 = scmp.lt.s32.totalorder %s23, 0
      %s547 = scalar_select %p546, %s23, 0
      %s548 = sadd.s32 %s547, %s545
      %s549 = smul.addr %s543, 8
      %s550 = sadd.s32 %s548, %s549
      %s551 = smul.addr %s550, 4
      %s552 = scalar_lea.vmem %s5, %s551
      // Predicated region
      $region41: #{_lambda_.17} parent=39 // pred_check
        %p553 = pneg %p195
      $region42: #{_lambda_.17} parent=39 // pred_check_branch
        %555 = sbr.rel (%p553) target = $region44
      $region43: #{_lambda_.17} parent=39 // pred_region
        %s556 = smul.u32 8, %s22
      $region44: #{_lambda_.17} parent=39 // pred_fallthru
        _
    $region40: #{_lambda_.17} parent=5 // pred_fallthru
      _
    %p557 = scmp.le.s32.totalorder 2, %s11
    // Predicated region
    $region45: #{_lambda_.17} parent=5 // pred_check
      %p558 = pneg %p557
    $region46: #{_lambda_.17} parent=5 // pred_check_branch
      %560 = sbr.rel (%p558) target = $region48
    $region47: #{_lambda_.17} parent=5 // pred_region
      %s561 = ssub.s32 %s11, 2
      // Predicated region
      $region49: #{_lambda_.17} parent=47 // pred_check
        %p562 = pneg %p201
      $region50: #{_lambda_.17} parent=47 // pred_check_branch
        %564 = sbr.rel (%p562) target = $region52
      $region51: #{_lambda_.17} parent=47 // pred_region
        %s565 = smul.u32 8, %s25
        %p566 = scmp.lt.s32.totalorder %s24, 1
        %s567 = scalar_select %p566, %s24, 1
        %p568 = scmp.lt.s32.totalorder %s565, 7
        %s569 = scalar_select %p568, %s565, 7
        %p570 = scmp.lt.s32.totalorder %s26, 0
        %s571 = scalar_select %p570, %s26, 0
        %s572 = sadd.s32 %s571, %s569
        %s573 = smul.addr %s567, 8
        %s574 = sadd.s32 %s572, %s573
        %s575 = smul.addr %s574, 4
        %s576 = scalar_lea.vmem %s5, %s575
      $region52: #{_lambda_.17} parent=47 // pred_fallthru
        _
    $region48: #{_lambda_.17} parent=5 // pred_fallthru
      _
  $region6: #{_lambda_.17} parent=0 // loop_footer
    %s15 = sadd.s32 1, %s11
  $region7: #{_lambda_.17} parent=0 // loop_footer_branch
    %10 = sbr.rel target = $region3
  $region8: #{_lambda_.17} parent=0 // loop_exit
    _

// kernel: _lambda_.18
$region0: #{_lambda_.18}
  #allocation0 [shape = 'u32[]', space=smem, size = 0x4, offset = 0x4, fixed_abs, tag = 'smem constant byte address 0x4 - core index']
  #allocation1 [shape = 'u32[72,128]{1,0:T(1,128)}', space=vmem, size = 0x9000, scoped, tag = 'internal scratch']
  %s0 = inlined_call_operand.vmem [shape: bf16[62,64], index: 0, kind: input, shape index: {}]
  %s1 = inlined_call_operand.vmem [shape: bf16[64,16], index: 1, kind: input, shape index: {}]
  %s2 = inlined_call_operand.vmem [shape: bf16[62,16], index: 2, kind: output, shape index: {}]
  %s3 = sld [smem:[#allocation0]]
  $region18: #{_lambda_.18} parent=0
    _
  %s5 = ssub.s32 1, %s3
  %s6 = scalar_select 0, %s5, %s3
  // Predicated region
  $region2: #{_lambda_.18} parent=0 // pred_check
    _
  $region3: #{_lambda_.18} parent=0 // pred_check_branch
    %8 = sbr.rel (0) target = $region5
  $region4: #{_lambda_.18} parent=0 // pred_region
    _
  $region5: #{_lambda_.18} parent=0 // pred_fallthru
    _
  // Predicated region
  $region6: #{_lambda_.18} parent=0 // pred_check
    _
  $region7: #{_lambda_.18} parent=0 // pred_check_branch
    %10 = sbr.rel (0) target = $region9
  $region8: #{_lambda_.18} parent=0 // pred_region
    _
  $region9: #{_lambda_.18} parent=0 // pred_fallthru
    _
  %v12 = vld [vmem:[%s0] sm:$0xf]
  %v13 = vld [vmem:[%s0 + $0x4] sm:$0xf]
  %v14 = vld [vmem:[%s0 + $0x8] sm:$0xf]
  %v15 = vld [vmem:[%s0 + $0xc] sm:$0xf]
  %v16 = vld [vmem:[%s0 + $0x10] sm:$0xf]
  %v17 = vld [vmem:[%s0 + $0x14] sm:$0xf]
  %v18 = vld [vmem:[%s0 + $0x18] sm:$0xf]
  %v19 = vld [vmem:[%s0 + $0x1c] sm:$0x7]
  %v20 = vld [vmem:[%s1] sm:$0xf]
  %v21 = vld [vmem:[%s1 + $0x4] sm:$0xf]
  %v22 = vld [vmem:[%s1 + $0x8] sm:$0xf]
  %v23 = vld [vmem:[%s1 + $0xc] sm:$0xf]
  %v24 = vld [vmem:[%s1 + $0x10] sm:$0xf]
  %v25 = vld [vmem:[%s1 + $0x14] sm:$0xf]
  %v26 = vld [vmem:[%s1 + $0x18] sm:$0xf]
  %v27 = vld [vmem:[%s1 + $0x1c] sm:$0xf]
  %v36 = vunpack.c.l.b16 %v12
  %v37 = vunpack.c.l.b16 %v13
  %v38 = vunpack.c.l.b16 %v14
  %v39 = vunpack.c.l.b16 %v15
  %v40 = vunpack.c.l.b16 %v16
  %v41 = vunpack.c.l.b16 %v17
  %v42 = vunpack.c.l.b16 %v18
  %v43 = vunpack.c.l.b16 %v19
  %v44 = vpack.c.b16 %v37, %v36
  %v45 = vpack.c.b16 %v39, %v38
  %v46 = vpack.c.b16 %v41, %v40
  %v47 = vpack.c.b16 %v43, %v42
  %v56 = vunpack.c.l.b16 %v20
  %v57 = vunpack.c.l.b16 %v21
  %v58 = vunpack.c.l.b16 %v22
  %v59 = vunpack.c.l.b16 %v23
  %v60 = vunpack.c.l.b16 %v24
  %v61 = vunpack.c.l.b16 %v25
  %v62 = vunpack.c.l.b16 %v26
  %v63 = vunpack.c.l.b16 %v27
  %v64 = vpack.c.b16 %v57, %v56
  %v65 = vpack.c.b16 %v59, %v58
  %v66 = vpack.c.b16 %v61, %v60
  %v67 = vpack.c.b16 %v63, %v62
  %vm72 = vcmask 523264
  %v74 = vsel %vm72, %v44, 0
  %v77 = vsel %vm72, %v45, 0
  %v80 = vsel %vm72, %v46, 0
  %v83 = vsel %vm72, %v47, 0
  %85 = vmatpush.bf16.msra.mxu0 0
  %86 = vmatpush.bf16.msra.mxu0 0
  %87 = vmatpush.bf16.msra.mxu0 0
  %88 = vmatpush.bf16.msra.mxu0 0
  %89 = vmatpush.bf16.msra.mxu0 %v67
  %90 = vmatpush.bf16.msra.mxu0 %v66
  %91 = vmatpush.bf16.msra.mxu0 %v65
  %92 = vmatpush.bf16.msra.mxu0 %v64
  %93 = vmatmul.bf16.gmra.mxu0 %v74
  %v94 = vpop.f32.mrf.mxu0
  %v95 = vadd.f32 0.0, %v94
  %v96 = vpop.f32.mrf.mxu0
  %v97 = vadd.f32 0.0, %v96
  %98 = vmatmul.bf16.gmra.mxu0 %v77
  %v99 = vpop.f32.mrf.mxu0
  %v100 = vadd.f32 0.0, %v99
  %v101 = vpop.f32.mrf.mxu0
  %v102 = vadd.f32 0.0, %v101
  %103 = vmatmul.bf16.gmra.mxu0 %v80
  %v104 = vpop.f32.mrf.mxu0
  %v105 = vadd.f32 0.0, %v104
  %v106 = vpop.f32.mrf.mxu0
  %v107 = vadd.f32 0.0, %v106
  %108 = vmatmul.bf16.gmra.mxu0 %v83
  %v109 = vpop.f32.mrf.mxu0
  %v110 = vadd.f32 0.0, %v109
  %v111 = vpop.f32.mrf.mxu0
  %v112 = vadd.f32 0.0, %v111
  %113 = vdwg.mxu0
  %v114 = vmul.f32 %v95, 0.5
  %v115 = vmul.f32 %v97, 0.5
  %v116 = vmul.f32 %v100, 0.5
  %v117 = vmul.f32 %v102, 0.5
  %v118 = vmul.f32 %v105, 0.5
  %v119 = vmul.f32 %v107, 0.5
  %v120 = vmul.f32 %v110, 0.5
  %v121 = vmul.f32 %v112, 0.5
  %v122 = vmul.f32 %v95, 0.044715
  %v123 = vmul.f32 %v97, 0.044715
  %v124 = vmul.f32 %v100, 0.044715
  %v125 = vmul.f32 %v102, 0.044715
  %v126 = vmul.f32 %v105, 0.044715
  %v127 = vmul.f32 %v107, 0.044715
  %v128 = vmul.f32 %v110, 0.044715
  %v129 = vmul.f32 %v112, 0.044715
  %v130 = vmul.f32 %v122, %v95
  %v131 = vmul.f32 %v123, %v97
  %v132 = vmul.f32 %v124, %v100
  %v133 = vmul.f32 %v125, %v102
  %v134 = vmul.f32 %v126, %v105
  %v135 = vmul.f32 %v127, %v107
  %v136 = vmul.f32 %v128, %v110
  %v137 = vmul.f32 %v129, %v112
  %v138 = vmul.f32 %v130, %v95
  %v139 = vmul.f32 %v131, %v97
  %v140 = vmul.f32 %v132, %v100
  %v141 = vmul.f32 %v133, %v102
  %v142 = vmul.f32 %v134, %v105
  %v143 = vmul.f32 %v135, %v107
  %v144 = vmul.f32 %v136, %v110
  %v145 = vmul.f32 %v137, %v112
  %v146 = vadd.f32 %v95, %v138
  %v147 = vadd.f32 %v97, %v139
  %v148 = vadd.f32 %v100, %v140
  %v149 = vadd.f32 %v102, %v141
  %v150 = vadd.f32 %v105, %v142
  %v151 = vadd.f32 %v107, %v143
  %v152 = vadd.f32 %v110, %v144
  %v153 = vadd.f32 %v112, %v145
  %v154 = vmul.f32 %v146, 0.7978846
  %v155 = vmul.f32 %v147, 0.7978846
  %v156 = vmul.f32 %v148, 0.7978846
  %v157 = vmul.f32 %v149, 0.7978846
  %v158 = vmul.f32 %v150, 0.7978846
  %v159 = vmul.f32 %v151, 0.7978846
  %v160 = vmul.f32 %v152, 0.7978846
  %v161 = vmul.f32 %v153, 0.7978846
  %v162 = vtanh.pop %v154
  %v163 = vtanh.pop %v155
  %v164 = vtanh.pop %v156
  %v165 = vtanh.pop %v157
  %v166 = vtanh.pop %v158
  %v167 = vtanh.pop %v159
  %v168 = vtanh.pop %v160
  %v169 = vtanh.pop %v161
  %v170 = vadd.f32 %v162, 1.0
  %v171 = vadd.f32 %v163, 1.0
  %v172 = vadd.f32 %v164, 1.0
  %v173 = vadd.f32 %v165, 1.0
  %v174 = vadd.f32 %v166, 1.0
  %v175 = vadd.f32 %v167, 1.0
  %v176 = vadd.f32 %v168, 1.0
  %v177 = vadd.f32 %v169, 1.0
  %v178 = vmul.f32 %v114, %v170
  %v179 = vmul.f32 %v115, %v171
  %v180 = vmul.f32 %v116, %v172
  %v181 = vmul.f32 %v117, %v173
  %v182 = vmul.f32 %v118, %v174
  %v183 = vmul.f32 %v119, %v175
  %v184 = vmul.f32 %v120, %v176
  %v185 = vmul.f32 %v121, %v177
  %v186 = vpack.c.bf16 %v178, %v178
  %v187 = vpack.c.bf16 %v179, %v179
  %v188 = vpack.c.bf16 %v180, %v180
  %v189 = vpack.c.bf16 %v181, %v181
  %v190 = vpack.c.bf16 %v182, %v182
  %v191 = vpack.c.bf16 %v183, %v183
  %v192 = vpack.c.bf16 %v184, %v184
  %v193 = vpack.c.bf16 %v185, %v185
  %vm194 = vcmask 125952
  %195 = vst.msk [vmem:[%s2] sm:$0xf] %vm194, %v186
  %196 = vst.msk [vmem:[%s2 + $0x4] sm:$0xf] %vm194, %v187
  %197 = vst.msk [vmem:[%s2 + $0x8] sm:$0xf] %vm194, %v188
  %198 = vst.msk [vmem:[%s2 + $0xc] sm:$0xf] %vm194, %v189
  %199 = vst.msk [vmem:[%s2 + $0x10] sm:$0xf] %vm194, %v190
  %200 = vst.msk [vmem:[%s2 + $0x14] sm:$0xf] %vm194, %v191
  %201 = vst.msk [vmem:[%s2 + $0x18] sm:$0xf] %vm194, %v192
  %vm202 = vcmask 124928
  %203 = vst.msk [vmem:[%s2 + $0x1c] sm:$0x7] %vm202, %v193
  // Predicated region
  $region10: #{_lambda_.18} parent=0 // pred_check
    _
  $region11: #{_lambda_.18} parent=0 // pred_check_branch
    %205 = sbr.rel (0) target = $region13
  $region12: #{_lambda_.18} parent=0 // pred_region
    _
  $region13: #{_lambda_.18} parent=0 // pred_fallthru
    _
  // Predicated region
  $region14: #{_lambda_.18} parent=0 // pred_check
    _
  $region15: #{_lambda_.18} parent=0 // pred_check_branch
    %207 = sbr.rel (0) target = $region17
  $region16: #{_lambda_.18} parent=0 // pred_region
    _
  $region17: #{_lambda_.18} parent=0 // pred_fallthru
    _

// kernel: _lambda_.19
$region0: #{_lambda_.19}
  #allocation0 [shape = 'u32[]', space=smem, size = 0x4, offset = 0x4, fixed_abs, tag = 'smem constant byte address 0x4 - core index']
  #allocation1 [shape = 'u32[72,128]{1,0:T(1,128)}', space=vmem, size = 0x9000, scoped, tag = 'internal scratch']
  %s0 = inlined_call_operand.vmem [shape: bf16[30,32], index: 0, kind: input, shape index: {}]
  %s1 = inlined_call_operand.vmem [shape: bf16[32,16], index: 1, kind: input, shape index: {}]
  %s2 = inlined_call_operand.vmem [shape: bf16[30,16], index: 2, kind: output, shape index: {}]
  %s3 = sld [smem:[#allocation0]]
  $region18: #{_lambda_.19} parent=0
    _
  %s5 = ssub.s32 1, %s3
  %s6 = scalar_select 0, %s5, %s3
  // Predicated region
  $region2: #{_lambda_.19} parent=0 // pred_check
    _
  $region3: #{_lambda_.19} parent=0 // pred_check_branch
    %8 = sbr.rel (0) target = $region5
  $region4: #{_lambda_.19} parent=0 // pred_region
    _
  $region5: #{_lambda_.19} parent=0 // pred_fallthru
    _
  // Predicated region
  $region6: #{_lambda_.19} parent=0 // pred_check
    _
  $region7: #{_lambda_.19} parent=0 // pred_check_branch
    %10 = sbr.rel (0) target = $region9
  $region8: #{_lambda_.19} parent=0 // pred_region
    _
  $region9: #{_lambda_.19} parent=0 // pred_fallthru
    _
  %v12 = vld [vmem:[%s0] sm:$0xf]
  %v13 = vld [vmem:[%s0 + $0x4] sm:$0xf]
  %v14 = vld [vmem:[%s0 + $0x8] sm:$0xf]
  %v15 = vld [vmem:[%s0 + $0xc] sm:$0x7]
  %v16 = vld [vmem:[%s1] sm:$0xf]
  %v17 = vld [vmem:[%s1 + $0x4] sm:$0xf]
  %v18 = vld [vmem:[%s1 + $0x8] sm:$0xf]
  %v19 = vld [vmem:[%s1 + $0xc] sm:$0xf]
  %v24 = vunpack.c.l.b16 %v12
  %v25 = vunpack.c.l.b16 %v13
  %v26 = vunpack.c.l.b16 %v14
  %v27 = vunpack.c.l.b16 %v15
  %v28 = vpack.c.b16 %v25, %v24
  %v29 = vpack.c.b16 %v27, %v26
  %v34 = vunpack.c.l.b16 %v16
  %v35 = vunpack.c.l.b16 %v17
  %v36 = vunpack.c.l.b16 %v18
  %v37 = vunpack.c.l.b16 %v19
  %v38 = vpack.c.b16 %v35, %v34
  %v39 = vpack.c.b16 %v37, %v36
  %vm42 = vcmask 261120
  %v44 = vsel %vm42, %v28, 0
  %v47 = vsel %vm42, %v29, 0
  %49 = vmatpush.bf16.msra.mxu0 0
  %50 = vmatpush.bf16.msra.mxu0 0
  %51 = vmatpush.bf16.msra.mxu0 0
  %52 = vmatpush.bf16.msra.mxu0 0
  %53 = vmatpush.bf16.msra.mxu0 0
  %54 = vmatpush.bf16.msra.mxu0 0
  %55 = vmatpush.bf16.msra.mxu0 %v39
  %56 = vmatpush.bf16.msra.mxu0 %v38
  %57 = vmatmul.bf16.gmra.mxu0 %v44
  %v58 = vpop.f32.mrf.mxu0
  %v59 = vadd.f32 0.0, %v58
  %v60 = vpop.f32.mrf.mxu0
  %v61 = vadd.f32 0.0, %v60
  %62 = vmatmul.bf16.gmra.mxu0 %v47
  %v63 = vpop.f32.mrf.mxu0
  %v64 = vadd.f32 0.0, %v63
  %v65 = vpop.f32.mrf.mxu0
  %v66 = vadd.f32 0.0, %v65
  %67 = vdwg.mxu0
  %v68 = vmul.f32 %v59, 0.5
  %v69 = vmul.f32 %v61, 0.5
  %v70 = vmul.f32 %v64, 0.5
  %v71 = vmul.f32 %v66, 0.5
  %v72 = vmul.f32 %v59, 0.044715
  %v73 = vmul.f32 %v61, 0.044715
  %v74 = vmul.f32 %v64, 0.044715
  %v75 = vmul.f32 %v66, 0.044715
  %v76 = vmul.f32 %v72, %v59
  %v77 = vmul.f32 %v73, %v61
  %v78 = vmul.f32 %v74, %v64
  %v79 = vmul.f32 %v75, %v66
  %v80 = vmul.f32 %v76, %v59
  %v81 = vmul.f32 %v77, %v61
  %v82 = vmul.f32 %v78, %v64
  %v83 = vmul.f32 %v79, %v66
  %v84 = vadd.f32 %v59, %v80
  %v85 = vadd.f32 %v61, %v81
  %v86 = vadd.f32 %v64, %v82
  %v87 = vadd.f32 %v66, %v83
  %v88 = vmul.f32 %v84, 0.7978846
  %v89 = vmul.f32 %v85, 0.7978846
  %v90 = vmul.f32 %v86, 0.7978846
  %v91 = vmul.f32 %v87, 0.7978846
  %v92 = vtanh.pop %v88
  %v93 = vtanh.pop %v89
  %v94 = vtanh.pop %v90
  %v95 = vtanh.pop %v91
  %v96 = vadd.f32 %v92, 1.0
  %v97 = vadd.f32 %v93, 1.0
  %v98 = vadd.f32 %v94, 1.0
  %v99 = vadd.f32 %v95, 1.0
  %v100 = vmul.f32 %v68, %v96
  %v101 = vmul.f32 %v69, %v97
  %v102 = vmul.f32 %v70, %v98
  %v103 = vmul.f32 %v71, %v99
  %v104 = vpack.c.bf16 %v100, %v100
  %v105 = vpack.c.bf16 %v101, %v101
  %v106 = vpack.c.bf16 %v102, %v102
  %v107 = vpack.c.bf16 %v103, %v103
  %vm108 = vcmask 125952
  %109 = vst.msk [vmem:[%s2] sm:$0xf] %vm108, %v104
  %110 = vst.msk [vmem:[%s2 + $0x4] sm:$0xf] %vm108, %v105
  %111 = vst.msk [vmem:[%s2 + $0x8] sm:$0xf] %vm108, %v106
  %vm112 = vcmask 124928
  %113 = vst.msk [vmem:[%s2 + $0xc] sm:$0x7] %vm112, %v107
  // Predicated region
  $region10: #{_lambda_.19} parent=0 // pred_check
    _
  $region11: #{_lambda_.19} parent=0 // pred_check_branch
    %115 = sbr.rel (0) target = $region13
  $region12: #{_lambda_.19} parent=0 // pred_region
    _
  $region13: #{_lambda_.19} parent=0 // pred_fallthru
    _
  // Predicated region
  $region14: #{_lambda_.19} parent=0 // pred_check
    _
  $region15: #{_lambda_.19} parent=0 // pred_check_branch
    %117 = sbr.rel (0) target = $region17
  $region16: #{_lambda_.19} parent=0 // pred_region
    _
  $region17: #{_lambda_.19} parent=0 // pred_fallthru
    _

// kernel: _lambda_.20
$region0: #{_lambda_.20}
  #allocation0 [shape = 'u32[]', space=smem, size = 0x4, offset = 0x4, fixed_abs, tag = 'smem constant byte address 0x4 - core index']
  #allocation1 [shape = 'u32[72,128]{1,0:T(1,128)}', space=vmem, size = 0x9000, scoped, tag = 'internal scratch']
  %s0 = inlined_call_operand.vmem [shape: bf16[30,16], index: 0, kind: input, shape index: {}]
  %s1 = inlined_call_operand.vmem [shape: f32[1,16], index: 1, kind: input, shape index: {}]
  %s2 = inlined_call_operand.vmem [shape: f32[1,16], index: 2, kind: input, shape index: {}]
  %s3 = inlined_call_operand.vmem [shape: bf16[16,128], index: 3, kind: input, shape index: {}]
  %s4 = inlined_call_operand.vmem [shape: f32[1,128], index: 4, kind: input, shape index: {}]
  %s5 = inlined_call_operand.vmem [shape: f32[30,1], index: 5, kind: input, shape index: {}]
  %s6 = inlined_call_operand.vmem [shape: bf16[30,128], index: 6, kind: output, shape index: {}]
  %s7 = sld [smem:[#allocation0]]
  $region34: #{_lambda_.20} parent=0
    _
  %s9 = ssub.s32 1, %s7
  %s10 = scalar_select 0, %s9, %s7
  // Predicated region
  $region2: #{_lambda_.20} parent=0 // pred_check
    _
  $region3: #{_lambda_.20} parent=0 // pred_check_branch
    %12 = sbr.rel (0) target = $region5
  $region4: #{_lambda_.20} parent=0 // pred_region
    _
  $region5: #{_lambda_.20} parent=0 // pred_fallthru
    _
  // Predicated region
  $region6: #{_lambda_.20} parent=0 // pred_check
    _
  $region7: #{_lambda_.20} parent=0 // pred_check_branch
    %14 = sbr.rel (0) target = $region9
  $region8: #{_lambda_.20} parent=0 // pred_region
    _
  $region9: #{_lambda_.20} parent=0 // pred_fallthru
    _
  // Predicated region
  $region10: #{_lambda_.20} parent=0 // pred_check
    _
  $region11: #{_lambda_.20} parent=0 // pred_check_branch
    %16 = sbr.rel (0) target = $region13
  $region12: #{_lambda_.20} parent=0 // pred_region
    _
  $region13: #{_lambda_.20} parent=0 // pred_fallthru
    _
  // Predicated region
  $region14: #{_lambda_.20} parent=0 // pred_check
    _
  $region15: #{_lambda_.20} parent=0 // pred_check_branch
    %18 = sbr.rel (0) target = $region17
  $region16: #{_lambda_.20} parent=0 // pred_region
    _
  $region17: #{_lambda_.20} parent=0 // pred_fallthru
    _
  // Predicated region
  $region18: #{_lambda_.20} parent=0 // pred_check
    _
  $region19: #{_lambda_.20} parent=0 // pred_check_branch
    %20 = sbr.rel (0) target = $region21
  $region20: #{_lambda_.20} parent=0 // pred_region
    _
  $region21: #{_lambda_.20} parent=0 // pred_fallthru
    _
  // Predicated region
  $region22: #{_lambda_.20} parent=0 // pred_check
    _
  $region23: #{_lambda_.20} parent=0 // pred_check_branch
    %22 = sbr.rel (0) target = $region25
  $region24: #{_lambda_.20} parent=0 // pred_region
    _
  $region25: #{_lambda_.20} parent=0 // pred_fallthru
    _
  %v24 = vld [vmem:[%s0] sm:$0xf]
  %v25 = vld [vmem:[%s0 + $0x4] sm:$0xf]
  %v26 = vld [vmem:[%s0 + $0x8] sm:$0xf]
  %v27 = vld [vmem:[%s0 + $0xc] sm:$0x7]
  %v28 = vunpack.c.l.bf16 %v24
  %v29 = vunpack.c.l.bf16 %v25
  %v30 = vunpack.c.l.bf16 %v26
  %v31 = vunpack.c.l.bf16 %v27
  %v32 = vld [vmem:[%s1] sm:$0x1]
  %v33 = vld [vmem:[%s2] sm:$0x1]
  %vm34 = vcmask 130048
  %v35 = vsel %vm34, %v28, 0.0
  %36 = vadd.xlane.f32.xlu0 %v35
  %v37 = vpop.xlane.xlu0 %36
  %v38 = vsel %vm34, %v29, 0.0
  %39 = vadd.xlane.f32.xlu0 %v38
  %v40 = vpop.xlane.xlu0 %39
  %v41 = vsel %vm34, %v30, 0.0
  %42 = vadd.xlane.f32.xlu0 %v41
  %v43 = vpop.xlane.xlu0 %42
  %vm44 = vcmask 128000
  %v45 = vsel %vm44, %v31, 0.0
  %46 = vadd.xlane.f32.xlu0 %v45
  %v47 = vpop.xlane.xlu0 %46
  %v48 = vrcp.pop 16.0
  %v49 = vmul.f32 16.0, %v48
  %v50 = vsub.f32 1.0, %v49
  %v51 = vmul.f32 %v48, %v50
  %v52 = vadd.f32 %v48, %v51
  %vm53 = vweird.f32 %v48
  %v54 = vsel %vm53, %v48, %v52
  %v55 = vmul.f32 %v37, %v54
  %v56 = vmul.f32 %v40, %v54
  %v57 = vmul.f32 %v43, %v54
  %v58 = vmul.f32 %v47, %v54
  %v59 = vsub.f32 %v28, %v55
  %v60 = vsub.f32 %v29, %v56
  %v61 = vsub.f32 %v30, %v57
  %v62 = vsub.f32 %v31, %v58
  %v63 = vmul.f32 %v59, %v59
  %v64 = vmul.f32 %v60, %v60
  %v65 = vmul.f32 %v61, %v61
  %v66 = vmul.f32 %v62, %v62
  %v67 = vsel %vm34, %v63, 0.0
  %68 = vadd.xlane.f32.xlu0 %v67
  %v69 = vpop.xlane.xlu0 %68
  %v70 = vsel %vm34, %v64, 0.0
  %71 = vadd.xlane.f32.xlu0 %v70
  %v72 = vpop.xlane.xlu0 %71
  %v73 = vsel %vm34, %v65, 0.0
  %74 = vadd.xlane.f32.xlu0 %v73
  %v75 = vpop.xlane.xlu0 %74
  %v76 = vsel %vm44, %v66, 0.0
  %77 = vadd.xlane.f32.xlu0 %v76
  %v78 = vpop.xlane.xlu0 %77
  %v79 = vmul.f32 %v69, %v54
  %v80 = vmul.f32 %v72, %v54
  %v81 = vmul.f32 %v75, %v54
  %v82 = vmul.f32 %v78, %v54
  %v83 = vadd.f32 %v79, 1e-05
  %v84 = vadd.f32 %v80, 1e-05
  %v85 = vadd.f32 %v81, 1e-05
  %v86 = vadd.f32 %v82, 1e-05
  %v87 = vrsqrt.pop %v83
  %v88 = vmul.f32 %v87, %v83
  %v89 = vmul.f32 %v88, %v87
  %v90 = vmul.f32 0.5, %v89
  %v91 = vsub.f32 1.5, %v90
  %v92 = vmul.f32 %v87, %v91
  %vm93 = vweird.f32 %v83
  %vm94 = vweird.f32 %v87
  %vm95 = vmor %vm93, %vm94
  %v96 = vsel %vm95, %v87, %v92
  %v97 = vrsqrt.pop %v84
  %v98 = vmul.f32 %v97, %v84
  %v99 = vmul.f32 %v98, %v97
  %v100 = vmul.f32 0.5, %v99
  %v101 = vsub.f32 1.5, %v100
  %v102 = vmul.f32 %v97, %v101
  %vm103 = vweird.f32 %v84
  %vm104 = vweird.f32 %v97
  %vm105 = vmor %vm103, %vm104
  %v106 = vsel %vm105, %v97, %v102
  %v107 = vrsqrt.pop %v85
  %v108 = vmul.f32 %v107, %v85
  %v109 = vmul.f32 %v108, %v107
  %v110 = vmul.f32 0.5, %v109
  %v111 = vsub.f32 1.5, %v110
  %v112 = vmul.f32 %v107, %v111
  %vm113 = vweird.f32 %v85
  %vm114 = vweird.f32 %v107
  %vm115 = vmor %vm113, %vm114
  %v116 = vsel %vm115, %v107, %v112
  %v117 = vrsqrt.pop %v86
  %v118 = vmul.f32 %v117, %v86
  %v119 = vmul.f32 %v118, %v117
  %v120 = vmul.f32 0.5, %v119
  %v121 = vsub.f32 1.5, %v120
  %v122 = vmul.f32 %v117, %v121
  %vm123 = vweird.f32 %v86
  %vm124 = vweird.f32 %v117
  %vm125 = vmor %vm123, %vm124
  %v126 = vsel %vm125, %v117, %v122
  %v127 = vmul.f32 %v59, %v96
  %v128 = vmul.f32 %v60, %v106
  %v129 = vmul.f32 %v61, %v116
  %v130 = vmul.f32 %v62, %v126
  %v132 = vperm.slane %v32, 0
  %v134 = vmul.f32 %v127, %v132
  %v135 = vmul.f32 %v128, %v132
  %v136 = vmul.f32 %v129, %v132
  %v137 = vmul.f32 %v130, %v132
  %v139 = vperm.slane %v33, 0
  %v141 = vadd.f32 %v134, %v139
  %v142 = vadd.f32 %v135, %v139
  %v143 = vadd.f32 %v136, %v139
  %v144 = vadd.f32 %v137, %v139
  %v145 = vpack.c.bf16 %v142, %v141
  %v146 = vpack.c.bf16 %v144, %v143
  %v147 = vld [vmem:[%s3] sm:$0xf]
  %v148 = vld [vmem:[%s3 + $0x4] sm:$0xf]
  %v149 = vld [vmem:[%s4] sm:$0x1]
  %v151 = vperm.slane %v149, 0
  %v155 = vunpack.c.l.b16 %v147
  %v156 = vunpack.c.l.b16 %v148
  %v157 = vpack.c.b16 %v156, %v155
  %v160 = vsel %vm34, %v145, 0
  %v163 = vsel %vm34, %v146, 0
  %165 = vmatpush.bf16.msra.mxu0 0
  %166 = vmatpush.bf16.msra.mxu0 0
  %167 = vmatpush.bf16.msra.mxu0 0
  %168 = vmatpush.bf16.msra.mxu0 0
  %169 = vmatpush.bf16.msra.mxu0 0
  %170 = vmatpush.bf16.msra.mxu0 0
  %171 = vmatpush.bf16.msra.mxu0 0
  %172 = vmatpush.bf16.msra.mxu0 %v157
  %173 = vmatmul.bf16.gmra.mxu0 %v160
  %v174 = vpop.f32.mrf.mxu0
  %v175 = vadd.f32 %v151, %v174
  %v176 = vpop.f32.mrf.mxu0
  %v177 = vadd.f32 %v151, %v176
  %178 = vmatmul.bf16.gmra.mxu0 %v163
  %v179 = vpop.f32.mrf.mxu0
  %v180 = vadd.f32 %v151, %v179
  %v181 = vpop.f32.mrf.mxu0
  %v182 = vadd.f32 %v151, %v181
  %183 = vdwg.mxu0
  %v184 = vld [vmem:[%s5] sm:$0xff]
  %v185 = vld [vmem:[%s5 + $0x8] sm:$0xff]
  %v186 = vld [vmem:[%s5 + $0x10] sm:$0xff]
  %v187 = vld [vmem:[%s5 + $0x18] sm:$0x3f]
  %189 = vset.pattern.permute.xlu0 0
  %190 = vperm.xlu0 %189, %v184
  %v191 = vpop.permute.xlu0 %190
  %194 = vset.pattern.permute.xlu0 0
  %195 = vperm.xlu0 %194, %v185
  %v196 = vpop.permute.xlu0 %195
  %199 = vset.pattern.permute.xlu0 0
  %200 = vperm.xlu0 %199, %v186
  %v201 = vpop.permute.xlu0 %200
  %204 = vset.pattern.permute.xlu0 0
  %205 = vperm.xlu0 %204, %v187
  %v206 = vpop.permute.xlu0 %205
  %v208 = vmul.f32 %v175, %v191
  %v209 = vmul.f32 %v177, %v196
  %v210 = vmul.f32 %v180, %v201
  %v211 = vmul.f32 %v182, %v206
  %v212 = vpack.c.bf16 %v208, %v208
  %v213 = vpack.c.bf16 %v209, %v209
  %v214 = vpack.c.bf16 %v210, %v210
  %v215 = vpack.c.bf16 %v211, %v211
  %216 = vst [vmem:[%s6] sm:$0xf] %v212
  %217 = vst [vmem:[%s6 + $0x4] sm:$0xf] %v213
  %218 = vst [vmem:[%s6 + $0x8] sm:$0xf] %v214
  %219 = vst [vmem:[%s6 + $0xc] sm:$0x7] %v215
  // Predicated region
  $region26: #{_lambda_.20} parent=0 // pred_check
    _
  $region27: #{_lambda_.20} parent=0 // pred_check_branch
    %221 = sbr.rel (0) target = $region29
  $region28: #{_lambda_.20} parent=0 // pred_region
    _
  $region29: #{_lambda_.20} parent=0 // pred_fallthru
    _
  // Predicated region
  $region30: #{_lambda_.20} parent=0 // pred_check
    _
  $region31: #{_lambda_.20} parent=0 // pred_check_branch
    %223 = sbr.rel (0) target = $region33
  $region32: #{_lambda_.20} parent=0 // pred_region
    _
  $region33: #{_lambda_.20} parent=0 // pred_fallthru
    _

// kernel: _lambda_.21
$region0: #{_lambda_.21}
  #allocation0 [shape = 'u32[]', space=smem, size = 0x4, offset = 0x4, fixed_abs, tag = 'smem constant byte address 0x4 - core index']
  #allocation1 [shape = 'u32[72,128]{1,0:T(1,128)}', space=vmem, size = 0x9000, scoped, tag = 'internal scratch']
  %s0 = inlined_call_operand.vmem [shape: bf16[2,17,128], index: 0, kind: input, shape index: {}]
  %s1 = inlined_call_operand.vmem [shape: bf16[3,128,128], index: 1, kind: input, shape index: {}]
  %s2 = inlined_call_operand.vmem [shape: f32[1,128], index: 2, kind: input, shape index: {}, may-alias: {2,5}]
  %s3 = inlined_call_operand.vmem [shape: bf16[2,15,128], index: 3, kind: input, shape index: {}]
  %s4 = inlined_call_operand.vmem [shape: f32[1,128], index: 4, kind: input, shape index: {}]
  %s5 = inlined_call_operand.vmem [shape: f32[1,128], index: 5, kind: input, shape index: {}, may-alias: {2,5}]
  %s6 = inlined_call_operand.vmem [shape: bf16[2,15,128], index: 6, kind: output, shape index: {}]
  %s7 = sld [smem:[#allocation0]]
  $region57: #{_lambda_.21} parent=0
    _
  %s9 = ssub.s32 1, %s7
  %s10 = scalar_select 0, %s9, %s7
  loop: start=0, step=1, limit=4
  $region2: #{_lambda_.21} parent=0 // loop_pre_header
    _
  $region3: #{_lambda_.21} parent=0 // loop_header
    %s12 = sphi 0, %s16
    %p13 = scmp.ge.s32.totalorder %s12, 4
    %s22 = sphi 0, %s24
    %s25 = sphi 0, %s22
    %s26 = sphi 0, %s25
    %s42 = sphi 0, %s26
    %s46 = sphi 0, %s46
    %s48 = sphi 0, %s46
    %s49 = sphi 0, %s48
    %s63 = sphi 0, %s49
    %s67 = sphi 0, %s67
    %s69 = sphi 0, %s67
    %s70 = sphi 0, %s69
    %s84 = sphi 0, %s70
    %s90 = sphi 0, %s92
    %s93 = sphi 0, %s90
    %s94 = sphi 0, %s93
    %s110 = sphi 0, %s94
    %s114 = sphi 0, %s114
    %s116 = sphi 0, %s114
    %s117 = sphi 0, %s116
    %s131 = sphi 0, %s117
    %s135 = sphi 0, %s135
    %s137 = sphi 0, %s135
    %s138 = sphi 0, %s137
    %s152 = sphi 0, %s138
    %s158 = sphi 0, %s160
    %s161 = sphi 0, %s158
    %s162 = sphi 0, %s161
    %s178 = sphi 0, %s162
  $region4: #{_lambda_.21} parent=0 // loop_header_branch
    %15 = sbr.rel (%p13) target = $region8
  $region5: #{_lambda_.21} parent=0 // loop_body
    %s17 = ssub.s32 %s12, 1
    %s18 = ssub.s32 %s12, 2
    %s19 = sadd.s32 %s12, 1
    %s20 = ssub.s32 %s12, %s19
    %p21 = scmp.eq.s32.totalorder %s20, 0
    %s23 = sadd.s32 %s22, 1
    %s24 = scalar_select %p21, %s22, %s23
    %p27 = pneg %p21
    %p28 = scmp.eq.s32.totalorder %s12, 1
    %p29 = por %p27, %p28
    %p30 = scmp.ne.s32.totalorder %s22, %s25
    %p31 = scmp.eq.s32.totalorder %s12, 0
    %p32 = por %p30, %p31
    %p33 = scmp.ne.s32.totalorder %s22, %s25
    %p34 = scmp.eq.s32.totalorder %s17, 1
    %p35 = por %p33, %p34
    %p36 = scmp.ne.s32.totalorder %s25, %s26
    %p37 = scmp.eq.s32.totalorder %s17, 0
    %p38 = por %p36, %p37
    %p39 = scmp.ne.s32.totalorder %s25, %s26
    %p40 = scmp.eq.s32.totalorder %s18, 1
    %p41 = por %p39, %p40
    %p43 = scmp.ne.s32.totalorder %s26, %s42
    %p44 = scmp.eq.s32.totalorder %s18, 0
    %p45 = por %p43, %p44
    %s47 = sadd.s32 %s46, 1
    %p50 = scmp.eq.s32.totalorder %s12, 1
    %p51 = scmp.ne.s32.totalorder %s46, %s48
    %p52 = scmp.eq.s32.totalorder %s12, 0
    %p53 = por %p51, %p52
    %p54 = scmp.ne.s32.totalorder %s46, %s48
    %p55 = scmp.eq.s32.totalorder %s17, 1
    %p56 = por %p54, %p55
    %p57 = scmp.ne.s32.totalorder %s48, %s49
    %p58 = scmp.eq.s32.totalorder %s17, 0
    %p59 = por %p57, %p58
    %p60 = scmp.ne.s32.totalorder %s48, %s49
    %p61 = scmp.eq.s32.totalorder %s18, 1
    %p62 = por %p60, %p61
    %p64 = scmp.ne.s32.totalorder %s49, %s63
    %p65 = scmp.eq.s32.totalorder %s18, 0
    %p66 = por %p64, %p65
    %s68 = sadd.s32 %s67, 1
    %p71 = scmp.eq.s32.totalorder %s12, 1
    %p72 = scmp.ne.s32.totalorder %s67, %s69
    %p73 = scmp.eq.s32.totalorder %s12, 0
    %p74 = por %p72, %p73
    %p75 = scmp.ne.s32.totalorder %s67, %s69
    %p76 = scmp.eq.s32.totalorder %s17, 1
    %p77 = por %p75, %p76
    %p78 = scmp.ne.s32.totalorder %s69, %s70
    %p79 = scmp.eq.s32.totalorder %s17, 0
    %p80 = por %p78, %p79
    %p81 = scmp.ne.s32.totalorder %s69, %s70
    %p82 = scmp.eq.s32.totalorder %s18, 1
    %p83 = por %p81, %p82
    %p85 = scmp.ne.s32.totalorder %s70, %s84
    %p86 = scmp.eq.s32.totalorder %s18, 0
    %p87 = por %p85, %p86
    %s88 = ssub.s32 %s12, %s19
    %p89 = scmp.eq.s32.totalorder %s88, 0
    %s91 = sadd.s32 %s90, 1
    %s92 = scalar_select %p89, %s90, %s91
    %p95 = pneg %p89
    %p96 = scmp.eq.s32.totalorder %s12, 1
    %p97 = por %p95, %p96
    %p98 = scmp.ne.s32.totalorder %s90, %s93
    %p99 = scmp.eq.s32.totalorder %s12, 0
    %p100 = por %p98, %p99
    %p101 = scmp.ne.s32.totalorder %s90, %s93
    %p102 = scmp.eq.s32.totalorder %s17, 1
    %p103 = por %p101, %p102
    %p104 = scmp.ne.s32.totalorder %s93, %s94
    %p105 = scmp.eq.s32.totalorder %s17, 0
    %p106 = por %p104, %p105
    %p107 = scmp.ne.s32.totalorder %s93, %s94
    %p108 = scmp.eq.s32.totalorder %s18, 1
    %p109 = por %p107, %p108
    %p111 = scmp.ne.s32.totalorder %s94, %s110
    %p112 = scmp.eq.s32.totalorder %s18, 0
    %p113 = por %p111, %p112
    %s115 = sadd.s32 %s114, 1
    %p118 = scmp.eq.s32.totalorder %s12, 1
    %p119 = scmp.ne.s32.totalorder %s114, %s116
    %p120 = scmp.eq.s32.totalorder %s12, 0
    %p121 = por %p119, %p120
    %p122 = scmp.ne.s32.totalorder %s114, %s116
    %p123 = scmp.eq.s32.totalorder %s17, 1
    %p124 = por %p122, %p123
    %p125 = scmp.ne.s32.totalorder %s116, %s117
    %p126 = scmp.eq.s32.totalorder %s17, 0
    %p127 = por %p125, %p126
    %p128 = scmp.ne.s32.totalorder %s116, %s117
    %p129 = scmp.eq.s32.totalorder %s18, 1
    %p130 = por %p128, %p129
    %p132 = scmp.ne.s32.totalorder %s117, %s131
    %p133 = scmp.eq.s32.totalorder %s18, 0
    %p134 = por %p132, %p133
    %s136 = sadd.s32 %s135, 1
    %p139 = scmp.eq.s32.totalorder %s12, 1
    %p140 = scmp.ne.s32.totalorder %s135, %s137
    %p141 = scmp.eq.s32.totalorder %s12, 0
    %p142 = por %p140, %p141
    %p143 = scmp.ne.s32.totalorder %s135, %s137
    %p144 = scmp.eq.s32.totalorder %s17, 1
    %p145 = por %p143, %p144
    %p146 = scmp.ne.s32.totalorder %s137, %s138
    %p147 = scmp.eq.s32.totalorder %s17, 0
    %p148 = por %p146, %p147
    %p149 = scmp.ne.s32.totalorder %s137, %s138
    %p150 = scmp.eq.s32.totalorder %s18, 1
    %p151 = por %p149, %p150
    %p153 = scmp.ne.s32.totalorder %s138, %s152
    %p154 = scmp.eq.s32.totalorder %s18, 0
    %p155 = por %p153, %p154
    %s156 = ssub.s32 %s12, %s19
    %p157 = scmp.eq.s32.totalorder %s156, 0
    %s159 = sadd.s32 %s158, 1
    %s160 = scalar_select %p157, %s158, %s159
    %p163 = pneg %p157
    %p164 = scmp.eq.s32.totalorder %s12, 1
    %p165 = por %p163, %p164
    %p166 = scmp.ne.s32.totalorder %s158, %s161
    %p167 = scmp.eq.s32.totalorder %s12, 0
    %p168 = por %p166, %p167
    %p169 = scmp.ne.s32.totalorder %s158, %s161
    %p170 = scmp.eq.s32.totalorder %s17, 1
    %p171 = por %p169, %p170
    %p172 = scmp.ne.s32.totalorder %s161, %s162
    %p173 = scmp.eq.s32.totalorder %s17, 0
    %p174 = por %p172, %p173
    %p175 = scmp.ne.s32.totalorder %s161, %s162
    %p176 = scmp.eq.s32.totalorder %s18, 1
    %p177 = por %p175, %p176
    %p179 = scmp.ne.s32.totalorder %s162, %s178
    %p180 = scmp.eq.s32.totalorder %s18, 0
    %p181 = por %p179, %p180
    %p182 = scmp.le.s32.totalorder 1, %s12
    %p183 = scmp.lt.s32.totalorder %s12, 3
    %p184 = pnand %p182, %p183
    %p185 = pneg %p184
    // Predicated region
    $region9: #{_lambda_.21} parent=5 // pred_check
      _
    $region10: #{_lambda_.21} parent=5 // pred_check_branch
      %187 = sbr.rel (%p184) target = $region12
    $region11: #{_lambda_.21} parent=5 // pred_region
      %s188 = ssub.s32 %s12, 1
      // Predicated region
      $region13: #{_lambda_.21} parent=11 // pred_check
        %p189 = pneg %p59
      $region14: #{_lambda_.21} parent=11 // pred_check_branch
        %191 = sbr.rel (%p189) target = $region16
      $region15: #{_lambda_.21} parent=11 // pred_region
        _
      $region16: #{_lambda_.21} parent=11 // pred_fallthru
        _
      // Predicated region
      $region17: #{_lambda_.21} parent=11 // pred_check
        %p192 = pneg %p80
      $region18: #{_lambda_.21} parent=11 // pred_check_branch
        %194 = sbr.rel (%p192) target = $region20
      $region19: #{_lambda_.21} parent=11 // pred_region
        _
      $region20: #{_lambda_.21} parent=11 // pred_fallthru
        _
      // Predicated region
      $region21: #{_lambda_.21} parent=11 // pred_check
        %p195 = pneg %p127
      $region22: #{_lambda_.21} parent=11 // pred_check_branch
        %197 = sbr.rel (%p195) target = $region24
      $region23: #{_lambda_.21} parent=11 // pred_region
        _
      $region24: #{_lambda_.21} parent=11 // pred_fallthru
        _
      // Predicated region
      $region25: #{_lambda_.21} parent=11 // pred_check
        %p198 = pneg %p148
      $region26: #{_lambda_.21} parent=11 // pred_check_branch
        %200 = sbr.rel (%p198) target = $region28
      $region27: #{_lambda_.21} parent=11 // pred_region
        _
      $region28: #{_lambda_.21} parent=11 // pred_fallthru
        _
    $region12: #{_lambda_.21} parent=5 // pred_fallthru
      _
    %p201 = scmp.lt.s32.totalorder %s12, 2
    // Predicated region
    $region29: #{_lambda_.21} parent=5 // pred_check
      %p202 = pneg %p201
    $region30: #{_lambda_.21} parent=5 // pred_check_branch
      %204 = sbr.rel (%p202) target = $region32
    $region31: #{_lambda_.21} parent=5 // pred_region
      // Predicated region
      $region33: #{_lambda_.21} parent=31 // pred_check
        %p205 = pneg %p32
      $region34: #{_lambda_.21} parent=31 // pred_check_branch
        %207 = sbr.rel (%p205) target = $region36
      $region35: #{_lambda_.21} parent=31 // pred_region
        %p208 = scmp.lt.s32.totalorder %s12, 1
        %s209 = scalar_select %p208, %s12, 1
        %s210 = smul.addr %s209, 3
        %s211 = smul.addr %s210, 4
        %s212 = scalar_lea.vmem %s0, %s211
      $region36: #{_lambda_.21} parent=31 // pred_fallthru
        _
      // Predicated region
      $region37: #{_lambda_.21} parent=31 // pred_check
        %p213 = pneg %p100
      $region38: #{_lambda_.21} parent=31 // pred_check_branch
        %215 = sbr.rel (%p213) target = $region40
      $region39: #{_lambda_.21} parent=31 // pred_region
        %p216 = scmp.lt.s32.totalorder %s12, 1
        %s217 = scalar_select %p216, %s12, 1
        %s218 = smul.addr %s217, 2
        %s219 = smul.addr %s218, 4
        %s220 = scalar_lea.vmem %s3, %s219
      $region40: #{_lambda_.21} parent=31 // pred_fallthru
        _
    $region32: #{_lambda_.21} parent=5 // pred_fallthru
      _
    %p221 = scmp.le.s32.totalorder 1, %s12
    %p222 = scmp.lt.s32.totalorder %s12, 3
    %p223 = pnand %p221, %p222
    %p224 = pneg %p223
    // Predicated region
    $region41: #{_lambda_.21} parent=5 // pred_check
      _
    $region42: #{_lambda_.21} parent=5 // pred_check_branch
      %226 = sbr.rel (%p223) target = $region44
    $region43: #{_lambda_.21} parent=5 // pred_region
      %s227 = ssub.s32 %s12, 1
      %p228 = scmp.lt.s32.totalorder %s17, 1
      %s229 = scalar_select %p228, %s17, 1
      %s230 = smul.addr %s229, 3
      %s231 = smul.addr %s230, 4
      %s232 = scalar_lea.vmem %s0, %s231
      %p233 = pneg %p38
      %p234 = pneg %p35
      %p235 = pneg %p59
      %p236 = pneg %p56
      %p237 = pneg %p80
      %p238 = pneg %p77
      %p239 = scmp.lt.s32.totalorder %s17, 1
      %s240 = scalar_select %p239, %s17, 1
      %s241 = smul.addr %s240, 2
      %s242 = smul.addr %s241, 4
      %s243 = scalar_lea.vmem %s3, %s242
      %p244 = pneg %p106
      %p245 = pneg %p103
      %p246 = pneg %p127
      %p247 = pneg %p124
      %p248 = pneg %p148
      %p249 = pneg %p145
      %p250 = pneg %p174
      %p251 = pneg %p171
      %p252 = scmp.lt.s32.totalorder %s17, 1
      %s253 = scalar_select %p252, %s17, 1
      %s254 = smul.addr %s253, 2
      %s255 = smul.addr %s254, 4
      %s256 = scalar_lea.vmem %s6, %s255
      %p257 = scmp.lt.s32.totalorder %s17, 1
      %s258 = scalar_select %p257, %s17, 1
      %s259 = smul.addr %s258, 3
      %s260 = smul.addr %s259, 4
      %s261 = scalar_lea.vmem %s0, %s260
      %p262 = scmp.lt.s32.totalorder %s17, 1
      %s263 = scalar_select %p262, %s17, 1
      %s264 = smul.addr %s263, 2
      %s265 = smul.addr %s264, 4
      %s266 = scalar_lea.vmem %s3, %s265
      %p267 = scmp.lt.s32.totalorder %s17, 1
      %s268 = scalar_select %p267, %s17, 1
      %s269 = smul.addr %s268, 2
      %s270 = smul.addr %s269, 4
      %s271 = scalar_lea.vmem %s6, %s270
      %v272 = vld [vmem:[%s261] sm:$0xf]
      %v273 = vld [vmem:[%s261 + $0x4] sm:$0xf]
      %v274 = vld [vmem:[%s1] sm:$0xf]
      %v275 = vld [vmem:[%s1 + $0x4] sm:$0xf]
      %v276 = vld [vmem:[%s1 + $0x8] sm:$0xf]
      %v277 = vld [vmem:[%s1 + $0xc] sm:$0xf]
      %v278 = vld [vmem:[%s1 + $0x10] sm:$0xf]
      %v279 = vld [vmem:[%s1 + $0x14] sm:$0xf]
      %v280 = vld [vmem:[%s1 + $0x18] sm:$0xf]
      %v281 = vld [vmem:[%s1 + $0x1c] sm:$0xf]
      %v282 = vld [vmem:[%s1 + $0x20] sm:$0xf]
      %v283 = vld [vmem:[%s1 + $0x24] sm:$0xf]
      %v284 = vld [vmem:[%s1 + $0x28] sm:$0xf]
      %v285 = vld [vmem:[%s1 + $0x2c] sm:$0xf]
      %v286 = vld [vmem:[%s1 + $0x30] sm:$0xf]
      %v287 = vld [vmem:[%s1 + $0x34] sm:$0xf]
      %v288 = vld [vmem:[%s1 + $0x38] sm:$0xf]
      %v289 = vld [vmem:[%s1 + $0x3c] sm:$0xf]
      %s290 = scalar_lea.vmem %s1, 64
      %v291 = vld [vmem:[%s290] sm:$0xf]
      %v292 = vld [vmem:[%s290 + $0x4] sm:$0xf]
      %v293 = vld [vmem:[%s290 + $0x8] sm:$0xf]
      %v294 = vld [vmem:[%s290 + $0xc] sm:$0xf]
      %v295 = vld [vmem:[%s290 + $0x10] sm:$0xf]
      %v296 = vld [vmem:[%s290 + $0x14] sm:$0xf]
      %v297 = vld [vmem:[%s290 + $0x18] sm:$0xf]
      %v298 = vld [vmem:[%s290 + $0x1c] sm:$0xf]
      %v299 = vld [vmem:[%s290 + $0x20] sm:$0xf]
      %v300 = vld [vmem:[%s290 + $0x24] sm:$0xf]
      %v301 = vld [vmem:[%s290 + $0x28] sm:$0xf]
      %v302 = vld [vmem:[%s290 + $0x2c] sm:$0xf]
      %v303 = vld [vmem:[%s290 + $0x30] sm:$0xf]
      %v304 = vld [vmem:[%s290 + $0x34] sm:$0xf]
      %v305 = vld [vmem:[%s290 + $0x38] sm:$0xf]
      %v306 = vld [vmem:[%s290 + $0x3c] sm:$0xf]
      %v309 = vunpack.c.l.b16 %v272
      %v310 = vunpack.c.l.b16 %v273
      %v311 = vpack.c.b16 %v310, %v309
      %v313 = vshrl.u32 %v311, 16
      %v315 = vshll.u32 %v311, 16
      %v317 = vrot.slane %v315, 1
      %v318 = vor.u32 %v313, %v317
      %v336 = vunpack.c.l.b16 %v291
      %v337 = vunpack.c.l.b16 %v292
      %v338 = vunpack.c.l.b16 %v293
      %v339 = vunpack.c.l.b16 %v294
      %v340 = vunpack.c.l.b16 %v295
      %v341 = vunpack.c.l.b16 %v296
      %v342 = vunpack.c.l.b16 %v297
      %v343 = vunpack.c.l.b16 %v298
      %v344 = vunpack.c.l.b16 %v299
      %v345 = vunpack.c.l.b16 %v300
      %v346 = vunpack.c.l.b16 %v301
      %v347 = vunpack.c.l.b16 %v302
      %v348 = vunpack.c.l.b16 %v303
      %v349 = vunpack.c.l.b16 %v304
      %v350 = vunpack.c.l.b16 %v305
      %v351 = vunpack.c.l.b16 %v306
      %v352 = vpack.c.b16 %v337, %v336
      %v353 = vpack.c.b16 %v339, %v338
      %v354 = vpack.c.b16 %v341, %v340
      %v355 = vpack.c.b16 %v343, %v342
      %v356 = vpack.c.b16 %v345, %v344
      %v357 = vpack.c.b16 %v347, %v346
      %v358 = vpack.c.b16 %v349, %v348
      %v359 = vpack.c.b16 %v351, %v350
      %368 = vmatpush.bf16.msra.mxu0 %v359
      %369 = vmatpush.bf16.msra.mxu0 %v358
      %370 = vmatpush.bf16.msra.mxu0 %v357
      %371 = vmatpush.bf16.msra.mxu0 %v356
      %372 = vmatpush.bf16.msra.mxu0 %v355
      %373 = vmatpush.bf16.msra.mxu0 %v354
      %374 = vmatpush.bf16.msra.mxu0 %v353
      %375 = vmatpush.bf16.msra.mxu0 %v352
      %376 = vmatmul.bf16.gmra.mxu0 %v318
      %v377 = vpop.f32.mrf.mxu0
      %v378 = vadd.f32 0.0, %v377
      %v379 = vpop.f32.mrf.mxu0
      %v380 = vadd.f32 0.0, %v379
      %381 = vdwg.mxu0
      %v399 = vunpack.c.l.b16 %v274
      %v400 = vunpack.c.l.b16 %v275
      %v401 = vunpack.c.l.b16 %v276
      %v402 = vunpack.c.l.b16 %v277
      %v403 = vunpack.c.l.b16 %v278
      %v404 = vunpack.c.l.b16 %v279
      %v405 = vunpack.c.l.b16 %v280
      %v406 = vunpack.c.l.b16 %v281
      %v407 = vunpack.c.l.b16 %v282
      %v408 = vunpack.c.l.b16 %v283
      %v409 = vunpack.c.l.b16 %v284
      %v410 = vunpack.c.l.b16 %v285
      %v411 = vunpack.c.l.b16 %v286
      %v412 = vunpack.c.l.b16 %v287
      %v413 = vunpack.c.l.b16 %v288
      %v414 = vunpack.c.l.b16 %v289
      %v415 = vpack.c.b16 %v400, %v399
      %v416 = vpack.c.b16 %v402, %v401
      %v417 = vpack.c.b16 %v404, %v403
      %v418 = vpack.c.b16 %v406, %v405
      %v419 = vpack.c.b16 %v408, %v407
      %v420 = vpack.c.b16 %v410, %v409
      %v421 = vpack.c.b16 %v412, %v411
      %v422 = vpack.c.b16 %v414, %v413
      %431 = vmatpush.bf16.msra.mxu0 %v422
      %432 = vmatpush.bf16.msra.mxu0 %v421
      %433 = vmatpush.bf16.msra.mxu0 %v420
      %434 = vmatpush.bf16.msra.mxu0 %v419
      %435 = vmatpush.bf16.msra.mxu0 %v418
      %436 = vmatpush.bf16.msra.mxu0 %v417
      %437 = vmatpush.bf16.msra.mxu0 %v416
      %438 = vmatpush.bf16.msra.mxu0 %v415
      %439 = vmatmul.bf16.gmra.mxu0 %v311
      %v440 = vpop.f32.mrf.mxu0
      %v441 = vadd.f32 %v378, %v440
      %v442 = vpop.f32.mrf.mxu0
      %v443 = vadd.f32 %v380, %v442
      %444 = vdwg.mxu0
      %v445 = vld [vmem:[%s261] sm:$0xe]
      %v446 = vld [vmem:[%s261 + $0x4] sm:$0xf]
      %v447 = vld [vmem:[%s261 + $0x8] sm:$0x1]
      %s448 = scalar_lea.vmem %s1, 128
      %v449 = vld [vmem:[%s448] sm:$0xf]
      %v450 = vld [vmem:[%s448 + $0x4] sm:$0xf]
      %v451 = vld [vmem:[%s448 + $0x8] sm:$0xf]
      %v452 = vld [vmem:[%s448 + $0xc] sm:$0xf]
      %v453 = vld [vmem:[%s448 + $0x10] sm:$0xf]
      %v454 = vld [vmem:[%s448 + $0x14] sm:$0xf]
      %v455 = vld [vmem:[%s448 + $0x18] sm:$0xf]
      %v456 = vld [vmem:[%s448 + $0x1c] sm:$0xf]
      %v457 = vld [vmem:[%s448 + $0x20] sm:$0xf]
      %v458 = vld [vmem:[%s448 + $0x24] sm:$0xf]
      %v459 = vld [vmem:[%s448 + $0x28] sm:$0xf]
      %v460 = vld [vmem:[%s448 + $0x2c] sm:$0xf]
      %v461 = vld [vmem:[%s448 + $0x30] sm:$0xf]
      %v462 = vld [vmem:[%s448 + $0x34] sm:$0xf]
      %v463 = vld [vmem:[%s448 + $0x38] sm:$0xf]
      %v464 = vld [vmem:[%s448 + $0x3c] sm:$0xf]
      %v468 = vunpack.c.l.b16 %v445
      %v469 = vunpack.c.l.b16 %v446
      %v470 = vunpack.c.l.b16 %v447
      %v471 = vpack.c.b16 %v469, %v468
      %v472 = vpack.c.b16 %v470, %v470
      %vm473 = vcmask 1046528
      %v474 = vrot.slane %v471, 1
      %v475 = vrot.slane %v472, 1
      %v476 = vsel %vm473, %v474, %v475
      %v494 = vunpack.c.l.b16 %v449
      %v495 = vunpack.c.l.b16 %v450
      %v496 = vunpack.c.l.b16 %v451
      %v497 = vunpack.c.l.b16 %v452
      %v498 = vunpack.c.l.b16 %v453
      %v499 = vunpack.c.l.b16 %v454
      %v500 = vunpack.c.l.b16 %v455
      %v501 = vunpack.c.l.b16 %v456
      %v502 = vunpack.c.l.b16 %v457
      %v503 = vunpack.c.l.b16 %v458
      %v504 = vunpack.c.l.b16 %v459
      %v505 = vunpack.c.l.b16 %v460
      %v506 = vunpack.c.l.b16 %v461
      %v507 = vunpack.c.l.b16 %v462
      %v508 = vunpack.c.l.b16 %v463
      %v509 = vunpack.c.l.b16 %v464
      %v510 = vpack.c.b16 %v495, %v494
      %v511 = vpack.c.b16 %v497, %v496
      %v512 = vpack.c.b16 %v499, %v498
      %v513 = vpack.c.b16 %v501, %v500
      %v514 = vpack.c.b16 %v503, %v502
      %v515 = vpack.c.b16 %v505, %v504
      %v516 = vpack.c.b16 %v507, %v506
      %v517 = vpack.c.b16 %v509, %v508
      %526 = vmatpush.bf16.msra.mxu0 %v517
      %527 = vmatpush.bf16.msra.mxu0 %v516
      %528 = vmatpush.bf16.msra.mxu0 %v515
      %529 = vmatpush.bf16.msra.mxu0 %v514
      %530 = vmatpush.bf16.msra.mxu0 %v513
      %531 = vmatpush.bf16.msra.mxu0 %v512
      %532 = vmatpush.bf16.msra.mxu0 %v511
      %533 = vmatpush.bf16.msra.mxu0 %v510
      %534 = vmatmul.bf16.gmra.mxu0 %v476
      %v535 = vpop.f32.mrf.mxu0
      %v536 = vadd.f32 0.0, %v535
      %v537 = vpop.f32.mrf.mxu0
      %v538 = vadd.f32 0.0, %v537
      %539 = vdwg.mxu0
      %v540 = vadd.f32 %v441, %v536
      %v541 = vadd.f32 %v443, %v538
      %v542 = vld [vmem:[%s2] sm:$0x1]
      %v544 = vperm.slane %v542, 0
      %v546 = vadd.f32 %v540, %v544
      %v547 = vadd.f32 %v541, %v544
      %v548 = vmul.f32 %v546, 0.5
      %v549 = vmul.f32 %v547, 0.5
      %v550 = vmul.f32 %v546, 0.044715
      %v551 = vmul.f32 %v547, 0.044715
      %v552 = vmul.f32 %v550, %v546
      %v553 = vmul.f32 %v551, %v547
      %v554 = vmul.f32 %v552, %v546
      %v555 = vmul.f32 %v553, %v547
      %v556 = vadd.f32 %v546, %v554
      %v557 = vadd.f32 %v547, %v555
      %v558 = vmul.f32 %v556, 0.7978846
      %v559 = vmul.f32 %v557, 0.7978846
      %v560 = vtanh.pop %v558
      %v561 = vtanh.pop %v559
      %v562 = vadd.f32 %v560, 1.0
      %v563 = vadd.f32 %v561, 1.0
      %v564 = vmul.f32 %v548, %v562
      %v565 = vmul.f32 %v549, %v563
      %v566 = vld [vmem:[%s266] sm:$0xf]
      %v567 = vld [vmem:[%s266 + $0x4] sm:$0xf]
      %v568 = vunpack.c.l.bf16 %v566
      %v569 = vunpack.c.l.bf16 %v567
      %v570 = vadd.f32 %v564, %v568
      %v571 = vadd.f32 %v565, %v569
      %v572 = vld [vmem:[%s4] sm:$0x1]
      %v573 = vld [vmem:[%s5] sm:$0x1]
      %574 = vadd.xlane.f32.xlu0 %v570
      %v575 = vpop.xlane.xlu0 %574
      %vm576 = vcmask 1046528
      %v577 = vsel %vm576, %v571, 0.0
      %578 = vadd.xlane.f32.xlu0 %v577
      %v579 = vpop.xlane.xlu0 %578
      %v580 = vrcp.pop 128.0
      %v581 = vmul.f32 128.0, %v580
      %v582 = vsub.f32 1.0, %v581
      %v583 = vmul.f32 %v580, %v582
      %v584 = vadd.f32 %v580, %v583
      %vm585 = vweird.f32 %v580
      %v586 = vsel %vm585, %v580, %v584
      %v587 = vmul.f32 %v575, %v586
      %v588 = vmul.f32 %v579, %v586
      %v589 = vsub.f32 %v570, %v587
      %v590 = vsub.f32 %v571, %v588
      %v591 = vmul.f32 %v589, %v589
      %v592 = vmul.f32 %v590, %v590
      %593 = vadd.xlane.f32.xlu0 %v591
      %v594 = vpop.xlane.xlu0 %593
      %v595 = vsel %vm576, %v592, 0.0
      %596 = vadd.xlane.f32.xlu0 %v595
      %v597 = vpop.xlane.xlu0 %596
      %v598 = vmul.f32 %v594, %v586
      %v599 = vmul.f32 %v597, %v586
      %v600 = vadd.f32 %v598, 1e-05
      %v601 = vadd.f32 %v599, 1e-05
      %v602 = vrsqrt.pop %v600
      %v603 = vmul.f32 %v602, %v600
      %v604 = vmul.f32 %v603, %v602
      %v605 = vmul.f32 0.5, %v604
      %v606 = vsub.f32 1.5, %v605
      %v607 = vmul.f32 %v602, %v606
      %vm608 = vweird.f32 %v600
      %vm609 = vweird.f32 %v602
      %vm610 = vmor %vm608, %vm609
      %v611 = vsel %vm610, %v602, %v607
      %v612 = vrsqrt.pop %v601
      %v613 = vmul.f32 %v612, %v601
      %v614 = vmul.f32 %v613, %v612
      %v615 = vmul.f32 0.5, %v614
      %v616 = vsub.f32 1.5, %v615
      %v617 = vmul.f32 %v612, %v616
      %vm618 = vweird.f32 %v601
      %vm619 = vweird.f32 %v612
      %vm620 = vmor %vm618, %vm619
      %v621 = vsel %vm620, %v612, %v617
      %v622 = vmul.f32 %v589, %v611
      %v623 = vmul.f32 %v590, %v621
      %v625 = vperm.slane %v572, 0
      %v627 = vmul.f32 %v622, %v625
      %v628 = vmul.f32 %v623, %v625
      %v630 = vperm.slane %v573, 0
      %v632 = vadd.f32 %v627, %v630
      %v633 = vadd.f32 %v628, %v630
      %v634 = vpack.c.bf16 %v632, %v632
      %v635 = vpack.c.bf16 %v633, %v633
      %636 = vst [vmem:[%s271] sm:$0xf] %v634
      %vm637 = vcmask 1043456
      %vm638 = vsmask.f32 3328
      %vm639 = vmand %vm637, %vm638
      %v640 = vld [vmem:[%s271 + $0x4] sm:$0xf]
      %v641 = vsel %vm639, %v635, %v640
      %642 = vst [vmem:[%s271 + $0x4] sm:$0xf] %v641
      %p643 = scmp.lt.s32.totalorder %s17, 1
      %s644 = scalar_select %p643, %s17, 1
      %s645 = smul.addr %s644, 2
      %s646 = smul.addr %s645, 4
      %s647 = scalar_lea.vmem %s6, %s646
      // Predicated region
      $region45: #{_lambda_.21} parent=43 // pred_check
        %p648 = pneg %p171
      $region46: #{_lambda_.21} parent=43 // pred_check_branch
        %650 = sbr.rel (%p648) target = $region48
      $region47: #{_lambda_.21} parent=43 // pred_region
        _
      $region48: #{_lambda_.21} parent=43 // pred_fallthru
        _
    $region44: #{_lambda_.21} parent=5 // pred_fallthru
      _
    %p651 = scmp.le.s32.totalorder 2, %s12
    // Predicated region
    $region49: #{_lambda_.21} parent=5 // pred_check
      %p652 = pneg %p651
    $region50: #{_lambda_.21} parent=5 // pred_check_branch
      %654 = sbr.rel (%p652) target = $region52
    $region51: #{_lambda_.21} parent=5 // pred_region
      %s655 = ssub.s32 %s12, 2
      // Predicated region
      $region53: #{_lambda_.21} parent=51 // pred_check
        %p656 = pneg %p177
      $region54: #{_lambda_.21} parent=51 // pred_check_branch
        %658 = sbr.rel (%p656) target = $region56
      $region55: #{_lambda_.21} parent=51 // pred_region
        %p659 = scmp.lt.s32.totalorder %s18, 1
        %s660 = scalar_select %p659, %s18, 1
        %s661 = smul.addr %s660, 2
        %s662 = smul.addr %s661, 4
        %s663 = scalar_lea.vmem %s6, %s662
      $region56: #{_lambda_.21} parent=51 // pred_fallthru
        _
    $region52: #{_lambda_.21} parent=5 // pred_fallthru
      _
  $region6: #{_lambda_.21} parent=0 // loop_footer
    %s16 = sadd.s32 1, %s12
  $region7: #{_lambda_.21} parent=0 // loop_footer_branch
    %11 = sbr.rel target = $region3
  $region8: #{_lambda_.21} parent=0 // loop_exit
    _

// kernel: _lambda_.22
$region0: #{_lambda_.22}
  #allocation0 [shape = 'u32[]', space=smem, size = 0x4, offset = 0x4, fixed_abs, tag = 'smem constant byte address 0x4 - core index']
  #allocation1 [shape = 'u32[72,128]{1,0:T(1,128)}', space=vmem, size = 0x9000, scoped, tag = 'internal scratch']
  %s0 = inlined_call_operand.vmem [shape: bf16[30,128], index: 0, kind: input, shape index: {}]
  %s1 = inlined_call_operand.vmem [shape: bf16[128,384], index: 1, kind: input, shape index: {}]
  %s2 = inlined_call_operand.vmem [shape: f32[1,384], index: 2, kind: input, shape index: {}]
  %s3 = inlined_call_operand.vmem [shape: bf16[30,384], index: 3, kind: output, shape index: {}]
  %s4 = sld [smem:[#allocation0]]
  $region22: #{_lambda_.22} parent=0
    _
  %s6 = ssub.s32 1, %s4
  %s7 = scalar_select 0, %s6, %s4
  // Predicated region
  $region2: #{_lambda_.22} parent=0 // pred_check
    _
  $region3: #{_lambda_.22} parent=0 // pred_check_branch
    %9 = sbr.rel (0) target = $region5
  $region4: #{_lambda_.22} parent=0 // pred_region
    _
  $region5: #{_lambda_.22} parent=0 // pred_fallthru
    _
  // Predicated region
  $region6: #{_lambda_.22} parent=0 // pred_check
    _
  $region7: #{_lambda_.22} parent=0 // pred_check_branch
    %11 = sbr.rel (0) target = $region9
  $region8: #{_lambda_.22} parent=0 // pred_region
    _
  $region9: #{_lambda_.22} parent=0 // pred_fallthru
    _
  // Predicated region
  $region10: #{_lambda_.22} parent=0 // pred_check
    _
  $region11: #{_lambda_.22} parent=0 // pred_check_branch
    %13 = sbr.rel (0) target = $region13
  $region12: #{_lambda_.22} parent=0 // pred_region
    _
  $region13: #{_lambda_.22} parent=0 // pred_fallthru
    _
  %v14 = vld [vmem:[%s0] sm:$0xf]
  %v15 = vld [vmem:[%s0 + $0x4] sm:$0xf]
  %v16 = vld [vmem:[%s0 + $0x8] sm:$0xf]
  %v17 = vld [vmem:[%s0 + $0xc] sm:$0x7]
  %v18 = vld [vmem:[%s1] sm:$0xff]
  %v19 = vld [vmem:[%s1 + $0x8] sm:$0xf]
  %v20 = vld [vmem:[%s1 + $0xc] sm:$0xff]
  %v21 = vld [vmem:[%s1 + $0x14] sm:$0xf]
  %v22 = vld [vmem:[%s1 + $0x18] sm:$0xff]
  %v23 = vld [vmem:[%s1 + $0x20] sm:$0xf]
  %v24 = vld [vmem:[%s1 + $0x24] sm:$0xff]
  %v25 = vld [vmem:[%s1 + $0x2c] sm:$0xf]
  %v26 = vld [vmem:[%s1 + $0x30] sm:$0xff]
  %v27 = vld [vmem:[%s1 + $0x38] sm:$0xf]
  %v28 = vld [vmem:[%s1 + $0x3c] sm:$0xff]
  %v29 = vld [vmem:[%s1 + $0x44] sm:$0xf]
  %v30 = vld [vmem:[%s1 + $0x48] sm:$0xff]
  %v31 = vld [vmem:[%s1 + $0x50] sm:$0xf]
  %v32 = vld [vmem:[%s1 + $0x54] sm:$0xff]
  %v33 = vld [vmem:[%s1 + $0x5c] sm:$0xf]
  %v34 = vld [vmem:[%s1 + $0x60] sm:$0xff]
  %v35 = vld [vmem:[%s1 + $0x68] sm:$0xf]
  %v36 = vld [vmem:[%s1 + $0x6c] sm:$0xff]
  %v37 = vld [vmem:[%s1 + $0x74] sm:$0xf]
  %v38 = vld [vmem:[%s1 + $0x78] sm:$0xff]
  %v39 = vld [vmem:[%s1 + $0x80] sm:$0xf]
  %v40 = vld [vmem:[%s1 + $0x84] sm:$0xff]
  %v41 = vld [vmem:[%s1 + $0x8c] sm:$0xf]
  %v42 = vld [vmem:[%s1 + $0x90] sm:$0xff]
  %v43 = vld [vmem:[%s1 + $0x98] sm:$0xf]
  %v44 = vld [vmem:[%s1 + $0x9c] sm:$0xff]
  %v45 = vld [vmem:[%s1 + $0xa4] sm:$0xf]
  %v46 = vld [vmem:[%s1 + $0xa8] sm:$0xff]
  %v47 = vld [vmem:[%s1 + $0xb0] sm:$0xf]
  %v48 = vld [vmem:[%s1 + $0xb4] sm:$0xff]
  %v49 = vld [vmem:[%s1 + $0xbc] sm:$0xf]
  %v50 = vld [vmem:[%s2] sm:$0x7]
  %v52 = vperm.slane %v50, 0
  %v53 = vperm.slane %v50, 1
  %v54 = vperm.slane %v50, 2
  %v62 = vunpack.c.l.b16 %v14
  %v63 = vunpack.c.l.b16 %v15
  %v64 = vunpack.c.l.b16 %v16
  %v65 = vunpack.c.l.b16 %v17
  %v66 = vpack.c.b16 %v63, %v62
  %v67 = vpack.c.b16 %v65, %v64
  %v102 = vunpack.c.l.b16 %v18
  %v103 = vunpack.c.h.b16 %v18
  %v104 = vunpack.c.l.b16 %v19
  %v105 = vunpack.c.l.b16 %v20
  %v106 = vunpack.c.h.b16 %v20
  %v107 = vunpack.c.l.b16 %v21
  %v108 = vunpack.c.l.b16 %v22
  %v109 = vunpack.c.h.b16 %v22
  %v110 = vunpack.c.l.b16 %v23
  %v111 = vunpack.c.l.b16 %v24
  %v112 = vunpack.c.h.b16 %v24
  %v113 = vunpack.c.l.b16 %v25
  %v114 = vunpack.c.l.b16 %v26
  %v115 = vunpack.c.h.b16 %v26
  %v116 = vunpack.c.l.b16 %v27
  %v117 = vunpack.c.l.b16 %v28
  %v118 = vunpack.c.h.b16 %v28
  %v119 = vunpack.c.l.b16 %v29
  %v120 = vunpack.c.l.b16 %v30
  %v121 = vunpack.c.h.b16 %v30
  %v122 = vunpack.c.l.b16 %v31
  %v123 = vunpack.c.l.b16 %v32
  %v124 = vunpack.c.h.b16 %v32
  %v125 = vunpack.c.l.b16 %v33
  %v126 = vunpack.c.l.b16 %v34
  %v127 = vunpack.c.h.b16 %v34
  %v128 = vunpack.c.l.b16 %v35
  %v129 = vunpack.c.l.b16 %v36
  %v130 = vunpack.c.h.b16 %v36
  %v131 = vunpack.c.l.b16 %v37
  %v132 = vunpack.c.l.b16 %v38
  %v133 = vunpack.c.h.b16 %v38
  %v134 = vunpack.c.l.b16 %v39
  %v135 = vunpack.c.l.b16 %v40
  %v136 = vunpack.c.h.b16 %v40
  %v137 = vunpack.c.l.b16 %v41
  %v138 = vunpack.c.l.b16 %v42
  %v139 = vunpack.c.h.b16 %v42
  %v140 = vunpack.c.l.b16 %v43
  %v141 = vunpack.c.l.b16 %v44
  %v142 = vunpack.c.h.b16 %v44
  %v143 = vunpack.c.l.b16 %v45
  %v144 = vunpack.c.l.b16 %v46
  %v145 = vunpack.c.h.b16 %v46
  %v146 = vunpack.c.l.b16 %v47
  %v147 = vunpack.c.l.b16 %v48
  %v148 = vunpack.c.h.b16 %v48
  %v149 = vunpack.c.l.b16 %v49
  %v150 = vpack.c.b16 %v105, %v102
  %v151 = vpack.c.b16 %v106, %v103
  %v152 = vpack.c.b16 %v107, %v104
  %v153 = vpack.c.b16 %v111, %v108
  %v154 = vpack.c.b16 %v112, %v109
  %v155 = vpack.c.b16 %v113, %v110
  %v156 = vpack.c.b16 %v117, %v114
  %v157 = vpack.c.b16 %v118, %v115
  %v158 = vpack.c.b16 %v119, %v116
  %v159 = vpack.c.b16 %v123, %v120
  %v160 = vpack.c.b16 %v124, %v121
  %v161 = vpack.c.b16 %v125, %v122
  %v162 = vpack.c.b16 %v129, %v126
  %v163 = vpack.c.b16 %v130, %v127
  %v164 = vpack.c.b16 %v131, %v128
  %v165 = vpack.c.b16 %v135, %v132
  %v166 = vpack.c.b16 %v136, %v133
  %v167 = vpack.c.b16 %v137, %v134
  %v168 = vpack.c.b16 %v141, %v138
  %v169 = vpack.c.b16 %v142, %v139
  %v170 = vpack.c.b16 %v143, %v140
  %v171 = vpack.c.b16 %v147, %v144
  %v172 = vpack.c.b16 %v148, %v145
  %v173 = vpack.c.b16 %v149, %v146
  %198 = vmatpush.bf16.msra.mxu0 %v171
  %199 = vmatpush.bf16.msra.mxu0 %v168
  %200 = vmatpush.bf16.msra.mxu0 %v165
  %201 = vmatpush.bf16.msra.mxu0 %v162
  %202 = vmatpush.bf16.msra.mxu0 %v159
  %203 = vmatpush.bf16.msra.mxu0 %v156
  %204 = vmatpush.bf16.msra.mxu0 %v153
  %205 = vmatpush.bf16.msra.mxu0 %v150
  %206 = vmatmul.bf16.gmra.mxu0 %v66
  %v207 = vpop.f32.mrf.mxu0
  %v208 = vadd.f32 %v52, %v207
  %v209 = vpop.f32.mrf.mxu0
  %v210 = vadd.f32 %v52, %v209
  %211 = vmatmul.bf16.gmra.mxu0 %v67
  %v212 = vpop.f32.mrf.mxu0
  %v213 = vadd.f32 %v52, %v212
  %v214 = vpop.f32.mrf.mxu0
  %v215 = vadd.f32 %v52, %v214
  %216 = vdwg.mxu0
  %217 = vmatpush.bf16.msra.mxu0 %v172
  %218 = vmatpush.bf16.msra.mxu0 %v169
  %219 = vmatpush.bf16.msra.mxu0 %v166
  %220 = vmatpush.bf16.msra.mxu0 %v163
  %221 = vmatpush.bf16.msra.mxu0 %v160
  %222 = vmatpush.bf16.msra.mxu0 %v157
  %223 = vmatpush.bf16.msra.mxu0 %v154
  %224 = vmatpush.bf16.msra.mxu0 %v151
  %225 = vmatmul.bf16.gmra.mxu0 %v66
  %v226 = vpop.f32.mrf.mxu0
  %v227 = vadd.f32 %v53, %v226
  %v228 = vpop.f32.mrf.mxu0
  %v229 = vadd.f32 %v53, %v228
  %230 = vmatmul.bf16.gmra.mxu0 %v67
  %v231 = vpop.f32.mrf.mxu0
  %v232 = vadd.f32 %v53, %v231
  %v233 = vpop.f32.mrf.mxu0
  %v234 = vadd.f32 %v53, %v233
  %235 = vdwg.mxu0
  %236 = vmatpush.bf16.msra.mxu0 %v173
  %237 = vmatpush.bf16.msra.mxu0 %v170
  %238 = vmatpush.bf16.msra.mxu0 %v167
  %239 = vmatpush.bf16.msra.mxu0 %v164
  %240 = vmatpush.bf16.msra.mxu0 %v161
  %241 = vmatpush.bf16.msra.mxu0 %v158
  %242 = vmatpush.bf16.msra.mxu0 %v155
  %243 = vmatpush.bf16.msra.mxu0 %v152
  %244 = vmatmul.bf16.gmra.mxu0 %v66
  %v245 = vpop.f32.mrf.mxu0
  %v246 = vadd.f32 %v54, %v245
  %v247 = vpop.f32.mrf.mxu0
  %v248 = vadd.f32 %v54, %v247
  %249 = vmatmul.bf16.gmra.mxu0 %v67
  %v250 = vpop.f32.mrf.mxu0
  %v251 = vadd.f32 %v54, %v250
  %v252 = vpop.f32.mrf.mxu0
  %v253 = vadd.f32 %v54, %v252
  %254 = vdwg.mxu0
  %v255 = vpack.c.bf16 %v227, %v208
  %v256 = vpack.c.bf16 %v246, %v246
  %v257 = vpack.c.bf16 %v229, %v210
  %v258 = vpack.c.bf16 %v248, %v248
  %v259 = vpack.c.bf16 %v232, %v213
  %v260 = vpack.c.bf16 %v251, %v251
  %v261 = vpack.c.bf16 %v234, %v215
  %v262 = vpack.c.bf16 %v253, %v253
  %263 = vst [vmem:[%s3] sm:$0xff] %v255
  %264 = vst [vmem:[%s3 + $0x8] sm:$0xf] %v256
  %265 = vst [vmem:[%s3 + $0xc] sm:$0xff] %v257
  %266 = vst [vmem:[%s3 + $0x14] sm:$0xf] %v258
  %267 = vst [vmem:[%s3 + $0x18] sm:$0xff] %v259
  %268 = vst [vmem:[%s3 + $0x20] sm:$0xf] %v260
  %269 = vst [vmem:[%s3 + $0x24] sm:$0x77] %v261
  %270 = vst [vmem:[%s3 + $0x2c] sm:$0x7] %v262
  // Predicated region
  $region14: #{_lambda_.22} parent=0 // pred_check
    _
  $region15: #{_lambda_.22} parent=0 // pred_check_branch
    %272 = sbr.rel (0) target = $region17
  $region16: #{_lambda_.22} parent=0 // pred_region
    _
  $region17: #{_lambda_.22} parent=0 // pred_fallthru
    _
  // Predicated region
  $region18: #{_lambda_.22} parent=0 // pred_check
    _
  $region19: #{_lambda_.22} parent=0 // pred_check_branch
    %274 = sbr.rel (0) target = $region21
  $region20: #{_lambda_.22} parent=0 // pred_region
    _
  $region21: #{_lambda_.22} parent=0 // pred_fallthru
    _

// kernel: _lambda_.24
$region0: #{_lambda_.24}
  #allocation0 [shape = 'u32[]', space=smem, size = 0x4, offset = 0x4, fixed_abs, tag = 'smem constant byte address 0x4 - core index']
  #allocation1 [shape = 'u32[72,128]{1,0:T(1,128)}', space=vmem, size = 0x9000, scoped, tag = 'internal scratch']
  %s0 = inlined_call_operand.vmem [shape: bf16[30,128], index: 0, kind: input, shape index: {}]
  %s1 = inlined_call_operand.vmem [shape: bf16[128,128], index: 1, kind: input, shape index: {}]
  %s2 = inlined_call_operand.vmem [shape: f32[1,128], index: 2, kind: input, shape index: {}, may-alias: {2,5}]
  %s3 = inlined_call_operand.vmem [shape: bf16[30,128], index: 3, kind: input, shape index: {}]
  %s4 = inlined_call_operand.vmem [shape: f32[1,128], index: 4, kind: input, shape index: {}]
  %s5 = inlined_call_operand.vmem [shape: f32[1,128], index: 5, kind: input, shape index: {}, may-alias: {2,5}]
  %s6 = inlined_call_operand.vmem [shape: bf16[30,128], index: 6, kind: output, shape index: {}]
  %s7 = sld [smem:[#allocation0]]
  $region34: #{_lambda_.24} parent=0
    _
  %s9 = ssub.s32 1, %s7
  %s10 = scalar_select 0, %s9, %s7
  // Predicated region
  $region2: #{_lambda_.24} parent=0 // pred_check
    _
  $region3: #{_lambda_.24} parent=0 // pred_check_branch
    %12 = sbr.rel (0) target = $region5
  $region4: #{_lambda_.24} parent=0 // pred_region
    _
  $region5: #{_lambda_.24} parent=0 // pred_fallthru
    _
  // Predicated region
  $region6: #{_lambda_.24} parent=0 // pred_check
    _
  $region7: #{_lambda_.24} parent=0 // pred_check_branch
    %14 = sbr.rel (0) target = $region9
  $region8: #{_lambda_.24} parent=0 // pred_region
    _
  $region9: #{_lambda_.24} parent=0 // pred_fallthru
    _
  // Predicated region
  $region10: #{_lambda_.24} parent=0 // pred_check
    _
  $region11: #{_lambda_.24} parent=0 // pred_check_branch
    %16 = sbr.rel (0) target = $region13
  $region12: #{_lambda_.24} parent=0 // pred_region
    _
  $region13: #{_lambda_.24} parent=0 // pred_fallthru
    _
  // Predicated region
  $region14: #{_lambda_.24} parent=0 // pred_check
    _
  $region15: #{_lambda_.24} parent=0 // pred_check_branch
    %18 = sbr.rel (0) target = $region17
  $region16: #{_lambda_.24} parent=0 // pred_region
    _
  $region17: #{_lambda_.24} parent=0 // pred_fallthru
    _
  // Predicated region
  $region18: #{_lambda_.24} parent=0 // pred_check
    _
  $region19: #{_lambda_.24} parent=0 // pred_check_branch
    %20 = sbr.rel (0) target = $region21
  $region20: #{_lambda_.24} parent=0 // pred_region
    _
  $region21: #{_lambda_.24} parent=0 // pred_fallthru
    _
  // Predicated region
  $region22: #{_lambda_.24} parent=0 // pred_check
    _
  $region23: #{_lambda_.24} parent=0 // pred_check_branch
    %22 = sbr.rel (0) target = $region25
  $region24: #{_lambda_.24} parent=0 // pred_region
    _
  $region25: #{_lambda_.24} parent=0 // pred_fallthru
    _
  %v23 = vld [vmem:[%s0] sm:$0xf]
  %v24 = vld [vmem:[%s0 + $0x4] sm:$0xf]
  %v25 = vld [vmem:[%s0 + $0x8] sm:$0xf]
  %v26 = vld [vmem:[%s0 + $0xc] sm:$0x7]
  %v27 = vld [vmem:[%s1] sm:$0xf]
  %v28 = vld [vmem:[%s1 + $0x4] sm:$0xf]
  %v29 = vld [vmem:[%s1 + $0x8] sm:$0xf]
  %v30 = vld [vmem:[%s1 + $0xc] sm:$0xf]
  %v31 = vld [vmem:[%s1 + $0x10] sm:$0xf]
  %v32 = vld [vmem:[%s1 + $0x14] sm:$0xf]
  %v33 = vld [vmem:[%s1 + $0x18] sm:$0xf]
  %v34 = vld [vmem:[%s1 + $0x1c] sm:$0xf]
  %v35 = vld [vmem:[%s1 + $0x20] sm:$0xf]
  %v36 = vld [vmem:[%s1 + $0x24] sm:$0xf]
  %v37 = vld [vmem:[%s1 + $0x28] sm:$0xf]
  %v38 = vld [vmem:[%s1 + $0x2c] sm:$0xf]
  %v39 = vld [vmem:[%s1 + $0x30] sm:$0xf]
  %v40 = vld [vmem:[%s1 + $0x34] sm:$0xf]
  %v41 = vld [vmem:[%s1 + $0x38] sm:$0xf]
  %v42 = vld [vmem:[%s1 + $0x3c] sm:$0xf]
  %v43 = vld [vmem:[%s2] sm:$0x1]
  %v45 = vperm.slane %v43, 0
  %v51 = vunpack.c.l.b16 %v23
  %v52 = vunpack.c.l.b16 %v24
  %v53 = vunpack.c.l.b16 %v25
  %v54 = vunpack.c.l.b16 %v26
  %v55 = vpack.c.b16 %v52, %v51
  %v56 = vpack.c.b16 %v54, %v53
  %v75 = vunpack.c.l.b16 %v27
  %v76 = vunpack.c.l.b16 %v28
  %v77 = vunpack.c.l.b16 %v29
  %v78 = vunpack.c.l.b16 %v30
  %v79 = vunpack.c.l.b16 %v31
  %v80 = vunpack.c.l.b16 %v32
  %v81 = vunpack.c.l.b16 %v33
  %v82 = vunpack.c.l.b16 %v34
  %v83 = vunpack.c.l.b16 %v35
  %v84 = vunpack.c.l.b16 %v36
  %v85 = vunpack.c.l.b16 %v37
  %v86 = vunpack.c.l.b16 %v38
  %v87 = vunpack.c.l.b16 %v39
  %v88 = vunpack.c.l.b16 %v40
  %v89 = vunpack.c.l.b16 %v41
  %v90 = vunpack.c.l.b16 %v42
  %v91 = vpack.c.b16 %v76, %v75
  %v92 = vpack.c.b16 %v78, %v77
  %v93 = vpack.c.b16 %v80, %v79
  %v94 = vpack.c.b16 %v82, %v81
  %v95 = vpack.c.b16 %v84, %v83
  %v96 = vpack.c.b16 %v86, %v85
  %v97 = vpack.c.b16 %v88, %v87
  %v98 = vpack.c.b16 %v90, %v89
  %107 = vmatpush.bf16.msra.mxu0 %v98
  %108 = vmatpush.bf16.msra.mxu0 %v97
  %109 = vmatpush.bf16.msra.mxu0 %v96
  %110 = vmatpush.bf16.msra.mxu0 %v95
  %111 = vmatpush.bf16.msra.mxu0 %v94
  %112 = vmatpush.bf16.msra.mxu0 %v93
  %113 = vmatpush.bf16.msra.mxu0 %v92
  %114 = vmatpush.bf16.msra.mxu0 %v91
  %115 = vmatmul.bf16.gmra.mxu0 %v55
  %v116 = vpop.f32.mrf.mxu0
  %v117 = vadd.f32 %v45, %v116
  %v118 = vpop.f32.mrf.mxu0
  %v119 = vadd.f32 %v45, %v118
  %120 = vmatmul.bf16.gmra.mxu0 %v56
  %v121 = vpop.f32.mrf.mxu0
  %v122 = vadd.f32 %v45, %v121
  %v123 = vpop.f32.mrf.mxu0
  %v124 = vadd.f32 %v45, %v123
  %125 = vdwg.mxu0
  %v126 = vld [vmem:[%s3] sm:$0xf]
  %v127 = vld [vmem:[%s3 + $0x4] sm:$0xf]
  %v128 = vld [vmem:[%s3 + $0x8] sm:$0xf]
  %v129 = vld [vmem:[%s3 + $0xc] sm:$0x7]
  %v130 = vunpack.c.l.bf16 %v126
  %v131 = vunpack.c.l.bf16 %v127
  %v132 = vunpack.c.l.bf16 %v128
  %v133 = vunpack.c.l.bf16 %v129
  %v134 = vadd.f32 %v117, %v130
  %v135 = vadd.f32 %v119, %v131
  %v136 = vadd.f32 %v122, %v132
  %v137 = vadd.f32 %v124, %v133
  %v138 = vld [vmem:[%s4] sm:$0x1]
  %v139 = vld [vmem:[%s5] sm:$0x1]
  %140 = vadd.xlane.f32.xlu0 %v134
  %v141 = vpop.xlane.xlu0 %140
  %142 = vadd.xlane.f32.xlu0 %v135
  %v143 = vpop.xlane.xlu0 %142
  %144 = vadd.xlane.f32.xlu0 %v136
  %v145 = vpop.xlane.xlu0 %144
  %vm146 = vcmask 1045504
  %v147 = vsel %vm146, %v137, 0.0
  %148 = vadd.xlane.f32.xlu0 %v147
  %v149 = vpop.xlane.xlu0 %148
  %v150 = vrcp.pop 128.0
  %v151 = vmul.f32 128.0, %v150
  %v152 = vsub.f32 1.0, %v151
  %v153 = vmul.f32 %v150, %v152
  %v154 = vadd.f32 %v150, %v153
  %vm155 = vweird.f32 %v150
  %v156 = vsel %vm155, %v150, %v154
  %v157 = vmul.f32 %v141, %v156
  %v158 = vmul.f32 %v143, %v156
  %v159 = vmul.f32 %v145, %v156
  %v160 = vmul.f32 %v149, %v156
  %v161 = vsub.f32 %v134, %v157
  %v162 = vsub.f32 %v135, %v158
  %v163 = vsub.f32 %v136, %v159
  %v164 = vsub.f32 %v137, %v160
  %v165 = vmul.f32 %v161, %v161
  %v166 = vmul.f32 %v162, %v162
  %v167 = vmul.f32 %v163, %v163
  %v168 = vmul.f32 %v164, %v164
  %169 = vadd.xlane.f32.xlu0 %v165
  %v170 = vpop.xlane.xlu0 %169
  %171 = vadd.xlane.f32.xlu0 %v166
  %v172 = vpop.xlane.xlu0 %171
  %173 = vadd.xlane.f32.xlu0 %v167
  %v174 = vpop.xlane.xlu0 %173
  %v175 = vsel %vm146, %v168, 0.0
  %176 = vadd.xlane.f32.xlu0 %v175
  %v177 = vpop.xlane.xlu0 %176
  %v178 = vmul.f32 %v170, %v156
  %v179 = vmul.f32 %v172, %v156
  %v180 = vmul.f32 %v174, %v156
  %v181 = vmul.f32 %v177, %v156
  %v182 = vadd.f32 %v178, 1e-05
  %v183 = vadd.f32 %v179, 1e-05
  %v184 = vadd.f32 %v180, 1e-05
  %v185 = vadd.f32 %v181, 1e-05
  %v186 = vrsqrt.pop %v182
  %v187 = vmul.f32 %v186, %v182
  %v188 = vmul.f32 %v187, %v186
  %v189 = vmul.f32 0.5, %v188
  %v190 = vsub.f32 1.5, %v189
  %v191 = vmul.f32 %v186, %v190
  %vm192 = vweird.f32 %v182
  %vm193 = vweird.f32 %v186
  %vm194 = vmor %vm192, %vm193
  %v195 = vsel %vm194, %v186, %v191
  %v196 = vrsqrt.pop %v183
  %v197 = vmul.f32 %v196, %v183
  %v198 = vmul.f32 %v197, %v196
  %v199 = vmul.f32 0.5, %v198
  %v200 = vsub.f32 1.5, %v199
  %v201 = vmul.f32 %v196, %v200
  %vm202 = vweird.f32 %v183
  %vm203 = vweird.f32 %v196
  %vm204 = vmor %vm202, %vm203
  %v205 = vsel %vm204, %v196, %v201
  %v206 = vrsqrt.pop %v184
  %v207 = vmul.f32 %v206, %v184
  %v208 = vmul.f32 %v207, %v206
  %v209 = vmul.f32 0.5, %v208
  %v210 = vsub.f32 1.5, %v209
  %v211 = vmul.f32 %v206, %v210
  %vm212 = vweird.f32 %v184
  %vm213 = vweird.f32 %v206
  %vm214 = vmor %vm212, %vm213
  %v215 = vsel %vm214, %v206, %v211
  %v216 = vrsqrt.pop %v185
  %v217 = vmul.f32 %v216, %v185
  %v218 = vmul.f32 %v217, %v216
  %v219 = vmul.f32 0.5, %v218
  %v220 = vsub.f32 1.5, %v219
  %v221 = vmul.f32 %v216, %v220
  %vm222 = vweird.f32 %v185
  %vm223 = vweird.f32 %v216
  %vm224 = vmor %vm222, %vm223
  %v225 = vsel %vm224, %v216, %v221
  %v226 = vmul.f32 %v161, %v195
  %v227 = vmul.f32 %v162, %v205
  %v228 = vmul.f32 %v163, %v215
  %v229 = vmul.f32 %v164, %v225
  %v231 = vperm.slane %v138, 0
  %v233 = vmul.f32 %v226, %v231
  %v234 = vmul.f32 %v227, %v231
  %v235 = vmul.f32 %v228, %v231
  %v236 = vmul.f32 %v229, %v231
  %v238 = vperm.slane %v139, 0
  %v240 = vadd.f32 %v233, %v238
  %v241 = vadd.f32 %v234, %v238
  %v242 = vadd.f32 %v235, %v238
  %v243 = vadd.f32 %v236, %v238
  %v244 = vpack.c.bf16 %v240, %v240
  %v245 = vpack.c.bf16 %v241, %v241
  %v246 = vpack.c.bf16 %v242, %v242
  %v247 = vpack.c.bf16 %v243, %v243
  %248 = vst [vmem:[%s6] sm:$0xf] %v244
  %249 = vst [vmem:[%s6 + $0x4] sm:$0xf] %v245
  %250 = vst [vmem:[%s6 + $0x8] sm:$0xf] %v246
  %251 = vst [vmem:[%s6 + $0xc] sm:$0x7] %v247
  // Predicated region
  $region26: #{_lambda_.24} parent=0 // pred_check
    _
  $region27: #{_lambda_.24} parent=0 // pred_check_branch
    %253 = sbr.rel (0) target = $region29
  $region28: #{_lambda_.24} parent=0 // pred_region
    _
  $region29: #{_lambda_.24} parent=0 // pred_fallthru
    _
  // Predicated region
  $region30: #{_lambda_.24} parent=0 // pred_check
    _
  $region31: #{_lambda_.24} parent=0 // pred_check_branch
    %255 = sbr.rel (0) target = $region33
  $region32: #{_lambda_.24} parent=0 // pred_region
    _
  $region33: #{_lambda_.24} parent=0 // pred_fallthru
    _

// kernel: _lambda_.23
$region0: #{_lambda_.23}
  #allocation0 [shape = 'u32[]', space=smem, size = 0x4, offset = 0x4, fixed_abs, tag = 'smem constant byte address 0x4 - core index']
  #allocation1 [shape = 'u32[72,128]{1,0:T(1,128)}', space=vmem, size = 0x9000, scoped, tag = 'internal scratch']
  #allocation2 [shape = 'f32[4,15,1]{2,1,0:T(8,128)}', space=vmem, size = 0x8000, scoped, tag = 'scratch operand']
  #allocation3 [shape = 'f32[4,15,1]{2,1,0:T(8,128)}', space=vmem, size = 0x8000, scoped, tag = 'scratch operand']
  #allocation4 [shape = 'f32[4,15,32]{2,1,0:T(8,128)}', space=vmem, size = 0x8000, scoped, tag = 'scratch operand']
  %s0 = inlined_call_operand.vmem [shape: bf16[2,15,384], index: 0, kind: input, shape index: {}, may-alias: {0,1,2}]
  %s1 = inlined_call_operand.vmem [shape: bf16[2,15,384], index: 1, kind: input, shape index: {}, may-alias: {0,1,2}]
  %s2 = inlined_call_operand.vmem [shape: bf16[2,15,384], index: 2, kind: input, shape index: {}, may-alias: {0,1,2}]
  %s3 = inlined_call_operand.vmem [shape: f32[2,1,15], index: 3, kind: input, shape index: {}]
  %s4 = inlined_call_operand.vmem [shape: bf16[2,15,128], index: 4, kind: output, shape index: {}]
  %s5 = sld [smem:[#allocation0]]
  $region180: #{_lambda_.23} parent=0
    _
  %s7 = ssub.s32 1, %s5
  %s8 = scalar_select 0, %s7, %s5
  $region1: #{_lambda_.23} parent=0
    #allocation5 [shape = 'u8[8192]{0}', space=vmem, size = 0x2000, scoped, tag = 'input window, operand 0']
    #allocation6 [shape = 'u8[8192]{0}', space=vmem, size = 0x2000, scoped, tag = 'input window, operand 1']
    #allocation7 [shape = 'u8[8192]{0}', space=vmem, size = 0x2000, scoped, tag = 'input window, operand 2']
    loop: start=0, step=1, limit=4
    $region2: #{_lambda_.23} parent=1 // loop_pre_header
      _
    $region3: #{_lambda_.23} parent=1 // loop_header
      %s10 = sphi 0, %s14
      %p11 = scmp.ge.s32.totalorder %s10, 4
      %s17 = sphi 0, %s36
      %s18 = sphi 0, %s32
      %s19 = sphi 0, %s28
      %s20 = sphi 0, %s17
      %s21 = sphi 0, %s18
      %s22 = sphi 0, %s19
      %s23 = sphi 0, %s20
      %s24 = sphi 0, %s21
      %s25 = sphi 0, %s22
      %s41 = sphi 0, %s43
      %s44 = sphi 0, %s41
      %s45 = sphi 0, %s44
      %s61 = sphi 0, %s45
      %s69 = sphi 0, %s71
      %s72 = sphi 0, %s69
      %s73 = sphi 0, %s72
      %s89 = sphi 0, %s73
      %s97 = sphi 0, %s99
      %s100 = sphi 0, %s97
      %s101 = sphi 0, %s100
      %s117 = sphi 0, %s101
      %s125 = sphi 0, %s127
      %s128 = sphi 0, %s125
      %s129 = sphi 0, %s128
      %s145 = sphi 0, %s129
      %s153 = sphi 0, %s155
      %s156 = sphi 0, %s153
      %s157 = sphi 0, %s156
      %s173 = sphi 0, %s157
    $region4: #{_lambda_.23} parent=1 // loop_header_branch
      %13 = sbr.rel (%p11) target = $region8
    $region5: #{_lambda_.23} parent=1 // loop_body
      %s15 = ssub.s32 %s10, 1
      %s16 = ssub.s32 %s10, 2
      %s26 = sadd.s32 1, %s19
      %p27 = scmp.ge.s32.totalorder %s26, 1
      %s28 = scalar_select %p27, 0, %s26
      %s29 = sadd.s32 1, %s18
      %s30 = scalar_select %p27, %s29, %s18
      %p31 = scmp.ge.s32.totalorder %s30, 1
      %s32 = scalar_select %p31, 0, %s30
      %s33 = sadd.s32 1, %s17
      %s34 = scalar_select %p31, %s33, %s17
      %p35 = scmp.ge.s32.totalorder %s34, 2
      %s36 = scalar_select %p35, 0, %s34
      %s37 = ssub.s32 %s17, %s36
      %s38 = ssub.s32 %s18, %s32
      %s39 = sor.u32 %s37, %s38
      %p40 = scmp.eq.s32.totalorder %s39, 0
      %s42 = sadd.s32 %s41, 1
      %s43 = scalar_select %p40, %s41, %s42
      %p46 = pneg %p40
      %p47 = scmp.eq.s32.totalorder %s10, 1
      %p48 = por %p46, %p47
      %p49 = scmp.ne.s32.totalorder %s41, %s44
      %p50 = scmp.eq.s32.totalorder %s10, 0
      %p51 = por %p49, %p50
      %p52 = scmp.ne.s32.totalorder %s41, %s44
      %p53 = scmp.eq.s32.totalorder %s15, 1
      %p54 = por %p52, %p53
      %p55 = scmp.ne.s32.totalorder %s44, %s45
      %p56 = scmp.eq.s32.totalorder %s15, 0
      %p57 = por %p55, %p56
      %p58 = scmp.ne.s32.totalorder %s44, %s45
      %p59 = scmp.eq.s32.totalorder %s16, 1
      %p60 = por %p58, %p59
      %p62 = scmp.ne.s32.totalorder %s45, %s61
      %p63 = scmp.eq.s32.totalorder %s16, 0
      %p64 = por %p62, %p63
      %s65 = ssub.s32 %s17, %s36
      %s66 = ssub.s32 %s19, %s28
      %s67 = sor.u32 %s65, %s66
      %p68 = scmp.eq.s32.totalorder %s67, 0
      %s70 = sadd.s32 %s69, 1
      %s71 = scalar_select %p68, %s69, %s70
      %p74 = pneg %p68
      %p75 = scmp.eq.s32.totalorder %s10, 1
      %p76 = por %p74, %p75
      %p77 = scmp.ne.s32.totalorder %s69, %s72
      %p78 = scmp.eq.s32.totalorder %s10, 0
      %p79 = por %p77, %p78
      %p80 = scmp.ne.s32.totalorder %s69, %s72
      %p81 = scmp.eq.s32.totalorder %s15, 1
      %p82 = por %p80, %p81
      %p83 = scmp.ne.s32.totalorder %s72, %s73
      %p84 = scmp.eq.s32.totalorder %s15, 0
      %p85 = por %p83, %p84
      %p86 = scmp.ne.s32.totalorder %s72, %s73
      %p87 = scmp.eq.s32.totalorder %s16, 1
      %p88 = por %p86, %p87
      %p90 = scmp.ne.s32.totalorder %s73, %s89
      %p91 = scmp.eq.s32.totalorder %s16, 0
      %p92 = por %p90, %p91
      %s93 = ssub.s32 %s17, %s36
      %s94 = ssub.s32 %s19, %s28
      %s95 = sor.u32 %s93, %s94
      %p96 = scmp.eq.s32.totalorder %s95, 0
      %s98 = sadd.s32 %s97, 1
      %s99 = scalar_select %p96, %s97, %s98
      %p102 = pneg %p96
      %p103 = scmp.eq.s32.totalorder %s10, 1
      %p104 = por %p102, %p103
      %p105 = scmp.ne.s32.totalorder %s97, %s100
      %p106 = scmp.eq.s32.totalorder %s10, 0
      %p107 = por %p105, %p106
      %p108 = scmp.ne.s32.totalorder %s97, %s100
      %p109 = scmp.eq.s32.totalorder %s15, 1
      %p110 = por %p108, %p109
      %p111 = scmp.ne.s32.totalorder %s100, %s101
      %p112 = scmp.eq.s32.totalorder %s15, 0
      %p113 = por %p111, %p112
      %p114 = scmp.ne.s32.totalorder %s100, %s101
      %p115 = scmp.eq.s32.totalorder %s16, 1
      %p116 = por %p114, %p115
      %p118 = scmp.ne.s32.totalorder %s101, %s117
      %p119 = scmp.eq.s32.totalorder %s16, 0
      %p120 = por %p118, %p119
      %s121 = ssub.s32 %s17, %s36
      %s122 = ssub.s32 %s19, %s28
      %s123 = sor.u32 %s121, %s122
      %p124 = scmp.eq.s32.totalorder %s123, 0
      %s126 = sadd.s32 %s125, 1
      %s127 = scalar_select %p124, %s125, %s126
      %p130 = pneg %p124
      %p131 = scmp.eq.s32.totalorder %s10, 1
      %p132 = por %p130, %p131
      %p133 = scmp.ne.s32.totalorder %s125, %s128
      %p134 = scmp.eq.s32.totalorder %s10, 0
      %p135 = por %p133, %p134
      %p136 = scmp.ne.s32.totalorder %s125, %s128
      %p137 = scmp.eq.s32.totalorder %s15, 1
      %p138 = por %p136, %p137
      %p139 = scmp.ne.s32.totalorder %s128, %s129
      %p140 = scmp.eq.s32.totalorder %s15, 0
      %p141 = por %p139, %p140
      %p142 = scmp.ne.s32.totalorder %s128, %s129
      %p143 = scmp.eq.s32.totalorder %s16, 1
      %p144 = por %p142, %p143
      %p146 = scmp.ne.s32.totalorder %s129, %s145
      %p147 = scmp.eq.s32.totalorder %s16, 0
      %p148 = por %p146, %p147
      %s149 = ssub.s32 %s17, %s36
      %s150 = ssub.s32 %s18, %s32
      %s151 = sor.u32 %s149, %s150
      %p152 = scmp.eq.s32.totalorder %s151, 0
      %s154 = sadd.s32 %s153, 1
      %s155 = scalar_select %p152, %s153, %s154
      %p158 = pneg %p152
      %p159 = scmp.eq.s32.totalorder %s10, 1
      %p160 = por %p158, %p159
      %p161 = scmp.ne.s32.totalorder %s153, %s156
      %p162 = scmp.eq.s32.totalorder %s10, 0
      %p163 = por %p161, %p162
      %p164 = scmp.ne.s32.totalorder %s153, %s156
      %p165 = scmp.eq.s32.totalorder %s15, 1
      %p166 = por %p164, %p165
      %p167 = scmp.ne.s32.totalorder %s156, %s157
      %p168 = scmp.eq.s32.totalorder %s15, 0
      %p169 = por %p167, %p168
      %p170 = scmp.ne.s32.totalorder %s156, %s157
      %p171 = scmp.eq.s32.totalorder %s16, 1
      %p172 = por %p170, %p171
      %p174 = scmp.ne.s32.totalorder %s157, %s173
      %p175 = scmp.eq.s32.totalorder %s16, 0
      %p176 = por %p174, %p175
      %p177 = scmp.le.s32.totalorder 1, %s10
      %p178 = scmp.lt.s32.totalorder %s10, 3
      %p179 = pnand %p177, %p178
      %p180 = pneg %p179
      // Predicated region
      $region9: #{_lambda_.23} parent=5 // pred_check
        _
      $region10: #{_lambda_.23} parent=5 // pred_check_branch
        %182 = sbr.rel (%p179) target = $region12
      $region11: #{_lambda_.23} parent=5 // pred_region
        %s183 = ssub.s32 %s10, 1
      $region12: #{_lambda_.23} parent=5 // pred_fallthru
        _
      %p184 = scmp.lt.s32.totalorder %s10, 2
      // Predicated region
      $region13: #{_lambda_.23} parent=5 // pred_check
        %p185 = pneg %p184
      $region14: #{_lambda_.23} parent=5 // pred_check_branch
        %187 = sbr.rel (%p185) target = $region16
      $region15: #{_lambda_.23} parent=5 // pred_region
        // Predicated region
        $region17: #{_lambda_.23} parent=15 // pred_check
          %p188 = pneg %p51
        $region18: #{_lambda_.23} parent=15 // pred_check_branch
          %190 = sbr.rel (%p188) target = $region20
        $region19: #{_lambda_.23} parent=15 // pred_region
          %s191 = sand.u32 %s41, 1
          %s192 = sand.u32 %s41, 1
          %s193 = smul.addr %s192, 8
          %s194 = scalar_lea.vmem [#allocation5], %s193
          %s195 = smul.u32 2, %s18
          %s196 = smul.addr %s195, 3
          %s197 = smul.addr %s17, 6
          %s198 = sadd.s32 %s196, %s197
          %s199 = smul.addr %s198, 4
          %s200 = scalar_lea.vmem %s0, %s199
          // Predicated region
          $region21: #{_lambda_.23} parent=19 // pred_check
            _
          $region22: #{_lambda_.23} parent=19 // pred_check_branch
            %202 = sbr.rel (0) target = $region24
          $region23: #{_lambda_.23} parent=19 // pred_region
            // Predicated region
            $region25: #{_lambda_.23} parent=23 // pred_check
              _
            $region26: #{_lambda_.23} parent=23 // pred_check_branch
              %204 = sbr.rel target = $region28
            $region27: #{_lambda_.23} parent=23 // pred_region
              // Predicated region
              $region40: #{_lambda_.23} parent=27 // pred_check
                _
              $region41: #{_lambda_.23} parent=27 // pred_check_branch
                %222 = sbr.rel (0) target = $region43
              $region42: #{_lambda_.23} parent=27 // pred_region
                loop: start=0, step=1, limit=1
                $region44: #{_lambda_.23} parent=42 // loop_pre_header
                  _
                $region45: #{_lambda_.23} parent=42 // loop_header
                  %s224 = sphi 0, %s228
                  %p225 = scmp.ge.s32.totalorder %s224, 1
                  %s229 = sphi %s200, %s200
                  %s230 = sphi %s194, %s194
                $region46: #{_lambda_.23} parent=42 // loop_header_branch
                  %227 = sbr.rel (%p225) target = $region50
                $region47: #{_lambda_.23} parent=42 // loop_body
                  _
                $region48: #{_lambda_.23} parent=42 // loop_footer
                  %s228 = sadd.s32 1, %s224
                $region49: #{_lambda_.23} parent=42 // loop_footer_branch
                  %223 = sbr.rel target = $region45
                $region50: #{_lambda_.23} parent=42 // loop_exit
                  _
                %s232 = ssub.s32 16, 1
                loop: start=0, step=1, limit=1
                $region51: #{_lambda_.23} parent=42 // loop_pre_header
                  _
                $region52: #{_lambda_.23} parent=42 // loop_header
                  %s234 = sphi 0, %s238
                  %p235 = scmp.ge.s32.totalorder %s234, 1
                  %s239 = sphi %s200, %s200
                  %s240 = sphi %s194, %s194
                $region53: #{_lambda_.23} parent=42 // loop_header_branch
                  %237 = sbr.rel (%p235) target = $region57
                $region54: #{_lambda_.23} parent=42 // loop_body
                  %v241 = vld [vmem:[%s239] sm:%s232]
                  %242 = vst [vmem:[%s240] sm:%s232] %v241
                  %v243 = vld [vmem:[%s239 + $0xc] sm:%s232]
                  %244 = vst [vmem:[%s240 + $0x4] sm:%s232] %v243
                $region55: #{_lambda_.23} parent=42 // loop_footer
                  %s238 = sadd.s32 1, %s234
                $region56: #{_lambda_.23} parent=42 // loop_footer_branch
                  %233 = sbr.rel target = $region52
                $region57: #{_lambda_.23} parent=42 // loop_exit
                  _
              $region43: #{_lambda_.23} parent=27 // pred_fallthru
                _
            $region28: #{_lambda_.23} parent=23 // pred_fallthru
              _
            // Predicated region
            $region29: #{_lambda_.23} parent=23 // pred_check
              _
            $region30: #{_lambda_.23} parent=23 // pred_check_branch
              %206 = sbr.rel (0) target = $region32
            $region31: #{_lambda_.23} parent=23 // pred_region
              %s208 = ssub.s32 16, 1
              loop: start=0, step=1, limit=1
              $region33: #{_lambda_.23} parent=31 // loop_pre_header
                _
              $region34: #{_lambda_.23} parent=31 // loop_header
                %s210 = sphi 0, %s214
                %p211 = scmp.ge.s32.totalorder %s210, 1
                %s215 = sphi %s200, %s200
                %s216 = sphi %s194, %s194
              $region35: #{_lambda_.23} parent=31 // loop_header_branch
                %213 = sbr.rel (%p211) target = $region39
              $region36: #{_lambda_.23} parent=31 // loop_body
                %v217 = vld [vmem:[%s215] sm:%s208]
                %218 = vst [vmem:[%s216] sm:%s208] %v217
                %v219 = vld [vmem:[%s215 + $0xc] sm:%s208]
                %220 = vst [vmem:[%s216 + $0x4] sm:%s208] %v219
              $region37: #{_lambda_.23} parent=31 // loop_footer
                %s214 = sadd.s32 1, %s210
              $region38: #{_lambda_.23} parent=31 // loop_footer_branch
                %209 = sbr.rel target = $region34
              $region39: #{_lambda_.23} parent=31 // loop_exit
                _
            $region32: #{_lambda_.23} parent=23 // pred_fallthru
              _
          $region24: #{_lambda_.23} parent=19 // pred_fallthru
            _
          %245 = vnop
        $region20: #{_lambda_.23} parent=15 // pred_fallthru
          _
        // Predicated region
        $region58: #{_lambda_.23} parent=15 // pred_check
          %p246 = pneg %p79
        $region59: #{_lambda_.23} parent=15 // pred_check_branch
          %248 = sbr.rel (%p246) target = $region61
        $region60: #{_lambda_.23} parent=15 // pred_region
          %s249 = sand.u32 %s69, 1
          %s250 = sand.u32 %s69, 1
          %s251 = smul.addr %s250, 8
          %s252 = scalar_lea.vmem [#allocation6], %s251
          %s253 = smul.u32 2, %s19
          %s254 = smul.addr %s253, 3
          %s255 = sadd.s32 1, %s254
          %s256 = smul.addr %s17, 6
          %s257 = sadd.s32 %s255, %s256
          %s258 = smul.addr %s257, 4
          %s259 = scalar_lea.vmem %s1, %s258
          // Predicated region
          $region62: #{_lambda_.23} parent=60 // pred_check
            _
          $region63: #{_lambda_.23} parent=60 // pred_check_branch
            %261 = sbr.rel (0) target = $region65
          $region64: #{_lambda_.23} parent=60 // pred_region
            // Predicated region
            $region66: #{_lambda_.23} parent=64 // pred_check
              _
            $region67: #{_lambda_.23} parent=64 // pred_check_branch
              %263 = sbr.rel target = $region69
            $region68: #{_lambda_.23} parent=64 // pred_region
              // Predicated region
              $region81: #{_lambda_.23} parent=68 // pred_check
                _
              $region82: #{_lambda_.23} parent=68 // pred_check_branch
                %281 = sbr.rel (0) target = $region84
              $region83: #{_lambda_.23} parent=68 // pred_region
                loop: start=0, step=1, limit=1
                $region85: #{_lambda_.23} parent=83 // loop_pre_header
                  _
                $region86: #{_lambda_.23} parent=83 // loop_header
                  %s283 = sphi 0, %s287
                  %p284 = scmp.ge.s32.totalorder %s283, 1
                  %s288 = sphi %s259, %s259
                  %s289 = sphi %s252, %s252
                $region87: #{_lambda_.23} parent=83 // loop_header_branch
                  %286 = sbr.rel (%p284) target = $region91
                $region88: #{_lambda_.23} parent=83 // loop_body
                  _
                $region89: #{_lambda_.23} parent=83 // loop_footer
                  %s287 = sadd.s32 1, %s283
                $region90: #{_lambda_.23} parent=83 // loop_footer_branch
                  %282 = sbr.rel target = $region86
                $region91: #{_lambda_.23} parent=83 // loop_exit
                  _
                %s291 = ssub.s32 16, 1
                loop: start=0, step=1, limit=1
                $region92: #{_lambda_.23} parent=83 // loop_pre_header
                  _
                $region93: #{_lambda_.23} parent=83 // loop_header
                  %s293 = sphi 0, %s297
                  %p294 = scmp.ge.s32.totalorder %s293, 1
                  %s298 = sphi %s259, %s259
                  %s299 = sphi %s252, %s252
                $region94: #{_lambda_.23} parent=83 // loop_header_branch
                  %296 = sbr.rel (%p294) target = $region98
                $region95: #{_lambda_.23} parent=83 // loop_body
                  %v300 = vld [vmem:[%s298] sm:%s291]
                  %301 = vst [vmem:[%s299] sm:%s291] %v300
                  %v302 = vld [vmem:[%s298 + $0xc] sm:%s291]
                  %303 = vst [vmem:[%s299 + $0x4] sm:%s291] %v302
                $region96: #{_lambda_.23} parent=83 // loop_footer
                  %s297 = sadd.s32 1, %s293
                $region97: #{_lambda_.23} parent=83 // loop_footer_branch
                  %292 = sbr.rel target = $region93
                $region98: #{_lambda_.23} parent=83 // loop_exit
                  _
              $region84: #{_lambda_.23} parent=68 // pred_fallthru
                _
            $region69: #{_lambda_.23} parent=64 // pred_fallthru
              _
            // Predicated region
            $region70: #{_lambda_.23} parent=64 // pred_check
              _
            $region71: #{_lambda_.23} parent=64 // pred_check_branch
              %265 = sbr.rel (0) target = $region73
            $region72: #{_lambda_.23} parent=64 // pred_region
              %s267 = ssub.s32 16, 1
              loop: start=0, step=1, limit=1
              $region74: #{_lambda_.23} parent=72 // loop_pre_header
                _
              $region75: #{_lambda_.23} parent=72 // loop_header
                %s269 = sphi 0, %s273
                %p270 = scmp.ge.s32.totalorder %s269, 1
                %s274 = sphi %s259, %s259
                %s275 = sphi %s252, %s252
              $region76: #{_lambda_.23} parent=72 // loop_header_branch
                %272 = sbr.rel (%p270) target = $region80
              $region77: #{_lambda_.23} parent=72 // loop_body
                %v276 = vld [vmem:[%s274] sm:%s267]
                %277 = vst [vmem:[%s275] sm:%s267] %v276
                %v278 = vld [vmem:[%s274 + $0xc] sm:%s267]
                %279 = vst [vmem:[%s275 + $0x4] sm:%s267] %v278
              $region78: #{_lambda_.23} parent=72 // loop_footer
                %s273 = sadd.s32 1, %s269
              $region79: #{_lambda_.23} parent=72 // loop_footer_branch
                %268 = sbr.rel target = $region75
              $region80: #{_lambda_.23} parent=72 // loop_exit
                _
            $region73: #{_lambda_.23} parent=64 // pred_fallthru
              _
          $region65: #{_lambda_.23} parent=60 // pred_fallthru
            _
          %304 = vnop
        $region61: #{_lambda_.23} parent=15 // pred_fallthru
          _
        // Predicated region
        $region99: #{_lambda_.23} parent=15 // pred_check
          %p305 = pneg %p107
        $region100: #{_lambda_.23} parent=15 // pred_check_branch
          %307 = sbr.rel (%p305) target = $region102
        $region101: #{_lambda_.23} parent=15 // pred_region
          %s308 = sand.u32 %s97, 1
          %s309 = sand.u32 %s97, 1
          %s310 = smul.addr %s309, 8
          %s311 = scalar_lea.vmem [#allocation7], %s310
          %s312 = smul.u32 2, %s19
          %s313 = smul.addr %s312, 3
          %s314 = sadd.s32 2, %s313
          %s315 = smul.addr %s17, 6
          %s316 = sadd.s32 %s314, %s315
          %s317 = smul.addr %s316, 4
          %s318 = scalar_lea.vmem %s2, %s317
          // Predicated region
          $region103: #{_lambda_.23} parent=101 // pred_check
            _
          $region104: #{_lambda_.23} parent=101 // pred_check_branch
            %320 = sbr.rel (0) target = $region106
          $region105: #{_lambda_.23} parent=101 // pred_region
            // Predicated region
            $region107: #{_lambda_.23} parent=105 // pred_check
              _
            $region108: #{_lambda_.23} parent=105 // pred_check_branch
              %322 = sbr.rel target = $region110
            $region109: #{_lambda_.23} parent=105 // pred_region
              // Predicated region
              $region122: #{_lambda_.23} parent=109 // pred_check
                _
              $region123: #{_lambda_.23} parent=109 // pred_check_branch
                %340 = sbr.rel (0) target = $region125
              $region124: #{_lambda_.23} parent=109 // pred_region
                loop: start=0, step=1, limit=1
                $region126: #{_lambda_.23} parent=124 // loop_pre_header
                  _
                $region127: #{_lambda_.23} parent=124 // loop_header
                  %s342 = sphi 0, %s346
                  %p343 = scmp.ge.s32.totalorder %s342, 1
                  %s347 = sphi %s318, %s318
                  %s348 = sphi %s311, %s311
                $region128: #{_lambda_.23} parent=124 // loop_header_branch
                  %345 = sbr.rel (%p343) target = $region132
                $region129: #{_lambda_.23} parent=124 // loop_body
                  _
                $region130: #{_lambda_.23} parent=124 // loop_footer
                  %s346 = sadd.s32 1, %s342
                $region131: #{_lambda_.23} parent=124 // loop_footer_branch
                  %341 = sbr.rel target = $region127
                $region132: #{_lambda_.23} parent=124 // loop_exit
                  _
                %s350 = ssub.s32 16, 1
                loop: start=0, step=1, limit=1
                $region133: #{_lambda_.23} parent=124 // loop_pre_header
                  _
                $region134: #{_lambda_.23} parent=124 // loop_header
                  %s352 = sphi 0, %s356
                  %p353 = scmp.ge.s32.totalorder %s352, 1
                  %s357 = sphi %s318, %s318
                  %s358 = sphi %s311, %s311
                $region135: #{_lambda_.23} parent=124 // loop_header_branch
                  %355 = sbr.rel (%p353) target = $region139
                $region136: #{_lambda_.23} parent=124 // loop_body
                  %v359 = vld [vmem:[%s357] sm:%s350]
                  %360 = vst [vmem:[%s358] sm:%s350] %v359
                  %v361 = vld [vmem:[%s357 + $0xc] sm:%s350]
                  %362 = vst [vmem:[%s358 + $0x4] sm:%s350] %v361
                $region137: #{_lambda_.23} parent=124 // loop_footer
                  %s356 = sadd.s32 1, %s352
                $region138: #{_lambda_.23} parent=124 // loop_footer_branch
                  %351 = sbr.rel target = $region134
                $region139: #{_lambda_.23} parent=124 // loop_exit
                  _
              $region125: #{_lambda_.23} parent=109 // pred_fallthru
                _
            $region110: #{_lambda_.23} parent=105 // pred_fallthru
              _
            // Predicated region
            $region111: #{_lambda_.23} parent=105 // pred_check
              _
            $region112: #{_lambda_.23} parent=105 // pred_check_branch
              %324 = sbr.rel (0) target = $region114
            $region113: #{_lambda_.23} parent=105 // pred_region
              %s326 = ssub.s32 16, 1
              loop: start=0, step=1, limit=1
              $region115: #{_lambda_.23} parent=113 // loop_pre_header
                _
              $region116: #{_lambda_.23} parent=113 // loop_header
                %s328 = sphi 0, %s332
                %p329 = scmp.ge.s32.totalorder %s328, 1
                %s333 = sphi %s318, %s318
                %s334 = sphi %s311, %s311
              $region117: #{_lambda_.23} parent=113 // loop_header_branch
                %331 = sbr.rel (%p329) target = $region121
              $region118: #{_lambda_.23} parent=113 // loop_body
                %v335 = vld [vmem:[%s333] sm:%s326]
                %336 = vst [vmem:[%s334] sm:%s326] %v335
                %v337 = vld [vmem:[%s333 + $0xc] sm:%s326]
                %338 = vst [vmem:[%s334 + $0x4] sm:%s326] %v337
              $region119: #{_lambda_.23} parent=113 // loop_footer
                %s332 = sadd.s32 1, %s328
              $region120: #{_lambda_.23} parent=113 // loop_footer_branch
                %327 = sbr.rel target = $region116
              $region121: #{_lambda_.23} parent=113 // loop_exit
                _
            $region114: #{_lambda_.23} parent=105 // pred_fallthru
              _
          $region106: #{_lambda_.23} parent=101 // pred_fallthru
            _
          %363 = vnop
        $region102: #{_lambda_.23} parent=15 // pred_fallthru
          _
        // Predicated region
        $region140: #{_lambda_.23} parent=15 // pred_check
          %p364 = pneg %p135
        $region141: #{_lambda_.23} parent=15 // pred_check_branch
          %366 = sbr.rel (%p364) target = $region143
        $region142: #{_lambda_.23} parent=15 // pred_region
          %p367 = scmp.lt.s32.totalorder %s17, 1
          %s368 = scalar_select %p367, %s17, 1
          %p369 = scmp.lt.s32.totalorder %s19, 0
          %s370 = scalar_select %p369, %s19, 0
          %s371 = sadd.s32 %s370, %s368
          %s372 = scalar_lea.vmem %s3, %s371
        $region143: #{_lambda_.23} parent=15 // pred_fallthru
          _
      $region16: #{_lambda_.23} parent=5 // pred_fallthru
        _
      %p373 = scmp.le.s32.totalorder 1, %s10
      %p374 = scmp.lt.s32.totalorder %s10, 3
      %p375 = pnand %p373, %p374
      %p376 = pneg %p375
      // Predicated region
      $region144: #{_lambda_.23} parent=5 // pred_check
        _
      $region145: #{_lambda_.23} parent=5 // pred_check_branch
        %378 = sbr.rel (%p375) target = $region147
      $region146: #{_lambda_.23} parent=5 // pred_region
        %s379 = ssub.s32 %s10, 1
        %s380 = sand.u32 %s44, 1
        %s381 = sand.u32 %s44, 1
        %s382 = smul.addr %s381, 8
        %s383 = scalar_lea.vmem [#allocation5], %s382
        // Predicated region
        $region148: #{_lambda_.23} parent=146 // pred_check
          %p384 = pneg %p57
        $region149: #{_lambda_.23} parent=146 // pred_check_branch
          %386 = sbr.rel (%p384) target = $region151
        $region150: #{_lambda_.23} parent=146 // pred_region
          _
        $region151: #{_lambda_.23} parent=146 // pred_fallthru
          _
        %s387 = sand.u32 %s72, 1
        %s388 = sand.u32 %s72, 1
        %s389 = smul.addr %s388, 8
        %s390 = scalar_lea.vmem [#allocation6], %s389
        // Predicated region
        $region152: #{_lambda_.23} parent=146 // pred_check
          %p391 = pneg %p85
        $region153: #{_lambda_.23} parent=146 // pred_check_branch
          %393 = sbr.rel (%p391) target = $region155
        $region154: #{_lambda_.23} parent=146 // pred_region
          _
        $region155: #{_lambda_.23} parent=146 // pred_fallthru
          _
        %s394 = sand.u32 %s100, 1
        %s395 = sand.u32 %s100, 1
        %s396 = smul.addr %s395, 8
        %s397 = scalar_lea.vmem [#allocation7], %s396
        // Predicated region
        $region156: #{_lambda_.23} parent=146 // pred_check
          %p398 = pneg %p113
        $region157: #{_lambda_.23} parent=146 // pred_check_branch
          %400 = sbr.rel (%p398) target = $region159
        $region158: #{_lambda_.23} parent=146 // pred_region
          _
        $region159: #{_lambda_.23} parent=146 // pred_fallthru
          _
        %s401 = sand.u32 %s44, 1
        %s402 = sand.u32 %s44, 1
        %s403 = smul.addr %s402, 8
        %s404 = scalar_lea.vmem [#allocation5], %s403
        %p405 = pneg %p57
        %p406 = pneg %p54
        %s407 = sand.u32 %s72, 1
        %s408 = sand.u32 %s72, 1
        %s409 = smul.addr %s408, 8
        %s410 = scalar_lea.vmem [#allocation6], %s409
        %p411 = pneg %p85
        %p412 = pneg %p82
        %s413 = sand.u32 %s100, 1
        %s414 = sand.u32 %s100, 1
        %s415 = smul.addr %s414, 8
        %s416 = scalar_lea.vmem [#allocation7], %s415
        %p417 = pneg %p113
        %p418 = pneg %p110
        %p419 = scmp.lt.s32.totalorder %s20, 1
        %s420 = scalar_select %p419, %s20, 1
        %p421 = scmp.lt.s32.totalorder %s22, 0
        %s422 = scalar_select %p421, %s22, 0
        %s423 = sadd.s32 %s422, %s420
        %s424 = scalar_lea.vmem %s3, %s423
        %p425 = pneg %p141
        %p426 = pneg %p138
        %p427 = pneg %p169
        %p428 = pneg %p166
        %s429 = smul.u32 2, %s21
        %p430 = scmp.lt.s32.totalorder %s20, 1
        %s431 = scalar_select %p430, %s20, 1
        %p432 = scmp.lt.s32.totalorder %s429, 1
        %s433 = scalar_select %p432, %s429, 1
        %s434 = smul.addr %s431, 2
        %s435 = sadd.s32 %s433, %s434
        %s436 = smul.addr %s435, 4
        %s437 = scalar_lea.vmem %s4, %s436
        %s438 = smul.u32 2, %s21
        %s439 = smul.u32 2, %s22
        %s440 = smul.u32 2, %s22
        %p441 = scmp.lt.s32.totalorder %s20, 1
        %s442 = scalar_select %p441, %s20, 1
        %p443 = scmp.lt.s32.totalorder %s22, 0
        %s444 = scalar_select %p443, %s22, 0
        %s445 = sadd.s32 %s444, %s442
        %s446 = scalar_lea.vmem %s3, %s445
        %s447 = smul.u32 2, %s21
        %p448 = scmp.lt.s32.totalorder %s20, 1
        %s449 = scalar_select %p448, %s20, 1
        %p450 = scmp.lt.s32.totalorder %s447, 1
        %s451 = scalar_select %p450, %s447, 1
        %s452 = smul.addr %s449, 2
        %s453 = sadd.s32 %s451, %s452
        %s454 = smul.addr %s453, 4
        %s455 = scalar_lea.vmem %s4, %s454
        %s456 = smul.u32 2, %s21
        %p458 = scmp.eq.s32.totalorder %s22, 0
        // Predicated region
        $region160: #{_lambda_.23} parent=146 // pred_check
          %p459 = pneg %p458
        $region161: #{_lambda_.23} parent=146 // pred_check_branch
          %461 = sbr.rel (%p459) target = $region163
        $region162: #{_lambda_.23} parent=146 // pred_region
          %vm462 = vcmask 7168
          %463 = vst.msk [vmem:[#allocation2] sm:$0xff] %vm462, -inf
          %vm464 = vcmask 6144
          %465 = vst.msk [vmem:[#allocation2 + $0x8] sm:$0x7f] %vm464, -inf
          %466 = vst.msk [vmem:[#allocation2 + $0x10] sm:$0xff] %vm462, -inf
          %467 = vst.msk [vmem:[#allocation2 + $0x18] sm:$0x7f] %vm464, -inf
          %468 = vst.msk [vmem:[#allocation2 + $0x20] sm:$0xff] %vm462, -inf
          %469 = vst.msk [vmem:[#allocation2 + $0x28] sm:$0x7f] %vm464, -inf
          %470 = vst.msk [vmem:[#allocation2 + $0x30] sm:$0xff] %vm462, -inf
          %471 = vst.msk [vmem:[#allocation2 + $0x38] sm:$0x7f] %vm464, -inf
          %472 = vst.msk [vmem:[#allocation3] sm:$0xff] %vm462, 0.0
          %473 = vst.msk [vmem:[#allocation3 + $0x8] sm:$0x7f] %vm464, 0.0
          %474 = vst.msk [vmem:[#allocation3 + $0x10] sm:$0xff] %vm462, 0.0
          %475 = vst.msk [vmem:[#allocation3 + $0x18] sm:$0x7f] %vm464, 0.0
          %476 = vst.msk [vmem:[#allocation3 + $0x20] sm:$0xff] %vm462, 0.0
          %477 = vst.msk [vmem:[#allocation3 + $0x28] sm:$0x7f] %vm464, 0.0
          %478 = vst.msk [vmem:[#allocation3 + $0x30] sm:$0xff] %vm462, 0.0
          %479 = vst.msk [vmem:[#allocation3 + $0x38] sm:$0x7f] %vm464, 0.0
          %vm480 = vcmask 261120
          %481 = vst.msk [vmem:[#allocation4] sm:$0xff] %vm480, 0.0
          %vm482 = vcmask 260096
          %483 = vst.msk [vmem:[#allocation4 + $0x8] sm:$0x7f] %vm482, 0.0
          %484 = vst.msk [vmem:[#allocation4 + $0x10] sm:$0xff] %vm480, 0.0
          %485 = vst.msk [vmem:[#allocation4 + $0x18] sm:$0x7f] %vm482, 0.0
          %486 = vst.msk [vmem:[#allocation4 + $0x20] sm:$0xff] %vm480, 0.0
          %487 = vst.msk [vmem:[#allocation4 + $0x28] sm:$0x7f] %vm482, 0.0
          %488 = vst.msk [vmem:[#allocation4 + $0x30] sm:$0xff] %vm480, 0.0
          %489 = vst.msk [vmem:[#allocation4 + $0x38] sm:$0x7f] %vm482, 0.0
        $region163: #{_lambda_.23} parent=146 // pred_fallthru
          _
        %v490 = vld [vmem:[%s446] sm:$0x1]
        %v491 = vld [vmem:[%s383] sm:$0xf]
        %v492 = vld [vmem:[%s383 + $0x4] sm:$0xf]
        %v493 = vld [vmem:[%s390] sm:$0xf]
        %v494 = vld [vmem:[%s390 + $0x4] sm:$0xf]
        %v495 = vld [vmem:[%s397] sm:$0xf]
        %v496 = vld [vmem:[%s397 + $0x4] sm:$0xf]
        %v498 = vperm.slane %v490, 0
        %v502 = vunpack.c.l.b16 %v491
        %v503 = vunpack.c.l.b16 %v492
        %v504 = vpack.c.b16 %v503, %v502
        %v507 = vunpack.c.l.b16 %v493
        %v508 = vunpack.c.l.b16 %v494
        %v509 = vpack.c.b16 %v508, %v507
        %vm510 = vcmask 261120
        %v512 = vsel %vm510, %v504, 0
        %v515 = vsel %vm510, %v509, 0
        %517 = vmatpush.bf16.xpose.msra.mxu0 0
        %518 = vmatpush.bf16.xpose.msra.mxu0 0
        %519 = vmatpush.bf16.xpose.msra.mxu0 0
        %520 = vmatpush.bf16.xpose.msra.mxu0 0
        %521 = vmatpush.bf16.xpose.msra.mxu0 0
        %522 = vmatpush.bf16.xpose.msra.mxu0 0
        %523 = vmatpush.bf16.xpose.msra.mxu0 0
        %524 = vmatpush.bf16.xpose.msra.mxu0 %v515
        %525 = vmatmul.bf16.gmra.mxu0 %v512
        %v526 = vpop.f32.mrf.mxu0
        %v527 = vadd.f32 %v498, %v526
        %v528 = vpop.f32.mrf.mxu0
        %v529 = vadd.f32 %v498, %v528
        %530 = vdwg.mxu0
        %v531 = vld [vmem:[#allocation2] sm:$0xff]
        %v532 = vld [vmem:[#allocation2 + $0x8] sm:$0x7f]
        %vm533 = vcmask 121856
        %v534 = vsel %vm533, %v527, -inf
        %535 = vmax.xlane.f32.xlu0 %v534
        %v536 = vpop.xlane.xlu0 %535
        %vm537 = vcmask 120832
        %v538 = vsel %vm537, %v529, -inf
        %539 = vmax.xlane.f32.xlu0 %v538
        %v540 = vpop.xlane.xlu0 %539
        %v541 = vmax.f32 %v531, %v536
        %v542 = vmax.f32 %v532, %v540
        %v543 = vsub.f32 %v531, %v541
        %v544 = vsub.f32 %v532, %v542
        %v545 = vmul.f32 %v543, 1.442695
        %v546 = vpow.pop %v545
        %v547 = vmul.f32 %v544, 1.442695
        %v548 = vpow.pop %v547
        %550 = vset.pattern.permute.xlu0 0
        %551 = vperm.xlu0 %550, %v541
        %v552 = vpop.permute.xlu0 %551
        %555 = vset.pattern.permute.xlu0 0
        %556 = vperm.xlu0 %555, %v542
        %v557 = vpop.permute.xlu0 %556
        %v559 = vsub.f32 %v527, %v552
        %v560 = vsub.f32 %v529, %v557
        %v561 = vmul.f32 %v559, 1.442695
        %v562 = vpow.pop %v561
        %v563 = vmul.f32 %v560, 1.442695
        %v564 = vpow.pop %v563
        %v565 = vld [vmem:[#allocation3] sm:$0xff]
        %v566 = vld [vmem:[#allocation3 + $0x8] sm:$0x7f]
        %v567 = vmul.f32 %v546, %v565
        %v568 = vmul.f32 %v548, %v566
        %v569 = vsel %vm533, %v562, 0.0
        %570 = vadd.xlane.f32.xlu0 %v569
        %v571 = vpop.xlane.xlu0 %570
        %v572 = vsel %vm537, %v564, 0.0
        %573 = vadd.xlane.f32.xlu0 %v572
        %v574 = vpop.xlane.xlu0 %573
        %v575 = vadd.f32 %v567, %v571
        %v576 = vadd.f32 %v568, %v574
        %vm577 = vcmask 7168
        %578 = vst.msk [vmem:[#allocation3] sm:$0xff] %vm577, %v575
        %vm579 = vcmask 6144
        %580 = vst.msk [vmem:[#allocation3 + $0x8] sm:$0x7f] %vm579, %v576
        %v581 = vld [vmem:[#allocation4] sm:$0xff]
        %v582 = vld [vmem:[#allocation4 + $0x8] sm:$0x7f]
        %584 = vset.pattern.permute.xlu0 0
        %585 = vperm.xlu0 %584, %v546
        %v586 = vpop.permute.xlu0 %585
        %589 = vset.pattern.permute.xlu0 0
        %590 = vperm.xlu0 %589, %v548
        %v591 = vpop.permute.xlu0 %590
        %v593 = vmul.f32 %v586, %v581
        %v594 = vmul.f32 %v591, %v582
        %v595 = vpack.c.bf16 %v564, %v562
        %v598 = vunpack.c.l.b16 %v495
        %v599 = vunpack.c.l.b16 %v496
        %v600 = vpack.c.b16 %v599, %v598
        %v602 = vsel %vm533, %v595, 0
        %vm604 = vcmask 1046528
        %vm605 = vcmask 1047552
        %v606 = vsel %vm604, 4294967295, 65535
        %v607 = vsel %vm605, %v606, 0
        %v609 = vand.u32 %v600, %v607
        %611 = vmatpush.bf16.msra.mxu0 0
        %612 = vmatpush.bf16.msra.mxu0 0
        %613 = vmatpush.bf16.msra.mxu0 0
        %614 = vmatpush.bf16.msra.mxu0 0
        %615 = vmatpush.bf16.msra.mxu0 0
        %616 = vmatpush.bf16.msra.mxu0 0
        %617 = vmatpush.bf16.msra.mxu0 0
        %618 = vmatpush.bf16.msra.mxu0 %v609
        %619 = vmatmul.bf16.gmra.mxu0 %v602
        %v620 = vpop.f32.mrf.mxu0
        %v621 = vadd.f32 0.0, %v620
        %v622 = vpop.f32.mrf.mxu0
        %v623 = vadd.f32 0.0, %v622
        %624 = vdwg.mxu0
        %v625 = vadd.f32 %v593, %v621
        %v626 = vadd.f32 %v594, %v623
        %627 = vst.msk [vmem:[#allocation4] sm:$0xff] %vm510, %v625
        %vm628 = vcmask 260096
        %629 = vst.msk [vmem:[#allocation4 + $0x8] sm:$0x7f] %vm628, %v626
        %630 = vst.msk [vmem:[#allocation2] sm:$0xff] %vm577, %v541
        %631 = vst.msk [vmem:[#allocation2 + $0x8] sm:$0x7f] %vm579, %v542
        %v632 = vld [vmem:[%s383] sm:$0xf]
        %v633 = vld [vmem:[%s383 + $0x4] sm:$0xf]
        %v634 = vld [vmem:[%s390] sm:$0xf]
        %v635 = vld [vmem:[%s390 + $0x4] sm:$0xf]
        %v636 = vld [vmem:[%s397] sm:$0xf]
        %v637 = vld [vmem:[%s397 + $0x4] sm:$0xf]
        %v640 = vunpack.c.l.b16 %v632
        %v641 = vunpack.c.l.b16 %v633
        %v642 = vpack.c.b16 %v641, %v640
        %643 = vrot.lane.b32.xlu0 %v642, 96
        %v644 = vpop.permute.xlu0 %643
        %v647 = vunpack.c.l.b16 %v634
        %v648 = vunpack.c.l.b16 %v635
        %v649 = vpack.c.b16 %v648, %v647
        %650 = vrot.lane.b32.xlu0 %v649, 96
        %v651 = vpop.permute.xlu0 %650
        %v653 = vsel %vm510, %v644, 0
        %v656 = vsel %vm510, %v651, 0
        %658 = vmatpush.bf16.xpose.msra.mxu0 0
        %659 = vmatpush.bf16.xpose.msra.mxu0 0
        %660 = vmatpush.bf16.xpose.msra.mxu0 0
        %661 = vmatpush.bf16.xpose.msra.mxu0 0
        %662 = vmatpush.bf16.xpose.msra.mxu0 0
        %663 = vmatpush.bf16.xpose.msra.mxu0 0
        %664 = vmatpush.bf16.xpose.msra.mxu0 0
        %665 = vmatpush.bf16.xpose.msra.mxu0 %v656
        %666 = vmatmul.bf16.gmra.mxu0 %v653
        %v667 = vpop.f32.mrf.mxu0
        %v668 = vadd.f32 %v498, %v667
        %v669 = vpop.f32.mrf.mxu0
        %v670 = vadd.f32 %v498, %v669
        %671 = vdwg.mxu0
        %s672 = scalar_lea.vmem [#allocation2], 16
        %v673 = vld [vmem:[%s672] sm:$0xff]
        %v674 = vld [vmem:[%s672 + $0x8] sm:$0x7f]
        %v675 = vsel %vm533, %v668, -inf
        %676 = vmax.xlane.f32.xlu0 %v675
        %v677 = vpop.xlane.xlu0 %676
        %v678 = vsel %vm537, %v670, -inf
        %679 = vmax.xlane.f32.xlu0 %v678
        %v680 = vpop.xlane.xlu0 %679
        %v681 = vmax.f32 %v673, %v677
        %v682 = vmax.f32 %v674, %v680
        %v683 = vsub.f32 %v673, %v681
        %v684 = vsub.f32 %v674, %v682
        %v685 = vmul.f32 %v683, 1.442695
        %v686 = vpow.pop %v685
        %v687 = vmul.f32 %v684, 1.442695
        %v688 = vpow.pop %v687
        %690 = vset.pattern.permute.xlu0 0
        %691 = vperm.xlu0 %690, %v681
        %v692 = vpop.permute.xlu0 %691
        %695 = vset.pattern.permute.xlu0 0
        %696 = vperm.xlu0 %695, %v682
        %v697 = vpop.permute.xlu0 %696
        %v699 = vsub.f32 %v668, %v692
        %v700 = vsub.f32 %v670, %v697
        %v701 = vmul.f32 %v699, 1.442695
        %v702 = vpow.pop %v701
        %v703 = vmul.f32 %v700, 1.442695
        %v704 = vpow.pop %v703
        %s705 = scalar_lea.vmem [#allocation3], 16
        %v706 = vld [vmem:[%s705] sm:$0xff]
        %v707 = vld [vmem:[%s705 + $0x8] sm:$0x7f]
        %v708 = vmul.f32 %v686, %v706
        %v709 = vmul.f32 %v688, %v707
        %v710 = vsel %vm533, %v702, 0.0
        %711 = vadd.xlane.f32.xlu0 %v710
        %v712 = vpop.xlane.xlu0 %711
        %v713 = vsel %vm537, %v704, 0.0
        %714 = vadd.xlane.f32.xlu0 %v713
        %v715 = vpop.xlane.xlu0 %714
        %v716 = vadd.f32 %v708, %v712
        %v717 = vadd.f32 %v709, %v715
        %718 = vst.msk [vmem:[%s705] sm:$0xff] %vm577, %v716
        %719 = vst.msk [vmem:[%s705 + $0x8] sm:$0x7f] %vm579, %v717
        %s720 = scalar_lea.vmem [#allocation4], 16
        %v721 = vld [vmem:[%s720] sm:$0xff]
        %v722 = vld [vmem:[%s720 + $0x8] sm:$0x7f]
        %724 = vset.pattern.permute.xlu0 0
        %725 = vperm.xlu0 %724, %v686
        %v726 = vpop.permute.xlu0 %725
        %729 = vset.pattern.permute.xlu0 0
        %730 = vperm.xlu0 %729, %v688
        %v731 = vpop.permute.xlu0 %730
        %v733 = vmul.f32 %v726, %v721
        %v734 = vmul.f32 %v731, %v722
        %v735 = vpack.c.bf16 %v704, %v702
        %v738 = vunpack.c.l.b16 %v636
        %v739 = vunpack.c.l.b16 %v637
        %v740 = vpack.c.b16 %v739, %v738
        %741 = vrot.lane.b32.xlu0 %v740, 96
        %v742 = vpop.permute.xlu0 %741
        %v744 = vsel %vm533, %v735, 0
        %v747 = vand.u32 %v742, %v607
        %749 = vmatpush.bf16.msra.mxu0 0
        %750 = vmatpush.bf16.msra.mxu0 0
        %751 = vmatpush.bf16.msra.mxu0 0
        %752 = vmatpush.bf16.msra.mxu0 0
        %753 = vmatpush.bf16.msra.mxu0 0
        %754 = vmatpush.bf16.msra.mxu0 0
        %755 = vmatpush.bf16.msra.mxu0 0
        %756 = vmatpush.bf16.msra.mxu0 %v747
        %757 = vmatmul.bf16.gmra.mxu0 %v744
        %v758 = vpop.f32.mrf.mxu0
        %v759 = vadd.f32 0.0, %v758
        %v760 = vpop.f32.mrf.mxu0
        %v761 = vadd.f32 0.0, %v760
        %762 = vdwg.mxu0
        %v763 = vadd.f32 %v733, %v759
        %v764 = vadd.f32 %v734, %v761
        %765 = vst.msk [vmem:[%s720] sm:$0xff] %vm510, %v763
        %766 = vst.msk [vmem:[%s720 + $0x8] sm:$0x7f] %vm628, %v764
        %767 = vst.msk [vmem:[%s672] sm:$0xff] %vm577, %v681
        %768 = vst.msk [vmem:[%s672 + $0x8] sm:$0x7f] %vm579, %v682
        %v769 = vld [vmem:[%s383] sm:$0xf]
        %v770 = vld [vmem:[%s383 + $0x4] sm:$0xf]
        %v771 = vld [vmem:[%s390] sm:$0xf]
        %v772 = vld [vmem:[%s390 + $0x4] sm:$0xf]
        %v773 = vld [vmem:[%s397] sm:$0xf]
        %v774 = vld [vmem:[%s397 + $0x4] sm:$0xf]
        %v777 = vunpack.c.l.b16 %v769
        %v778 = vunpack.c.l.b16 %v770
        %v779 = vpack.c.b16 %v778, %v777
        %780 = vrot.lane.b32.xlu0 %v779, 64
        %v781 = vpop.permute.xlu0 %780
        %v784 = vunpack.c.l.b16 %v771
        %v785 = vunpack.c.l.b16 %v772
        %v786 = vpack.c.b16 %v785, %v784
        %787 = vrot.lane.b32.xlu0 %v786, 64
        %v788 = vpop.permute.xlu0 %787
        %v790 = vsel %vm510, %v781, 0
        %v793 = vsel %vm510, %v788, 0
        %795 = vmatpush.bf16.xpose.msra.mxu0 0
        %796 = vmatpush.bf16.xpose.msra.mxu0 0
        %797 = vmatpush.bf16.xpose.msra.mxu0 0
        %798 = vmatpush.bf16.xpose.msra.mxu0 0
        %799 = vmatpush.bf16.xpose.msra.mxu0 0
        %800 = vmatpush.bf16.xpose.msra.mxu0 0
        %801 = vmatpush.bf16.xpose.msra.mxu0 0
        %802 = vmatpush.bf16.xpose.msra.mxu0 %v793
        %803 = vmatmul.bf16.gmra.mxu0 %v790
        %v804 = vpop.f32.mrf.mxu0
        %v805 = vadd.f32 %v498, %v804
        %v806 = vpop.f32.mrf.mxu0
        %v807 = vadd.f32 %v498, %v806
        %808 = vdwg.mxu0
        %s809 = scalar_lea.vmem [#allocation2], 32
        %v810 = vld [vmem:[%s809] sm:$0xff]
        %v811 = vld [vmem:[%s809 + $0x8] sm:$0x7f]
        %v812 = vsel %vm533, %v805, -inf
        %813 = vmax.xlane.f32.xlu0 %v812
        %v814 = vpop.xlane.xlu0 %813
        %v815 = vsel %vm537, %v807, -inf
        %816 = vmax.xlane.f32.xlu0 %v815
        %v817 = vpop.xlane.xlu0 %816
        %v818 = vmax.f32 %v810, %v814
        %v819 = vmax.f32 %v811, %v817
        %v820 = vsub.f32 %v810, %v818
        %v821 = vsub.f32 %v811, %v819
        %v822 = vmul.f32 %v820, 1.442695
        %v823 = vpow.pop %v822
        %v824 = vmul.f32 %v821, 1.442695
        %v825 = vpow.pop %v824
        %827 = vset.pattern.permute.xlu0 0
        %828 = vperm.xlu0 %827, %v818
        %v829 = vpop.permute.xlu0 %828
        %832 = vset.pattern.permute.xlu0 0
        %833 = vperm.xlu0 %832, %v819
        %v834 = vpop.permute.xlu0 %833
        %v836 = vsub.f32 %v805, %v829
        %v837 = vsub.f32 %v807, %v834
        %v838 = vmul.f32 %v836, 1.442695
        %v839 = vpow.pop %v838
        %v840 = vmul.f32 %v837, 1.442695
        %v841 = vpow.pop %v840
        %s842 = scalar_lea.vmem [#allocation3], 32
        %v843 = vld [vmem:[%s842] sm:$0xff]
        %v844 = vld [vmem:[%s842 + $0x8] sm:$0x7f]
        %v845 = vmul.f32 %v823, %v843
        %v846 = vmul.f32 %v825, %v844
        %v847 = vsel %vm533, %v839, 0.0
        %848 = vadd.xlane.f32.xlu0 %v847
        %v849 = vpop.xlane.xlu0 %848
        %v850 = vsel %vm537, %v841, 0.0
        %851 = vadd.xlane.f32.xlu0 %v850
        %v852 = vpop.xlane.xlu0 %851
        %v853 = vadd.f32 %v845, %v849
        %v854 = vadd.f32 %v846, %v852
        %855 = vst.msk [vmem:[%s842] sm:$0xff] %vm577, %v853
        %856 = vst.msk [vmem:[%s842 + $0x8] sm:$0x7f] %vm579, %v854
        %s857 = scalar_lea.vmem [#allocation4], 32
        %v858 = vld [vmem:[%s857] sm:$0xff]
        %v859 = vld [vmem:[%s857 + $0x8] sm:$0x7f]
        %861 = vset.pattern.permute.xlu0 0
        %862 = vperm.xlu0 %861, %v823
        %v863 = vpop.permute.xlu0 %862
        %866 = vset.pattern.permute.xlu0 0
        %867 = vperm.xlu0 %866, %v825
        %v868 = vpop.permute.xlu0 %867
        %v870 = vmul.f32 %v863, %v858
        %v871 = vmul.f32 %v868, %v859
        %v872 = vpack.c.bf16 %v841, %v839
        %v875 = vunpack.c.l.b16 %v773
        %v876 = vunpack.c.l.b16 %v774
        %v877 = vpack.c.b16 %v876, %v875
        %878 = vrot.lane.b32.xlu0 %v877, 64
        %v879 = vpop.permute.xlu0 %878
        %v881 = vsel %vm533, %v872, 0
        %v884 = vand.u32 %v879, %v607
        %886 = vmatpush.bf16.msra.mxu0 0
        %887 = vmatpush.bf16.msra.mxu0 0
        %888 = vmatpush.bf16.msra.mxu0 0
        %889 = vmatpush.bf16.msra.mxu0 0
        %890 = vmatpush.bf16.msra.mxu0 0
        %891 = vmatpush.bf16.msra.mxu0 0
        %892 = vmatpush.bf16.msra.mxu0 0
        %893 = vmatpush.bf16.msra.mxu0 %v884
        %894 = vmatmul.bf16.gmra.mxu0 %v881
        %v895 = vpop.f32.mrf.mxu0
        %v896 = vadd.f32 0.0, %v895
        %v897 = vpop.f32.mrf.mxu0
        %v898 = vadd.f32 0.0, %v897
        %899 = vdwg.mxu0
        %v900 = vadd.f32 %v870, %v896
        %v901 = vadd.f32 %v871, %v898
        %902 = vst.msk [vmem:[%s857] sm:$0xff] %vm510, %v900
        %903 = vst.msk [vmem:[%s857 + $0x8] sm:$0x7f] %vm628, %v901
        %904 = vst.msk [vmem:[%s809] sm:$0xff] %vm577, %v818
        %905 = vst.msk [vmem:[%s809 + $0x8] sm:$0x7f] %vm579, %v819
        %v906 = vld [vmem:[%s383] sm:$0xf]
        %v907 = vld [vmem:[%s383 + $0x4] sm:$0xf]
        %v908 = vld [vmem:[%s390] sm:$0xf]
        %v909 = vld [vmem:[%s390 + $0x4] sm:$0xf]
        %v910 = vld [vmem:[%s397] sm:$0xf]
        %v911 = vld [vmem:[%s397 + $0x4] sm:$0xf]
        %v914 = vunpack.c.l.b16 %v906
        %v915 = vunpack.c.l.b16 %v907
        %v916 = vpack.c.b16 %v915, %v914
        %917 = vrot.lane.b32.xlu0 %v916, 32
        %v918 = vpop.permute.xlu0 %917
        %v921 = vunpack.c.l.b16 %v908
        %v922 = vunpack.c.l.b16 %v909
        %v923 = vpack.c.b16 %v922, %v921
        %924 = vrot.lane.b32.xlu0 %v923, 32
        %v925 = vpop.permute.xlu0 %924
        %v927 = vsel %vm510, %v918, 0
        %v930 = vsel %vm510, %v925, 0
        %932 = vmatpush.bf16.xpose.msra.mxu0 0
        %933 = vmatpush.bf16.xpose.msra.mxu0 0
        %934 = vmatpush.bf16.xpose.msra.mxu0 0
        %935 = vmatpush.bf16.xpose.msra.mxu0 0
        %936 = vmatpush.bf16.xpose.msra.mxu0 0
        %937 = vmatpush.bf16.xpose.msra.mxu0 0
        %938 = vmatpush.bf16.xpose.msra.mxu0 0
        %939 = vmatpush.bf16.xpose.msra.mxu0 %v930
        %940 = vmatmul.bf16.gmra.mxu0 %v927
        %v941 = vpop.f32.mrf.mxu0
        %v942 = vadd.f32 %v498, %v941
        %v943 = vpop.f32.mrf.mxu0
        %v944 = vadd.f32 %v498, %v943
        %945 = vdwg.mxu0
        %s946 = scalar_lea.vmem [#allocation2], 48
        %v947 = vld [vmem:[%s946] sm:$0xff]
        %v948 = vld [vmem:[%s946 + $0x8] sm:$0x7f]
        %v949 = vsel %vm533, %v942, -inf
        %950 = vmax.xlane.f32.xlu0 %v949
        %v951 = vpop.xlane.xlu0 %950
        %v952 = vsel %vm537, %v944, -inf
        %953 = vmax.xlane.f32.xlu0 %v952
        %v954 = vpop.xlane.xlu0 %953
        %v955 = vmax.f32 %v947, %v951
        %v956 = vmax.f32 %v948, %v954
        %v957 = vsub.f32 %v947, %v955
        %v958 = vsub.f32 %v948, %v956
        %v959 = vmul.f32 %v957, 1.442695
        %v960 = vpow.pop %v959
        %v961 = vmul.f32 %v958, 1.442695
        %v962 = vpow.pop %v961
        %964 = vset.pattern.permute.xlu0 0
        %965 = vperm.xlu0 %964, %v955
        %v966 = vpop.permute.xlu0 %965
        %969 = vset.pattern.permute.xlu0 0
        %970 = vperm.xlu0 %969, %v956
        %v971 = vpop.permute.xlu0 %970
        %v973 = vsub.f32 %v942, %v966
        %v974 = vsub.f32 %v944, %v971
        %v975 = vmul.f32 %v973, 1.442695
        %v976 = vpow.pop %v975
        %v977 = vmul.f32 %v974, 1.442695
        %v978 = vpow.pop %v977
        %s979 = scalar_lea.vmem [#allocation3], 48
        %v980 = vld [vmem:[%s979] sm:$0xff]
        %v981 = vld [vmem:[%s979 + $0x8] sm:$0x7f]
        %v982 = vmul.f32 %v960, %v980
        %v983 = vmul.f32 %v962, %v981
        %v984 = vsel %vm533, %v976, 0.0
        %985 = vadd.xlane.f32.xlu0 %v984
        %v986 = vpop.xlane.xlu0 %985
        %v987 = vsel %vm537, %v978, 0.0
        %988 = vadd.xlane.f32.xlu0 %v987
        %v989 = vpop.xlane.xlu0 %988
        %v990 = vadd.f32 %v982, %v986
        %v991 = vadd.f32 %v983, %v989
        %992 = vst.msk [vmem:[%s979] sm:$0xff] %vm577, %v990
        %993 = vst.msk [vmem:[%s979 + $0x8] sm:$0x7f] %vm579, %v991
        %s994 = scalar_lea.vmem [#allocation4], 48
        %v995 = vld [vmem:[%s994] sm:$0xff]
        %v996 = vld [vmem:[%s994 + $0x8] sm:$0x7f]
        %998 = vset.pattern.permute.xlu0 0
        %999 = vperm.xlu0 %998, %v960
        %v1000 = vpop.permute.xlu0 %999
        %1003 = vset.pattern.permute.xlu0 0
        %1004 = vperm.xlu0 %1003, %v962
        %v1005 = vpop.permute.xlu0 %1004
        %v1007 = vmul.f32 %v1000, %v995
        %v1008 = vmul.f32 %v1005, %v996
        %v1009 = vpack.c.bf16 %v978, %v976
        %v1012 = vunpack.c.l.b16 %v910
        %v1013 = vunpack.c.l.b16 %v911
        %v1014 = vpack.c.b16 %v1013, %v1012
        %1015 = vrot.lane.b32.xlu0 %v1014, 32
        %v1016 = vpop.permute.xlu0 %1015
        %v1018 = vsel %vm533, %v1009, 0
        %v1021 = vand.u32 %v1016, %v607
        %1023 = vmatpush.bf16.msra.mxu0 0
        %1024 = vmatpush.bf16.msra.mxu0 0
        %1025 = vmatpush.bf16.msra.mxu0 0
        %1026 = vmatpush.bf16.msra.mxu0 0
        %1027 = vmatpush.bf16.msra.mxu0 0
        %1028 = vmatpush.bf16.msra.mxu0 0
        %1029 = vmatpush.bf16.msra.mxu0 0
        %1030 = vmatpush.bf16.msra.mxu0 %v1021
        %1031 = vmatmul.bf16.gmra.mxu0 %v1018
        %v1032 = vpop.f32.mrf.mxu0
        %v1033 = vadd.f32 0.0, %v1032
        %v1034 = vpop.f32.mrf.mxu0
        %v1035 = vadd.f32 0.0, %v1034
        %1036 = vdwg.mxu0
        %v1037 = vadd.f32 %v1007, %v1033
        %v1038 = vadd.f32 %v1008, %v1035
        %1039 = vst.msk [vmem:[%s994] sm:$0xff] %vm510, %v1037
        %1040 = vst.msk [vmem:[%s994 + $0x8] sm:$0x7f] %vm628, %v1038
        %1041 = vst.msk [vmem:[%s946] sm:$0xff] %vm577, %v955
        %1042 = vst.msk [vmem:[%s946 + $0x8] sm:$0x7f] %vm579, %v956
        // Predicated region
        $region164: #{_lambda_.23} parent=146 // pred_check
          %p1043 = pneg %p458
        $region165: #{_lambda_.23} parent=146 // pred_check_branch
          %1045 = sbr.rel (%p1043) target = $region167
        $region166: #{_lambda_.23} parent=146 // pred_region
          %v1046 = vld [vmem:[#allocation4] sm:$0xff]
          %v1047 = vld [vmem:[#allocation4 + $0x8] sm:$0x7f]
          %v1048 = vld [vmem:[#allocation3] sm:$0xff]
          %v1049 = vld [vmem:[#allocation3 + $0x8] sm:$0x7f]
          %1051 = vset.pattern.permute.xlu0 0
          %1052 = vperm.xlu0 %1051, %v1048
          %v1053 = vpop.permute.xlu0 %1052
          %1056 = vset.pattern.permute.xlu0 0
          %1057 = vperm.xlu0 %1056, %v1049
          %v1058 = vpop.permute.xlu0 %1057
          %v1060 = vrcp.pop %v1053
          %v1061 = vmul.f32 %v1053, %v1060
          %v1062 = vsub.f32 1.0, %v1061
          %v1063 = vmul.f32 %v1060, %v1062
          %v1064 = vadd.f32 %v1060, %v1063
          %vm1065 = vweird.f32 %v1053
          %vm1066 = vweird.f32 %v1060
          %vm1067 = vmor %vm1065, %vm1066
          %v1068 = vsel %vm1067, %v1060, %v1064
          %v1069 = vand.u32 2147483647, %v1053
          %vm1070 = vcmp.eq.f32.partialorder %v1069, 8.507059e+37
          %v1071 = vand.u32 %v1053, 2147483648
          %v1072 = vor.u32 1.1754944e-38, %v1071
          %v1073 = vsel %vm1070, %v1072, %v1068
          %v1074 = vmul.f32 %v1046, %v1073
          %v1075 = vrcp.pop %v1058
          %v1076 = vmul.f32 %v1058, %v1075
          %v1077 = vsub.f32 1.0, %v1076
          %v1078 = vmul.f32 %v1075, %v1077
          %v1079 = vadd.f32 %v1075, %v1078
          %vm1080 = vweird.f32 %v1058
          %vm1081 = vweird.f32 %v1075
          %vm1082 = vmor %vm1080, %vm1081
          %v1083 = vsel %vm1082, %v1075, %v1079
          %v1084 = vand.u32 2147483647, %v1058
          %vm1085 = vcmp.eq.f32.partialorder %v1084, 8.507059e+37
          %v1086 = vand.u32 %v1058, 2147483648
          %v1087 = vor.u32 1.1754944e-38, %v1086
          %v1088 = vsel %vm1085, %v1087, %v1083
          %v1089 = vmul.f32 %v1047, %v1088
          %v1090 = vld [vmem:[%s720] sm:$0xff]
          %v1091 = vld [vmem:[%s720 + $0x8] sm:$0x7f]
          %v1092 = vld [vmem:[%s705] sm:$0xff]
          %v1093 = vld [vmem:[%s705 + $0x8] sm:$0x7f]
          %1095 = vset.pattern.permute.xlu0 0
          %1096 = vperm.xlu0 %1095, %v1092
          %v1097 = vpop.permute.xlu0 %1096
          %1100 = vset.pattern.permute.xlu0 0
          %1101 = vperm.xlu0 %1100, %v1093
          %v1102 = vpop.permute.xlu0 %1101
          %v1104 = vrcp.pop %v1097
          %v1105 = vmul.f32 %v1097, %v1104
          %v1106 = vsub.f32 1.0, %v1105
          %v1107 = vmul.f32 %v1104, %v1106
          %v1108 = vadd.f32 %v1104, %v1107
          %vm1109 = vweird.f32 %v1097
          %vm1110 = vweird.f32 %v1104
          %vm1111 = vmor %vm1109, %vm1110
          %v1112 = vsel %vm1111, %v1104, %v1108
          %v1113 = vand.u32 2147483647, %v1097
          %vm1114 = vcmp.eq.f32.partialorder %v1113, 8.507059e+37
          %v1115 = vand.u32 %v1097, 2147483648
          %v1116 = vor.u32 1.1754944e-38, %v1115
          %v1117 = vsel %vm1114, %v1116, %v1112
          %v1118 = vmul.f32 %v1090, %v1117
          %v1119 = vrcp.pop %v1102
          %v1120 = vmul.f32 %v1102, %v1119
          %v1121 = vsub.f32 1.0, %v1120
          %v1122 = vmul.f32 %v1119, %v1121
          %v1123 = vadd.f32 %v1119, %v1122
          %vm1124 = vweird.f32 %v1102
          %vm1125 = vweird.f32 %v1119
          %vm1126 = vmor %vm1124, %vm1125
          %v1127 = vsel %vm1126, %v1119, %v1123
          %v1128 = vand.u32 2147483647, %v1102
          %vm1129 = vcmp.eq.f32.partialorder %v1128, 8.507059e+37
          %v1130 = vand.u32 %v1102, 2147483648
          %v1131 = vor.u32 1.1754944e-38, %v1130
          %v1132 = vsel %vm1129, %v1131, %v1127
          %v1133 = vmul.f32 %v1091, %v1132
          %v1134 = vld [vmem:[%s857] sm:$0xff]
          %v1135 = vld [vmem:[%s857 + $0x8] sm:$0x7f]
          %v1136 = vld [vmem:[%s842] sm:$0xff]
          %v1137 = vld [vmem:[%s842 + $0x8] sm:$0x7f]
          %1139 = vset.pattern.permute.xlu0 0
          %1140 = vperm.xlu0 %1139, %v1136
          %v1141 = vpop.permute.xlu0 %1140
          %1144 = vset.pattern.permute.xlu0 0
          %1145 = vperm.xlu0 %1144, %v1137
          %v1146 = vpop.permute.xlu0 %1145
          %v1148 = vrcp.pop %v1141
          %v1149 = vmul.f32 %v1141, %v1148
          %v1150 = vsub.f32 1.0, %v1149
          %v1151 = vmul.f32 %v1148, %v1150
          %v1152 = vadd.f32 %v1148, %v1151
          %vm1153 = vweird.f32 %v1141
          %vm1154 = vweird.f32 %v1148
          %vm1155 = vmor %vm1153, %vm1154
          %v1156 = vsel %vm1155, %v1148, %v1152
          %v1157 = vand.u32 2147483647, %v1141
          %vm1158 = vcmp.eq.f32.partialorder %v1157, 8.507059e+37
          %v1159 = vand.u32 %v1141, 2147483648
          %v1160 = vor.u32 1.1754944e-38, %v1159
          %v1161 = vsel %vm1158, %v1160, %v1156
          %v1162 = vmul.f32 %v1134, %v1161
          %v1163 = vrcp.pop %v1146
          %v1164 = vmul.f32 %v1146, %v1163
          %v1165 = vsub.f32 1.0, %v1164
          %v1166 = vmul.f32 %v1163, %v1165
          %v1167 = vadd.f32 %v1163, %v1166
          %vm1168 = vweird.f32 %v1146
          %vm1169 = vweird.f32 %v1163
          %vm1170 = vmor %vm1168, %vm1169
          %v1171 = vsel %vm1170, %v1163, %v1167
          %v1172 = vand.u32 2147483647, %v1146
          %vm1173 = vcmp.eq.f32.partialorder %v1172, 8.507059e+37
          %v1174 = vand.u32 %v1146, 2147483648
          %v1175 = vor.u32 1.1754944e-38, %v1174
          %v1176 = vsel %vm1173, %v1175, %v1171
          %v1177 = vmul.f32 %v1135, %v1176
          %v1178 = vld [vmem:[%s994] sm:$0xff]
          %v1179 = vld [vmem:[%s994 + $0x8] sm:$0x7f]
          %v1180 = vld [vmem:[%s979] sm:$0xff]
          %v1181 = vld [vmem:[%s979 + $0x8] sm:$0x7f]
          %1183 = vset.pattern.permute.xlu0 0
          %1184 = vperm.xlu0 %1183, %v1180
          %v1185 = vpop.permute.xlu0 %1184
          %1188 = vset.pattern.permute.xlu0 0
          %1189 = vperm.xlu0 %1188, %v1181
          %v1190 = vpop.permute.xlu0 %1189
          %v1192 = vrcp.pop %v1185
          %v1193 = vmul.f32 %v1185, %v1192
          %v1194 = vsub.f32 1.0, %v1193
          %v1195 = vmul.f32 %v1192, %v1194
          %v1196 = vadd.f32 %v1192, %v1195
          %vm1197 = vweird.f32 %v1185
          %vm1198 = vweird.f32 %v1192
          %vm1199 = vmor %vm1197, %vm1198
          %v1200 = vsel %vm1199, %v1192, %v1196
          %v1201 = vand.u32 2147483647, %v1185
          %vm1202 = vcmp.eq.f32.partialorder %v1201, 8.507059e+37
          %v1203 = vand.u32 %v1185, 2147483648
          %v1204 = vor.u32 1.1754944e-38, %v1203
          %v1205 = vsel %vm1202, %v1204, %v1200
          %v1206 = vmul.f32 %v1178, %v1205
          %v1207 = vrcp.pop %v1190
          %v1208 = vmul.f32 %v1190, %v1207
          %v1209 = vsub.f32 1.0, %v1208
          %v1210 = vmul.f32 %v1207, %v1209
          %v1211 = vadd.f32 %v1207, %v1210
          %vm1212 = vweird.f32 %v1190
          %vm1213 = vweird.f32 %v1207
          %vm1214 = vmor %vm1212, %vm1213
          %v1215 = vsel %vm1214, %v1207, %v1211
          %v1216 = vand.u32 2147483647, %v1190
          %vm1217 = vcmp.eq.f32.partialorder %v1216, 8.507059e+37
          %v1218 = vand.u32 %v1190, 2147483648
          %v1219 = vor.u32 1.1754944e-38, %v1218
          %v1220 = vsel %vm1217, %v1219, %v1215
          %v1221 = vmul.f32 %v1179, %v1220
          %1224 = vrot.lane.b32.xlu0 %v1118, 32
          %v1225 = vpop.permute.xlu0 %1224
          %1226 = vrot.lane.b32.xlu0 %v1133, 32
          %v1227 = vpop.permute.xlu0 %1226
          %1232 = vrot.lane.b32.xlu0 %v1162, 64
          %v1233 = vpop.permute.xlu0 %1232
          %1234 = vrot.lane.b32.xlu0 %v1177, 64
          %v1235 = vpop.permute.xlu0 %1234
          %1240 = vrot.lane.b32.xlu0 %v1206, 96
          %v1241 = vpop.permute.xlu0 %1240
          %1242 = vrot.lane.b32.xlu0 %v1221, 96
          %v1243 = vpop.permute.xlu0 %1242
          %v1246 = vsel %vm510, %v1074, %v1225
          %v1247 = vsel %vm510, %v1089, %v1227
          %vm1248 = vcmask 523264
          %v1249 = vsel %vm1248, %v1246, %v1233
          %v1250 = vsel %vm1248, %v1247, %v1235
          %vm1251 = vcmask 785408
          %v1252 = vsel %vm1251, %v1249, %v1241
          %v1253 = vsel %vm1251, %v1250, %v1243
          %v1254 = vpack.c.bf16 %v1252, %v1252
          %v1255 = vpack.c.bf16 %v1253, %v1253
          %1256 = vst [vmem:[%s455] sm:$0xf] %v1254
          %vm1257 = vcmask 1043456
          %vm1258 = vsmask.f32 3328
          %vm1259 = vmand %vm1257, %vm1258
          %v1260 = vld [vmem:[%s455 + $0x4] sm:$0xf]
          %v1261 = vsel %vm1259, %v1255, %v1260
          %1262 = vst [vmem:[%s455 + $0x4] sm:$0xf] %v1261
        $region167: #{_lambda_.23} parent=146 // pred_fallthru
          _
        %s1263 = smul.u32 2, %s21
        %p1264 = scmp.lt.s32.totalorder %s20, 1
        %s1265 = scalar_select %p1264, %s20, 1
        %p1266 = scmp.lt.s32.totalorder %s1263, 1
        %s1267 = scalar_select %p1266, %s1263, 1
        %s1268 = smul.addr %s1265, 2
        %s1269 = sadd.s32 %s1267, %s1268
        %s1270 = smul.addr %s1269, 4
        %s1271 = scalar_lea.vmem %s4, %s1270
        // Predicated region
        $region168: #{_lambda_.23} parent=146 // pred_check
          %p1272 = pneg %p166
        $region169: #{_lambda_.23} parent=146 // pred_check_branch
          %1274 = sbr.rel (%p1272) target = $region171
        $region170: #{_lambda_.23} parent=146 // pred_region
          %s1275 = smul.u32 2, %s21
        $region171: #{_lambda_.23} parent=146 // pred_fallthru
          _
      $region147: #{_lambda_.23} parent=5 // pred_fallthru
        _
      %p1276 = scmp.le.s32.totalorder 2, %s10
      // Predicated region
      $region172: #{_lambda_.23} parent=5 // pred_check
        %p1277 = pneg %p1276
      $region173: #{_lambda_.23} parent=5 // pred_check_branch
        %1279 = sbr.rel (%p1277) target = $region175
      $region174: #{_lambda_.23} parent=5 // pred_region
        %s1280 = ssub.s32 %s10, 2
        // Predicated region
        $region176: #{_lambda_.23} parent=174 // pred_check
          %p1281 = pneg %p172
        $region177: #{_lambda_.23} parent=174 // pred_check_branch
          %1283 = sbr.rel (%p1281) target = $region179
        $region178: #{_lambda_.23} parent=174 // pred_region
          %s1284 = smul.u32 2, %s24
          %p1285 = scmp.lt.s32.totalorder %s23, 1
          %s1286 = scalar_select %p1285, %s23, 1
          %p1287 = scmp.lt.s32.totalorder %s1284, 1
          %s1288 = scalar_select %p1287, %s1284, 1
          %s1289 = smul.addr %s1286, 2
          %s1290 = sadd.s32 %s1288, %s1289
          %s1291 = smul.addr %s1290, 4
          %s1292 = scalar_lea.vmem %s4, %s1291
        $region179: #{_lambda_.23} parent=174 // pred_fallthru
          _
      $region175: #{_lambda_.23} parent=5 // pred_fallthru
        _
    $region6: #{_lambda_.23} parent=1 // loop_footer
      %s14 = sadd.s32 1, %s10
    $region7: #{_lambda_.23} parent=1 // loop_footer_branch
      %9 = sbr.rel target = $region3
    $region8: #{_lambda_.23} parent=1 // loop_exit
      _

// kernel: _lambda_.25
$region0: #{_lambda_.25}
  #allocation0 [shape = 'u32[]', space=smem, size = 0x4, offset = 0x4, fixed_abs, tag = 'smem constant byte address 0x4 - core index']
  #allocation1 [shape = 'u32[72,128]{1,0:T(1,128)}', space=vmem, size = 0x9000, scoped, tag = 'internal scratch']
  %s0 = inlined_call_operand.vmem [shape: bf16[30,128], index: 0, kind: input, shape index: {}]
  %s1 = inlined_call_operand.vmem [shape: bf16[128,256], index: 1, kind: input, shape index: {}]
  %s2 = inlined_call_operand.vmem [shape: f32[1,256], index: 2, kind: input, shape index: {}]
  %s3 = inlined_call_operand.vmem [shape: bf16[256,128], index: 3, kind: input, shape index: {}]
  %s4 = inlined_call_operand.vmem [shape: f32[1,128], index: 4, kind: input, shape index: {}, may-alias: {4,6}]
  %s5 = inlined_call_operand.vmem [shape: f32[1,128], index: 5, kind: input, shape index: {}]
  %s6 = inlined_call_operand.vmem [shape: f32[1,128], index: 6, kind: input, shape index: {}, may-alias: {4,6}]
  %s7 = inlined_call_operand.vmem [shape: bf16[30,128], index: 7, kind: output, shape index: {}]
  %s8 = sld [smem:[#allocation0]]
  $region38: #{_lambda_.25} parent=0
    _
  %s10 = ssub.s32 1, %s8
  %s11 = scalar_select 0, %s10, %s8
  // Predicated region
  $region2: #{_lambda_.25} parent=0 // pred_check
    _
  $region3: #{_lambda_.25} parent=0 // pred_check_branch
    %13 = sbr.rel (0) target = $region5
  $region4: #{_lambda_.25} parent=0 // pred_region
    _
  $region5: #{_lambda_.25} parent=0 // pred_fallthru
    _
  // Predicated region
  $region6: #{_lambda_.25} parent=0 // pred_check
    _
  $region7: #{_lambda_.25} parent=0 // pred_check_branch
    %15 = sbr.rel (0) target = $region9
  $region8: #{_lambda_.25} parent=0 // pred_region
    _
  $region9: #{_lambda_.25} parent=0 // pred_fallthru
    _
  // Predicated region
  $region10: #{_lambda_.25} parent=0 // pred_check
    _
  $region11: #{_lambda_.25} parent=0 // pred_check_branch
    %17 = sbr.rel (0) target = $region13
  $region12: #{_lambda_.25} parent=0 // pred_region
    _
  $region13: #{_lambda_.25} parent=0 // pred_fallthru
    _
  // Predicated region
  $region14: #{_lambda_.25} parent=0 // pred_check
    _
  $region15: #{_lambda_.25} parent=0 // pred_check_branch
    %19 = sbr.rel (0) target = $region17
  $region16: #{_lambda_.25} parent=0 // pred_region
    _
  $region17: #{_lambda_.25} parent=0 // pred_fallthru
    _
  // Predicated region
  $region18: #{_lambda_.25} parent=0 // pred_check
    _
  $region19: #{_lambda_.25} parent=0 // pred_check_branch
    %21 = sbr.rel (0) target = $region21
  $region20: #{_lambda_.25} parent=0 // pred_region
    _
  $region21: #{_lambda_.25} parent=0 // pred_fallthru
    _
  // Predicated region
  $region22: #{_lambda_.25} parent=0 // pred_check
    _
  $region23: #{_lambda_.25} parent=0 // pred_check_branch
    %23 = sbr.rel (0) target = $region25
  $region24: #{_lambda_.25} parent=0 // pred_region
    _
  $region25: #{_lambda_.25} parent=0 // pred_fallthru
    _
  // Predicated region
  $region26: #{_lambda_.25} parent=0 // pred_check
    _
  $region27: #{_lambda_.25} parent=0 // pred_check_branch
    %25 = sbr.rel (0) target = $region29
  $region28: #{_lambda_.25} parent=0 // pred_region
    _
  $region29: #{_lambda_.25} parent=0 // pred_fallthru
    _
  %v26 = vld [vmem:[%s0] sm:$0xf]
  %v27 = vld [vmem:[%s0 + $0x4] sm:$0xf]
  %v28 = vld [vmem:[%s0 + $0x8] sm:$0xf]
  %v29 = vld [vmem:[%s0 + $0xc] sm:$0x7]
  %v30 = vld [vmem:[%s1] sm:$0xff]
  %v31 = vld [vmem:[%s1 + $0x8] sm:$0xff]
  %v32 = vld [vmem:[%s1 + $0x10] sm:$0xff]
  %v33 = vld [vmem:[%s1 + $0x18] sm:$0xff]
  %v34 = vld [vmem:[%s1 + $0x20] sm:$0xff]
  %v35 = vld [vmem:[%s1 + $0x28] sm:$0xff]
  %v36 = vld [vmem:[%s1 + $0x30] sm:$0xff]
  %v37 = vld [vmem:[%s1 + $0x38] sm:$0xff]
  %v38 = vld [vmem:[%s1 + $0x40] sm:$0xff]
  %v39 = vld [vmem:[%s1 + $0x48] sm:$0xff]
  %v40 = vld [vmem:[%s1 + $0x50] sm:$0xff]
  %v41 = vld [vmem:[%s1 + $0x58] sm:$0xff]
  %v42 = vld [vmem:[%s1 + $0x60] sm:$0xff]
  %v43 = vld [vmem:[%s1 + $0x68] sm:$0xff]
  %v44 = vld [vmem:[%s1 + $0x70] sm:$0xff]
  %v45 = vld [vmem:[%s1 + $0x78] sm:$0xff]
  %v46 = vld [vmem:[%s2] sm:$0x3]
  %v48 = vperm.slane %v46, 0
  %v49 = vperm.slane %v46, 1
  %v56 = vunpack.c.l.b16 %v26
  %v57 = vunpack.c.l.b16 %v27
  %v58 = vunpack.c.l.b16 %v28
  %v59 = vunpack.c.l.b16 %v29
  %v60 = vpack.c.b16 %v57, %v56
  %v61 = vpack.c.b16 %v59, %v58
  %v80 = vunpack.c.l.b16 %v30
  %v81 = vunpack.c.h.b16 %v30
  %v82 = vunpack.c.l.b16 %v31
  %v83 = vunpack.c.h.b16 %v31
  %v84 = vunpack.c.l.b16 %v32
  %v85 = vunpack.c.h.b16 %v32
  %v86 = vunpack.c.l.b16 %v33
  %v87 = vunpack.c.h.b16 %v33
  %v88 = vunpack.c.l.b16 %v34
  %v89 = vunpack.c.h.b16 %v34
  %v90 = vunpack.c.l.b16 %v35
  %v91 = vunpack.c.h.b16 %v35
  %v92 = vunpack.c.l.b16 %v36
  %v93 = vunpack.c.h.b16 %v36
  %v94 = vunpack.c.l.b16 %v37
  %v95 = vunpack.c.h.b16 %v37
  %v96 = vunpack.c.l.b16 %v38
  %v97 = vunpack.c.h.b16 %v38
  %v98 = vunpack.c.l.b16 %v39
  %v99 = vunpack.c.h.b16 %v39
  %v100 = vunpack.c.l.b16 %v40
  %v101 = vunpack.c.h.b16 %v40
  %v102 = vunpack.c.l.b16 %v41
  %v103 = vunpack.c.h.b16 %v41
  %v104 = vunpack.c.l.b16 %v42
  %v105 = vunpack.c.h.b16 %v42
  %v106 = vunpack.c.l.b16 %v43
  %v107 = vunpack.c.h.b16 %v43
  %v108 = vunpack.c.l.b16 %v44
  %v109 = vunpack.c.h.b16 %v44
  %v110 = vunpack.c.l.b16 %v45
  %v111 = vunpack.c.h.b16 %v45
  %v112 = vpack.c.b16 %v82, %v80
  %v113 = vpack.c.b16 %v83, %v81
  %v114 = vpack.c.b16 %v86, %v84
  %v115 = vpack.c.b16 %v87, %v85
  %v116 = vpack.c.b16 %v90, %v88
  %v117 = vpack.c.b16 %v91, %v89
  %v118 = vpack.c.b16 %v94, %v92
  %v119 = vpack.c.b16 %v95, %v93
  %v120 = vpack.c.b16 %v98, %v96
  %v121 = vpack.c.b16 %v99, %v97
  %v122 = vpack.c.b16 %v102, %v100
  %v123 = vpack.c.b16 %v103, %v101
  %v124 = vpack.c.b16 %v106, %v104
  %v125 = vpack.c.b16 %v107, %v105
  %v126 = vpack.c.b16 %v110, %v108
  %v127 = vpack.c.b16 %v111, %v109
  %144 = vmatpush.bf16.msra.mxu0 %v126
  %145 = vmatpush.bf16.msra.mxu0 %v124
  %146 = vmatpush.bf16.msra.mxu0 %v122
  %147 = vmatpush.bf16.msra.mxu0 %v120
  %148 = vmatpush.bf16.msra.mxu0 %v118
  %149 = vmatpush.bf16.msra.mxu0 %v116
  %150 = vmatpush.bf16.msra.mxu0 %v114
  %151 = vmatpush.bf16.msra.mxu0 %v112
  %152 = vmatmul.bf16.gmra.mxu0 %v60
  %v153 = vpop.f32.mrf.mxu0
  %v154 = vadd.f32 %v48, %v153
  %v155 = vpop.f32.mrf.mxu0
  %v156 = vadd.f32 %v48, %v155
  %157 = vmatmul.bf16.gmra.mxu0 %v61
  %v158 = vpop.f32.mrf.mxu0
  %v159 = vadd.f32 %v48, %v158
  %v160 = vpop.f32.mrf.mxu0
  %v161 = vadd.f32 %v48, %v160
  %162 = vdwg.mxu0
  %163 = vmatpush.bf16.msra.mxu0 %v127
  %164 = vmatpush.bf16.msra.mxu0 %v125
  %165 = vmatpush.bf16.msra.mxu0 %v123
  %166 = vmatpush.bf16.msra.mxu0 %v121
  %167 = vmatpush.bf16.msra.mxu0 %v119
  %168 = vmatpush.bf16.msra.mxu0 %v117
  %169 = vmatpush.bf16.msra.mxu0 %v115
  %170 = vmatpush.bf16.msra.mxu0 %v113
  %171 = vmatmul.bf16.gmra.mxu0 %v60
  %v172 = vpop.f32.mrf.mxu0
  %v173 = vadd.f32 %v49, %v172
  %v174 = vpop.f32.mrf.mxu0
  %v175 = vadd.f32 %v49, %v174
  %176 = vmatmul.bf16.gmra.mxu0 %v61
  %v177 = vpop.f32.mrf.mxu0
  %v178 = vadd.f32 %v49, %v177
  %v179 = vpop.f32.mrf.mxu0
  %v180 = vadd.f32 %v49, %v179
  %181 = vdwg.mxu0
  %v182 = vmul.f32 %v154, 0.5
  %v183 = vmul.f32 %v173, 0.5
  %v184 = vmul.f32 %v156, 0.5
  %v185 = vmul.f32 %v175, 0.5
  %v186 = vmul.f32 %v159, 0.5
  %v187 = vmul.f32 %v178, 0.5
  %v188 = vmul.f32 %v161, 0.5
  %v189 = vmul.f32 %v180, 0.5
  %v190 = vmul.f32 %v154, 0.044715
  %v191 = vmul.f32 %v173, 0.044715
  %v192 = vmul.f32 %v156, 0.044715
  %v193 = vmul.f32 %v175, 0.044715
  %v194 = vmul.f32 %v159, 0.044715
  %v195 = vmul.f32 %v178, 0.044715
  %v196 = vmul.f32 %v161, 0.044715
  %v197 = vmul.f32 %v180, 0.044715
  %v198 = vmul.f32 %v190, %v154
  %v199 = vmul.f32 %v191, %v173
  %v200 = vmul.f32 %v192, %v156
  %v201 = vmul.f32 %v193, %v175
  %v202 = vmul.f32 %v194, %v159
  %v203 = vmul.f32 %v195, %v178
  %v204 = vmul.f32 %v196, %v161
  %v205 = vmul.f32 %v197, %v180
  %v206 = vmul.f32 %v198, %v154
  %v207 = vmul.f32 %v199, %v173
  %v208 = vmul.f32 %v200, %v156
  %v209 = vmul.f32 %v201, %v175
  %v210 = vmul.f32 %v202, %v159
  %v211 = vmul.f32 %v203, %v178
  %v212 = vmul.f32 %v204, %v161
  %v213 = vmul.f32 %v205, %v180
  %v214 = vadd.f32 %v154, %v206
  %v215 = vadd.f32 %v173, %v207
  %v216 = vadd.f32 %v156, %v208
  %v217 = vadd.f32 %v175, %v209
  %v218 = vadd.f32 %v159, %v210
  %v219 = vadd.f32 %v178, %v211
  %v220 = vadd.f32 %v161, %v212
  %v221 = vadd.f32 %v180, %v213
  %v222 = vmul.f32 %v214, 0.7978846
  %v223 = vmul.f32 %v215, 0.7978846
  %v224 = vmul.f32 %v216, 0.7978846
  %v225 = vmul.f32 %v217, 0.7978846
  %v226 = vmul.f32 %v218, 0.7978846
  %v227 = vmul.f32 %v219, 0.7978846
  %v228 = vmul.f32 %v220, 0.7978846
  %v229 = vmul.f32 %v221, 0.7978846
  %v230 = vtanh.pop %v222
  %v231 = vtanh.pop %v223
  %v232 = vtanh.pop %v224
  %v233 = vtanh.pop %v225
  %v234 = vtanh.pop %v226
  %v235 = vtanh.pop %v227
  %v236 = vtanh.pop %v228
  %v237 = vtanh.pop %v229
  %v238 = vadd.f32 %v230, 1.0
  %v239 = vadd.f32 %v231, 1.0
  %v240 = vadd.f32 %v232, 1.0
  %v241 = vadd.f32 %v233, 1.0
  %v242 = vadd.f32 %v234, 1.0
  %v243 = vadd.f32 %v235, 1.0
  %v244 = vadd.f32 %v236, 1.0
  %v245 = vadd.f32 %v237, 1.0
  %v246 = vmul.f32 %v182, %v238
  %v247 = vmul.f32 %v183, %v239
  %v248 = vmul.f32 %v184, %v240
  %v249 = vmul.f32 %v185, %v241
  %v250 = vmul.f32 %v186, %v242
  %v251 = vmul.f32 %v187, %v243
  %v252 = vmul.f32 %v188, %v244
  %v253 = vmul.f32 %v189, %v245
  %v254 = vpack.c.bf16 %v248, %v246
  %v255 = vpack.c.bf16 %v249, %v247
  %v256 = vpack.c.bf16 %v252, %v250
  %v257 = vpack.c.bf16 %v253, %v251
  %v258 = vld [vmem:[%s3] sm:$0xf]
  %v259 = vld [vmem:[%s3 + $0x4] sm:$0xf]
  %v260 = vld [vmem:[%s3 + $0x8] sm:$0xf]
  %v261 = vld [vmem:[%s3 + $0xc] sm:$0xf]
  %v262 = vld [vmem:[%s3 + $0x10] sm:$0xf]
  %v263 = vld [vmem:[%s3 + $0x14] sm:$0xf]
  %v264 = vld [vmem:[%s3 + $0x18] sm:$0xf]
  %v265 = vld [vmem:[%s3 + $0x1c] sm:$0xf]
  %v266 = vld [vmem:[%s3 + $0x20] sm:$0xf]
  %v267 = vld [vmem:[%s3 + $0x24] sm:$0xf]
  %v268 = vld [vmem:[%s3 + $0x28] sm:$0xf]
  %v269 = vld [vmem:[%s3 + $0x2c] sm:$0xf]
  %v270 = vld [vmem:[%s3 + $0x30] sm:$0xf]
  %v271 = vld [vmem:[%s3 + $0x34] sm:$0xf]
  %v272 = vld [vmem:[%s3 + $0x38] sm:$0xf]
  %v273 = vld [vmem:[%s3 + $0x3c] sm:$0xf]
  %v274 = vld [vmem:[%s3 + $0x40] sm:$0xf]
  %v275 = vld [vmem:[%s3 + $0x44] sm:$0xf]
  %v276 = vld [vmem:[%s3 + $0x48] sm:$0xf]
  %v277 = vld [vmem:[%s3 + $0x4c] sm:$0xf]
  %v278 = vld [vmem:[%s3 + $0x50] sm:$0xf]
  %v279 = vld [vmem:[%s3 + $0x54] sm:$0xf]
  %v280 = vld [vmem:[%s3 + $0x58] sm:$0xf]
  %v281 = vld [vmem:[%s3 + $0x5c] sm:$0xf]
  %v282 = vld [vmem:[%s3 + $0x60] sm:$0xf]
  %v283 = vld [vmem:[%s3 + $0x64] sm:$0xf]
  %v284 = vld [vmem:[%s3 + $0x68] sm:$0xf]
  %v285 = vld [vmem:[%s3 + $0x6c] sm:$0xf]
  %v286 = vld [vmem:[%s3 + $0x70] sm:$0xf]
  %v287 = vld [vmem:[%s3 + $0x74] sm:$0xf]
  %v288 = vld [vmem:[%s3 + $0x78] sm:$0xf]
  %v289 = vld [vmem:[%s3 + $0x7c] sm:$0xf]
  %v290 = vld [vmem:[%s4] sm:$0x1]
  %v292 = vperm.slane %v290, 0
  %v326 = vunpack.c.l.b16 %v258
  %v327 = vunpack.c.l.b16 %v259
  %v328 = vunpack.c.l.b16 %v260
  %v329 = vunpack.c.l.b16 %v261
  %v330 = vunpack.c.l.b16 %v262
  %v331 = vunpack.c.l.b16 %v263
  %v332 = vunpack.c.l.b16 %v264
  %v333 = vunpack.c.l.b16 %v265
  %v334 = vunpack.c.l.b16 %v266
  %v335 = vunpack.c.l.b16 %v267
  %v336 = vunpack.c.l.b16 %v268
  %v337 = vunpack.c.l.b16 %v269
  %v338 = vunpack.c.l.b16 %v270
  %v339 = vunpack.c.l.b16 %v271
  %v340 = vunpack.c.l.b16 %v272
  %v341 = vunpack.c.l.b16 %v273
  %v342 = vunpack.c.l.b16 %v274
  %v343 = vunpack.c.l.b16 %v275
  %v344 = vunpack.c.l.b16 %v276
  %v345 = vunpack.c.l.b16 %v277
  %v346 = vunpack.c.l.b16 %v278
  %v347 = vunpack.c.l.b16 %v279
  %v348 = vunpack.c.l.b16 %v280
  %v349 = vunpack.c.l.b16 %v281
  %v350 = vunpack.c.l.b16 %v282
  %v351 = vunpack.c.l.b16 %v283
  %v352 = vunpack.c.l.b16 %v284
  %v353 = vunpack.c.l.b16 %v285
  %v354 = vunpack.c.l.b16 %v286
  %v355 = vunpack.c.l.b16 %v287
  %v356 = vunpack.c.l.b16 %v288
  %v357 = vunpack.c.l.b16 %v289
  %v358 = vpack.c.b16 %v327, %v326
  %v359 = vpack.c.b16 %v329, %v328
  %v360 = vpack.c.b16 %v331, %v330
  %v361 = vpack.c.b16 %v333, %v332
  %v362 = vpack.c.b16 %v335, %v334
  %v363 = vpack.c.b16 %v337, %v336
  %v364 = vpack.c.b16 %v339, %v338
  %v365 = vpack.c.b16 %v341, %v340
  %v366 = vpack.c.b16 %v343, %v342
  %v367 = vpack.c.b16 %v345, %v344
  %v368 = vpack.c.b16 %v347, %v346
  %v369 = vpack.c.b16 %v349, %v348
  %v370 = vpack.c.b16 %v351, %v350
  %v371 = vpack.c.b16 %v353, %v352
  %v372 = vpack.c.b16 %v355, %v354
  %v373 = vpack.c.b16 %v357, %v356
  %390 = vmatpush.bf16.msra.mxu0 %v365
  %391 = vmatpush.bf16.msra.mxu0 %v364
  %392 = vmatpush.bf16.msra.mxu0 %v363
  %393 = vmatpush.bf16.msra.mxu0 %v362
  %394 = vmatpush.bf16.msra.mxu0 %v361
  %395 = vmatpush.bf16.msra.mxu0 %v360
  %396 = vmatpush.bf16.msra.mxu0 %v359
  %397 = vmatpush.bf16.msra.mxu0 %v358
  %398 = vmatmul.bf16.gmra.mxu0 %v254
  %v399 = vpop.f32.mrf.mxu0
  %v400 = vadd.f32 %v292, %v399
  %v401 = vpop.f32.mrf.mxu0
  %v402 = vadd.f32 %v292, %v401
  %403 = vmatmul.bf16.gmra.mxu0 %v256
  %v404 = vpop.f32.mrf.mxu0
  %v405 = vadd.f32 %v292, %v404
  %v406 = vpop.f32.mrf.mxu0
  %v407 = vadd.f32 %v292, %v406
  %408 = vdwg.mxu0
  %409 = vmatpush.bf16.msra.mxu0 %v373
  %410 = vmatpush.bf16.msra.mxu0 %v372
  %411 = vmatpush.bf16.msra.mxu0 %v371
  %412 = vmatpush.bf16.msra.mxu0 %v370
  %413 = vmatpush.bf16.msra.mxu0 %v369
  %414 = vmatpush.bf16.msra.mxu0 %v368
  %415 = vmatpush.bf16.msra.mxu0 %v367
  %416 = vmatpush.bf16.msra.mxu0 %v366
  %417 = vmatmul.bf16.gmra.mxu0 %v255
  %v418 = vpop.f32.mrf.mxu0
  %v419 = vadd.f32 %v400, %v418
  %v420 = vpop.f32.mrf.mxu0
  %v421 = vadd.f32 %v402, %v420
  %422 = vmatmul.bf16.gmra.mxu0 %v257
  %v423 = vpop.f32.mrf.mxu0
  %v424 = vadd.f32 %v405, %v423
  %v425 = vpop.f32.mrf.mxu0
  %v426 = vadd.f32 %v407, %v425
  %427 = vdwg.mxu0
  %v428 = vunpack.c.l.bf16 %v26
  %v429 = vunpack.c.l.bf16 %v27
  %v430 = vunpack.c.l.bf16 %v28
  %v431 = vunpack.c.l.bf16 %v29
  %v432 = vadd.f32 %v419, %v428
  %v433 = vadd.f32 %v421, %v429
  %v434 = vadd.f32 %v424, %v430
  %v435 = vadd.f32 %v426, %v431
  %v436 = vld [vmem:[%s5] sm:$0x1]
  %v437 = vld [vmem:[%s6] sm:$0x1]
  %438 = vadd.xlane.f32.xlu0 %v432
  %v439 = vpop.xlane.xlu0 %438
  %440 = vadd.xlane.f32.xlu0 %v433
  %v441 = vpop.xlane.xlu0 %440
  %442 = vadd.xlane.f32.xlu0 %v434
  %v443 = vpop.xlane.xlu0 %442
  %vm444 = vcmask 1045504
  %v445 = vsel %vm444, %v435, 0.0
  %446 = vadd.xlane.f32.xlu0 %v445
  %v447 = vpop.xlane.xlu0 %446
  %v448 = vrcp.pop 128.0
  %v449 = vmul.f32 128.0, %v448
  %v450 = vsub.f32 1.0, %v449
  %v451 = vmul.f32 %v448, %v450
  %v452 = vadd.f32 %v448, %v451
  %vm453 = vweird.f32 %v448
  %v454 = vsel %vm453, %v448, %v452
  %v455 = vmul.f32 %v439, %v454
  %v456 = vmul.f32 %v441, %v454
  %v457 = vmul.f32 %v443, %v454
  %v458 = vmul.f32 %v447, %v454
  %v459 = vsub.f32 %v432, %v455
  %v460 = vsub.f32 %v433, %v456
  %v461 = vsub.f32 %v434, %v457
  %v462 = vsub.f32 %v435, %v458
  %v463 = vmul.f32 %v459, %v459
  %v464 = vmul.f32 %v460, %v460
  %v465 = vmul.f32 %v461, %v461
  %v466 = vmul.f32 %v462, %v462
  %467 = vadd.xlane.f32.xlu0 %v463
  %v468 = vpop.xlane.xlu0 %467
  %469 = vadd.xlane.f32.xlu0 %v464
  %v470 = vpop.xlane.xlu0 %469
  %471 = vadd.xlane.f32.xlu0 %v465
  %v472 = vpop.xlane.xlu0 %471
  %v473 = vsel %vm444, %v466, 0.0
  %474 = vadd.xlane.f32.xlu0 %v473
  %v475 = vpop.xlane.xlu0 %474
  %v476 = vmul.f32 %v468, %v454
  %v477 = vmul.f32 %v470, %v454
  %v478 = vmul.f32 %v472, %v454
  %v479 = vmul.f32 %v475, %v454
  %v480 = vadd.f32 %v476, 1e-05
  %v481 = vadd.f32 %v477, 1e-05
  %v482 = vadd.f32 %v478, 1e-05
  %v483 = vadd.f32 %v479, 1e-05
  %v484 = vrsqrt.pop %v480
  %v485 = vmul.f32 %v484, %v480
  %v486 = vmul.f32 %v485, %v484
  %v487 = vmul.f32 0.5, %v486
  %v488 = vsub.f32 1.5, %v487
  %v489 = vmul.f32 %v484, %v488
  %vm490 = vweird.f32 %v480
  %vm491 = vweird.f32 %v484
  %vm492 = vmor %vm490, %vm491
  %v493 = vsel %vm492, %v484, %v489
  %v494 = vrsqrt.pop %v481
  %v495 = vmul.f32 %v494, %v481
  %v496 = vmul.f32 %v495, %v494
  %v497 = vmul.f32 0.5, %v496
  %v498 = vsub.f32 1.5, %v497
  %v499 = vmul.f32 %v494, %v498
  %vm500 = vweird.f32 %v481
  %vm501 = vweird.f32 %v494
  %vm502 = vmor %vm500, %vm501
  %v503 = vsel %vm502, %v494, %v499
  %v504 = vrsqrt.pop %v482
  %v505 = vmul.f32 %v504, %v482
  %v506 = vmul.f32 %v505, %v504
  %v507 = vmul.f32 0.5, %v506
  %v508 = vsub.f32 1.5, %v507
  %v509 = vmul.f32 %v504, %v508
  %vm510 = vweird.f32 %v482
  %vm511 = vweird.f32 %v504
  %vm512 = vmor %vm510, %vm511
  %v513 = vsel %vm512, %v504, %v509
  %v514 = vrsqrt.pop %v483
  %v515 = vmul.f32 %v514, %v483
  %v516 = vmul.f32 %v515, %v514
  %v517 = vmul.f32 0.5, %v516
  %v518 = vsub.f32 1.5, %v517
  %v519 = vmul.f32 %v514, %v518
  %vm520 = vweird.f32 %v483
  %vm521 = vweird.f32 %v514
  %vm522 = vmor %vm520, %vm521
  %v523 = vsel %vm522, %v514, %v519
  %v524 = vmul.f32 %v459, %v493
  %v525 = vmul.f32 %v460, %v503
  %v526 = vmul.f32 %v461, %v513
  %v527 = vmul.f32 %v462, %v523
  %v529 = vperm.slane %v436, 0
  %v531 = vmul.f32 %v524, %v529
  %v532 = vmul.f32 %v525, %v529
  %v533 = vmul.f32 %v526, %v529
  %v534 = vmul.f32 %v527, %v529
  %v536 = vperm.slane %v437, 0
  %v538 = vadd.f32 %v531, %v536
  %v539 = vadd.f32 %v532, %v536
  %v540 = vadd.f32 %v533, %v536
  %v541 = vadd.f32 %v534, %v536
  %v542 = vpack.c.bf16 %v538, %v538
  %v543 = vpack.c.bf16 %v539, %v539
  %v544 = vpack.c.bf16 %v540, %v540
  %v545 = vpack.c.bf16 %v541, %v541
  %546 = vst [vmem:[%s7] sm:$0xf] %v542
  %547 = vst [vmem:[%s7 + $0x4] sm:$0xf] %v543
  %548 = vst [vmem:[%s7 + $0x8] sm:$0xf] %v544
  %549 = vst [vmem:[%s7 + $0xc] sm:$0x7] %v545
  // Predicated region
  $region30: #{_lambda_.25} parent=0 // pred_check
    _
  $region31: #{_lambda_.25} parent=0 // pred_check_branch
    %551 = sbr.rel (0) target = $region33
  $region32: #{_lambda_.25} parent=0 // pred_region
    _
  $region33: #{_lambda_.25} parent=0 // pred_fallthru
    _
  // Predicated region
  $region34: #{_lambda_.25} parent=0 // pred_check
    _
  $region35: #{_lambda_.25} parent=0 // pred_check_branch
    %553 = sbr.rel (0) target = $region37
  $region36: #{_lambda_.25} parent=0 // pred_region
    _
  $region37: #{_lambda_.25} parent=0 // pred_fallthru
    _

</llo_original>
